<compile_context>
chip_gen: v7x
topology: tpu7x:2x2x1
jax: 0.10.0
libtpu: 0.0.40
codegen_flags: <defaults>
</compile_context>

<pallas_src>
import functools

import jax
import jax.numpy as jnp
from jax.experimental import pallas as pl
from jax.experimental.pallas import tpu as pltpu


def _pfn_concat_kernel(x_ref, w_ref, shift_ref, o_ref, *, pts):
    """last_layer=False path: write [x, max_p(x)] concatenated on channels."""
    rows, _ = x_ref.shape                 # rows = tile_n * pts
    cout = w_ref.shape[1]
    tn = rows // pts

    # Linear on the MXU; BN scale is pre-folded into w_ref columns.
    y = jnp.dot(x_ref[...], w_ref[...], preferred_element_type=jnp.float32)
    y = jnp.maximum(y + shift_ref[...], 0.0)          # BN shift + ReLU

    y3 = y.reshape(tn, pts, cout)                     # leading-dim split (free)
    y_max = jnp.max(y3, axis=1, keepdims=True)        # per-pillar max
    y_rep = jnp.broadcast_to(y_max, (tn, pts, cout))
    o_ref[...] = jnp.concatenate([y3, y_rep], axis=-1).astype(o_ref.dtype)


def _pfn_max_kernel(x_ref, w_ref, shift_ref, o_ref, *, pts):
    """last_layer=True path: write only the per-pillar max, shape (tn, C_out)."""
    rows, _ = x_ref.shape
    cout = w_ref.shape[1]
    tn = rows // pts

    y = jnp.dot(x_ref[...], w_ref[...], preferred_element_type=jnp.float32)
    y = jnp.maximum(y + shift_ref[...], 0.0)
    o_ref[...] = jnp.max(y.reshape(tn, pts, cout), axis=1).astype(o_ref.dtype)


def pfn_layer(inputs, weight, bn_gamma, bn_beta, bn_mean, bn_var,
              *, eps=1e-3, last_layer=False, tile_n=256):
    """inputs: (N, P, C_in); weight: (C_in, C_out) (pre-transposed vs torch's
    (out, in)); BN params: (C_out,).  Returns (N, P, 2*C_out) or (N, 1, C_out).

    tile_n guidance: <=256 on v7x (64 MiB VMEM/TC); 512-1024 on v6e and
    256-512 on v5e are fine with the raised vmem_limit_bytes below.
    """
    # TODO(synk): training-mode BatchNorm batch statistics are not reproduced;
    # only the inference/running-stats form is folded (matches eval parity).
    N, P, C_in = inputs.shape
    C_out = weight.shape[1]
    out_dtype = inputs.dtype
    itemsize = jnp.dtype(out_dtype).itemsize

    # Fold BN into the bias-free linear:
    #   BN(x @ W) = x @ (W * s) + (beta - mean * s),  s = gamma / rsqrt-less form
    scale = bn_gamma.astype(jnp.float32) / jnp.sqrt(bn_var.astype(jnp.float32) + eps)
    w_folded = weight.astype(jnp.float32) * scale[None, :]
    shift = (bn_beta.astype(jnp.float32)
             - bn_mean.astype(jnp.float32) * scale).reshape(1, C_out)

    # Tile over pillars; sublane-align and handle ragged N with padding.
    tile_n = max(8, min(int(tile_n), ((N + 7) // 8) * 8))
    tile_n = ((tile_n + 7) // 8) * 8
    n_pad = pl.cdiv(N, tile_n) * tile_n
    if n_pad != N:
        inputs = jnp.pad(inputs, ((0, n_pad - N), (0, 0), (0, 0)))

    # Flatten pillars x points wrapper-side (free, contiguous reshape).
    x2 = inputs.reshape(n_pad * P, C_in)
    grid = (n_pad // tile_n,)

    in_specs = [
        pl.BlockSpec((tile_n * P, C_in), lambda i: (i, 0)),
        pl.BlockSpec((C_in, C_out), lambda i: (0, 0)),
        pl.BlockSpec((1, C_out), lambda i: (0, 0)),
    ]

    if last_layer:
        kernel = functools.partial(_pfn_max_kernel, pts=P)
        out_shape = jax.ShapeDtypeStruct((n_pad, C_out), out_dtype)
        out_specs = pl.BlockSpec((tile_n, C_out), lambda i: (i, 0))
        out_bytes = n_pad * C_out * itemsize
    else:
        kernel = functools.partial(_pfn_concat_kernel, pts=P)
        out_shape = jax.ShapeDtypeStruct((n_pad, P, 2 * C_out), out_dtype)
        out_specs = pl.BlockSpec((tile_n, P, 2 * C_out), lambda i: (i, 0, 0))
        out_bytes = n_pad * P * 2 * C_out * itemsize

    cost = pl.CostEstimate(
        flops=2 * n_pad * P * C_in * C_out,
        transcendentals=0,
        bytes_accessed=(n_pad * P * C_in * itemsize
                        + C_in * C_out * 4 + C_out * 4
                        + out_bytes),
    )

    out = pl.pallas_call(
        kernel,
        out_shape=out_shape,
        grid_spec=pltpu.PrefetchScalarGridSpec(
            num_scalar_prefetch=0,
            grid=grid,
            in_specs=in_specs,
            out_specs=out_specs,
        ),
        compiler_params=pltpu.CompilerParams(
            dimension_semantics=("parallel",),
            vmem_limit_bytes=64 * 1024 * 1024,
        ),
        cost_estimate=cost,
    )(x2, w_folded, shift)

    if last_layer:
        return out[:N].reshape(N, 1, C_out)
    return out[:N]


def _reference(inputs, weight, bn_gamma, bn_beta, bn_mean, bn_var,
               *, eps=1e-3, last_layer=False):
    x = jnp.einsum("npc,cd->npd", inputs, weight)
    x = (x - bn_mean) / jnp.sqrt(bn_var + eps) * bn_gamma + bn_beta
    x = jax.nn.relu(x)
    x_max = jnp.max(x, axis=1, keepdims=True)
    if last_layer:
        return x_max
    x_rep = jnp.broadcast_to(x_max, x.shape)
    return jnp.concatenate([x, x_rep], axis=2)


if __name__ == "__main__":
    # Small shapes consistent with the module:
    #   N pillars = 120 (deliberately ragged), P = 32 points/pillar,
    #   in_channels = 10, out_channels = 64 -> linear maps 10 -> 32
    #   (out_channels // 2, since last_layer=False).
    N, P, C_in, out_channels = 120, 32, 10, 64
    C_out = out_channels // 2

    key = jax.random.PRNGKey(0)
    k_in, k_w, k_g, k_b, k_m, k_v = jax.random.split(key, 6)

    inputs = jax.random.normal(k_in, (N, P, C_in), dtype=jnp.float32)
    # torch Linear weight is (out, in); we keep it pre-transposed as (in, out).
    weight = jax.random.normal(k_w, (C_in, C_out), dtype=jnp.float32) * 0.1
    bn_gamma = 1.0 + 0.1 * jax.random.normal(k_g, (C_out,), dtype=jnp.float32)
    bn_beta = 0.1 * jax.random.normal(k_b, (C_out,), dtype=jnp.float32)
    bn_mean = 0.05 * jax.random.normal(k_m, (C_out,), dtype=jnp.float32)
    bn_var = 1.0 + 0.1 * jax.random.uniform(k_v, (C_out,), dtype=jnp.float32)

    out = pfn_layer(inputs, weight, bn_gamma, bn_beta, bn_mean, bn_var,
                    last_layer=False, tile_n=256)
    out = jax.block_until_ready(out)

    ref = _reference(inputs, weight, bn_gamma, bn_beta, bn_mean, bn_var,
                     last_layer=False)
    assert out.shape == (N, P, out_channels), out.shape
    assert jnp.allclose(out, ref, atol=1e-4, rtol=1e-4)

    # last_layer=True path (returns (N, 1, C_out) max-pooled features).
    out_last = pfn_layer(inputs, weight, bn_gamma, bn_beta, bn_mean, bn_var,
                         last_layer=True, tile_n=256)
    out_last = jax.block_until_ready(out_last)
    ref_last = _reference(inputs, weight, bn_gamma, bn_beta, bn_mean, bn_var,
                          last_layer=True)
    assert out_last.shape == (N, 1, C_out)
    assert jnp.allclose(out_last, ref_last, atol=1e-4, rtol=1e-4)

    print("KERNEL_OK")
</pallas_src>

<mosaic_0001>
module attributes {stable_mosaic.version = 11 : i64} {
  func.func @_pfn_concat_kernel(%arg0: i32, %arg1: memref<3840x10xf32, #tpu.memory_space<vmem>>, %arg2: memref<10x32xf32, #tpu.memory_space<vmem>>, %arg3: memref<1x32xf32, #tpu.memory_space<vmem>>, %arg4: memref<120x32x64xf32, #tpu.memory_space<vmem>>) attributes {dimension_semantics = [#tpu.dimension_semantics<parallel>], iteration_bounds = array<i64: 1>, scalar_prefetch = 0 : i64, scratch_operands = 0 : i64, tpu.core_type = #tpu.core_type<tc>, window_params = [{transform_indices = @transform_0, window_bounds = array<i64: 3840, 10>}, {pipeline_mode = #tpu.pipeline_mode<synchronous>, transform_indices = @transform_1, window_bounds = array<i64: 10, 32>}, {pipeline_mode = #tpu.pipeline_mode<synchronous>, transform_indices = @transform_2, window_bounds = array<i64: 1, 32>}, {transform_indices = @transform_3, window_bounds = array<i64: 120, 32, 64>}]} {
    %c0 = arith.constant 0 : index
    %c0_0 = arith.constant 0 : index
    %0 = vector.load %arg1[%c0, %c0_0] : memref<3840x10xf32, #tpu.memory_space<vmem>>, vector<3840x10xf32>
    %c0_1 = arith.constant 0 : index
    %c0_2 = arith.constant 0 : index
    %1 = vector.load %arg2[%c0_1, %c0_2] : memref<10x32xf32, #tpu.memory_space<vmem>>, vector<10x32xf32>
    %cst = arith.constant dense<0.000000e+00> : vector<3840x32xf32>
    %2 = tpu.matmul %0, %1, %cst {dimension_numbers = #tpu.dot_dimension_numbers<[1], [0], [0], [1], [0, 0, 1, 1], [], []>} : vector<3840x10xf32>, vector<10x32xf32>, vector<3840x32xf32> -> vector<3840x32xf32>
    %c0_3 = arith.constant 0 : index
    %c0_4 = arith.constant 0 : index
    %3 = vector.load %arg3[%c0_3, %c0_4] : memref<1x32xf32, #tpu.memory_space<vmem>>, vector<1x32xf32>
    %4 = vector.broadcast %3 : vector<1x32xf32> to vector<3840x32xf32>
    %5 = arith.addf %2, %4 : vector<3840x32xf32>
    %cst_5 = arith.constant 0.000000e+00 : f32
    %6 = vector.broadcast %cst_5 : f32 to vector<3840x32xf32>
    %7 = arith.maximumf %5, %6 : vector<3840x32xf32>
    %8 = vector.shape_cast %7 : vector<3840x32xf32> to vector<120x32x32xf32>
    %cst_6 = arith.constant dense<0xFF800000> : vector<120x32xf32>
    %9 = vector.multi_reduction <maximumf>, %8, %cst_6 [1] : vector<120x32x32xf32> to vector<120x32xf32>
    %10 = vector.shape_cast %9 : vector<120x32xf32> to vector<120x1x32xf32>
    %11 = vector.shape_cast %10 : vector<120x1x32xf32> to vector<120x1x32xf32>
    %12 = vector.broadcast %11 : vector<120x1x32xf32> to vector<120x32x32xf32>
    %13 = tpu.concatenate %8, %12 in 2 : vector<120x32x32xf32>, vector<120x32x32xf32> -> vector<120x32x64xf32>
    %c0_7 = arith.constant 0 : index
    %c0_8 = arith.constant 0 : index
    %c0_9 = arith.constant 0 : index
    %14 = vector.load %arg4[%c0_7, %c0_8, %c0_9] : memref<120x32x64xf32, #tpu.memory_space<vmem>>, vector<120x32x64xf32>
    tpu.vector_store %arg4[%c0_7, %c0_8, %c0_9], %13 {strides = array<i32>} : memref<120x32x64xf32, #tpu.memory_space<vmem>>, vector<120x32x64xf32>,
    return
  }
  func.func @transform_0(%arg0: i32) -> (i32, i32) {
    %c0_i32 = arith.constant 0 : i32
    %c0_i32_0 = arith.constant 0 : i32
    return %arg0, %c0_i32 : i32, i32
  }
  func.func @transform_1(%arg0: i32) -> (i32, i32) {
    %c0_i32 = arith.constant 0 : i32
    %c0_i32_0 = arith.constant 0 : i32
    %c0_i32_1 = arith.constant 0 : i32
    return %c0_i32, %c0_i32_0 : i32, i32
  }
  func.func @transform_2(%arg0: i32) -> (i32, i32) {
    %c0_i32 = arith.constant 0 : i32
    %c0_i32_0 = arith.constant 0 : i32
    %c0_i32_1 = arith.constant 0 : i32
    return %c0_i32, %c0_i32_0 : i32, i32
  }
  func.func @transform_3(%arg0: i32) -> (i32, i32, i32) {
    %c0_i32 = arith.constant 0 : i32
    %c0_i32_0 = arith.constant 0 : i32
    %c0_i32_1 = arith.constant 0 : i32
    return %arg0, %c0_i32, %c0_i32_0 : i32, i32, i32
  }
}

</mosaic_0001>

<llo_original>
// kernel: tpu_custom_call.1
$region0: #{tpu_custom_call.1}
  #allocation0 [shape = 'u32[]', space=smem, size = 0x4, offset = 0x4, fixed_abs, tag = 'smem constant byte address 0x4 - core index']
  #allocation1 [shape = 'u32[144,128]{1,0:T(1,128)}', space=vmem, size = 0x12000, scoped, tag = 'internal scratch']
  %s0 = inlined_call_operand.hbm [shape: f32[3840,10], index: 0, kind: input, shape index: {}]
  %s1 = inlined_call_operand.hbm [shape: f32[10,32], index: 1, kind: input, shape index: {}]
  %s2 = inlined_call_operand.hbm [shape: f32[1,32], index: 2, kind: input, shape index: {}]
  %s3 = inlined_call_operand.hbm [shape: f32[120,32,64], index: 3, kind: output, shape index: {}]
  %s4 = sld [smem:[#allocation0]]
  $region34: #{tpu_custom_call.1} parent=0
    _
  %s6 = ssub.s32 1, %s4
  %s7 = scalar_select 0, %s6, %s4
  $region1: #{tpu_custom_call.1} parent=0
    #allocation2 [shape = 'u8[1966080]{0}', space=vmem, size = 0x1e0000, scoped, tag = 'input window, operand 0, single buffered']
    #allocation3 [shape = 's32[1]{0}', space=sflag, size = 0x4, scoped, tag = 'scoped memory for tpu_custom_call.1']
    #allocation4 [shape = 's32[1]{0}', space=sflag, size = 0x4, scoped, tag = 'scoped memory for tpu_custom_call.1']
    #allocation5 [shape = 'u8[8192]{0}', space=vmem, size = 0x2000, scoped, tag = 'input window, operand 1, single buffered']
    #allocation6 [shape = 's32[1]{0}', space=sflag, size = 0x4, scoped, tag = 'scoped memory for tpu_custom_call.1']
    #allocation7 [shape = 'u8[512]{0}', space=vmem, size = 0x400, scoped, tag = 'input window, operand 2, single buffered']
    #allocation8 [shape = 'u8[1966080]{0}', space=vmem, size = 0x1e0000, scoped, tag = 'output window, operand 0, single buffered']
    %8 = vsyncpa [#allocation3], 0
    %9 = vsyncpa [#allocation6], 0
    %10 = vsyncpa [#allocation4], 0
    // Predicated region
    $region2: #{tpu_custom_call.1} parent=1 // pred_check
      _
    $region3: #{tpu_custom_call.1} parent=1 // pred_check_branch
      %12 = sbr.rel (0) target = $region5
    $region4: #{tpu_custom_call.1} parent=1 // pred_region
      %s14 = ssub.s32 61440, 61440
      %15 = vsyncadd [#allocation3], %s14
      %s16 = sshll.u32 [#allocation2], 4
      %s17 = int_to_ptr.vmem [resolvable:$true] %s16
      %22 = dma.hbm_to_vmem [thread:$0]  %s0, 61440, %s17, [#allocation3], 128, 128, 8
    $region5: #{tpu_custom_call.1} parent=1 // pred_fallthru
      _
    // Predicated region
    $region6: #{tpu_custom_call.1} parent=1 // pred_check
      _
    $region7: #{tpu_custom_call.1} parent=1 // pred_check_branch
      %24 = sbr.rel (0) target = $region9
    $region8: #{tpu_custom_call.1} parent=1 // pred_region
      %s26 = ssub.s32 256, 256
      %27 = vsyncadd [#allocation6], %s26
      %s28 = sshll.u32 [#allocation5], 4
      %s29 = int_to_ptr.vmem [resolvable:$true] %s28
      %34 = dma.hbm_to_vmem [thread:$0]  %s1, 256, %s29, [#allocation6], 128, 128, 8
    $region9: #{tpu_custom_call.1} parent=1 // pred_fallthru
      _
    // Predicated region
    $region10: #{tpu_custom_call.1} parent=1 // pred_check
      _
    $region11: #{tpu_custom_call.1} parent=1 // pred_check_branch
      %36 = sbr.rel (0) target = $region13
    $region12: #{tpu_custom_call.1} parent=1 // pred_region
      %s38 = ssub.s32 16, 16
      %39 = vsyncadd [#allocation6], %s38
      %s41 = sshll.u32 [#allocation7], 4
      %s42 = int_to_ptr.vmem [resolvable:$true] %s41
      %44 = dma.hbm_to_vmem [thread:$0]  %s2, 16, %s42, [#allocation6]
    $region13: #{tpu_custom_call.1} parent=1 // pred_fallthru
      _
    // Predicated region
    $region14: #{tpu_custom_call.1} parent=1 // pred_check
      _
    $region15: #{tpu_custom_call.1} parent=1 // pred_check_branch
      %46 = sbr.rel (0) target = $region17
    $region16: #{tpu_custom_call.1} parent=1 // pred_region
      %47 = dma.done [#allocation3], 61440
    $region17: #{tpu_custom_call.1} parent=1 // pred_fallthru
      _
    // Predicated region
    $region18: #{tpu_custom_call.1} parent=1 // pred_check
      _
    $region19: #{tpu_custom_call.1} parent=1 // pred_check_branch
      %49 = sbr.rel (0) target = $region21
    $region20: #{tpu_custom_call.1} parent=1 // pred_region
      %50 = dma.done [#allocation6], 256
    $region21: #{tpu_custom_call.1} parent=1 // pred_fallthru
      _
    // Predicated region
    $region22: #{tpu_custom_call.1} parent=1 // pred_check
      _
    $region23: #{tpu_custom_call.1} parent=1 // pred_check_branch
      %52 = sbr.rel (0) target = $region25
    $region24: #{tpu_custom_call.1} parent=1 // pred_region
      %53 = dma.done [#allocation6], 16
    $region25: #{tpu_custom_call.1} parent=1 // pred_fallthru
      _
    %v54 = vld [vmem:[#allocation2] sm:$0xff]
    %v55 = vld [vmem:[#allocation2 + $0x8] sm:$0xff]
    %v56 = vld [vmem:[#allocation2 + $0x10] sm:$0xff]
    %v57 = vld [vmem:[#allocation2 + $0x18] sm:$0xff]
    %v58 = vld [vmem:[#allocation2 + $0x20] sm:$0xff]
    %v59 = vld [vmem:[#allocation2 + $0x28] sm:$0xff]
    %v60 = vld [vmem:[#allocation2 + $0x30] sm:$0xff]
    %v61 = vld [vmem:[#allocation2 + $0x38] sm:$0xff]
    %v62 = vld [vmem:[#allocation2 + $0x40] sm:$0xff]
    %v63 = vld [vmem:[#allocation2 + $0x48] sm:$0xff]
    %v64 = vld [vmem:[#allocation2 + $0x50] sm:$0xff]
    %v65 = vld [vmem:[#allocation2 + $0x58] sm:$0xff]
    %v66 = vld [vmem:[#allocation2 + $0x60] sm:$0xff]
    %v67 = vld [vmem:[#allocation2 + $0x68] sm:$0xff]
    %v68 = vld [vmem:[#allocation2 + $0x70] sm:$0xff]
    %v69 = vld [vmem:[#allocation2 + $0x78] sm:$0xff]
    %v70 = vld [vmem:[#allocation2 + $0x80] sm:$0xff]
    %v71 = vld [vmem:[#allocation2 + $0x88] sm:$0xff]
    %v72 = vld [vmem:[#allocation2 + $0x90] sm:$0xff]
    %v73 = vld [vmem:[#allocation2 + $0x98] sm:$0xff]
    %v74 = vld [vmem:[#allocation2 + $0xa0] sm:$0xff]
    %v75 = vld [vmem:[#allocation2 + $0xa8] sm:$0xff]
    %v76 = vld [vmem:[#allocation2 + $0xb0] sm:$0xff]
    %v77 = vld [vmem:[#allocation2 + $0xb8] sm:$0xff]
    %v78 = vld [vmem:[#allocation2 + $0xc0] sm:$0xff]
    %v79 = vld [vmem:[#allocation2 + $0xc8] sm:$0xff]
    %v80 = vld [vmem:[#allocation2 + $0xd0] sm:$0xff]
    %v81 = vld [vmem:[#allocation2 + $0xd8] sm:$0xff]
    %v82 = vld [vmem:[#allocation2 + $0xe0] sm:$0xff]
    %v83 = vld [vmem:[#allocation2 + $0xe8] sm:$0xff]
    %v84 = vld [vmem:[#allocation2 + $0xf0] sm:$0xff]
    %v85 = vld [vmem:[#allocation2 + $0xf8] sm:$0xff]
    %v86 = vld [vmem:[#allocation2 + $0x100] sm:$0xff]
    %v87 = vld [vmem:[#allocation2 + $0x108] sm:$0xff]
    %v88 = vld [vmem:[#allocation2 + $0x110] sm:$0xff]
    %v89 = vld [vmem:[#allocation2 + $0x118] sm:$0xff]
    %v90 = vld [vmem:[#allocation2 + $0x120] sm:$0xff]
    %v91 = vld [vmem:[#allocation2 + $0x128] sm:$0xff]
    %v92 = vld [vmem:[#allocation2 + $0x130] sm:$0xff]
    %v93 = vld [vmem:[#allocation2 + $0x138] sm:$0xff]
    %v94 = vld [vmem:[#allocation2 + $0x140] sm:$0xff]
    %v95 = vld [vmem:[#allocation2 + $0x148] sm:$0xff]
    %v96 = vld [vmem:[#allocation2 + $0x150] sm:$0xff]
    %v97 = vld [vmem:[#allocation2 + $0x158] sm:$0xff]
    %v98 = vld [vmem:[#allocation2 + $0x160] sm:$0xff]
    %v99 = vld [vmem:[#allocation2 + $0x168] sm:$0xff]
    %v100 = vld [vmem:[#allocation2 + $0x170] sm:$0xff]
    %v101 = vld [vmem:[#allocation2 + $0x178] sm:$0xff]
    %v102 = vld [vmem:[#allocation2 + $0x180] sm:$0xff]
    %v103 = vld [vmem:[#allocation2 + $0x188] sm:$0xff]
    %v104 = vld [vmem:[#allocation2 + $0x190] sm:$0xff]
    %v105 = vld [vmem:[#allocation2 + $0x198] sm:$0xff]
    %v106 = vld [vmem:[#allocation2 + $0x1a0] sm:$0xff]
    %v107 = vld [vmem:[#allocation2 + $0x1a8] sm:$0xff]
    %v108 = vld [vmem:[#allocation2 + $0x1b0] sm:$0xff]
    %v109 = vld [vmem:[#allocation2 + $0x1b8] sm:$0xff]
    %v110 = vld [vmem:[#allocation2 + $0x1c0] sm:$0xff]
    %v111 = vld [vmem:[#allocation2 + $0x1c8] sm:$0xff]
    %v112 = vld [vmem:[#allocation2 + $0x1d0] sm:$0xff]
    %v113 = vld [vmem:[#allocation2 + $0x1d8] sm:$0xff]
    %v114 = vld [vmem:[#allocation2 + $0x1e0] sm:$0xff]
    %v115 = vld [vmem:[#allocation2 + $0x1e8] sm:$0xff]
    %v116 = vld [vmem:[#allocation2 + $0x1f0] sm:$0xff]
    %v117 = vld [vmem:[#allocation2 + $0x1f8] sm:$0xff]
    %v118 = vld [vmem:[#allocation2 + $0x200] sm:$0xff]
    %v119 = vld [vmem:[#allocation2 + $0x208] sm:$0xff]
    %v120 = vld [vmem:[#allocation2 + $0x210] sm:$0xff]
    %v121 = vld [vmem:[#allocation2 + $0x218] sm:$0xff]
    %v122 = vld [vmem:[#allocation2 + $0x220] sm:$0xff]
    %v123 = vld [vmem:[#allocation2 + $0x228] sm:$0xff]
    %v124 = vld [vmem:[#allocation2 + $0x230] sm:$0xff]
    %v125 = vld [vmem:[#allocation2 + $0x238] sm:$0xff]
    %v126 = vld [vmem:[#allocation2 + $0x240] sm:$0xff]
    %v127 = vld [vmem:[#allocation2 + $0x248] sm:$0xff]
    %v128 = vld [vmem:[#allocation2 + $0x250] sm:$0xff]
    %v129 = vld [vmem:[#allocation2 + $0x258] sm:$0xff]
    %v130 = vld [vmem:[#allocation2 + $0x260] sm:$0xff]
    %v131 = vld [vmem:[#allocation2 + $0x268] sm:$0xff]
    %v132 = vld [vmem:[#allocation2 + $0x270] sm:$0xff]
    %v133 = vld [vmem:[#allocation2 + $0x278] sm:$0xff]
    %v134 = vld [vmem:[#allocation2 + $0x280] sm:$0xff]
    %v135 = vld [vmem:[#allocation2 + $0x288] sm:$0xff]
    %v136 = vld [vmem:[#allocation2 + $0x290] sm:$0xff]
    %v137 = vld [vmem:[#allocation2 + $0x298] sm:$0xff]
    %v138 = vld [vmem:[#allocation2 + $0x2a0] sm:$0xff]
    %v139 = vld [vmem:[#allocation2 + $0x2a8] sm:$0xff]
    %v140 = vld [vmem:[#allocation2 + $0x2b0] sm:$0xff]
    %v141 = vld [vmem:[#allocation2 + $0x2b8] sm:$0xff]
    %v142 = vld [vmem:[#allocation2 + $0x2c0] sm:$0xff]
    %v143 = vld [vmem:[#allocation2 + $0x2c8] sm:$0xff]
    %v144 = vld [vmem:[#allocation2 + $0x2d0] sm:$0xff]
    %v145 = vld [vmem:[#allocation2 + $0x2d8] sm:$0xff]
    %v146 = vld [vmem:[#allocation2 + $0x2e0] sm:$0xff]
    %v147 = vld [vmem:[#allocation2 + $0x2e8] sm:$0xff]
    %v148 = vld [vmem:[#allocation2 + $0x2f0] sm:$0xff]
    %v149 = vld [vmem:[#allocation2 + $0x2f8] sm:$0xff]
    %v150 = vld [vmem:[#allocation2 + $0x300] sm:$0xff]
    %v151 = vld [vmem:[#allocation2 + $0x308] sm:$0xff]
    %v152 = vld [vmem:[#allocation2 + $0x310] sm:$0xff]
    %v153 = vld [vmem:[#allocation2 + $0x318] sm:$0xff]
    %v154 = vld [vmem:[#allocation2 + $0x320] sm:$0xff]
    %v155 = vld [vmem:[#allocation2 + $0x328] sm:$0xff]
    %v156 = vld [vmem:[#allocation2 + $0x330] sm:$0xff]
    %v157 = vld [vmem:[#allocation2 + $0x338] sm:$0xff]
    %v158 = vld [vmem:[#allocation2 + $0x340] sm:$0xff]
    %v159 = vld [vmem:[#allocation2 + $0x348] sm:$0xff]
    %v160 = vld [vmem:[#allocation2 + $0x350] sm:$0xff]
    %v161 = vld [vmem:[#allocation2 + $0x358] sm:$0xff]
    %v162 = vld [vmem:[#allocation2 + $0x360] sm:$0xff]
    %v163 = vld [vmem:[#allocation2 + $0x368] sm:$0xff]
    %v164 = vld [vmem:[#allocation2 + $0x370] sm:$0xff]
    %v165 = vld [vmem:[#allocation2 + $0x378] sm:$0xff]
    %v166 = vld [vmem:[#allocation2 + $0x380] sm:$0xff]
    %v167 = vld [vmem:[#allocation2 + $0x388] sm:$0xff]
    %v168 = vld [vmem:[#allocation2 + $0x390] sm:$0xff]
    %v169 = vld [vmem:[#allocation2 + $0x398] sm:$0xff]
    %v170 = vld [vmem:[#allocation2 + $0x3a0] sm:$0xff]
    %v171 = vld [vmem:[#allocation2 + $0x3a8] sm:$0xff]
    %v172 = vld [vmem:[#allocation2 + $0x3b0] sm:$0xff]
    %v173 = vld [vmem:[#allocation2 + $0x3b8] sm:$0xff]
    %v174 = vld [vmem:[#allocation2 + $0x3c0] sm:$0xff]
    %v175 = vld [vmem:[#allocation2 + $0x3c8] sm:$0xff]
    %v176 = vld [vmem:[#allocation2 + $0x3d0] sm:$0xff]
    %v177 = vld [vmem:[#allocation2 + $0x3d8] sm:$0xff]
    %v178 = vld [vmem:[#allocation2 + $0x3e0] sm:$0xff]
    %v179 = vld [vmem:[#allocation2 + $0x3e8] sm:$0xff]
    %v180 = vld [vmem:[#allocation2 + $0x3f0] sm:$0xff]
    %v181 = vld [vmem:[#allocation2 + $0x3f8] sm:$0xff]
    %v182 = vld [vmem:[#allocation2 + $0x400] sm:$0xff]
    %v183 = vld [vmem:[#allocation2 + $0x408] sm:$0xff]
    %v184 = vld [vmem:[#allocation2 + $0x410] sm:$0xff]
    %v185 = vld [vmem:[#allocation2 + $0x418] sm:$0xff]
    %v186 = vld [vmem:[#allocation2 + $0x420] sm:$0xff]
    %v187 = vld [vmem:[#allocation2 + $0x428] sm:$0xff]
    %v188 = vld [vmem:[#allocation2 + $0x430] sm:$0xff]
    %v189 = vld [vmem:[#allocation2 + $0x438] sm:$0xff]
    %v190 = vld [vmem:[#allocation2 + $0x440] sm:$0xff]
    %v191 = vld [vmem:[#allocation2 + $0x448] sm:$0xff]
    %v192 = vld [vmem:[#allocation2 + $0x450] sm:$0xff]
    %v193 = vld [vmem:[#allocation2 + $0x458] sm:$0xff]
    %v194 = vld [vmem:[#allocation2 + $0x460] sm:$0xff]
    %v195 = vld [vmem:[#allocation2 + $0x468] sm:$0xff]
    %v196 = vld [vmem:[#allocation2 + $0x470] sm:$0xff]
    %v197 = vld [vmem:[#allocation2 + $0x478] sm:$0xff]
    %v198 = vld [vmem:[#allocation2 + $0x480] sm:$0xff]
    %v199 = vld [vmem:[#allocation2 + $0x488] sm:$0xff]
    %v200 = vld [vmem:[#allocation2 + $0x490] sm:$0xff]
    %v201 = vld [vmem:[#allocation2 + $0x498] sm:$0xff]
    %v202 = vld [vmem:[#allocation2 + $0x4a0] sm:$0xff]
    %v203 = vld [vmem:[#allocation2 + $0x4a8] sm:$0xff]
    %v204 = vld [vmem:[#allocation2 + $0x4b0] sm:$0xff]
    %v205 = vld [vmem:[#allocation2 + $0x4b8] sm:$0xff]
    %v206 = vld [vmem:[#allocation2 + $0x4c0] sm:$0xff]
    %v207 = vld [vmem:[#allocation2 + $0x4c8] sm:$0xff]
    %v208 = vld [vmem:[#allocation2 + $0x4d0] sm:$0xff]
    %v209 = vld [vmem:[#allocation2 + $0x4d8] sm:$0xff]
    %v210 = vld [vmem:[#allocation2 + $0x4e0] sm:$0xff]
    %v211 = vld [vmem:[#allocation2 + $0x4e8] sm:$0xff]
    %v212 = vld [vmem:[#allocation2 + $0x4f0] sm:$0xff]
    %v213 = vld [vmem:[#allocation2 + $0x4f8] sm:$0xff]
    %v214 = vld [vmem:[#allocation2 + $0x500] sm:$0xff]
    %v215 = vld [vmem:[#allocation2 + $0x508] sm:$0xff]
    %v216 = vld [vmem:[#allocation2 + $0x510] sm:$0xff]
    %v217 = vld [vmem:[#allocation2 + $0x518] sm:$0xff]
    %v218 = vld [vmem:[#allocation2 + $0x520] sm:$0xff]
    %v219 = vld [vmem:[#allocation2 + $0x528] sm:$0xff]
    %v220 = vld [vmem:[#allocation2 + $0x530] sm:$0xff]
    %v221 = vld [vmem:[#allocation2 + $0x538] sm:$0xff]
    %v222 = vld [vmem:[#allocation2 + $0x540] sm:$0xff]
    %v223 = vld [vmem:[#allocation2 + $0x548] sm:$0xff]
    %v224 = vld [vmem:[#allocation2 + $0x550] sm:$0xff]
    %v225 = vld [vmem:[#allocation2 + $0x558] sm:$0xff]
    %v226 = vld [vmem:[#allocation2 + $0x560] sm:$0xff]
    %v227 = vld [vmem:[#allocation2 + $0x568] sm:$0xff]
    %v228 = vld [vmem:[#allocation2 + $0x570] sm:$0xff]
    %v229 = vld [vmem:[#allocation2 + $0x578] sm:$0xff]
    %v230 = vld [vmem:[#allocation2 + $0x580] sm:$0xff]
    %v231 = vld [vmem:[#allocation2 + $0x588] sm:$0xff]
    %v232 = vld [vmem:[#allocation2 + $0x590] sm:$0xff]
    %v233 = vld [vmem:[#allocation2 + $0x598] sm:$0xff]
    %v234 = vld [vmem:[#allocation2 + $0x5a0] sm:$0xff]
    %v235 = vld [vmem:[#allocation2 + $0x5a8] sm:$0xff]
    %v236 = vld [vmem:[#allocation2 + $0x5b0] sm:$0xff]
    %v237 = vld [vmem:[#allocation2 + $0x5b8] sm:$0xff]
    %v238 = vld [vmem:[#allocation2 + $0x5c0] sm:$0xff]
    %v239 = vld [vmem:[#allocation2 + $0x5c8] sm:$0xff]
    %v240 = vld [vmem:[#allocation2 + $0x5d0] sm:$0xff]
    %v241 = vld [vmem:[#allocation2 + $0x5d8] sm:$0xff]
    %v242 = vld [vmem:[#allocation2 + $0x5e0] sm:$0xff]
    %v243 = vld [vmem:[#allocation2 + $0x5e8] sm:$0xff]
    %v244 = vld [vmem:[#allocation2 + $0x5f0] sm:$0xff]
    %v245 = vld [vmem:[#allocation2 + $0x5f8] sm:$0xff]
    %v246 = vld [vmem:[#allocation2 + $0x600] sm:$0xff]
    %v247 = vld [vmem:[#allocation2 + $0x608] sm:$0xff]
    %v248 = vld [vmem:[#allocation2 + $0x610] sm:$0xff]
    %v249 = vld [vmem:[#allocation2 + $0x618] sm:$0xff]
    %v250 = vld [vmem:[#allocation2 + $0x620] sm:$0xff]
    %v251 = vld [vmem:[#allocation2 + $0x628] sm:$0xff]
    %v252 = vld [vmem:[#allocation2 + $0x630] sm:$0xff]
    %v253 = vld [vmem:[#allocation2 + $0x638] sm:$0xff]
    %v254 = vld [vmem:[#allocation2 + $0x640] sm:$0xff]
    %v255 = vld [vmem:[#allocation2 + $0x648] sm:$0xff]
    %v256 = vld [vmem:[#allocation2 + $0x650] sm:$0xff]
    %v257 = vld [vmem:[#allocation2 + $0x658] sm:$0xff]
    %v258 = vld [vmem:[#allocation2 + $0x660] sm:$0xff]
    %v259 = vld [vmem:[#allocation2 + $0x668] sm:$0xff]
    %v260 = vld [vmem:[#allocation2 + $0x670] sm:$0xff]
    %v261 = vld [vmem:[#allocation2 + $0x678] sm:$0xff]
    %v262 = vld [vmem:[#allocation2 + $0x680] sm:$0xff]
    %v263 = vld [vmem:[#allocation2 + $0x688] sm:$0xff]
    %v264 = vld [vmem:[#allocation2 + $0x690] sm:$0xff]
    %v265 = vld [vmem:[#allocation2 + $0x698] sm:$0xff]
    %v266 = vld [vmem:[#allocation2 + $0x6a0] sm:$0xff]
    %v267 = vld [vmem:[#allocation2 + $0x6a8] sm:$0xff]
    %v268 = vld [vmem:[#allocation2 + $0x6b0] sm:$0xff]
    %v269 = vld [vmem:[#allocation2 + $0x6b8] sm:$0xff]
    %v270 = vld [vmem:[#allocation2 + $0x6c0] sm:$0xff]
    %v271 = vld [vmem:[#allocation2 + $0x6c8] sm:$0xff]
    %v272 = vld [vmem:[#allocation2 + $0x6d0] sm:$0xff]
    %v273 = vld [vmem:[#allocation2 + $0x6d8] sm:$0xff]
    %v274 = vld [vmem:[#allocation2 + $0x6e0] sm:$0xff]
    %v275 = vld [vmem:[#allocation2 + $0x6e8] sm:$0xff]
    %v276 = vld [vmem:[#allocation2 + $0x6f0] sm:$0xff]
    %v277 = vld [vmem:[#allocation2 + $0x6f8] sm:$0xff]
    %v278 = vld [vmem:[#allocation2 + $0x700] sm:$0xff]
    %v279 = vld [vmem:[#allocation2 + $0x708] sm:$0xff]
    %v280 = vld [vmem:[#allocation2 + $0x710] sm:$0xff]
    %v281 = vld [vmem:[#allocation2 + $0x718] sm:$0xff]
    %v282 = vld [vmem:[#allocation2 + $0x720] sm:$0xff]
    %v283 = vld [vmem:[#allocation2 + $0x728] sm:$0xff]
    %v284 = vld [vmem:[#allocation2 + $0x730] sm:$0xff]
    %v285 = vld [vmem:[#allocation2 + $0x738] sm:$0xff]
    %v286 = vld [vmem:[#allocation2 + $0x740] sm:$0xff]
    %v287 = vld [vmem:[#allocation2 + $0x748] sm:$0xff]
    %v288 = vld [vmem:[#allocation2 + $0x750] sm:$0xff]
    %v289 = vld [vmem:[#allocation2 + $0x758] sm:$0xff]
    %v290 = vld [vmem:[#allocation2 + $0x760] sm:$0xff]
    %v291 = vld [vmem:[#allocation2 + $0x768] sm:$0xff]
    %v292 = vld [vmem:[#allocation2 + $0x770] sm:$0xff]
    %v293 = vld [vmem:[#allocation2 + $0x778] sm:$0xff]
    %v294 = vld [vmem:[#allocation2 + $0x780] sm:$0xff]
    %v295 = vld [vmem:[#allocation2 + $0x788] sm:$0xff]
    %v296 = vld [vmem:[#allocation2 + $0x790] sm:$0xff]
    %v297 = vld [vmem:[#allocation2 + $0x798] sm:$0xff]
    %v298 = vld [vmem:[#allocation2 + $0x7a0] sm:$0xff]
    %v299 = vld [vmem:[#allocation2 + $0x7a8] sm:$0xff]
    %v300 = vld [vmem:[#allocation2 + $0x7b0] sm:$0xff]
    %v301 = vld [vmem:[#allocation2 + $0x7b8] sm:$0xff]
    %v302 = vld [vmem:[#allocation2 + $0x7c0] sm:$0xff]
    %v303 = vld [vmem:[#allocation2 + $0x7c8] sm:$0xff]
    %v304 = vld [vmem:[#allocation2 + $0x7d0] sm:$0xff]
    %v305 = vld [vmem:[#allocation2 + $0x7d8] sm:$0xff]
    %v306 = vld [vmem:[#allocation2 + $0x7e0] sm:$0xff]
    %v307 = vld [vmem:[#allocation2 + $0x7e8] sm:$0xff]
    %v308 = vld [vmem:[#allocation2 + $0x7f0] sm:$0xff]
    %v309 = vld [vmem:[#allocation2 + $0x7f8] sm:$0xff]
    %v310 = vld [vmem:[#allocation2 + $0x800] sm:$0xff]
    %v311 = vld [vmem:[#allocation2 + $0x808] sm:$0xff]
    %v312 = vld [vmem:[#allocation2 + $0x810] sm:$0xff]
    %v313 = vld [vmem:[#allocation2 + $0x818] sm:$0xff]
    %v314 = vld [vmem:[#allocation2 + $0x820] sm:$0xff]
    %v315 = vld [vmem:[#allocation2 + $0x828] sm:$0xff]
    %v316 = vld [vmem:[#allocation2 + $0x830] sm:$0xff]
    %v317 = vld [vmem:[#allocation2 + $0x838] sm:$0xff]
    %v318 = vld [vmem:[#allocation2 + $0x840] sm:$0xff]
    %v319 = vld [vmem:[#allocation2 + $0x848] sm:$0xff]
    %v320 = vld [vmem:[#allocation2 + $0x850] sm:$0xff]
    %v321 = vld [vmem:[#allocation2 + $0x858] sm:$0xff]
    %v322 = vld [vmem:[#allocation2 + $0x860] sm:$0xff]
    %v323 = vld [vmem:[#allocation2 + $0x868] sm:$0xff]
    %v324 = vld [vmem:[#allocation2 + $0x870] sm:$0xff]
    %v325 = vld [vmem:[#allocation2 + $0x878] sm:$0xff]
    %v326 = vld [vmem:[#allocation2 + $0x880] sm:$0xff]
    %v327 = vld [vmem:[#allocation2 + $0x888] sm:$0xff]
    %v328 = vld [vmem:[#allocation2 + $0x890] sm:$0xff]
    %v329 = vld [vmem:[#allocation2 + $0x898] sm:$0xff]
    %v330 = vld [vmem:[#allocation2 + $0x8a0] sm:$0xff]
    %v331 = vld [vmem:[#allocation2 + $0x8a8] sm:$0xff]
    %v332 = vld [vmem:[#allocation2 + $0x8b0] sm:$0xff]
    %v333 = vld [vmem:[#allocation2 + $0x8b8] sm:$0xff]
    %v334 = vld [vmem:[#allocation2 + $0x8c0] sm:$0xff]
    %v335 = vld [vmem:[#allocation2 + $0x8c8] sm:$0xff]
    %v336 = vld [vmem:[#allocation2 + $0x8d0] sm:$0xff]
    %v337 = vld [vmem:[#allocation2 + $0x8d8] sm:$0xff]
    %v338 = vld [vmem:[#allocation2 + $0x8e0] sm:$0xff]
    %v339 = vld [vmem:[#allocation2 + $0x8e8] sm:$0xff]
    %v340 = vld [vmem:[#allocation2 + $0x8f0] sm:$0xff]
    %v341 = vld [vmem:[#allocation2 + $0x8f8] sm:$0xff]
    %v342 = vld [vmem:[#allocation2 + $0x900] sm:$0xff]
    %v343 = vld [vmem:[#allocation2 + $0x908] sm:$0xff]
    %v344 = vld [vmem:[#allocation2 + $0x910] sm:$0xff]
    %v345 = vld [vmem:[#allocation2 + $0x918] sm:$0xff]
    %v346 = vld [vmem:[#allocation2 + $0x920] sm:$0xff]
    %v347 = vld [vmem:[#allocation2 + $0x928] sm:$0xff]
    %v348 = vld [vmem:[#allocation2 + $0x930] sm:$0xff]
    %v349 = vld [vmem:[#allocation2 + $0x938] sm:$0xff]
    %v350 = vld [vmem:[#allocation2 + $0x940] sm:$0xff]
    %v351 = vld [vmem:[#allocation2 + $0x948] sm:$0xff]
    %v352 = vld [vmem:[#allocation2 + $0x950] sm:$0xff]
    %v353 = vld [vmem:[#allocation2 + $0x958] sm:$0xff]
    %v354 = vld [vmem:[#allocation2 + $0x960] sm:$0xff]
    %v355 = vld [vmem:[#allocation2 + $0x968] sm:$0xff]
    %v356 = vld [vmem:[#allocation2 + $0x970] sm:$0xff]
    %v357 = vld [vmem:[#allocation2 + $0x978] sm:$0xff]
    %v358 = vld [vmem:[#allocation2 + $0x980] sm:$0xff]
    %v359 = vld [vmem:[#allocation2 + $0x988] sm:$0xff]
    %v360 = vld [vmem:[#allocation2 + $0x990] sm:$0xff]
    %v361 = vld [vmem:[#allocation2 + $0x998] sm:$0xff]
    %v362 = vld [vmem:[#allocation2 + $0x9a0] sm:$0xff]
    %v363 = vld [vmem:[#allocation2 + $0x9a8] sm:$0xff]
    %v364 = vld [vmem:[#allocation2 + $0x9b0] sm:$0xff]
    %v365 = vld [vmem:[#allocation2 + $0x9b8] sm:$0xff]
    %v366 = vld [vmem:[#allocation2 + $0x9c0] sm:$0xff]
    %v367 = vld [vmem:[#allocation2 + $0x9c8] sm:$0xff]
    %v368 = vld [vmem:[#allocation2 + $0x9d0] sm:$0xff]
    %v369 = vld [vmem:[#allocation2 + $0x9d8] sm:$0xff]
    %v370 = vld [vmem:[#allocation2 + $0x9e0] sm:$0xff]
    %v371 = vld [vmem:[#allocation2 + $0x9e8] sm:$0xff]
    %v372 = vld [vmem:[#allocation2 + $0x9f0] sm:$0xff]
    %v373 = vld [vmem:[#allocation2 + $0x9f8] sm:$0xff]
    %v374 = vld [vmem:[#allocation2 + $0xa00] sm:$0xff]
    %v375 = vld [vmem:[#allocation2 + $0xa08] sm:$0xff]
    %v376 = vld [vmem:[#allocation2 + $0xa10] sm:$0xff]
    %v377 = vld [vmem:[#allocation2 + $0xa18] sm:$0xff]
    %v378 = vld [vmem:[#allocation2 + $0xa20] sm:$0xff]
    %v379 = vld [vmem:[#allocation2 + $0xa28] sm:$0xff]
    %v380 = vld [vmem:[#allocation2 + $0xa30] sm:$0xff]
    %v381 = vld [vmem:[#allocation2 + $0xa38] sm:$0xff]
    %v382 = vld [vmem:[#allocation2 + $0xa40] sm:$0xff]
    %v383 = vld [vmem:[#allocation2 + $0xa48] sm:$0xff]
    %v384 = vld [vmem:[#allocation2 + $0xa50] sm:$0xff]
    %v385 = vld [vmem:[#allocation2 + $0xa58] sm:$0xff]
    %v386 = vld [vmem:[#allocation2 + $0xa60] sm:$0xff]
    %v387 = vld [vmem:[#allocation2 + $0xa68] sm:$0xff]
    %v388 = vld [vmem:[#allocation2 + $0xa70] sm:$0xff]
    %v389 = vld [vmem:[#allocation2 + $0xa78] sm:$0xff]
    %v390 = vld [vmem:[#allocation2 + $0xa80] sm:$0xff]
    %v391 = vld [vmem:[#allocation2 + $0xa88] sm:$0xff]
    %v392 = vld [vmem:[#allocation2 + $0xa90] sm:$0xff]
    %v393 = vld [vmem:[#allocation2 + $0xa98] sm:$0xff]
    %v394 = vld [vmem:[#allocation2 + $0xaa0] sm:$0xff]
    %v395 = vld [vmem:[#allocation2 + $0xaa8] sm:$0xff]
    %v396 = vld [vmem:[#allocation2 + $0xab0] sm:$0xff]
    %v397 = vld [vmem:[#allocation2 + $0xab8] sm:$0xff]
    %v398 = vld [vmem:[#allocation2 + $0xac0] sm:$0xff]
    %v399 = vld [vmem:[#allocation2 + $0xac8] sm:$0xff]
    %v400 = vld [vmem:[#allocation2 + $0xad0] sm:$0xff]
    %v401 = vld [vmem:[#allocation2 + $0xad8] sm:$0xff]
    %v402 = vld [vmem:[#allocation2 + $0xae0] sm:$0xff]
    %v403 = vld [vmem:[#allocation2 + $0xae8] sm:$0xff]
    %v404 = vld [vmem:[#allocation2 + $0xaf0] sm:$0xff]
    %v405 = vld [vmem:[#allocation2 + $0xaf8] sm:$0xff]
    %v406 = vld [vmem:[#allocation2 + $0xb00] sm:$0xff]
    %v407 = vld [vmem:[#allocation2 + $0xb08] sm:$0xff]
    %v408 = vld [vmem:[#allocation2 + $0xb10] sm:$0xff]
    %v409 = vld [vmem:[#allocation2 + $0xb18] sm:$0xff]
    %v410 = vld [vmem:[#allocation2 + $0xb20] sm:$0xff]
    %v411 = vld [vmem:[#allocation2 + $0xb28] sm:$0xff]
    %v412 = vld [vmem:[#allocation2 + $0xb30] sm:$0xff]
    %v413 = vld [vmem:[#allocation2 + $0xb38] sm:$0xff]
    %v414 = vld [vmem:[#allocation2 + $0xb40] sm:$0xff]
    %v415 = vld [vmem:[#allocation2 + $0xb48] sm:$0xff]
    %v416 = vld [vmem:[#allocation2 + $0xb50] sm:$0xff]
    %v417 = vld [vmem:[#allocation2 + $0xb58] sm:$0xff]
    %v418 = vld [vmem:[#allocation2 + $0xb60] sm:$0xff]
    %v419 = vld [vmem:[#allocation2 + $0xb68] sm:$0xff]
    %v420 = vld [vmem:[#allocation2 + $0xb70] sm:$0xff]
    %v421 = vld [vmem:[#allocation2 + $0xb78] sm:$0xff]
    %v422 = vld [vmem:[#allocation2 + $0xb80] sm:$0xff]
    %v423 = vld [vmem:[#allocation2 + $0xb88] sm:$0xff]
    %v424 = vld [vmem:[#allocation2 + $0xb90] sm:$0xff]
    %v425 = vld [vmem:[#allocation2 + $0xb98] sm:$0xff]
    %v426 = vld [vmem:[#allocation2 + $0xba0] sm:$0xff]
    %v427 = vld [vmem:[#allocation2 + $0xba8] sm:$0xff]
    %v428 = vld [vmem:[#allocation2 + $0xbb0] sm:$0xff]
    %v429 = vld [vmem:[#allocation2 + $0xbb8] sm:$0xff]
    %v430 = vld [vmem:[#allocation2 + $0xbc0] sm:$0xff]
    %v431 = vld [vmem:[#allocation2 + $0xbc8] sm:$0xff]
    %v432 = vld [vmem:[#allocation2 + $0xbd0] sm:$0xff]
    %v433 = vld [vmem:[#allocation2 + $0xbd8] sm:$0xff]
    %v434 = vld [vmem:[#allocation2 + $0xbe0] sm:$0xff]
    %v435 = vld [vmem:[#allocation2 + $0xbe8] sm:$0xff]
    %v436 = vld [vmem:[#allocation2 + $0xbf0] sm:$0xff]
    %v437 = vld [vmem:[#allocation2 + $0xbf8] sm:$0xff]
    %v438 = vld [vmem:[#allocation2 + $0xc00] sm:$0xff]
    %v439 = vld [vmem:[#allocation2 + $0xc08] sm:$0xff]
    %v440 = vld [vmem:[#allocation2 + $0xc10] sm:$0xff]
    %v441 = vld [vmem:[#allocation2 + $0xc18] sm:$0xff]
    %v442 = vld [vmem:[#allocation2 + $0xc20] sm:$0xff]
    %v443 = vld [vmem:[#allocation2 + $0xc28] sm:$0xff]
    %v444 = vld [vmem:[#allocation2 + $0xc30] sm:$0xff]
    %v445 = vld [vmem:[#allocation2 + $0xc38] sm:$0xff]
    %v446 = vld [vmem:[#allocation2 + $0xc40] sm:$0xff]
    %v447 = vld [vmem:[#allocation2 + $0xc48] sm:$0xff]
    %v448 = vld [vmem:[#allocation2 + $0xc50] sm:$0xff]
    %v449 = vld [vmem:[#allocation2 + $0xc58] sm:$0xff]
    %v450 = vld [vmem:[#allocation2 + $0xc60] sm:$0xff]
    %v451 = vld [vmem:[#allocation2 + $0xc68] sm:$0xff]
    %v452 = vld [vmem:[#allocation2 + $0xc70] sm:$0xff]
    %v453 = vld [vmem:[#allocation2 + $0xc78] sm:$0xff]
    %v454 = vld [vmem:[#allocation2 + $0xc80] sm:$0xff]
    %v455 = vld [vmem:[#allocation2 + $0xc88] sm:$0xff]
    %v456 = vld [vmem:[#allocation2 + $0xc90] sm:$0xff]
    %v457 = vld [vmem:[#allocation2 + $0xc98] sm:$0xff]
    %v458 = vld [vmem:[#allocation2 + $0xca0] sm:$0xff]
    %v459 = vld [vmem:[#allocation2 + $0xca8] sm:$0xff]
    %v460 = vld [vmem:[#allocation2 + $0xcb0] sm:$0xff]
    %v461 = vld [vmem:[#allocation2 + $0xcb8] sm:$0xff]
    %v462 = vld [vmem:[#allocation2 + $0xcc0] sm:$0xff]
    %v463 = vld [vmem:[#allocation2 + $0xcc8] sm:$0xff]
    %v464 = vld [vmem:[#allocation2 + $0xcd0] sm:$0xff]
    %v465 = vld [vmem:[#allocation2 + $0xcd8] sm:$0xff]
    %v466 = vld [vmem:[#allocation2 + $0xce0] sm:$0xff]
    %v467 = vld [vmem:[#allocation2 + $0xce8] sm:$0xff]
    %v468 = vld [vmem:[#allocation2 + $0xcf0] sm:$0xff]
    %v469 = vld [vmem:[#allocation2 + $0xcf8] sm:$0xff]
    %v470 = vld [vmem:[#allocation2 + $0xd00] sm:$0xff]
    %v471 = vld [vmem:[#allocation2 + $0xd08] sm:$0xff]
    %v472 = vld [vmem:[#allocation2 + $0xd10] sm:$0xff]
    %v473 = vld [vmem:[#allocation2 + $0xd18] sm:$0xff]
    %v474 = vld [vmem:[#allocation2 + $0xd20] sm:$0xff]
    %v475 = vld [vmem:[#allocation2 + $0xd28] sm:$0xff]
    %v476 = vld [vmem:[#allocation2 + $0xd30] sm:$0xff]
    %v477 = vld [vmem:[#allocation2 + $0xd38] sm:$0xff]
    %v478 = vld [vmem:[#allocation2 + $0xd40] sm:$0xff]
    %v479 = vld [vmem:[#allocation2 + $0xd48] sm:$0xff]
    %v480 = vld [vmem:[#allocation2 + $0xd50] sm:$0xff]
    %v481 = vld [vmem:[#allocation2 + $0xd58] sm:$0xff]
    %v482 = vld [vmem:[#allocation2 + $0xd60] sm:$0xff]
    %v483 = vld [vmem:[#allocation2 + $0xd68] sm:$0xff]
    %v484 = vld [vmem:[#allocation2 + $0xd70] sm:$0xff]
    %v485 = vld [vmem:[#allocation2 + $0xd78] sm:$0xff]
    %v486 = vld [vmem:[#allocation2 + $0xd80] sm:$0xff]
    %v487 = vld [vmem:[#allocation2 + $0xd88] sm:$0xff]
    %v488 = vld [vmem:[#allocation2 + $0xd90] sm:$0xff]
    %v489 = vld [vmem:[#allocation2 + $0xd98] sm:$0xff]
    %v490 = vld [vmem:[#allocation2 + $0xda0] sm:$0xff]
    %v491 = vld [vmem:[#allocation2 + $0xda8] sm:$0xff]
    %v492 = vld [vmem:[#allocation2 + $0xdb0] sm:$0xff]
    %v493 = vld [vmem:[#allocation2 + $0xdb8] sm:$0xff]
    %v494 = vld [vmem:[#allocation2 + $0xdc0] sm:$0xff]
    %v495 = vld [vmem:[#allocation2 + $0xdc8] sm:$0xff]
    %v496 = vld [vmem:[#allocation2 + $0xdd0] sm:$0xff]
    %v497 = vld [vmem:[#allocation2 + $0xdd8] sm:$0xff]
    %v498 = vld [vmem:[#allocation2 + $0xde0] sm:$0xff]
    %v499 = vld [vmem:[#allocation2 + $0xde8] sm:$0xff]
    %v500 = vld [vmem:[#allocation2 + $0xdf0] sm:$0xff]
    %v501 = vld [vmem:[#allocation2 + $0xdf8] sm:$0xff]
    %v502 = vld [vmem:[#allocation2 + $0xe00] sm:$0xff]
    %v503 = vld [vmem:[#allocation2 + $0xe08] sm:$0xff]
    %v504 = vld [vmem:[#allocation2 + $0xe10] sm:$0xff]
    %v505 = vld [vmem:[#allocation2 + $0xe18] sm:$0xff]
    %v506 = vld [vmem:[#allocation2 + $0xe20] sm:$0xff]
    %v507 = vld [vmem:[#allocation2 + $0xe28] sm:$0xff]
    %v508 = vld [vmem:[#allocation2 + $0xe30] sm:$0xff]
    %v509 = vld [vmem:[#allocation2 + $0xe38] sm:$0xff]
    %v510 = vld [vmem:[#allocation2 + $0xe40] sm:$0xff]
    %v511 = vld [vmem:[#allocation2 + $0xe48] sm:$0xff]
    %v512 = vld [vmem:[#allocation2 + $0xe50] sm:$0xff]
    %v513 = vld [vmem:[#allocation2 + $0xe58] sm:$0xff]
    %v514 = vld [vmem:[#allocation2 + $0xe60] sm:$0xff]
    %v515 = vld [vmem:[#allocation2 + $0xe68] sm:$0xff]
    %v516 = vld [vmem:[#allocation2 + $0xe70] sm:$0xff]
    %v517 = vld [vmem:[#allocation2 + $0xe78] sm:$0xff]
    %v518 = vld [vmem:[#allocation2 + $0xe80] sm:$0xff]
    %v519 = vld [vmem:[#allocation2 + $0xe88] sm:$0xff]
    %v520 = vld [vmem:[#allocation2 + $0xe90] sm:$0xff]
    %v521 = vld [vmem:[#allocation2 + $0xe98] sm:$0xff]
    %v522 = vld [vmem:[#allocation2 + $0xea0] sm:$0xff]
    %v523 = vld [vmem:[#allocation2 + $0xea8] sm:$0xff]
    %v524 = vld [vmem:[#allocation2 + $0xeb0] sm:$0xff]
    %v525 = vld [vmem:[#allocation2 + $0xeb8] sm:$0xff]
    %v526 = vld [vmem:[#allocation2 + $0xec0] sm:$0xff]
    %v527 = vld [vmem:[#allocation2 + $0xec8] sm:$0xff]
    %v528 = vld [vmem:[#allocation2 + $0xed0] sm:$0xff]
    %v529 = vld [vmem:[#allocation2 + $0xed8] sm:$0xff]
    %v530 = vld [vmem:[#allocation2 + $0xee0] sm:$0xff]
    %v531 = vld [vmem:[#allocation2 + $0xee8] sm:$0xff]
    %v532 = vld [vmem:[#allocation2 + $0xef0] sm:$0xff]
    %v533 = vld [vmem:[#allocation2 + $0xef8] sm:$0xff]
    %v534 = vld [vmem:[#allocation5] sm:$0xff]
    %v535 = vld [vmem:[#allocation5 + $0x8] sm:$0x3]
    %v536 = vld [vmem:[#allocation7] sm:$0x1]
    %v538 = vlaneseq
    %v539 = vshrl.u32 %v538, 7
    %v540 = vsub.s32 0, %v539
    %v541 = vrot.slane %v536, %v540
    %vm543 = vcmask 80896
    %v545 = vsel %vm543, %v54, 0
    %v548 = vsel %vm543, %v55, 0
    %v551 = vsel %vm543, %v56, 0
    %v554 = vsel %vm543, %v57, 0
    %v557 = vsel %vm543, %v58, 0
    %v560 = vsel %vm543, %v59, 0
    %v563 = vsel %vm543, %v60, 0
    %v566 = vsel %vm543, %v61, 0
    %v569 = vsel %vm543, %v62, 0
    %v572 = vsel %vm543, %v63, 0
    %v575 = vsel %vm543, %v64, 0
    %v578 = vsel %vm543, %v65, 0
    %v581 = vsel %vm543, %v66, 0
    %v584 = vsel %vm543, %v67, 0
    %v587 = vsel %vm543, %v68, 0
    %v590 = vsel %vm543, %v69, 0
    %v593 = vsel %vm543, %v70, 0
    %v596 = vsel %vm543, %v71, 0
    %v599 = vsel %vm543, %v72, 0
    %v602 = vsel %vm543, %v73, 0
    %v605 = vsel %vm543, %v74, 0
    %v608 = vsel %vm543, %v75, 0
    %v611 = vsel %vm543, %v76, 0
    %v614 = vsel %vm543, %v77, 0
    %v617 = vsel %vm543, %v78, 0
    %v620 = vsel %vm543, %v79, 0
    %v623 = vsel %vm543, %v80, 0
    %v626 = vsel %vm543, %v81, 0
    %v629 = vsel %vm543, %v82, 0
    %v632 = vsel %vm543, %v83, 0
    %v635 = vsel %vm543, %v84, 0
    %v638 = vsel %vm543, %v85, 0
    %v641 = vsel %vm543, %v86, 0
    %v644 = vsel %vm543, %v87, 0
    %v647 = vsel %vm543, %v88, 0
    %v650 = vsel %vm543, %v89, 0
    %v653 = vsel %vm543, %v90, 0
    %v656 = vsel %vm543, %v91, 0
    %v659 = vsel %vm543, %v92, 0
    %v662 = vsel %vm543, %v93, 0
    %v665 = vsel %vm543, %v94, 0
    %v668 = vsel %vm543, %v95, 0
    %v671 = vsel %vm543, %v96, 0
    %v674 = vsel %vm543, %v97, 0
    %v677 = vsel %vm543, %v98, 0
    %v680 = vsel %vm543, %v99, 0
    %v683 = vsel %vm543, %v100, 0
    %v686 = vsel %vm543, %v101, 0
    %v689 = vsel %vm543, %v102, 0
    %v692 = vsel %vm543, %v103, 0
    %v695 = vsel %vm543, %v104, 0
    %v698 = vsel %vm543, %v105, 0
    %v701 = vsel %vm543, %v106, 0
    %v704 = vsel %vm543, %v107, 0
    %v707 = vsel %vm543, %v108, 0
    %v710 = vsel %vm543, %v109, 0
    %v713 = vsel %vm543, %v110, 0
    %v716 = vsel %vm543, %v111, 0
    %v719 = vsel %vm543, %v112, 0
    %v722 = vsel %vm543, %v113, 0
    %v725 = vsel %vm543, %v114, 0
    %v728 = vsel %vm543, %v115, 0
    %v731 = vsel %vm543, %v116, 0
    %v734 = vsel %vm543, %v117, 0
    %v737 = vsel %vm543, %v118, 0
    %v740 = vsel %vm543, %v119, 0
    %v743 = vsel %vm543, %v120, 0
    %v746 = vsel %vm543, %v121, 0
    %v749 = vsel %vm543, %v122, 0
    %v752 = vsel %vm543, %v123, 0
    %v755 = vsel %vm543, %v124, 0
    %v758 = vsel %vm543, %v125, 0
    %v761 = vsel %vm543, %v126, 0
    %v764 = vsel %vm543, %v127, 0
    %v767 = vsel %vm543, %v128, 0
    %v770 = vsel %vm543, %v129, 0
    %v773 = vsel %vm543, %v130, 0
    %v776 = vsel %vm543, %v131, 0
    %v779 = vsel %vm543, %v132, 0
    %v782 = vsel %vm543, %v133, 0
    %v785 = vsel %vm543, %v134, 0
    %v788 = vsel %vm543, %v135, 0
    %v791 = vsel %vm543, %v136, 0
    %v794 = vsel %vm543, %v137, 0
    %v797 = vsel %vm543, %v138, 0
    %v800 = vsel %vm543, %v139, 0
    %v803 = vsel %vm543, %v140, 0
    %v806 = vsel %vm543, %v141, 0
    %v809 = vsel %vm543, %v142, 0
    %v812 = vsel %vm543, %v143, 0
    %v815 = vsel %vm543, %v144, 0
    %v818 = vsel %vm543, %v145, 0
    %v821 = vsel %vm543, %v146, 0
    %v824 = vsel %vm543, %v147, 0
    %v827 = vsel %vm543, %v148, 0
    %v830 = vsel %vm543, %v149, 0
    %v833 = vsel %vm543, %v150, 0
    %v836 = vsel %vm543, %v151, 0
    %v839 = vsel %vm543, %v152, 0
    %v842 = vsel %vm543, %v153, 0
    %v845 = vsel %vm543, %v154, 0
    %v848 = vsel %vm543, %v155, 0
    %v851 = vsel %vm543, %v156, 0
    %v854 = vsel %vm543, %v157, 0
    %v857 = vsel %vm543, %v158, 0
    %v860 = vsel %vm543, %v159, 0
    %v863 = vsel %vm543, %v160, 0
    %v866 = vsel %vm543, %v161, 0
    %v869 = vsel %vm543, %v162, 0
    %v872 = vsel %vm543, %v163, 0
    %v875 = vsel %vm543, %v164, 0
    %v878 = vsel %vm543, %v165, 0
    %v881 = vsel %vm543, %v166, 0
    %v884 = vsel %vm543, %v167, 0
    %v887 = vsel %vm543, %v168, 0
    %v890 = vsel %vm543, %v169, 0
    %v893 = vsel %vm543, %v170, 0
    %v896 = vsel %vm543, %v171, 0
    %v899 = vsel %vm543, %v172, 0
    %v902 = vsel %vm543, %v173, 0
    %v905 = vsel %vm543, %v174, 0
    %v908 = vsel %vm543, %v175, 0
    %v911 = vsel %vm543, %v176, 0
    %v914 = vsel %vm543, %v177, 0
    %v917 = vsel %vm543, %v178, 0
    %v920 = vsel %vm543, %v179, 0
    %v923 = vsel %vm543, %v180, 0
    %v926 = vsel %vm543, %v181, 0
    %v929 = vsel %vm543, %v182, 0
    %v932 = vsel %vm543, %v183, 0
    %v935 = vsel %vm543, %v184, 0
    %v938 = vsel %vm543, %v185, 0
    %v941 = vsel %vm543, %v186, 0
    %v944 = vsel %vm543, %v187, 0
    %v947 = vsel %vm543, %v188, 0
    %v950 = vsel %vm543, %v189, 0
    %v953 = vsel %vm543, %v190, 0
    %v956 = vsel %vm543, %v191, 0
    %v959 = vsel %vm543, %v192, 0
    %v962 = vsel %vm543, %v193, 0
    %v965 = vsel %vm543, %v194, 0
    %v968 = vsel %vm543, %v195, 0
    %v971 = vsel %vm543, %v196, 0
    %v974 = vsel %vm543, %v197, 0
    %v977 = vsel %vm543, %v198, 0
    %v980 = vsel %vm543, %v199, 0
    %v983 = vsel %vm543, %v200, 0
    %v986 = vsel %vm543, %v201, 0
    %v989 = vsel %vm543, %v202, 0
    %v992 = vsel %vm543, %v203, 0
    %v995 = vsel %vm543, %v204, 0
    %v998 = vsel %vm543, %v205, 0
    %v1001 = vsel %vm543, %v206, 0
    %v1004 = vsel %vm543, %v207, 0
    %v1007 = vsel %vm543, %v208, 0
    %v1010 = vsel %vm543, %v209, 0
    %v1013 = vsel %vm543, %v210, 0
    %v1016 = vsel %vm543, %v211, 0
    %v1019 = vsel %vm543, %v212, 0
    %v1022 = vsel %vm543, %v213, 0
    %v1025 = vsel %vm543, %v214, 0
    %v1028 = vsel %vm543, %v215, 0
    %v1031 = vsel %vm543, %v216, 0
    %v1034 = vsel %vm543, %v217, 0
    %v1037 = vsel %vm543, %v218, 0
    %v1040 = vsel %vm543, %v219, 0
    %v1043 = vsel %vm543, %v220, 0
    %v1046 = vsel %vm543, %v221, 0
    %v1049 = vsel %vm543, %v222, 0
    %v1052 = vsel %vm543, %v223, 0
    %v1055 = vsel %vm543, %v224, 0
    %v1058 = vsel %vm543, %v225, 0
    %v1061 = vsel %vm543, %v226, 0
    %v1064 = vsel %vm543, %v227, 0
    %v1067 = vsel %vm543, %v228, 0
    %v1070 = vsel %vm543, %v229, 0
    %v1073 = vsel %vm543, %v230, 0
    %v1076 = vsel %vm543, %v231, 0
    %v1079 = vsel %vm543, %v232, 0
    %v1082 = vsel %vm543, %v233, 0
    %v1085 = vsel %vm543, %v234, 0
    %v1088 = vsel %vm543, %v235, 0
    %v1091 = vsel %vm543, %v236, 0
    %v1094 = vsel %vm543, %v237, 0
    %v1097 = vsel %vm543, %v238, 0
    %v1100 = vsel %vm543, %v239, 0
    %v1103 = vsel %vm543, %v240, 0
    %v1106 = vsel %vm543, %v241, 0
    %v1109 = vsel %vm543, %v242, 0
    %v1112 = vsel %vm543, %v243, 0
    %v1115 = vsel %vm543, %v244, 0
    %v1118 = vsel %vm543, %v245, 0
    %v1121 = vsel %vm543, %v246, 0
    %v1124 = vsel %vm543, %v247, 0
    %v1127 = vsel %vm543, %v248, 0
    %v1130 = vsel %vm543, %v249, 0
    %v1133 = vsel %vm543, %v250, 0
    %v1136 = vsel %vm543, %v251, 0
    %v1139 = vsel %vm543, %v252, 0
    %v1142 = vsel %vm543, %v253, 0
    %v1145 = vsel %vm543, %v254, 0
    %v1148 = vsel %vm543, %v255, 0
    %v1151 = vsel %vm543, %v256, 0
    %v1154 = vsel %vm543, %v257, 0
    %v1157 = vsel %vm543, %v258, 0
    %v1160 = vsel %vm543, %v259, 0
    %v1163 = vsel %vm543, %v260, 0
    %v1166 = vsel %vm543, %v261, 0
    %v1169 = vsel %vm543, %v262, 0
    %v1172 = vsel %vm543, %v263, 0
    %v1175 = vsel %vm543, %v264, 0
    %v1178 = vsel %vm543, %v265, 0
    %v1181 = vsel %vm543, %v266, 0
    %v1184 = vsel %vm543, %v267, 0
    %v1187 = vsel %vm543, %v268, 0
    %v1190 = vsel %vm543, %v269, 0
    %v1193 = vsel %vm543, %v270, 0
    %v1196 = vsel %vm543, %v271, 0
    %v1199 = vsel %vm543, %v272, 0
    %v1202 = vsel %vm543, %v273, 0
    %v1205 = vsel %vm543, %v274, 0
    %v1208 = vsel %vm543, %v275, 0
    %v1211 = vsel %vm543, %v276, 0
    %v1214 = vsel %vm543, %v277, 0
    %v1217 = vsel %vm543, %v278, 0
    %v1220 = vsel %vm543, %v279, 0
    %v1223 = vsel %vm543, %v280, 0
    %v1226 = vsel %vm543, %v281, 0
    %v1229 = vsel %vm543, %v282, 0
    %v1232 = vsel %vm543, %v283, 0
    %v1235 = vsel %vm543, %v284, 0
    %v1238 = vsel %vm543, %v285, 0
    %v1241 = vsel %vm543, %v286, 0
    %v1244 = vsel %vm543, %v287, 0
    %v1247 = vsel %vm543, %v288, 0
    %v1250 = vsel %vm543, %v289, 0
    %v1253 = vsel %vm543, %v290, 0
    %v1256 = vsel %vm543, %v291, 0
    %v1259 = vsel %vm543, %v292, 0
    %v1262 = vsel %vm543, %v293, 0
    %v1265 = vsel %vm543, %v294, 0
    %v1268 = vsel %vm543, %v295, 0
    %v1271 = vsel %vm543, %v296, 0
    %v1274 = vsel %vm543, %v297, 0
    %v1277 = vsel %vm543, %v298, 0
    %v1280 = vsel %vm543, %v299, 0
    %v1283 = vsel %vm543, %v300, 0
    %v1286 = vsel %vm543, %v301, 0
    %v1289 = vsel %vm543, %v302, 0
    %v1292 = vsel %vm543, %v303, 0
    %v1295 = vsel %vm543, %v304, 0
    %v1298 = vsel %vm543, %v305, 0
    %v1301 = vsel %vm543, %v306, 0
    %v1304 = vsel %vm543, %v307, 0
    %v1307 = vsel %vm543, %v308, 0
    %v1310 = vsel %vm543, %v309, 0
    %v1313 = vsel %vm543, %v310, 0
    %v1316 = vsel %vm543, %v311, 0
    %v1319 = vsel %vm543, %v312, 0
    %v1322 = vsel %vm543, %v313, 0
    %v1325 = vsel %vm543, %v314, 0
    %v1328 = vsel %vm543, %v315, 0
    %v1331 = vsel %vm543, %v316, 0
    %v1334 = vsel %vm543, %v317, 0
    %v1337 = vsel %vm543, %v318, 0
    %v1340 = vsel %vm543, %v319, 0
    %v1343 = vsel %vm543, %v320, 0
    %v1346 = vsel %vm543, %v321, 0
    %v1349 = vsel %vm543, %v322, 0
    %v1352 = vsel %vm543, %v323, 0
    %v1355 = vsel %vm543, %v324, 0
    %v1358 = vsel %vm543, %v325, 0
    %v1361 = vsel %vm543, %v326, 0
    %v1364 = vsel %vm543, %v327, 0
    %v1367 = vsel %vm543, %v328, 0
    %v1370 = vsel %vm543, %v329, 0
    %v1373 = vsel %vm543, %v330, 0
    %v1376 = vsel %vm543, %v331, 0
    %v1379 = vsel %vm543, %v332, 0
    %v1382 = vsel %vm543, %v333, 0
    %v1385 = vsel %vm543, %v334, 0
    %v1388 = vsel %vm543, %v335, 0
    %v1391 = vsel %vm543, %v336, 0
    %v1394 = vsel %vm543, %v337, 0
    %v1397 = vsel %vm543, %v338, 0
    %v1400 = vsel %vm543, %v339, 0
    %v1403 = vsel %vm543, %v340, 0
    %v1406 = vsel %vm543, %v341, 0
    %v1409 = vsel %vm543, %v342, 0
    %v1412 = vsel %vm543, %v343, 0
    %v1415 = vsel %vm543, %v344, 0
    %v1418 = vsel %vm543, %v345, 0
    %v1421 = vsel %vm543, %v346, 0
    %v1424 = vsel %vm543, %v347, 0
    %v1427 = vsel %vm543, %v348, 0
    %v1430 = vsel %vm543, %v349, 0
    %v1433 = vsel %vm543, %v350, 0
    %v1436 = vsel %vm543, %v351, 0
    %v1439 = vsel %vm543, %v352, 0
    %v1442 = vsel %vm543, %v353, 0
    %v1445 = vsel %vm543, %v354, 0
    %v1448 = vsel %vm543, %v355, 0
    %v1451 = vsel %vm543, %v356, 0
    %v1454 = vsel %vm543, %v357, 0
    %v1457 = vsel %vm543, %v358, 0
    %v1460 = vsel %vm543, %v359, 0
    %v1463 = vsel %vm543, %v360, 0
    %v1466 = vsel %vm543, %v361, 0
    %v1469 = vsel %vm543, %v362, 0
    %v1472 = vsel %vm543, %v363, 0
    %v1475 = vsel %vm543, %v364, 0
    %v1478 = vsel %vm543, %v365, 0
    %v1481 = vsel %vm543, %v366, 0
    %v1484 = vsel %vm543, %v367, 0
    %v1487 = vsel %vm543, %v368, 0
    %v1490 = vsel %vm543, %v369, 0
    %v1493 = vsel %vm543, %v370, 0
    %v1496 = vsel %vm543, %v371, 0
    %v1499 = vsel %vm543, %v372, 0
    %v1502 = vsel %vm543, %v373, 0
    %v1505 = vsel %vm543, %v374, 0
    %v1508 = vsel %vm543, %v375, 0
    %v1511 = vsel %vm543, %v376, 0
    %v1514 = vsel %vm543, %v377, 0
    %v1517 = vsel %vm543, %v378, 0
    %v1520 = vsel %vm543, %v379, 0
    %v1523 = vsel %vm543, %v380, 0
    %v1526 = vsel %vm543, %v381, 0
    %v1529 = vsel %vm543, %v382, 0
    %v1532 = vsel %vm543, %v383, 0
    %v1535 = vsel %vm543, %v384, 0
    %v1538 = vsel %vm543, %v385, 0
    %v1541 = vsel %vm543, %v386, 0
    %v1544 = vsel %vm543, %v387, 0
    %v1547 = vsel %vm543, %v388, 0
    %v1550 = vsel %vm543, %v389, 0
    %v1553 = vsel %vm543, %v390, 0
    %v1556 = vsel %vm543, %v391, 0
    %v1559 = vsel %vm543, %v392, 0
    %v1562 = vsel %vm543, %v393, 0
    %v1565 = vsel %vm543, %v394, 0
    %v1568 = vsel %vm543, %v395, 0
    %v1571 = vsel %vm543, %v396, 0
    %v1574 = vsel %vm543, %v397, 0
    %v1577 = vsel %vm543, %v398, 0
    %v1580 = vsel %vm543, %v399, 0
    %v1583 = vsel %vm543, %v400, 0
    %v1586 = vsel %vm543, %v401, 0
    %v1589 = vsel %vm543, %v402, 0
    %v1592 = vsel %vm543, %v403, 0
    %v1595 = vsel %vm543, %v404, 0
    %v1598 = vsel %vm543, %v405, 0
    %v1601 = vsel %vm543, %v406, 0
    %v1604 = vsel %vm543, %v407, 0
    %v1607 = vsel %vm543, %v408, 0
    %v1610 = vsel %vm543, %v409, 0
    %v1613 = vsel %vm543, %v410, 0
    %v1616 = vsel %vm543, %v411, 0
    %v1619 = vsel %vm543, %v412, 0
    %v1622 = vsel %vm543, %v413, 0
    %v1625 = vsel %vm543, %v414, 0
    %v1628 = vsel %vm543, %v415, 0
    %v1631 = vsel %vm543, %v416, 0
    %v1634 = vsel %vm543, %v417, 0
    %v1637 = vsel %vm543, %v418, 0
    %v1640 = vsel %vm543, %v419, 0
    %v1643 = vsel %vm543, %v420, 0
    %v1646 = vsel %vm543, %v421, 0
    %v1649 = vsel %vm543, %v422, 0
    %v1652 = vsel %vm543, %v423, 0
    %v1655 = vsel %vm543, %v424, 0
    %v1658 = vsel %vm543, %v425, 0
    %v1661 = vsel %vm543, %v426, 0
    %v1664 = vsel %vm543, %v427, 0
    %v1667 = vsel %vm543, %v428, 0
    %v1670 = vsel %vm543, %v429, 0
    %v1673 = vsel %vm543, %v430, 0
    %v1676 = vsel %vm543, %v431, 0
    %v1679 = vsel %vm543, %v432, 0
    %v1682 = vsel %vm543, %v433, 0
    %v1685 = vsel %vm543, %v434, 0
    %v1688 = vsel %vm543, %v435, 0
    %v1691 = vsel %vm543, %v436, 0
    %v1694 = vsel %vm543, %v437, 0
    %v1697 = vsel %vm543, %v438, 0
    %v1700 = vsel %vm543, %v439, 0
    %v1703 = vsel %vm543, %v440, 0
    %v1706 = vsel %vm543, %v441, 0
    %v1709 = vsel %vm543, %v442, 0
    %v1712 = vsel %vm543, %v443, 0
    %v1715 = vsel %vm543, %v444, 0
    %v1718 = vsel %vm543, %v445, 0
    %v1721 = vsel %vm543, %v446, 0
    %v1724 = vsel %vm543, %v447, 0
    %v1727 = vsel %vm543, %v448, 0
    %v1730 = vsel %vm543, %v449, 0
    %v1733 = vsel %vm543, %v450, 0
    %v1736 = vsel %vm543, %v451, 0
    %v1739 = vsel %vm543, %v452, 0
    %v1742 = vsel %vm543, %v453, 0
    %v1745 = vsel %vm543, %v454, 0
    %v1748 = vsel %vm543, %v455, 0
    %v1751 = vsel %vm543, %v456, 0
    %v1754 = vsel %vm543, %v457, 0
    %v1757 = vsel %vm543, %v458, 0
    %v1760 = vsel %vm543, %v459, 0
    %v1763 = vsel %vm543, %v460, 0
    %v1766 = vsel %vm543, %v461, 0
    %v1769 = vsel %vm543, %v462, 0
    %v1772 = vsel %vm543, %v463, 0
    %v1775 = vsel %vm543, %v464, 0
    %v1778 = vsel %vm543, %v465, 0
    %v1781 = vsel %vm543, %v466, 0
    %v1784 = vsel %vm543, %v467, 0
    %v1787 = vsel %vm543, %v468, 0
    %v1790 = vsel %vm543, %v469, 0
    %v1793 = vsel %vm543, %v470, 0
    %v1796 = vsel %vm543, %v471, 0
    %v1799 = vsel %vm543, %v472, 0
    %v1802 = vsel %vm543, %v473, 0
    %v1805 = vsel %vm543, %v474, 0
    %v1808 = vsel %vm543, %v475, 0
    %v1811 = vsel %vm543, %v476, 0
    %v1814 = vsel %vm543, %v477, 0
    %v1817 = vsel %vm543, %v478, 0
    %v1820 = vsel %vm543, %v479, 0
    %v1823 = vsel %vm543, %v480, 0
    %v1826 = vsel %vm543, %v481, 0
    %v1829 = vsel %vm543, %v482, 0
    %v1832 = vsel %vm543, %v483, 0
    %v1835 = vsel %vm543, %v484, 0
    %v1838 = vsel %vm543, %v485, 0
    %v1841 = vsel %vm543, %v486, 0
    %v1844 = vsel %vm543, %v487, 0
    %v1847 = vsel %vm543, %v488, 0
    %v1850 = vsel %vm543, %v489, 0
    %v1853 = vsel %vm543, %v490, 0
    %v1856 = vsel %vm543, %v491, 0
    %v1859 = vsel %vm543, %v492, 0
    %v1862 = vsel %vm543, %v493, 0
    %v1865 = vsel %vm543, %v494, 0
    %v1868 = vsel %vm543, %v495, 0
    %v1871 = vsel %vm543, %v496, 0
    %v1874 = vsel %vm543, %v497, 0
    %v1877 = vsel %vm543, %v498, 0
    %v1880 = vsel %vm543, %v499, 0
    %v1883 = vsel %vm543, %v500, 0
    %v1886 = vsel %vm543, %v501, 0
    %v1889 = vsel %vm543, %v502, 0
    %v1892 = vsel %vm543, %v503, 0
    %v1895 = vsel %vm543, %v504, 0
    %v1898 = vsel %vm543, %v505, 0
    %v1901 = vsel %vm543, %v506, 0
    %v1904 = vsel %vm543, %v507, 0
    %v1907 = vsel %vm543, %v508, 0
    %v1910 = vsel %vm543, %v509, 0
    %v1913 = vsel %vm543, %v510, 0
    %v1916 = vsel %vm543, %v511, 0
    %v1919 = vsel %vm543, %v512, 0
    %v1922 = vsel %vm543, %v513, 0
    %v1925 = vsel %vm543, %v514, 0
    %v1928 = vsel %vm543, %v515, 0
    %v1931 = vsel %vm543, %v516, 0
    %v1934 = vsel %vm543, %v517, 0
    %v1937 = vsel %vm543, %v518, 0
    %v1940 = vsel %vm543, %v519, 0
    %v1943 = vsel %vm543, %v520, 0
    %v1946 = vsel %vm543, %v521, 0
    %v1949 = vsel %vm543, %v522, 0
    %v1952 = vsel %vm543, %v523, 0
    %v1955 = vsel %vm543, %v524, 0
    %v1958 = vsel %vm543, %v525, 0
    %v1961 = vsel %vm543, %v526, 0
    %v1964 = vsel %vm543, %v527, 0
    %v1967 = vsel %vm543, %v528, 0
    %v1970 = vsel %vm543, %v529, 0
    %v1973 = vsel %vm543, %v530, 0
    %v1976 = vsel %vm543, %v531, 0
    %v1979 = vsel %vm543, %v532, 0
    %v1982 = vsel %vm543, %v533, 0
    %vm1984 = vcmask 1041408
    %v1986 = vsel %vm1984, %v535, 0
    %1988 = vmatprep.subr.mxu0 0.0
    %1989 = vmatpush1.msra.mxu0 %v534
    %1990 = vmatprep.subr.mxu0 0.0
    %1991 = vmatpush1.msra.mxu0 %v1986
    %1992 = vmatprep.subr.mxu0 0.0
    %1993 = vmatpush1.msra.mxu0 0.0
    %1994 = vmatprep.subr.mxu0 0.0
    %1995 = vmatpush1.msra.mxu0 0.0
    %1996 = vmatprep.subr.mxu0 0.0
    %1997 = vmatpush1.msra.mxu0 0.0
    %1998 = vmatprep.subr.mxu0 0.0
    %1999 = vmatpush1.msra.mxu0 0.0
    %2000 = vmatprep.subr.mxu0 0.0
    %2001 = vmatpush1.msra.mxu0 0.0
    %2002 = vmatprep.subr.mxu0 0.0
    %2003 = vmatpush1.msra.mxu0 0.0
    %2004 = vmatprep.subr.mxu0 0.0
    %2005 = vmatpush1.msra.mxu0 0.0
    %2006 = vmatprep.subr.mxu0 0.0
    %2007 = vmatpush1.msra.mxu0 0.0
    %2008 = vmatprep.subr.mxu0 0.0
    %2009 = vmatpush1.msra.mxu0 0.0
    %2010 = vmatprep.subr.mxu0 0.0
    %2011 = vmatpush1.msra.mxu0 0.0
    %2012 = vmatprep.subr.mxu0 0.0
    %2013 = vmatpush1.msra.mxu0 0.0
    %2014 = vmatprep.subr.mxu0 0.0
    %2015 = vmatpush1.msra.mxu0 0.0
    %2016 = vmatprep.subr.mxu0 0.0
    %2017 = vmatpush1.msra.mxu0 0.0
    %2018 = vmatprep.subr.mxu0 0.0
    %2019 = vmatpush1.msra.mxu0 0.0
    %2020 = vmatprep.subr.mxu0 0.0
    %2021 = vmatpush1.msra.mxu0 0.0
    %2022 = vmatprep.subr.mxu0 0.0
    %2023 = vmatpush1.msra.mxu0 0.0
    %2024 = vmatprep.subr.mxu0 0.0
    %2025 = vmatpush1.msra.mxu0 0.0
    %2026 = vmatprep.subr.mxu0 0.0
    %2027 = vmatpush1.msra.mxu0 0.0
    %2028 = vmatprep.subr.mxu0 0.0
    %2029 = vmatpush1.msra.mxu0 0.0
    %2030 = vmatprep.subr.mxu0 0.0
    %2031 = vmatpush1.msra.mxu0 0.0
    %2032 = vmatprep.subr.mxu0 0.0
    %2033 = vmatpush1.msra.mxu0 0.0
    %2034 = vmatprep.subr.mxu0 0.0
    %2035 = vmatpush1.msra.mxu0 0.0
    %2036 = vmatprep.subr.mxu0 0.0
    %2037 = vmatpush1.msra.mxu0 0.0
    %2038 = vmatprep.subr.mxu0 0.0
    %2039 = vmatpush1.msra.mxu0 0.0
    %2040 = vmatprep.subr.mxu0 0.0
    %2041 = vmatpush1.msra.mxu0 0.0
    %2042 = vmatprep.subr.mxu0 0.0
    %2043 = vmatpush1.msra.mxu0 0.0
    %2044 = vmatprep.subr.mxu0 0.0
    %2045 = vmatpush1.msra.mxu0 0.0
    %2046 = vmatprep.subr.mxu0 0.0
    %2047 = vmatpush1.msra.mxu0 0.0
    %2048 = vmatprep.subr.mxu0 0.0
    %2049 = vmatpush1.msra.mxu0 0.0
    %2050 = vmatprep.subr.mxu0 0.0
    %2051 = vmatpush1.msra.mxu0 0.0
    %2052 = vmatprep.mubr.f32.mxu0 0.0
    %2053 = vmatmul.mubr.f32.gmra.mrb[0].mxu0 %v545
    %v2054 = vpop.f32.mrb[0].mxu0
    %v2055 = vadd.f32 %v541, %v2054
    %v2056 = vpop.f32.mrb[0].mxu0
    %2057 = vmatprep.mubr.f32.mxu0 0.0
    %2058 = vmatmul.mubr.f32.gmra.mrb[0].mxu0 %v548
    %v2059 = vpop.f32.mrb[0].mxu0
    %v2060 = vadd.f32 %v541, %v2059
    %v2061 = vpop.f32.mrb[0].mxu0
    %2062 = vmatprep.mubr.f32.mxu0 0.0
    %2063 = vmatmul.mubr.f32.gmra.mrb[0].mxu0 %v551
    %v2064 = vpop.f32.mrb[0].mxu0
    %v2065 = vadd.f32 %v541, %v2064
    %v2066 = vpop.f32.mrb[0].mxu0
    %2067 = vmatprep.mubr.f32.mxu0 0.0
    %2068 = vmatmul.mubr.f32.gmra.mrb[0].mxu0 %v554
    %v2069 = vpop.f32.mrb[0].mxu0
    %v2070 = vadd.f32 %v541, %v2069
    %v2071 = vpop.f32.mrb[0].mxu0
    %2072 = vmatprep.mubr.f32.mxu0 0.0
    %2073 = vmatmul.mubr.f32.gmra.mrb[0].mxu0 %v557
    %v2074 = vpop.f32.mrb[0].mxu0
    %v2075 = vadd.f32 %v541, %v2074
    %v2076 = vpop.f32.mrb[0].mxu0
    %2077 = vmatprep.mubr.f32.mxu0 0.0
    %2078 = vmatmul.mubr.f32.gmra.mrb[0].mxu0 %v560
    %v2079 = vpop.f32.mrb[0].mxu0
    %v2080 = vadd.f32 %v541, %v2079
    %v2081 = vpop.f32.mrb[0].mxu0
    %2082 = vmatprep.mubr.f32.mxu0 0.0
    %2083 = vmatmul.mubr.f32.gmra.mrb[0].mxu0 %v563
    %v2084 = vpop.f32.mrb[0].mxu0
    %v2085 = vadd.f32 %v541, %v2084
    %v2086 = vpop.f32.mrb[0].mxu0
    %2087 = vmatprep.mubr.f32.mxu0 0.0
    %2088 = vmatmul.mubr.f32.gmra.mrb[0].mxu0 %v566
    %v2089 = vpop.f32.mrb[0].mxu0
    %v2090 = vadd.f32 %v541, %v2089
    %v2091 = vpop.f32.mrb[0].mxu0
    %2092 = vmatprep.mubr.f32.mxu0 0.0
    %2093 = vmatmul.mubr.f32.gmra.mrb[0].mxu0 %v569
    %v2094 = vpop.f32.mrb[0].mxu0
    %v2095 = vadd.f32 %v541, %v2094
    %v2096 = vpop.f32.mrb[0].mxu0
    %2097 = vmatprep.mubr.f32.mxu0 0.0
    %2098 = vmatmul.mubr.f32.gmra.mrb[0].mxu0 %v572
    %v2099 = vpop.f32.mrb[0].mxu0
    %v2100 = vadd.f32 %v541, %v2099
    %v2101 = vpop.f32.mrb[0].mxu0
    %2102 = vmatprep.mubr.f32.mxu0 0.0
    %2103 = vmatmul.mubr.f32.gmra.mrb[0].mxu0 %v575
    %v2104 = vpop.f32.mrb[0].mxu0
    %v2105 = vadd.f32 %v541, %v2104
    %v2106 = vpop.f32.mrb[0].mxu0
    %2107 = vmatprep.mubr.f32.mxu0 0.0
    %2108 = vmatmul.mubr.f32.gmra.mrb[0].mxu0 %v578
    %v2109 = vpop.f32.mrb[0].mxu0
    %v2110 = vadd.f32 %v541, %v2109
    %v2111 = vpop.f32.mrb[0].mxu0
    %2112 = vmatprep.mubr.f32.mxu0 0.0
    %2113 = vmatmul.mubr.f32.gmra.mrb[0].mxu0 %v581
    %v2114 = vpop.f32.mrb[0].mxu0
    %v2115 = vadd.f32 %v541, %v2114
    %v2116 = vpop.f32.mrb[0].mxu0
    %2117 = vmatprep.mubr.f32.mxu0 0.0
    %2118 = vmatmul.mubr.f32.gmra.mrb[0].mxu0 %v584
    %v2119 = vpop.f32.mrb[0].mxu0
    %v2120 = vadd.f32 %v541, %v2119
    %v2121 = vpop.f32.mrb[0].mxu0
    %2122 = vmatprep.mubr.f32.mxu0 0.0
    %2123 = vmatmul.mubr.f32.gmra.mrb[0].mxu0 %v587
    %v2124 = vpop.f32.mrb[0].mxu0
    %v2125 = vadd.f32 %v541, %v2124
    %v2126 = vpop.f32.mrb[0].mxu0
    %2127 = vmatprep.mubr.f32.mxu0 0.0
    %2128 = vmatmul.mubr.f32.gmra.mrb[0].mxu0 %v590
    %v2129 = vpop.f32.mrb[0].mxu0
    %v2130 = vadd.f32 %v541, %v2129
    %v2131 = vpop.f32.mrb[0].mxu0
    %2132 = vmatprep.mubr.f32.mxu0 0.0
    %2133 = vmatmul.mubr.f32.gmra.mrb[0].mxu0 %v593
    %v2134 = vpop.f32.mrb[0].mxu0
    %v2135 = vadd.f32 %v541, %v2134
    %v2136 = vpop.f32.mrb[0].mxu0
    %2137 = vmatprep.mubr.f32.mxu0 0.0
    %2138 = vmatmul.mubr.f32.gmra.mrb[0].mxu0 %v596
    %v2139 = vpop.f32.mrb[0].mxu0
    %v2140 = vadd.f32 %v541, %v2139
    %v2141 = vpop.f32.mrb[0].mxu0
    %2142 = vmatprep.mubr.f32.mxu0 0.0
    %2143 = vmatmul.mubr.f32.gmra.mrb[0].mxu0 %v599
    %v2144 = vpop.f32.mrb[0].mxu0
    %v2145 = vadd.f32 %v541, %v2144
    %v2146 = vpop.f32.mrb[0].mxu0
    %2147 = vmatprep.mubr.f32.mxu0 0.0
    %2148 = vmatmul.mubr.f32.gmra.mrb[0].mxu0 %v602
    %v2149 = vpop.f32.mrb[0].mxu0
    %v2150 = vadd.f32 %v541, %v2149
    %v2151 = vpop.f32.mrb[0].mxu0
    %2152 = vmatprep.mubr.f32.mxu0 0.0
    %2153 = vmatmul.mubr.f32.gmra.mrb[0].mxu0 %v605
    %v2154 = vpop.f32.mrb[0].mxu0
    %v2155 = vadd.f32 %v541, %v2154
    %v2156 = vpop.f32.mrb[0].mxu0
    %2157 = vmatprep.mubr.f32.mxu0 0.0
    %2158 = vmatmul.mubr.f32.gmra.mrb[0].mxu0 %v608
    %v2159 = vpop.f32.mrb[0].mxu0
    %v2160 = vadd.f32 %v541, %v2159
    %v2161 = vpop.f32.mrb[0].mxu0
    %2162 = vmatprep.mubr.f32.mxu0 0.0
    %2163 = vmatmul.mubr.f32.gmra.mrb[0].mxu0 %v611
    %v2164 = vpop.f32.mrb[0].mxu0
    %v2165 = vadd.f32 %v541, %v2164
    %v2166 = vpop.f32.mrb[0].mxu0
    %2167 = vmatprep.mubr.f32.mxu0 0.0
    %2168 = vmatmul.mubr.f32.gmra.mrb[0].mxu0 %v614
    %v2169 = vpop.f32.mrb[0].mxu0
    %v2170 = vadd.f32 %v541, %v2169
    %v2171 = vpop.f32.mrb[0].mxu0
    %2172 = vmatprep.mubr.f32.mxu0 0.0
    %2173 = vmatmul.mubr.f32.gmra.mrb[0].mxu0 %v617
    %v2174 = vpop.f32.mrb[0].mxu0
    %v2175 = vadd.f32 %v541, %v2174
    %v2176 = vpop.f32.mrb[0].mxu0
    %2177 = vmatprep.mubr.f32.mxu0 0.0
    %2178 = vmatmul.mubr.f32.gmra.mrb[0].mxu0 %v620
    %v2179 = vpop.f32.mrb[0].mxu0
    %v2180 = vadd.f32 %v541, %v2179
    %v2181 = vpop.f32.mrb[0].mxu0
    %2182 = vmatprep.mubr.f32.mxu0 0.0
    %2183 = vmatmul.mubr.f32.gmra.mrb[0].mxu0 %v623
    %v2184 = vpop.f32.mrb[0].mxu0
    %v2185 = vadd.f32 %v541, %v2184
    %v2186 = vpop.f32.mrb[0].mxu0
    %2187 = vmatprep.mubr.f32.mxu0 0.0
    %2188 = vmatmul.mubr.f32.gmra.mrb[0].mxu0 %v626
    %v2189 = vpop.f32.mrb[0].mxu0
    %v2190 = vadd.f32 %v541, %v2189
    %v2191 = vpop.f32.mrb[0].mxu0
    %2192 = vmatprep.mubr.f32.mxu0 0.0
    %2193 = vmatmul.mubr.f32.gmra.mrb[0].mxu0 %v629
    %v2194 = vpop.f32.mrb[0].mxu0
    %v2195 = vadd.f32 %v541, %v2194
    %v2196 = vpop.f32.mrb[0].mxu0
    %2197 = vmatprep.mubr.f32.mxu0 0.0
    %2198 = vmatmul.mubr.f32.gmra.mrb[0].mxu0 %v632
    %v2199 = vpop.f32.mrb[0].mxu0
    %v2200 = vadd.f32 %v541, %v2199
    %v2201 = vpop.f32.mrb[0].mxu0
    %2202 = vmatprep.mubr.f32.mxu0 0.0
    %2203 = vmatmul.mubr.f32.gmra.mrb[0].mxu0 %v635
    %v2204 = vpop.f32.mrb[0].mxu0
    %v2205 = vadd.f32 %v541, %v2204
    %v2206 = vpop.f32.mrb[0].mxu0
    %2207 = vmatprep.mubr.f32.mxu0 0.0
    %2208 = vmatmul.mubr.f32.gmra.mrb[0].mxu0 %v638
    %v2209 = vpop.f32.mrb[0].mxu0
    %v2210 = vadd.f32 %v541, %v2209
    %v2211 = vpop.f32.mrb[0].mxu0
    %2212 = vmatprep.mubr.f32.mxu0 0.0
    %2213 = vmatmul.mubr.f32.gmra.mrb[0].mxu0 %v641
    %v2214 = vpop.f32.mrb[0].mxu0
    %v2215 = vadd.f32 %v541, %v2214
    %v2216 = vpop.f32.mrb[0].mxu0
    %2217 = vmatprep.mubr.f32.mxu0 0.0
    %2218 = vmatmul.mubr.f32.gmra.mrb[0].mxu0 %v644
    %v2219 = vpop.f32.mrb[0].mxu0
    %v2220 = vadd.f32 %v541, %v2219
    %v2221 = vpop.f32.mrb[0].mxu0
    %2222 = vmatprep.mubr.f32.mxu0 0.0
    %2223 = vmatmul.mubr.f32.gmra.mrb[0].mxu0 %v647
    %v2224 = vpop.f32.mrb[0].mxu0
    %v2225 = vadd.f32 %v541, %v2224
    %v2226 = vpop.f32.mrb[0].mxu0
    %2227 = vmatprep.mubr.f32.mxu0 0.0
    %2228 = vmatmul.mubr.f32.gmra.mrb[0].mxu0 %v650
    %v2229 = vpop.f32.mrb[0].mxu0
    %v2230 = vadd.f32 %v541, %v2229
    %v2231 = vpop.f32.mrb[0].mxu0
    %2232 = vmatprep.mubr.f32.mxu0 0.0
    %2233 = vmatmul.mubr.f32.gmra.mrb[0].mxu0 %v653
    %v2234 = vpop.f32.mrb[0].mxu0
    %v2235 = vadd.f32 %v541, %v2234
    %v2236 = vpop.f32.mrb[0].mxu0
    %2237 = vmatprep.mubr.f32.mxu0 0.0
    %2238 = vmatmul.mubr.f32.gmra.mrb[0].mxu0 %v656
    %v2239 = vpop.f32.mrb[0].mxu0
    %v2240 = vadd.f32 %v541, %v2239
    %v2241 = vpop.f32.mrb[0].mxu0
    %2242 = vmatprep.mubr.f32.mxu0 0.0
    %2243 = vmatmul.mubr.f32.gmra.mrb[0].mxu0 %v659
    %v2244 = vpop.f32.mrb[0].mxu0
    %v2245 = vadd.f32 %v541, %v2244
    %v2246 = vpop.f32.mrb[0].mxu0
    %2247 = vmatprep.mubr.f32.mxu0 0.0
    %2248 = vmatmul.mubr.f32.gmra.mrb[0].mxu0 %v662
    %v2249 = vpop.f32.mrb[0].mxu0
    %v2250 = vadd.f32 %v541, %v2249
    %v2251 = vpop.f32.mrb[0].mxu0
    %2252 = vmatprep.mubr.f32.mxu0 0.0
    %2253 = vmatmul.mubr.f32.gmra.mrb[0].mxu0 %v665
    %v2254 = vpop.f32.mrb[0].mxu0
    %v2255 = vadd.f32 %v541, %v2254
    %v2256 = vpop.f32.mrb[0].mxu0
    %2257 = vmatprep.mubr.f32.mxu0 0.0
    %2258 = vmatmul.mubr.f32.gmra.mrb[0].mxu0 %v668
    %v2259 = vpop.f32.mrb[0].mxu0
    %v2260 = vadd.f32 %v541, %v2259
    %v2261 = vpop.f32.mrb[0].mxu0
    %2262 = vmatprep.mubr.f32.mxu0 0.0
    %2263 = vmatmul.mubr.f32.gmra.mrb[0].mxu0 %v671
    %v2264 = vpop.f32.mrb[0].mxu0
    %v2265 = vadd.f32 %v541, %v2264
    %v2266 = vpop.f32.mrb[0].mxu0
    %2267 = vmatprep.mubr.f32.mxu0 0.0
    %2268 = vmatmul.mubr.f32.gmra.mrb[0].mxu0 %v674
    %v2269 = vpop.f32.mrb[0].mxu0
    %v2270 = vadd.f32 %v541, %v2269
    %v2271 = vpop.f32.mrb[0].mxu0
    %2272 = vmatprep.mubr.f32.mxu0 0.0
    %2273 = vmatmul.mubr.f32.gmra.mrb[0].mxu0 %v677
    %v2274 = vpop.f32.mrb[0].mxu0
    %v2275 = vadd.f32 %v541, %v2274
    %v2276 = vpop.f32.mrb[0].mxu0
    %2277 = vmatprep.mubr.f32.mxu0 0.0
    %2278 = vmatmul.mubr.f32.gmra.mrb[0].mxu0 %v680
    %v2279 = vpop.f32.mrb[0].mxu0
    %v2280 = vadd.f32 %v541, %v2279
    %v2281 = vpop.f32.mrb[0].mxu0
    %2282 = vmatprep.mubr.f32.mxu0 0.0
    %2283 = vmatmul.mubr.f32.gmra.mrb[0].mxu0 %v683
    %v2284 = vpop.f32.mrb[0].mxu0
    %v2285 = vadd.f32 %v541, %v2284
    %v2286 = vpop.f32.mrb[0].mxu0
    %2287 = vmatprep.mubr.f32.mxu0 0.0
    %2288 = vmatmul.mubr.f32.gmra.mrb[0].mxu0 %v686
    %v2289 = vpop.f32.mrb[0].mxu0
    %v2290 = vadd.f32 %v541, %v2289
    %v2291 = vpop.f32.mrb[0].mxu0
    %2292 = vmatprep.mubr.f32.mxu0 0.0
    %2293 = vmatmul.mubr.f32.gmra.mrb[0].mxu0 %v689
    %v2294 = vpop.f32.mrb[0].mxu0
    %v2295 = vadd.f32 %v541, %v2294
    %v2296 = vpop.f32.mrb[0].mxu0
    %2297 = vmatprep.mubr.f32.mxu0 0.0
    %2298 = vmatmul.mubr.f32.gmra.mrb[0].mxu0 %v692
    %v2299 = vpop.f32.mrb[0].mxu0
    %v2300 = vadd.f32 %v541, %v2299
    %v2301 = vpop.f32.mrb[0].mxu0
    %2302 = vmatprep.mubr.f32.mxu0 0.0
    %2303 = vmatmul.mubr.f32.gmra.mrb[0].mxu0 %v695
    %v2304 = vpop.f32.mrb[0].mxu0
    %v2305 = vadd.f32 %v541, %v2304
    %v2306 = vpop.f32.mrb[0].mxu0
    %2307 = vmatprep.mubr.f32.mxu0 0.0
    %2308 = vmatmul.mubr.f32.gmra.mrb[0].mxu0 %v698
    %v2309 = vpop.f32.mrb[0].mxu0
    %v2310 = vadd.f32 %v541, %v2309
    %v2311 = vpop.f32.mrb[0].mxu0
    %2312 = vmatprep.mubr.f32.mxu0 0.0
    %2313 = vmatmul.mubr.f32.gmra.mrb[0].mxu0 %v701
    %v2314 = vpop.f32.mrb[0].mxu0
    %v2315 = vadd.f32 %v541, %v2314
    %v2316 = vpop.f32.mrb[0].mxu0
    %2317 = vmatprep.mubr.f32.mxu0 0.0
    %2318 = vmatmul.mubr.f32.gmra.mrb[0].mxu0 %v704
    %v2319 = vpop.f32.mrb[0].mxu0
    %v2320 = vadd.f32 %v541, %v2319
    %v2321 = vpop.f32.mrb[0].mxu0
    %2322 = vmatprep.mubr.f32.mxu0 0.0
    %2323 = vmatmul.mubr.f32.gmra.mrb[0].mxu0 %v707
    %v2324 = vpop.f32.mrb[0].mxu0
    %v2325 = vadd.f32 %v541, %v2324
    %v2326 = vpop.f32.mrb[0].mxu0
    %2327 = vmatprep.mubr.f32.mxu0 0.0
    %2328 = vmatmul.mubr.f32.gmra.mrb[0].mxu0 %v710
    %v2329 = vpop.f32.mrb[0].mxu0
    %v2330 = vadd.f32 %v541, %v2329
    %v2331 = vpop.f32.mrb[0].mxu0
    %2332 = vmatprep.mubr.f32.mxu0 0.0
    %2333 = vmatmul.mubr.f32.gmra.mrb[0].mxu0 %v713
    %v2334 = vpop.f32.mrb[0].mxu0
    %v2335 = vadd.f32 %v541, %v2334
    %v2336 = vpop.f32.mrb[0].mxu0
    %2337 = vmatprep.mubr.f32.mxu0 0.0
    %2338 = vmatmul.mubr.f32.gmra.mrb[0].mxu0 %v716
    %v2339 = vpop.f32.mrb[0].mxu0
    %v2340 = vadd.f32 %v541, %v2339
    %v2341 = vpop.f32.mrb[0].mxu0
    %2342 = vmatprep.mubr.f32.mxu0 0.0
    %2343 = vmatmul.mubr.f32.gmra.mrb[0].mxu0 %v719
    %v2344 = vpop.f32.mrb[0].mxu0
    %v2345 = vadd.f32 %v541, %v2344
    %v2346 = vpop.f32.mrb[0].mxu0
    %2347 = vmatprep.mubr.f32.mxu0 0.0
    %2348 = vmatmul.mubr.f32.gmra.mrb[0].mxu0 %v722
    %v2349 = vpop.f32.mrb[0].mxu0
    %v2350 = vadd.f32 %v541, %v2349
    %v2351 = vpop.f32.mrb[0].mxu0
    %2352 = vmatprep.mubr.f32.mxu0 0.0
    %2353 = vmatmul.mubr.f32.gmra.mrb[0].mxu0 %v725
    %v2354 = vpop.f32.mrb[0].mxu0
    %v2355 = vadd.f32 %v541, %v2354
    %v2356 = vpop.f32.mrb[0].mxu0
    %2357 = vmatprep.mubr.f32.mxu0 0.0
    %2358 = vmatmul.mubr.f32.gmra.mrb[0].mxu0 %v728
    %v2359 = vpop.f32.mrb[0].mxu0
    %v2360 = vadd.f32 %v541, %v2359
    %v2361 = vpop.f32.mrb[0].mxu0
    %2362 = vmatprep.mubr.f32.mxu0 0.0
    %2363 = vmatmul.mubr.f32.gmra.mrb[0].mxu0 %v731
    %v2364 = vpop.f32.mrb[0].mxu0
    %v2365 = vadd.f32 %v541, %v2364
    %v2366 = vpop.f32.mrb[0].mxu0
    %2367 = vmatprep.mubr.f32.mxu0 0.0
    %2368 = vmatmul.mubr.f32.gmra.mrb[0].mxu0 %v734
    %v2369 = vpop.f32.mrb[0].mxu0
    %v2370 = vadd.f32 %v541, %v2369
    %v2371 = vpop.f32.mrb[0].mxu0
    %2372 = vmatprep.mubr.f32.mxu0 0.0
    %2373 = vmatmul.mubr.f32.gmra.mrb[0].mxu0 %v737
    %v2374 = vpop.f32.mrb[0].mxu0
    %v2375 = vadd.f32 %v541, %v2374
    %v2376 = vpop.f32.mrb[0].mxu0
    %2377 = vmatprep.mubr.f32.mxu0 0.0
    %2378 = vmatmul.mubr.f32.gmra.mrb[0].mxu0 %v740
    %v2379 = vpop.f32.mrb[0].mxu0
    %v2380 = vadd.f32 %v541, %v2379
    %v2381 = vpop.f32.mrb[0].mxu0
    %2382 = vmatprep.mubr.f32.mxu0 0.0
    %2383 = vmatmul.mubr.f32.gmra.mrb[0].mxu0 %v743
    %v2384 = vpop.f32.mrb[0].mxu0
    %v2385 = vadd.f32 %v541, %v2384
    %v2386 = vpop.f32.mrb[0].mxu0
    %2387 = vmatprep.mubr.f32.mxu0 0.0
    %2388 = vmatmul.mubr.f32.gmra.mrb[0].mxu0 %v746
    %v2389 = vpop.f32.mrb[0].mxu0
    %v2390 = vadd.f32 %v541, %v2389
    %v2391 = vpop.f32.mrb[0].mxu0
    %2392 = vmatprep.mubr.f32.mxu0 0.0
    %2393 = vmatmul.mubr.f32.gmra.mrb[0].mxu0 %v749
    %v2394 = vpop.f32.mrb[0].mxu0
    %v2395 = vadd.f32 %v541, %v2394
    %v2396 = vpop.f32.mrb[0].mxu0
    %2397 = vmatprep.mubr.f32.mxu0 0.0
    %2398 = vmatmul.mubr.f32.gmra.mrb[0].mxu0 %v752
    %v2399 = vpop.f32.mrb[0].mxu0
    %v2400 = vadd.f32 %v541, %v2399
    %v2401 = vpop.f32.mrb[0].mxu0
    %2402 = vmatprep.mubr.f32.mxu0 0.0
    %2403 = vmatmul.mubr.f32.gmra.mrb[0].mxu0 %v755
    %v2404 = vpop.f32.mrb[0].mxu0
    %v2405 = vadd.f32 %v541, %v2404
    %v2406 = vpop.f32.mrb[0].mxu0
    %2407 = vmatprep.mubr.f32.mxu0 0.0
    %2408 = vmatmul.mubr.f32.gmra.mrb[0].mxu0 %v758
    %v2409 = vpop.f32.mrb[0].mxu0
    %v2410 = vadd.f32 %v541, %v2409
    %v2411 = vpop.f32.mrb[0].mxu0
    %2412 = vmatprep.mubr.f32.mxu0 0.0
    %2413 = vmatmul.mubr.f32.gmra.mrb[0].mxu0 %v761
    %v2414 = vpop.f32.mrb[0].mxu0
    %v2415 = vadd.f32 %v541, %v2414
    %v2416 = vpop.f32.mrb[0].mxu0
    %2417 = vmatprep.mubr.f32.mxu0 0.0
    %2418 = vmatmul.mubr.f32.gmra.mrb[0].mxu0 %v764
    %v2419 = vpop.f32.mrb[0].mxu0
    %v2420 = vadd.f32 %v541, %v2419
    %v2421 = vpop.f32.mrb[0].mxu0
    %2422 = vmatprep.mubr.f32.mxu0 0.0
    %2423 = vmatmul.mubr.f32.gmra.mrb[0].mxu0 %v767
    %v2424 = vpop.f32.mrb[0].mxu0
    %v2425 = vadd.f32 %v541, %v2424
    %v2426 = vpop.f32.mrb[0].mxu0
    %2427 = vmatprep.mubr.f32.mxu0 0.0
    %2428 = vmatmul.mubr.f32.gmra.mrb[0].mxu0 %v770
    %v2429 = vpop.f32.mrb[0].mxu0
    %v2430 = vadd.f32 %v541, %v2429
    %v2431 = vpop.f32.mrb[0].mxu0
    %2432 = vmatprep.mubr.f32.mxu0 0.0
    %2433 = vmatmul.mubr.f32.gmra.mrb[0].mxu0 %v773
    %v2434 = vpop.f32.mrb[0].mxu0
    %v2435 = vadd.f32 %v541, %v2434
    %v2436 = vpop.f32.mrb[0].mxu0
    %2437 = vmatprep.mubr.f32.mxu0 0.0
    %2438 = vmatmul.mubr.f32.gmra.mrb[0].mxu0 %v776
    %v2439 = vpop.f32.mrb[0].mxu0
    %v2440 = vadd.f32 %v541, %v2439
    %v2441 = vpop.f32.mrb[0].mxu0
    %2442 = vmatprep.mubr.f32.mxu0 0.0
    %2443 = vmatmul.mubr.f32.gmra.mrb[0].mxu0 %v779
    %v2444 = vpop.f32.mrb[0].mxu0
    %v2445 = vadd.f32 %v541, %v2444
    %v2446 = vpop.f32.mrb[0].mxu0
    %2447 = vmatprep.mubr.f32.mxu0 0.0
    %2448 = vmatmul.mubr.f32.gmra.mrb[0].mxu0 %v782
    %v2449 = vpop.f32.mrb[0].mxu0
    %v2450 = vadd.f32 %v541, %v2449
    %v2451 = vpop.f32.mrb[0].mxu0
    %2452 = vmatprep.mubr.f32.mxu0 0.0
    %2453 = vmatmul.mubr.f32.gmra.mrb[0].mxu0 %v785
    %v2454 = vpop.f32.mrb[0].mxu0
    %v2455 = vadd.f32 %v541, %v2454
    %v2456 = vpop.f32.mrb[0].mxu0
    %2457 = vmatprep.mubr.f32.mxu0 0.0
    %2458 = vmatmul.mubr.f32.gmra.mrb[0].mxu0 %v788
    %v2459 = vpop.f32.mrb[0].mxu0
    %v2460 = vadd.f32 %v541, %v2459
    %v2461 = vpop.f32.mrb[0].mxu0
    %2462 = vmatprep.mubr.f32.mxu0 0.0
    %2463 = vmatmul.mubr.f32.gmra.mrb[0].mxu0 %v791
    %v2464 = vpop.f32.mrb[0].mxu0
    %v2465 = vadd.f32 %v541, %v2464
    %v2466 = vpop.f32.mrb[0].mxu0
    %2467 = vmatprep.mubr.f32.mxu0 0.0
    %2468 = vmatmul.mubr.f32.gmra.mrb[0].mxu0 %v794
    %v2469 = vpop.f32.mrb[0].mxu0
    %v2470 = vadd.f32 %v541, %v2469
    %v2471 = vpop.f32.mrb[0].mxu0
    %2472 = vmatprep.mubr.f32.mxu0 0.0
    %2473 = vmatmul.mubr.f32.gmra.mrb[0].mxu0 %v797
    %v2474 = vpop.f32.mrb[0].mxu0
    %v2475 = vadd.f32 %v541, %v2474
    %v2476 = vpop.f32.mrb[0].mxu0
    %2477 = vmatprep.mubr.f32.mxu0 0.0
    %2478 = vmatmul.mubr.f32.gmra.mrb[0].mxu0 %v800
    %v2479 = vpop.f32.mrb[0].mxu0
    %v2480 = vadd.f32 %v541, %v2479
    %v2481 = vpop.f32.mrb[0].mxu0
    %2482 = vmatprep.mubr.f32.mxu0 0.0
    %2483 = vmatmul.mubr.f32.gmra.mrb[0].mxu0 %v803
    %v2484 = vpop.f32.mrb[0].mxu0
    %v2485 = vadd.f32 %v541, %v2484
    %v2486 = vpop.f32.mrb[0].mxu0
    %2487 = vmatprep.mubr.f32.mxu0 0.0
    %2488 = vmatmul.mubr.f32.gmra.mrb[0].mxu0 %v806
    %v2489 = vpop.f32.mrb[0].mxu0
    %v2490 = vadd.f32 %v541, %v2489
    %v2491 = vpop.f32.mrb[0].mxu0
    %2492 = vmatprep.mubr.f32.mxu0 0.0
    %2493 = vmatmul.mubr.f32.gmra.mrb[0].mxu0 %v809
    %v2494 = vpop.f32.mrb[0].mxu0
    %v2495 = vadd.f32 %v541, %v2494
    %v2496 = vpop.f32.mrb[0].mxu0
    %2497 = vmatprep.mubr.f32.mxu0 0.0
    %2498 = vmatmul.mubr.f32.gmra.mrb[0].mxu0 %v812
    %v2499 = vpop.f32.mrb[0].mxu0
    %v2500 = vadd.f32 %v541, %v2499
    %v2501 = vpop.f32.mrb[0].mxu0
    %2502 = vmatprep.mubr.f32.mxu0 0.0
    %2503 = vmatmul.mubr.f32.gmra.mrb[0].mxu0 %v815
    %v2504 = vpop.f32.mrb[0].mxu0
    %v2505 = vadd.f32 %v541, %v2504
    %v2506 = vpop.f32.mrb[0].mxu0
    %2507 = vmatprep.mubr.f32.mxu0 0.0
    %2508 = vmatmul.mubr.f32.gmra.mrb[0].mxu0 %v818
    %v2509 = vpop.f32.mrb[0].mxu0
    %v2510 = vadd.f32 %v541, %v2509
    %v2511 = vpop.f32.mrb[0].mxu0
    %2512 = vmatprep.mubr.f32.mxu0 0.0
    %2513 = vmatmul.mubr.f32.gmra.mrb[0].mxu0 %v821
    %v2514 = vpop.f32.mrb[0].mxu0
    %v2515 = vadd.f32 %v541, %v2514
    %v2516 = vpop.f32.mrb[0].mxu0
    %2517 = vmatprep.mubr.f32.mxu0 0.0
    %2518 = vmatmul.mubr.f32.gmra.mrb[0].mxu0 %v824
    %v2519 = vpop.f32.mrb[0].mxu0
    %v2520 = vadd.f32 %v541, %v2519
    %v2521 = vpop.f32.mrb[0].mxu0
    %2522 = vmatprep.mubr.f32.mxu0 0.0
    %2523 = vmatmul.mubr.f32.gmra.mrb[0].mxu0 %v827
    %v2524 = vpop.f32.mrb[0].mxu0
    %v2525 = vadd.f32 %v541, %v2524
    %v2526 = vpop.f32.mrb[0].mxu0
    %2527 = vmatprep.mubr.f32.mxu0 0.0
    %2528 = vmatmul.mubr.f32.gmra.mrb[0].mxu0 %v830
    %v2529 = vpop.f32.mrb[0].mxu0
    %v2530 = vadd.f32 %v541, %v2529
    %v2531 = vpop.f32.mrb[0].mxu0
    %2532 = vmatprep.mubr.f32.mxu0 0.0
    %2533 = vmatmul.mubr.f32.gmra.mrb[0].mxu0 %v833
    %v2534 = vpop.f32.mrb[0].mxu0
    %v2535 = vadd.f32 %v541, %v2534
    %v2536 = vpop.f32.mrb[0].mxu0
    %2537 = vmatprep.mubr.f32.mxu0 0.0
    %2538 = vmatmul.mubr.f32.gmra.mrb[0].mxu0 %v836
    %v2539 = vpop.f32.mrb[0].mxu0
    %v2540 = vadd.f32 %v541, %v2539
    %v2541 = vpop.f32.mrb[0].mxu0
    %2542 = vmatprep.mubr.f32.mxu0 0.0
    %2543 = vmatmul.mubr.f32.gmra.mrb[0].mxu0 %v839
    %v2544 = vpop.f32.mrb[0].mxu0
    %v2545 = vadd.f32 %v541, %v2544
    %v2546 = vpop.f32.mrb[0].mxu0
    %2547 = vmatprep.mubr.f32.mxu0 0.0
    %2548 = vmatmul.mubr.f32.gmra.mrb[0].mxu0 %v842
    %v2549 = vpop.f32.mrb[0].mxu0
    %v2550 = vadd.f32 %v541, %v2549
    %v2551 = vpop.f32.mrb[0].mxu0
    %2552 = vmatprep.mubr.f32.mxu0 0.0
    %2553 = vmatmul.mubr.f32.gmra.mrb[0].mxu0 %v845
    %v2554 = vpop.f32.mrb[0].mxu0
    %v2555 = vadd.f32 %v541, %v2554
    %v2556 = vpop.f32.mrb[0].mxu0
    %2557 = vmatprep.mubr.f32.mxu0 0.0
    %2558 = vmatmul.mubr.f32.gmra.mrb[0].mxu0 %v848
    %v2559 = vpop.f32.mrb[0].mxu0
    %v2560 = vadd.f32 %v541, %v2559
    %v2561 = vpop.f32.mrb[0].mxu0
    %2562 = vmatprep.mubr.f32.mxu0 0.0
    %2563 = vmatmul.mubr.f32.gmra.mrb[0].mxu0 %v851
    %v2564 = vpop.f32.mrb[0].mxu0
    %v2565 = vadd.f32 %v541, %v2564
    %v2566 = vpop.f32.mrb[0].mxu0
    %2567 = vmatprep.mubr.f32.mxu0 0.0
    %2568 = vmatmul.mubr.f32.gmra.mrb[0].mxu0 %v854
    %v2569 = vpop.f32.mrb[0].mxu0
    %v2570 = vadd.f32 %v541, %v2569
    %v2571 = vpop.f32.mrb[0].mxu0
    %2572 = vmatprep.mubr.f32.mxu0 0.0
    %2573 = vmatmul.mubr.f32.gmra.mrb[0].mxu0 %v857
    %v2574 = vpop.f32.mrb[0].mxu0
    %v2575 = vadd.f32 %v541, %v2574
    %v2576 = vpop.f32.mrb[0].mxu0
    %2577 = vmatprep.mubr.f32.mxu0 0.0
    %2578 = vmatmul.mubr.f32.gmra.mrb[0].mxu0 %v860
    %v2579 = vpop.f32.mrb[0].mxu0
    %v2580 = vadd.f32 %v541, %v2579
    %v2581 = vpop.f32.mrb[0].mxu0
    %2582 = vmatprep.mubr.f32.mxu0 0.0
    %2583 = vmatmul.mubr.f32.gmra.mrb[0].mxu0 %v863
    %v2584 = vpop.f32.mrb[0].mxu0
    %v2585 = vadd.f32 %v541, %v2584
    %v2586 = vpop.f32.mrb[0].mxu0
    %2587 = vmatprep.mubr.f32.mxu0 0.0
    %2588 = vmatmul.mubr.f32.gmra.mrb[0].mxu0 %v866
    %v2589 = vpop.f32.mrb[0].mxu0
    %v2590 = vadd.f32 %v541, %v2589
    %v2591 = vpop.f32.mrb[0].mxu0
    %2592 = vmatprep.mubr.f32.mxu0 0.0
    %2593 = vmatmul.mubr.f32.gmra.mrb[0].mxu0 %v869
    %v2594 = vpop.f32.mrb[0].mxu0
    %v2595 = vadd.f32 %v541, %v2594
    %v2596 = vpop.f32.mrb[0].mxu0
    %2597 = vmatprep.mubr.f32.mxu0 0.0
    %2598 = vmatmul.mubr.f32.gmra.mrb[0].mxu0 %v872
    %v2599 = vpop.f32.mrb[0].mxu0
    %v2600 = vadd.f32 %v541, %v2599
    %v2601 = vpop.f32.mrb[0].mxu0
    %2602 = vmatprep.mubr.f32.mxu0 0.0
    %2603 = vmatmul.mubr.f32.gmra.mrb[0].mxu0 %v875
    %v2604 = vpop.f32.mrb[0].mxu0
    %v2605 = vadd.f32 %v541, %v2604
    %v2606 = vpop.f32.mrb[0].mxu0
    %2607 = vmatprep.mubr.f32.mxu0 0.0
    %2608 = vmatmul.mubr.f32.gmra.mrb[0].mxu0 %v878
    %v2609 = vpop.f32.mrb[0].mxu0
    %v2610 = vadd.f32 %v541, %v2609
    %v2611 = vpop.f32.mrb[0].mxu0
    %2612 = vmatprep.mubr.f32.mxu0 0.0
    %2613 = vmatmul.mubr.f32.gmra.mrb[0].mxu0 %v881
    %v2614 = vpop.f32.mrb[0].mxu0
    %v2615 = vadd.f32 %v541, %v2614
    %v2616 = vpop.f32.mrb[0].mxu0
    %2617 = vmatprep.mubr.f32.mxu0 0.0
    %2618 = vmatmul.mubr.f32.gmra.mrb[0].mxu0 %v884
    %v2619 = vpop.f32.mrb[0].mxu0
    %v2620 = vadd.f32 %v541, %v2619
    %v2621 = vpop.f32.mrb[0].mxu0
    %2622 = vmatprep.mubr.f32.mxu0 0.0
    %2623 = vmatmul.mubr.f32.gmra.mrb[0].mxu0 %v887
    %v2624 = vpop.f32.mrb[0].mxu0
    %v2625 = vadd.f32 %v541, %v2624
    %v2626 = vpop.f32.mrb[0].mxu0
    %2627 = vmatprep.mubr.f32.mxu0 0.0
    %2628 = vmatmul.mubr.f32.gmra.mrb[0].mxu0 %v890
    %v2629 = vpop.f32.mrb[0].mxu0
    %v2630 = vadd.f32 %v541, %v2629
    %v2631 = vpop.f32.mrb[0].mxu0
    %2632 = vmatprep.mubr.f32.mxu0 0.0
    %2633 = vmatmul.mubr.f32.gmra.mrb[0].mxu0 %v893
    %v2634 = vpop.f32.mrb[0].mxu0
    %v2635 = vadd.f32 %v541, %v2634
    %v2636 = vpop.f32.mrb[0].mxu0
    %2637 = vmatprep.mubr.f32.mxu0 0.0
    %2638 = vmatmul.mubr.f32.gmra.mrb[0].mxu0 %v896
    %v2639 = vpop.f32.mrb[0].mxu0
    %v2640 = vadd.f32 %v541, %v2639
    %v2641 = vpop.f32.mrb[0].mxu0
    %2642 = vmatprep.mubr.f32.mxu0 0.0
    %2643 = vmatmul.mubr.f32.gmra.mrb[0].mxu0 %v899
    %v2644 = vpop.f32.mrb[0].mxu0
    %v2645 = vadd.f32 %v541, %v2644
    %v2646 = vpop.f32.mrb[0].mxu0
    %2647 = vmatprep.mubr.f32.mxu0 0.0
    %2648 = vmatmul.mubr.f32.gmra.mrb[0].mxu0 %v902
    %v2649 = vpop.f32.mrb[0].mxu0
    %v2650 = vadd.f32 %v541, %v2649
    %v2651 = vpop.f32.mrb[0].mxu0
    %2652 = vmatprep.mubr.f32.mxu0 0.0
    %2653 = vmatmul.mubr.f32.gmra.mrb[0].mxu0 %v905
    %v2654 = vpop.f32.mrb[0].mxu0
    %v2655 = vadd.f32 %v541, %v2654
    %v2656 = vpop.f32.mrb[0].mxu0
    %2657 = vmatprep.mubr.f32.mxu0 0.0
    %2658 = vmatmul.mubr.f32.gmra.mrb[0].mxu0 %v908
    %v2659 = vpop.f32.mrb[0].mxu0
    %v2660 = vadd.f32 %v541, %v2659
    %v2661 = vpop.f32.mrb[0].mxu0
    %2662 = vmatprep.mubr.f32.mxu0 0.0
    %2663 = vmatmul.mubr.f32.gmra.mrb[0].mxu0 %v911
    %v2664 = vpop.f32.mrb[0].mxu0
    %v2665 = vadd.f32 %v541, %v2664
    %v2666 = vpop.f32.mrb[0].mxu0
    %2667 = vmatprep.mubr.f32.mxu0 0.0
    %2668 = vmatmul.mubr.f32.gmra.mrb[0].mxu0 %v914
    %v2669 = vpop.f32.mrb[0].mxu0
    %v2670 = vadd.f32 %v541, %v2669
    %v2671 = vpop.f32.mrb[0].mxu0
    %2672 = vmatprep.mubr.f32.mxu0 0.0
    %2673 = vmatmul.mubr.f32.gmra.mrb[0].mxu0 %v917
    %v2674 = vpop.f32.mrb[0].mxu0
    %v2675 = vadd.f32 %v541, %v2674
    %v2676 = vpop.f32.mrb[0].mxu0
    %2677 = vmatprep.mubr.f32.mxu0 0.0
    %2678 = vmatmul.mubr.f32.gmra.mrb[0].mxu0 %v920
    %v2679 = vpop.f32.mrb[0].mxu0
    %v2680 = vadd.f32 %v541, %v2679
    %v2681 = vpop.f32.mrb[0].mxu0
    %2682 = vmatprep.mubr.f32.mxu0 0.0
    %2683 = vmatmul.mubr.f32.gmra.mrb[0].mxu0 %v923
    %v2684 = vpop.f32.mrb[0].mxu0
    %v2685 = vadd.f32 %v541, %v2684
    %v2686 = vpop.f32.mrb[0].mxu0
    %2687 = vmatprep.mubr.f32.mxu0 0.0
    %2688 = vmatmul.mubr.f32.gmra.mrb[0].mxu0 %v926
    %v2689 = vpop.f32.mrb[0].mxu0
    %v2690 = vadd.f32 %v541, %v2689
    %v2691 = vpop.f32.mrb[0].mxu0
    %2692 = vmatprep.mubr.f32.mxu0 0.0
    %2693 = vmatmul.mubr.f32.gmra.mrb[0].mxu0 %v929
    %v2694 = vpop.f32.mrb[0].mxu0
    %v2695 = vadd.f32 %v541, %v2694
    %v2696 = vpop.f32.mrb[0].mxu0
    %2697 = vmatprep.mubr.f32.mxu0 0.0
    %2698 = vmatmul.mubr.f32.gmra.mrb[0].mxu0 %v932
    %v2699 = vpop.f32.mrb[0].mxu0
    %v2700 = vadd.f32 %v541, %v2699
    %v2701 = vpop.f32.mrb[0].mxu0
    %2702 = vmatprep.mubr.f32.mxu0 0.0
    %2703 = vmatmul.mubr.f32.gmra.mrb[0].mxu0 %v935
    %v2704 = vpop.f32.mrb[0].mxu0
    %v2705 = vadd.f32 %v541, %v2704
    %v2706 = vpop.f32.mrb[0].mxu0
    %2707 = vmatprep.mubr.f32.mxu0 0.0
    %2708 = vmatmul.mubr.f32.gmra.mrb[0].mxu0 %v938
    %v2709 = vpop.f32.mrb[0].mxu0
    %v2710 = vadd.f32 %v541, %v2709
    %v2711 = vpop.f32.mrb[0].mxu0
    %2712 = vmatprep.mubr.f32.mxu0 0.0
    %2713 = vmatmul.mubr.f32.gmra.mrb[0].mxu0 %v941
    %v2714 = vpop.f32.mrb[0].mxu0
    %v2715 = vadd.f32 %v541, %v2714
    %v2716 = vpop.f32.mrb[0].mxu0
    %2717 = vmatprep.mubr.f32.mxu0 0.0
    %2718 = vmatmul.mubr.f32.gmra.mrb[0].mxu0 %v944
    %v2719 = vpop.f32.mrb[0].mxu0
    %v2720 = vadd.f32 %v541, %v2719
    %v2721 = vpop.f32.mrb[0].mxu0
    %2722 = vmatprep.mubr.f32.mxu0 0.0
    %2723 = vmatmul.mubr.f32.gmra.mrb[0].mxu0 %v947
    %v2724 = vpop.f32.mrb[0].mxu0
    %v2725 = vadd.f32 %v541, %v2724
    %v2726 = vpop.f32.mrb[0].mxu0
    %2727 = vmatprep.mubr.f32.mxu0 0.0
    %2728 = vmatmul.mubr.f32.gmra.mrb[0].mxu0 %v950
    %v2729 = vpop.f32.mrb[0].mxu0
    %v2730 = vadd.f32 %v541, %v2729
    %v2731 = vpop.f32.mrb[0].mxu0
    %2732 = vmatprep.mubr.f32.mxu0 0.0
    %2733 = vmatmul.mubr.f32.gmra.mrb[0].mxu0 %v953
    %v2734 = vpop.f32.mrb[0].mxu0
    %v2735 = vadd.f32 %v541, %v2734
    %v2736 = vpop.f32.mrb[0].mxu0
    %2737 = vmatprep.mubr.f32.mxu0 0.0
    %2738 = vmatmul.mubr.f32.gmra.mrb[0].mxu0 %v956
    %v2739 = vpop.f32.mrb[0].mxu0
    %v2740 = vadd.f32 %v541, %v2739
    %v2741 = vpop.f32.mrb[0].mxu0
    %2742 = vmatprep.mubr.f32.mxu0 0.0
    %2743 = vmatmul.mubr.f32.gmra.mrb[0].mxu0 %v959
    %v2744 = vpop.f32.mrb[0].mxu0
    %v2745 = vadd.f32 %v541, %v2744
    %v2746 = vpop.f32.mrb[0].mxu0
    %2747 = vmatprep.mubr.f32.mxu0 0.0
    %2748 = vmatmul.mubr.f32.gmra.mrb[0].mxu0 %v962
    %v2749 = vpop.f32.mrb[0].mxu0
    %v2750 = vadd.f32 %v541, %v2749
    %v2751 = vpop.f32.mrb[0].mxu0
    %2752 = vmatprep.mubr.f32.mxu0 0.0
    %2753 = vmatmul.mubr.f32.gmra.mrb[0].mxu0 %v965
    %v2754 = vpop.f32.mrb[0].mxu0
    %v2755 = vadd.f32 %v541, %v2754
    %v2756 = vpop.f32.mrb[0].mxu0
    %2757 = vmatprep.mubr.f32.mxu0 0.0
    %2758 = vmatmul.mubr.f32.gmra.mrb[0].mxu0 %v968
    %v2759 = vpop.f32.mrb[0].mxu0
    %v2760 = vadd.f32 %v541, %v2759
    %v2761 = vpop.f32.mrb[0].mxu0
    %2762 = vmatprep.mubr.f32.mxu0 0.0
    %2763 = vmatmul.mubr.f32.gmra.mrb[0].mxu0 %v971
    %v2764 = vpop.f32.mrb[0].mxu0
    %v2765 = vadd.f32 %v541, %v2764
    %v2766 = vpop.f32.mrb[0].mxu0
    %2767 = vmatprep.mubr.f32.mxu0 0.0
    %2768 = vmatmul.mubr.f32.gmra.mrb[0].mxu0 %v974
    %v2769 = vpop.f32.mrb[0].mxu0
    %v2770 = vadd.f32 %v541, %v2769
    %v2771 = vpop.f32.mrb[0].mxu0
    %2772 = vmatprep.mubr.f32.mxu0 0.0
    %2773 = vmatmul.mubr.f32.gmra.mrb[0].mxu0 %v977
    %v2774 = vpop.f32.mrb[0].mxu0
    %v2775 = vadd.f32 %v541, %v2774
    %v2776 = vpop.f32.mrb[0].mxu0
    %2777 = vmatprep.mubr.f32.mxu0 0.0
    %2778 = vmatmul.mubr.f32.gmra.mrb[0].mxu0 %v980
    %v2779 = vpop.f32.mrb[0].mxu0
    %v2780 = vadd.f32 %v541, %v2779
    %v2781 = vpop.f32.mrb[0].mxu0
    %2782 = vmatprep.mubr.f32.mxu0 0.0
    %2783 = vmatmul.mubr.f32.gmra.mrb[0].mxu0 %v983
    %v2784 = vpop.f32.mrb[0].mxu0
    %v2785 = vadd.f32 %v541, %v2784
    %v2786 = vpop.f32.mrb[0].mxu0
    %2787 = vmatprep.mubr.f32.mxu0 0.0
    %2788 = vmatmul.mubr.f32.gmra.mrb[0].mxu0 %v986
    %v2789 = vpop.f32.mrb[0].mxu0
    %v2790 = vadd.f32 %v541, %v2789
    %v2791 = vpop.f32.mrb[0].mxu0
    %2792 = vmatprep.mubr.f32.mxu0 0.0
    %2793 = vmatmul.mubr.f32.gmra.mrb[0].mxu0 %v989
    %v2794 = vpop.f32.mrb[0].mxu0
    %v2795 = vadd.f32 %v541, %v2794
    %v2796 = vpop.f32.mrb[0].mxu0
    %2797 = vmatprep.mubr.f32.mxu0 0.0
    %2798 = vmatmul.mubr.f32.gmra.mrb[0].mxu0 %v992
    %v2799 = vpop.f32.mrb[0].mxu0
    %v2800 = vadd.f32 %v541, %v2799
    %v2801 = vpop.f32.mrb[0].mxu0
    %2802 = vmatprep.mubr.f32.mxu0 0.0
    %2803 = vmatmul.mubr.f32.gmra.mrb[0].mxu0 %v995
    %v2804 = vpop.f32.mrb[0].mxu0
    %v2805 = vadd.f32 %v541, %v2804
    %v2806 = vpop.f32.mrb[0].mxu0
    %2807 = vmatprep.mubr.f32.mxu0 0.0
    %2808 = vmatmul.mubr.f32.gmra.mrb[0].mxu0 %v998
    %v2809 = vpop.f32.mrb[0].mxu0
    %v2810 = vadd.f32 %v541, %v2809
    %v2811 = vpop.f32.mrb[0].mxu0
    %2812 = vmatprep.mubr.f32.mxu0 0.0
    %2813 = vmatmul.mubr.f32.gmra.mrb[0].mxu0 %v1001
    %v2814 = vpop.f32.mrb[0].mxu0
    %v2815 = vadd.f32 %v541, %v2814
    %v2816 = vpop.f32.mrb[0].mxu0
    %2817 = vmatprep.mubr.f32.mxu0 0.0
    %2818 = vmatmul.mubr.f32.gmra.mrb[0].mxu0 %v1004
    %v2819 = vpop.f32.mrb[0].mxu0
    %v2820 = vadd.f32 %v541, %v2819
    %v2821 = vpop.f32.mrb[0].mxu0
    %2822 = vmatprep.mubr.f32.mxu0 0.0
    %2823 = vmatmul.mubr.f32.gmra.mrb[0].mxu0 %v1007
    %v2824 = vpop.f32.mrb[0].mxu0
    %v2825 = vadd.f32 %v541, %v2824
    %v2826 = vpop.f32.mrb[0].mxu0
    %2827 = vmatprep.mubr.f32.mxu0 0.0
    %2828 = vmatmul.mubr.f32.gmra.mrb[0].mxu0 %v1010
    %v2829 = vpop.f32.mrb[0].mxu0
    %v2830 = vadd.f32 %v541, %v2829
    %v2831 = vpop.f32.mrb[0].mxu0
    %2832 = vmatprep.mubr.f32.mxu0 0.0
    %2833 = vmatmul.mubr.f32.gmra.mrb[0].mxu0 %v1013
    %v2834 = vpop.f32.mrb[0].mxu0
    %v2835 = vadd.f32 %v541, %v2834
    %v2836 = vpop.f32.mrb[0].mxu0
    %2837 = vmatprep.mubr.f32.mxu0 0.0
    %2838 = vmatmul.mubr.f32.gmra.mrb[0].mxu0 %v1016
    %v2839 = vpop.f32.mrb[0].mxu0
    %v2840 = vadd.f32 %v541, %v2839
    %v2841 = vpop.f32.mrb[0].mxu0
    %2842 = vmatprep.mubr.f32.mxu0 0.0
    %2843 = vmatmul.mubr.f32.gmra.mrb[0].mxu0 %v1019
    %v2844 = vpop.f32.mrb[0].mxu0
    %v2845 = vadd.f32 %v541, %v2844
    %v2846 = vpop.f32.mrb[0].mxu0
    %2847 = vmatprep.mubr.f32.mxu0 0.0
    %2848 = vmatmul.mubr.f32.gmra.mrb[0].mxu0 %v1022
    %v2849 = vpop.f32.mrb[0].mxu0
    %v2850 = vadd.f32 %v541, %v2849
    %v2851 = vpop.f32.mrb[0].mxu0
    %2852 = vmatprep.mubr.f32.mxu0 0.0
    %2853 = vmatmul.mubr.f32.gmra.mrb[0].mxu0 %v1025
    %v2854 = vpop.f32.mrb[0].mxu0
    %v2855 = vadd.f32 %v541, %v2854
    %v2856 = vpop.f32.mrb[0].mxu0
    %2857 = vmatprep.mubr.f32.mxu0 0.0
    %2858 = vmatmul.mubr.f32.gmra.mrb[0].mxu0 %v1028
    %v2859 = vpop.f32.mrb[0].mxu0
    %v2860 = vadd.f32 %v541, %v2859
    %v2861 = vpop.f32.mrb[0].mxu0
    %2862 = vmatprep.mubr.f32.mxu0 0.0
    %2863 = vmatmul.mubr.f32.gmra.mrb[0].mxu0 %v1031
    %v2864 = vpop.f32.mrb[0].mxu0
    %v2865 = vadd.f32 %v541, %v2864
    %v2866 = vpop.f32.mrb[0].mxu0
    %2867 = vmatprep.mubr.f32.mxu0 0.0
    %2868 = vmatmul.mubr.f32.gmra.mrb[0].mxu0 %v1034
    %v2869 = vpop.f32.mrb[0].mxu0
    %v2870 = vadd.f32 %v541, %v2869
    %v2871 = vpop.f32.mrb[0].mxu0
    %2872 = vmatprep.mubr.f32.mxu0 0.0
    %2873 = vmatmul.mubr.f32.gmra.mrb[0].mxu0 %v1037
    %v2874 = vpop.f32.mrb[0].mxu0
    %v2875 = vadd.f32 %v541, %v2874
    %v2876 = vpop.f32.mrb[0].mxu0
    %2877 = vmatprep.mubr.f32.mxu0 0.0
    %2878 = vmatmul.mubr.f32.gmra.mrb[0].mxu0 %v1040
    %v2879 = vpop.f32.mrb[0].mxu0
    %v2880 = vadd.f32 %v541, %v2879
    %v2881 = vpop.f32.mrb[0].mxu0
    %2882 = vmatprep.mubr.f32.mxu0 0.0
    %2883 = vmatmul.mubr.f32.gmra.mrb[0].mxu0 %v1043
    %v2884 = vpop.f32.mrb[0].mxu0
    %v2885 = vadd.f32 %v541, %v2884
    %v2886 = vpop.f32.mrb[0].mxu0
    %2887 = vmatprep.mubr.f32.mxu0 0.0
    %2888 = vmatmul.mubr.f32.gmra.mrb[0].mxu0 %v1046
    %v2889 = vpop.f32.mrb[0].mxu0
    %v2890 = vadd.f32 %v541, %v2889
    %v2891 = vpop.f32.mrb[0].mxu0
    %2892 = vmatprep.mubr.f32.mxu0 0.0
    %2893 = vmatmul.mubr.f32.gmra.mrb[0].mxu0 %v1049
    %v2894 = vpop.f32.mrb[0].mxu0
    %v2895 = vadd.f32 %v541, %v2894
    %v2896 = vpop.f32.mrb[0].mxu0
    %2897 = vmatprep.mubr.f32.mxu0 0.0
    %2898 = vmatmul.mubr.f32.gmra.mrb[0].mxu0 %v1052
    %v2899 = vpop.f32.mrb[0].mxu0
    %v2900 = vadd.f32 %v541, %v2899
    %v2901 = vpop.f32.mrb[0].mxu0
    %2902 = vmatprep.mubr.f32.mxu0 0.0
    %2903 = vmatmul.mubr.f32.gmra.mrb[0].mxu0 %v1055
    %v2904 = vpop.f32.mrb[0].mxu0
    %v2905 = vadd.f32 %v541, %v2904
    %v2906 = vpop.f32.mrb[0].mxu0
    %2907 = vmatprep.mubr.f32.mxu0 0.0
    %2908 = vmatmul.mubr.f32.gmra.mrb[0].mxu0 %v1058
    %v2909 = vpop.f32.mrb[0].mxu0
    %v2910 = vadd.f32 %v541, %v2909
    %v2911 = vpop.f32.mrb[0].mxu0
    %2912 = vmatprep.mubr.f32.mxu0 0.0
    %2913 = vmatmul.mubr.f32.gmra.mrb[0].mxu0 %v1061
    %v2914 = vpop.f32.mrb[0].mxu0
    %v2915 = vadd.f32 %v541, %v2914
    %v2916 = vpop.f32.mrb[0].mxu0
    %2917 = vmatprep.mubr.f32.mxu0 0.0
    %2918 = vmatmul.mubr.f32.gmra.mrb[0].mxu0 %v1064
    %v2919 = vpop.f32.mrb[0].mxu0
    %v2920 = vadd.f32 %v541, %v2919
    %v2921 = vpop.f32.mrb[0].mxu0
    %2922 = vmatprep.mubr.f32.mxu0 0.0
    %2923 = vmatmul.mubr.f32.gmra.mrb[0].mxu0 %v1067
    %v2924 = vpop.f32.mrb[0].mxu0
    %v2925 = vadd.f32 %v541, %v2924
    %v2926 = vpop.f32.mrb[0].mxu0
    %2927 = vmatprep.mubr.f32.mxu0 0.0
    %2928 = vmatmul.mubr.f32.gmra.mrb[0].mxu0 %v1070
    %v2929 = vpop.f32.mrb[0].mxu0
    %v2930 = vadd.f32 %v541, %v2929
    %v2931 = vpop.f32.mrb[0].mxu0
    %2932 = vmatprep.mubr.f32.mxu0 0.0
    %2933 = vmatmul.mubr.f32.gmra.mrb[0].mxu0 %v1073
    %v2934 = vpop.f32.mrb[0].mxu0
    %v2935 = vadd.f32 %v541, %v2934
    %v2936 = vpop.f32.mrb[0].mxu0
    %2937 = vmatprep.mubr.f32.mxu0 0.0
    %2938 = vmatmul.mubr.f32.gmra.mrb[0].mxu0 %v1076
    %v2939 = vpop.f32.mrb[0].mxu0
    %v2940 = vadd.f32 %v541, %v2939
    %v2941 = vpop.f32.mrb[0].mxu0
    %2942 = vmatprep.mubr.f32.mxu0 0.0
    %2943 = vmatmul.mubr.f32.gmra.mrb[0].mxu0 %v1079
    %v2944 = vpop.f32.mrb[0].mxu0
    %v2945 = vadd.f32 %v541, %v2944
    %v2946 = vpop.f32.mrb[0].mxu0
    %2947 = vmatprep.mubr.f32.mxu0 0.0
    %2948 = vmatmul.mubr.f32.gmra.mrb[0].mxu0 %v1082
    %v2949 = vpop.f32.mrb[0].mxu0
    %v2950 = vadd.f32 %v541, %v2949
    %v2951 = vpop.f32.mrb[0].mxu0
    %2952 = vmatprep.mubr.f32.mxu0 0.0
    %2953 = vmatmul.mubr.f32.gmra.mrb[0].mxu0 %v1085
    %v2954 = vpop.f32.mrb[0].mxu0
    %v2955 = vadd.f32 %v541, %v2954
    %v2956 = vpop.f32.mrb[0].mxu0
    %2957 = vmatprep.mubr.f32.mxu0 0.0
    %2958 = vmatmul.mubr.f32.gmra.mrb[0].mxu0 %v1088
    %v2959 = vpop.f32.mrb[0].mxu0
    %v2960 = vadd.f32 %v541, %v2959
    %v2961 = vpop.f32.mrb[0].mxu0
    %2962 = vmatprep.mubr.f32.mxu0 0.0
    %2963 = vmatmul.mubr.f32.gmra.mrb[0].mxu0 %v1091
    %v2964 = vpop.f32.mrb[0].mxu0
    %v2965 = vadd.f32 %v541, %v2964
    %v2966 = vpop.f32.mrb[0].mxu0
    %2967 = vmatprep.mubr.f32.mxu0 0.0
    %2968 = vmatmul.mubr.f32.gmra.mrb[0].mxu0 %v1094
    %v2969 = vpop.f32.mrb[0].mxu0
    %v2970 = vadd.f32 %v541, %v2969
    %v2971 = vpop.f32.mrb[0].mxu0
    %2972 = vmatprep.mubr.f32.mxu0 0.0
    %2973 = vmatmul.mubr.f32.gmra.mrb[0].mxu0 %v1097
    %v2974 = vpop.f32.mrb[0].mxu0
    %v2975 = vadd.f32 %v541, %v2974
    %v2976 = vpop.f32.mrb[0].mxu0
    %2977 = vmatprep.mubr.f32.mxu0 0.0
    %2978 = vmatmul.mubr.f32.gmra.mrb[0].mxu0 %v1100
    %v2979 = vpop.f32.mrb[0].mxu0
    %v2980 = vadd.f32 %v541, %v2979
    %v2981 = vpop.f32.mrb[0].mxu0
    %2982 = vmatprep.mubr.f32.mxu0 0.0
    %2983 = vmatmul.mubr.f32.gmra.mrb[0].mxu0 %v1103
    %v2984 = vpop.f32.mrb[0].mxu0
    %v2985 = vadd.f32 %v541, %v2984
    %v2986 = vpop.f32.mrb[0].mxu0
    %2987 = vmatprep.mubr.f32.mxu0 0.0
    %2988 = vmatmul.mubr.f32.gmra.mrb[0].mxu0 %v1106
    %v2989 = vpop.f32.mrb[0].mxu0
    %v2990 = vadd.f32 %v541, %v2989
    %v2991 = vpop.f32.mrb[0].mxu0
    %2992 = vmatprep.mubr.f32.mxu0 0.0
    %2993 = vmatmul.mubr.f32.gmra.mrb[0].mxu0 %v1109
    %v2994 = vpop.f32.mrb[0].mxu0
    %v2995 = vadd.f32 %v541, %v2994
    %v2996 = vpop.f32.mrb[0].mxu0
    %2997 = vmatprep.mubr.f32.mxu0 0.0
    %2998 = vmatmul.mubr.f32.gmra.mrb[0].mxu0 %v1112
    %v2999 = vpop.f32.mrb[0].mxu0
    %v3000 = vadd.f32 %v541, %v2999
    %v3001 = vpop.f32.mrb[0].mxu0
    %3002 = vmatprep.mubr.f32.mxu0 0.0
    %3003 = vmatmul.mubr.f32.gmra.mrb[0].mxu0 %v1115
    %v3004 = vpop.f32.mrb[0].mxu0
    %v3005 = vadd.f32 %v541, %v3004
    %v3006 = vpop.f32.mrb[0].mxu0
    %3007 = vmatprep.mubr.f32.mxu0 0.0
    %3008 = vmatmul.mubr.f32.gmra.mrb[0].mxu0 %v1118
    %v3009 = vpop.f32.mrb[0].mxu0
    %v3010 = vadd.f32 %v541, %v3009
    %v3011 = vpop.f32.mrb[0].mxu0
    %3012 = vmatprep.mubr.f32.mxu0 0.0
    %3013 = vmatmul.mubr.f32.gmra.mrb[0].mxu0 %v1121
    %v3014 = vpop.f32.mrb[0].mxu0
    %v3015 = vadd.f32 %v541, %v3014
    %v3016 = vpop.f32.mrb[0].mxu0
    %3017 = vmatprep.mubr.f32.mxu0 0.0
    %3018 = vmatmul.mubr.f32.gmra.mrb[0].mxu0 %v1124
    %v3019 = vpop.f32.mrb[0].mxu0
    %v3020 = vadd.f32 %v541, %v3019
    %v3021 = vpop.f32.mrb[0].mxu0
    %3022 = vmatprep.mubr.f32.mxu0 0.0
    %3023 = vmatmul.mubr.f32.gmra.mrb[0].mxu0 %v1127
    %v3024 = vpop.f32.mrb[0].mxu0
    %v3025 = vadd.f32 %v541, %v3024
    %v3026 = vpop.f32.mrb[0].mxu0
    %3027 = vmatprep.mubr.f32.mxu0 0.0
    %3028 = vmatmul.mubr.f32.gmra.mrb[0].mxu0 %v1130
    %v3029 = vpop.f32.mrb[0].mxu0
    %v3030 = vadd.f32 %v541, %v3029
    %v3031 = vpop.f32.mrb[0].mxu0
    %3032 = vmatprep.mubr.f32.mxu0 0.0
    %3033 = vmatmul.mubr.f32.gmra.mrb[0].mxu0 %v1133
    %v3034 = vpop.f32.mrb[0].mxu0
    %v3035 = vadd.f32 %v541, %v3034
    %v3036 = vpop.f32.mrb[0].mxu0
    %3037 = vmatprep.mubr.f32.mxu0 0.0
    %3038 = vmatmul.mubr.f32.gmra.mrb[0].mxu0 %v1136
    %v3039 = vpop.f32.mrb[0].mxu0
    %v3040 = vadd.f32 %v541, %v3039
    %v3041 = vpop.f32.mrb[0].mxu0
    %3042 = vmatprep.mubr.f32.mxu0 0.0
    %3043 = vmatmul.mubr.f32.gmra.mrb[0].mxu0 %v1139
    %v3044 = vpop.f32.mrb[0].mxu0
    %v3045 = vadd.f32 %v541, %v3044
    %v3046 = vpop.f32.mrb[0].mxu0
    %3047 = vmatprep.mubr.f32.mxu0 0.0
    %3048 = vmatmul.mubr.f32.gmra.mrb[0].mxu0 %v1142
    %v3049 = vpop.f32.mrb[0].mxu0
    %v3050 = vadd.f32 %v541, %v3049
    %v3051 = vpop.f32.mrb[0].mxu0
    %3052 = vmatprep.mubr.f32.mxu0 0.0
    %3053 = vmatmul.mubr.f32.gmra.mrb[0].mxu0 %v1145
    %v3054 = vpop.f32.mrb[0].mxu0
    %v3055 = vadd.f32 %v541, %v3054
    %v3056 = vpop.f32.mrb[0].mxu0
    %3057 = vmatprep.mubr.f32.mxu0 0.0
    %3058 = vmatmul.mubr.f32.gmra.mrb[0].mxu0 %v1148
    %v3059 = vpop.f32.mrb[0].mxu0
    %v3060 = vadd.f32 %v541, %v3059
    %v3061 = vpop.f32.mrb[0].mxu0
    %3062 = vmatprep.mubr.f32.mxu0 0.0
    %3063 = vmatmul.mubr.f32.gmra.mrb[0].mxu0 %v1151
    %v3064 = vpop.f32.mrb[0].mxu0
    %v3065 = vadd.f32 %v541, %v3064
    %v3066 = vpop.f32.mrb[0].mxu0
    %3067 = vmatprep.mubr.f32.mxu0 0.0
    %3068 = vmatmul.mubr.f32.gmra.mrb[0].mxu0 %v1154
    %v3069 = vpop.f32.mrb[0].mxu0
    %v3070 = vadd.f32 %v541, %v3069
    %v3071 = vpop.f32.mrb[0].mxu0
    %3072 = vmatprep.mubr.f32.mxu0 0.0
    %3073 = vmatmul.mubr.f32.gmra.mrb[0].mxu0 %v1157
    %v3074 = vpop.f32.mrb[0].mxu0
    %v3075 = vadd.f32 %v541, %v3074
    %v3076 = vpop.f32.mrb[0].mxu0
    %3077 = vmatprep.mubr.f32.mxu0 0.0
    %3078 = vmatmul.mubr.f32.gmra.mrb[0].mxu0 %v1160
    %v3079 = vpop.f32.mrb[0].mxu0
    %v3080 = vadd.f32 %v541, %v3079
    %v3081 = vpop.f32.mrb[0].mxu0
    %3082 = vmatprep.mubr.f32.mxu0 0.0
    %3083 = vmatmul.mubr.f32.gmra.mrb[0].mxu0 %v1163
    %v3084 = vpop.f32.mrb[0].mxu0
    %v3085 = vadd.f32 %v541, %v3084
    %v3086 = vpop.f32.mrb[0].mxu0
    %3087 = vmatprep.mubr.f32.mxu0 0.0
    %3088 = vmatmul.mubr.f32.gmra.mrb[0].mxu0 %v1166
    %v3089 = vpop.f32.mrb[0].mxu0
    %v3090 = vadd.f32 %v541, %v3089
    %v3091 = vpop.f32.mrb[0].mxu0
    %3092 = vmatprep.mubr.f32.mxu0 0.0
    %3093 = vmatmul.mubr.f32.gmra.mrb[0].mxu0 %v1169
    %v3094 = vpop.f32.mrb[0].mxu0
    %v3095 = vadd.f32 %v541, %v3094
    %v3096 = vpop.f32.mrb[0].mxu0
    %3097 = vmatprep.mubr.f32.mxu0 0.0
    %3098 = vmatmul.mubr.f32.gmra.mrb[0].mxu0 %v1172
    %v3099 = vpop.f32.mrb[0].mxu0
    %v3100 = vadd.f32 %v541, %v3099
    %v3101 = vpop.f32.mrb[0].mxu0
    %3102 = vmatprep.mubr.f32.mxu0 0.0
    %3103 = vmatmul.mubr.f32.gmra.mrb[0].mxu0 %v1175
    %v3104 = vpop.f32.mrb[0].mxu0
    %v3105 = vadd.f32 %v541, %v3104
    %v3106 = vpop.f32.mrb[0].mxu0
    %3107 = vmatprep.mubr.f32.mxu0 0.0
    %3108 = vmatmul.mubr.f32.gmra.mrb[0].mxu0 %v1178
    %v3109 = vpop.f32.mrb[0].mxu0
    %v3110 = vadd.f32 %v541, %v3109
    %v3111 = vpop.f32.mrb[0].mxu0
    %3112 = vmatprep.mubr.f32.mxu0 0.0
    %3113 = vmatmul.mubr.f32.gmra.mrb[0].mxu0 %v1181
    %v3114 = vpop.f32.mrb[0].mxu0
    %v3115 = vadd.f32 %v541, %v3114
    %v3116 = vpop.f32.mrb[0].mxu0
    %3117 = vmatprep.mubr.f32.mxu0 0.0
    %3118 = vmatmul.mubr.f32.gmra.mrb[0].mxu0 %v1184
    %v3119 = vpop.f32.mrb[0].mxu0
    %v3120 = vadd.f32 %v541, %v3119
    %v3121 = vpop.f32.mrb[0].mxu0
    %3122 = vmatprep.mubr.f32.mxu0 0.0
    %3123 = vmatmul.mubr.f32.gmra.mrb[0].mxu0 %v1187
    %v3124 = vpop.f32.mrb[0].mxu0
    %v3125 = vadd.f32 %v541, %v3124
    %v3126 = vpop.f32.mrb[0].mxu0
    %3127 = vmatprep.mubr.f32.mxu0 0.0
    %3128 = vmatmul.mubr.f32.gmra.mrb[0].mxu0 %v1190
    %v3129 = vpop.f32.mrb[0].mxu0
    %v3130 = vadd.f32 %v541, %v3129
    %v3131 = vpop.f32.mrb[0].mxu0
    %3132 = vmatprep.mubr.f32.mxu0 0.0
    %3133 = vmatmul.mubr.f32.gmra.mrb[0].mxu0 %v1193
    %v3134 = vpop.f32.mrb[0].mxu0
    %v3135 = vadd.f32 %v541, %v3134
    %v3136 = vpop.f32.mrb[0].mxu0
    %3137 = vmatprep.mubr.f32.mxu0 0.0
    %3138 = vmatmul.mubr.f32.gmra.mrb[0].mxu0 %v1196
    %v3139 = vpop.f32.mrb[0].mxu0
    %v3140 = vadd.f32 %v541, %v3139
    %v3141 = vpop.f32.mrb[0].mxu0
    %3142 = vmatprep.mubr.f32.mxu0 0.0
    %3143 = vmatmul.mubr.f32.gmra.mrb[0].mxu0 %v1199
    %v3144 = vpop.f32.mrb[0].mxu0
    %v3145 = vadd.f32 %v541, %v3144
    %v3146 = vpop.f32.mrb[0].mxu0
    %3147 = vmatprep.mubr.f32.mxu0 0.0
    %3148 = vmatmul.mubr.f32.gmra.mrb[0].mxu0 %v1202
    %v3149 = vpop.f32.mrb[0].mxu0
    %v3150 = vadd.f32 %v541, %v3149
    %v3151 = vpop.f32.mrb[0].mxu0
    %3152 = vmatprep.mubr.f32.mxu0 0.0
    %3153 = vmatmul.mubr.f32.gmra.mrb[0].mxu0 %v1205
    %v3154 = vpop.f32.mrb[0].mxu0
    %v3155 = vadd.f32 %v541, %v3154
    %v3156 = vpop.f32.mrb[0].mxu0
    %3157 = vmatprep.mubr.f32.mxu0 0.0
    %3158 = vmatmul.mubr.f32.gmra.mrb[0].mxu0 %v1208
    %v3159 = vpop.f32.mrb[0].mxu0
    %v3160 = vadd.f32 %v541, %v3159
    %v3161 = vpop.f32.mrb[0].mxu0
    %3162 = vmatprep.mubr.f32.mxu0 0.0
    %3163 = vmatmul.mubr.f32.gmra.mrb[0].mxu0 %v1211
    %v3164 = vpop.f32.mrb[0].mxu0
    %v3165 = vadd.f32 %v541, %v3164
    %v3166 = vpop.f32.mrb[0].mxu0
    %3167 = vmatprep.mubr.f32.mxu0 0.0
    %3168 = vmatmul.mubr.f32.gmra.mrb[0].mxu0 %v1214
    %v3169 = vpop.f32.mrb[0].mxu0
    %v3170 = vadd.f32 %v541, %v3169
    %v3171 = vpop.f32.mrb[0].mxu0
    %3172 = vmatprep.mubr.f32.mxu0 0.0
    %3173 = vmatmul.mubr.f32.gmra.mrb[0].mxu0 %v1217
    %v3174 = vpop.f32.mrb[0].mxu0
    %v3175 = vadd.f32 %v541, %v3174
    %v3176 = vpop.f32.mrb[0].mxu0
    %3177 = vmatprep.mubr.f32.mxu0 0.0
    %3178 = vmatmul.mubr.f32.gmra.mrb[0].mxu0 %v1220
    %v3179 = vpop.f32.mrb[0].mxu0
    %v3180 = vadd.f32 %v541, %v3179
    %v3181 = vpop.f32.mrb[0].mxu0
    %3182 = vmatprep.mubr.f32.mxu0 0.0
    %3183 = vmatmul.mubr.f32.gmra.mrb[0].mxu0 %v1223
    %v3184 = vpop.f32.mrb[0].mxu0
    %v3185 = vadd.f32 %v541, %v3184
    %v3186 = vpop.f32.mrb[0].mxu0
    %3187 = vmatprep.mubr.f32.mxu0 0.0
    %3188 = vmatmul.mubr.f32.gmra.mrb[0].mxu0 %v1226
    %v3189 = vpop.f32.mrb[0].mxu0
    %v3190 = vadd.f32 %v541, %v3189
    %v3191 = vpop.f32.mrb[0].mxu0
    %3192 = vmatprep.mubr.f32.mxu0 0.0
    %3193 = vmatmul.mubr.f32.gmra.mrb[0].mxu0 %v1229
    %v3194 = vpop.f32.mrb[0].mxu0
    %v3195 = vadd.f32 %v541, %v3194
    %v3196 = vpop.f32.mrb[0].mxu0
    %3197 = vmatprep.mubr.f32.mxu0 0.0
    %3198 = vmatmul.mubr.f32.gmra.mrb[0].mxu0 %v1232
    %v3199 = vpop.f32.mrb[0].mxu0
    %v3200 = vadd.f32 %v541, %v3199
    %v3201 = vpop.f32.mrb[0].mxu0
    %3202 = vmatprep.mubr.f32.mxu0 0.0
    %3203 = vmatmul.mubr.f32.gmra.mrb[0].mxu0 %v1235
    %v3204 = vpop.f32.mrb[0].mxu0
    %v3205 = vadd.f32 %v541, %v3204
    %v3206 = vpop.f32.mrb[0].mxu0
    %3207 = vmatprep.mubr.f32.mxu0 0.0
    %3208 = vmatmul.mubr.f32.gmra.mrb[0].mxu0 %v1238
    %v3209 = vpop.f32.mrb[0].mxu0
    %v3210 = vadd.f32 %v541, %v3209
    %v3211 = vpop.f32.mrb[0].mxu0
    %3212 = vmatprep.mubr.f32.mxu0 0.0
    %3213 = vmatmul.mubr.f32.gmra.mrb[0].mxu0 %v1241
    %v3214 = vpop.f32.mrb[0].mxu0
    %v3215 = vadd.f32 %v541, %v3214
    %v3216 = vpop.f32.mrb[0].mxu0
    %3217 = vmatprep.mubr.f32.mxu0 0.0
    %3218 = vmatmul.mubr.f32.gmra.mrb[0].mxu0 %v1244
    %v3219 = vpop.f32.mrb[0].mxu0
    %v3220 = vadd.f32 %v541, %v3219
    %v3221 = vpop.f32.mrb[0].mxu0
    %3222 = vmatprep.mubr.f32.mxu0 0.0
    %3223 = vmatmul.mubr.f32.gmra.mrb[0].mxu0 %v1247
    %v3224 = vpop.f32.mrb[0].mxu0
    %v3225 = vadd.f32 %v541, %v3224
    %v3226 = vpop.f32.mrb[0].mxu0
    %3227 = vmatprep.mubr.f32.mxu0 0.0
    %3228 = vmatmul.mubr.f32.gmra.mrb[0].mxu0 %v1250
    %v3229 = vpop.f32.mrb[0].mxu0
    %v3230 = vadd.f32 %v541, %v3229
    %v3231 = vpop.f32.mrb[0].mxu0
    %3232 = vmatprep.mubr.f32.mxu0 0.0
    %3233 = vmatmul.mubr.f32.gmra.mrb[0].mxu0 %v1253
    %v3234 = vpop.f32.mrb[0].mxu0
    %v3235 = vadd.f32 %v541, %v3234
    %v3236 = vpop.f32.mrb[0].mxu0
    %3237 = vmatprep.mubr.f32.mxu0 0.0
    %3238 = vmatmul.mubr.f32.gmra.mrb[0].mxu0 %v1256
    %v3239 = vpop.f32.mrb[0].mxu0
    %v3240 = vadd.f32 %v541, %v3239
    %v3241 = vpop.f32.mrb[0].mxu0
    %3242 = vmatprep.mubr.f32.mxu0 0.0
    %3243 = vmatmul.mubr.f32.gmra.mrb[0].mxu0 %v1259
    %v3244 = vpop.f32.mrb[0].mxu0
    %v3245 = vadd.f32 %v541, %v3244
    %v3246 = vpop.f32.mrb[0].mxu0
    %3247 = vmatprep.mubr.f32.mxu0 0.0
    %3248 = vmatmul.mubr.f32.gmra.mrb[0].mxu0 %v1262
    %v3249 = vpop.f32.mrb[0].mxu0
    %v3250 = vadd.f32 %v541, %v3249
    %v3251 = vpop.f32.mrb[0].mxu0
    %3252 = vmatprep.mubr.f32.mxu0 0.0
    %3253 = vmatmul.mubr.f32.gmra.mrb[0].mxu0 %v1265
    %v3254 = vpop.f32.mrb[0].mxu0
    %v3255 = vadd.f32 %v541, %v3254
    %v3256 = vpop.f32.mrb[0].mxu0
    %3257 = vmatprep.mubr.f32.mxu0 0.0
    %3258 = vmatmul.mubr.f32.gmra.mrb[0].mxu0 %v1268
    %v3259 = vpop.f32.mrb[0].mxu0
    %v3260 = vadd.f32 %v541, %v3259
    %v3261 = vpop.f32.mrb[0].mxu0
    %3262 = vmatprep.mubr.f32.mxu0 0.0
    %3263 = vmatmul.mubr.f32.gmra.mrb[0].mxu0 %v1271
    %v3264 = vpop.f32.mrb[0].mxu0
    %v3265 = vadd.f32 %v541, %v3264
    %v3266 = vpop.f32.mrb[0].mxu0
    %3267 = vmatprep.mubr.f32.mxu0 0.0
    %3268 = vmatmul.mubr.f32.gmra.mrb[0].mxu0 %v1274
    %v3269 = vpop.f32.mrb[0].mxu0
    %v3270 = vadd.f32 %v541, %v3269
    %v3271 = vpop.f32.mrb[0].mxu0
    %3272 = vmatprep.mubr.f32.mxu0 0.0
    %3273 = vmatmul.mubr.f32.gmra.mrb[0].mxu0 %v1277
    %v3274 = vpop.f32.mrb[0].mxu0
    %v3275 = vadd.f32 %v541, %v3274
    %v3276 = vpop.f32.mrb[0].mxu0
    %3277 = vmatprep.mubr.f32.mxu0 0.0
    %3278 = vmatmul.mubr.f32.gmra.mrb[0].mxu0 %v1280
    %v3279 = vpop.f32.mrb[0].mxu0
    %v3280 = vadd.f32 %v541, %v3279
    %v3281 = vpop.f32.mrb[0].mxu0
    %3282 = vmatprep.mubr.f32.mxu0 0.0
    %3283 = vmatmul.mubr.f32.gmra.mrb[0].mxu0 %v1283
    %v3284 = vpop.f32.mrb[0].mxu0
    %v3285 = vadd.f32 %v541, %v3284
    %v3286 = vpop.f32.mrb[0].mxu0
    %3287 = vmatprep.mubr.f32.mxu0 0.0
    %3288 = vmatmul.mubr.f32.gmra.mrb[0].mxu0 %v1286
    %v3289 = vpop.f32.mrb[0].mxu0
    %v3290 = vadd.f32 %v541, %v3289
    %v3291 = vpop.f32.mrb[0].mxu0
    %3292 = vmatprep.mubr.f32.mxu0 0.0
    %3293 = vmatmul.mubr.f32.gmra.mrb[0].mxu0 %v1289
    %v3294 = vpop.f32.mrb[0].mxu0
    %v3295 = vadd.f32 %v541, %v3294
    %v3296 = vpop.f32.mrb[0].mxu0
    %3297 = vmatprep.mubr.f32.mxu0 0.0
    %3298 = vmatmul.mubr.f32.gmra.mrb[0].mxu0 %v1292
    %v3299 = vpop.f32.mrb[0].mxu0
    %v3300 = vadd.f32 %v541, %v3299
    %v3301 = vpop.f32.mrb[0].mxu0
    %3302 = vmatprep.mubr.f32.mxu0 0.0
    %3303 = vmatmul.mubr.f32.gmra.mrb[0].mxu0 %v1295
    %v3304 = vpop.f32.mrb[0].mxu0
    %v3305 = vadd.f32 %v541, %v3304
    %v3306 = vpop.f32.mrb[0].mxu0
    %3307 = vmatprep.mubr.f32.mxu0 0.0
    %3308 = vmatmul.mubr.f32.gmra.mrb[0].mxu0 %v1298
    %v3309 = vpop.f32.mrb[0].mxu0
    %v3310 = vadd.f32 %v541, %v3309
    %v3311 = vpop.f32.mrb[0].mxu0
    %3312 = vmatprep.mubr.f32.mxu0 0.0
    %3313 = vmatmul.mubr.f32.gmra.mrb[0].mxu0 %v1301
    %v3314 = vpop.f32.mrb[0].mxu0
    %v3315 = vadd.f32 %v541, %v3314
    %v3316 = vpop.f32.mrb[0].mxu0
    %3317 = vmatprep.mubr.f32.mxu0 0.0
    %3318 = vmatmul.mubr.f32.gmra.mrb[0].mxu0 %v1304
    %v3319 = vpop.f32.mrb[0].mxu0
    %v3320 = vadd.f32 %v541, %v3319
    %v3321 = vpop.f32.mrb[0].mxu0
    %3322 = vmatprep.mubr.f32.mxu0 0.0
    %3323 = vmatmul.mubr.f32.gmra.mrb[0].mxu0 %v1307
    %v3324 = vpop.f32.mrb[0].mxu0
    %v3325 = vadd.f32 %v541, %v3324
    %v3326 = vpop.f32.mrb[0].mxu0
    %3327 = vmatprep.mubr.f32.mxu0 0.0
    %3328 = vmatmul.mubr.f32.gmra.mrb[0].mxu0 %v1310
    %v3329 = vpop.f32.mrb[0].mxu0
    %v3330 = vadd.f32 %v541, %v3329
    %v3331 = vpop.f32.mrb[0].mxu0
    %3332 = vmatprep.mubr.f32.mxu0 0.0
    %3333 = vmatmul.mubr.f32.gmra.mrb[0].mxu0 %v1313
    %v3334 = vpop.f32.mrb[0].mxu0
    %v3335 = vadd.f32 %v541, %v3334
    %v3336 = vpop.f32.mrb[0].mxu0
    %3337 = vmatprep.mubr.f32.mxu0 0.0
    %3338 = vmatmul.mubr.f32.gmra.mrb[0].mxu0 %v1316
    %v3339 = vpop.f32.mrb[0].mxu0
    %v3340 = vadd.f32 %v541, %v3339
    %v3341 = vpop.f32.mrb[0].mxu0
    %3342 = vmatprep.mubr.f32.mxu0 0.0
    %3343 = vmatmul.mubr.f32.gmra.mrb[0].mxu0 %v1319
    %v3344 = vpop.f32.mrb[0].mxu0
    %v3345 = vadd.f32 %v541, %v3344
    %v3346 = vpop.f32.mrb[0].mxu0
    %3347 = vmatprep.mubr.f32.mxu0 0.0
    %3348 = vmatmul.mubr.f32.gmra.mrb[0].mxu0 %v1322
    %v3349 = vpop.f32.mrb[0].mxu0
    %v3350 = vadd.f32 %v541, %v3349
    %v3351 = vpop.f32.mrb[0].mxu0
    %3352 = vmatprep.mubr.f32.mxu0 0.0
    %3353 = vmatmul.mubr.f32.gmra.mrb[0].mxu0 %v1325
    %v3354 = vpop.f32.mrb[0].mxu0
    %v3355 = vadd.f32 %v541, %v3354
    %v3356 = vpop.f32.mrb[0].mxu0
    %3357 = vmatprep.mubr.f32.mxu0 0.0
    %3358 = vmatmul.mubr.f32.gmra.mrb[0].mxu0 %v1328
    %v3359 = vpop.f32.mrb[0].mxu0
    %v3360 = vadd.f32 %v541, %v3359
    %v3361 = vpop.f32.mrb[0].mxu0
    %3362 = vmatprep.mubr.f32.mxu0 0.0
    %3363 = vmatmul.mubr.f32.gmra.mrb[0].mxu0 %v1331
    %v3364 = vpop.f32.mrb[0].mxu0
    %v3365 = vadd.f32 %v541, %v3364
    %v3366 = vpop.f32.mrb[0].mxu0
    %3367 = vmatprep.mubr.f32.mxu0 0.0
    %3368 = vmatmul.mubr.f32.gmra.mrb[0].mxu0 %v1334
    %v3369 = vpop.f32.mrb[0].mxu0
    %v3370 = vadd.f32 %v541, %v3369
    %v3371 = vpop.f32.mrb[0].mxu0
    %3372 = vmatprep.mubr.f32.mxu0 0.0
    %3373 = vmatmul.mubr.f32.gmra.mrb[0].mxu0 %v1337
    %v3374 = vpop.f32.mrb[0].mxu0
    %v3375 = vadd.f32 %v541, %v3374
    %v3376 = vpop.f32.mrb[0].mxu0
    %3377 = vmatprep.mubr.f32.mxu0 0.0
    %3378 = vmatmul.mubr.f32.gmra.mrb[0].mxu0 %v1340
    %v3379 = vpop.f32.mrb[0].mxu0
    %v3380 = vadd.f32 %v541, %v3379
    %v3381 = vpop.f32.mrb[0].mxu0
    %3382 = vmatprep.mubr.f32.mxu0 0.0
    %3383 = vmatmul.mubr.f32.gmra.mrb[0].mxu0 %v1343
    %v3384 = vpop.f32.mrb[0].mxu0
    %v3385 = vadd.f32 %v541, %v3384
    %v3386 = vpop.f32.mrb[0].mxu0
    %3387 = vmatprep.mubr.f32.mxu0 0.0
    %3388 = vmatmul.mubr.f32.gmra.mrb[0].mxu0 %v1346
    %v3389 = vpop.f32.mrb[0].mxu0
    %v3390 = vadd.f32 %v541, %v3389
    %v3391 = vpop.f32.mrb[0].mxu0
    %3392 = vmatprep.mubr.f32.mxu0 0.0
    %3393 = vmatmul.mubr.f32.gmra.mrb[0].mxu0 %v1349
    %v3394 = vpop.f32.mrb[0].mxu0
    %v3395 = vadd.f32 %v541, %v3394
    %v3396 = vpop.f32.mrb[0].mxu0
    %3397 = vmatprep.mubr.f32.mxu0 0.0
    %3398 = vmatmul.mubr.f32.gmra.mrb[0].mxu0 %v1352
    %v3399 = vpop.f32.mrb[0].mxu0
    %v3400 = vadd.f32 %v541, %v3399
    %v3401 = vpop.f32.mrb[0].mxu0
    %3402 = vmatprep.mubr.f32.mxu0 0.0
    %3403 = vmatmul.mubr.f32.gmra.mrb[0].mxu0 %v1355
    %v3404 = vpop.f32.mrb[0].mxu0
    %v3405 = vadd.f32 %v541, %v3404
    %v3406 = vpop.f32.mrb[0].mxu0
    %3407 = vmatprep.mubr.f32.mxu0 0.0
    %3408 = vmatmul.mubr.f32.gmra.mrb[0].mxu0 %v1358
    %v3409 = vpop.f32.mrb[0].mxu0
    %v3410 = vadd.f32 %v541, %v3409
    %v3411 = vpop.f32.mrb[0].mxu0
    %3412 = vmatprep.mubr.f32.mxu0 0.0
    %3413 = vmatmul.mubr.f32.gmra.mrb[0].mxu0 %v1361
    %v3414 = vpop.f32.mrb[0].mxu0
    %v3415 = vadd.f32 %v541, %v3414
    %v3416 = vpop.f32.mrb[0].mxu0
    %3417 = vmatprep.mubr.f32.mxu0 0.0
    %3418 = vmatmul.mubr.f32.gmra.mrb[0].mxu0 %v1364
    %v3419 = vpop.f32.mrb[0].mxu0
    %v3420 = vadd.f32 %v541, %v3419
    %v3421 = vpop.f32.mrb[0].mxu0
    %3422 = vmatprep.mubr.f32.mxu0 0.0
    %3423 = vmatmul.mubr.f32.gmra.mrb[0].mxu0 %v1367
    %v3424 = vpop.f32.mrb[0].mxu0
    %v3425 = vadd.f32 %v541, %v3424
    %v3426 = vpop.f32.mrb[0].mxu0
    %3427 = vmatprep.mubr.f32.mxu0 0.0
    %3428 = vmatmul.mubr.f32.gmra.mrb[0].mxu0 %v1370
    %v3429 = vpop.f32.mrb[0].mxu0
    %v3430 = vadd.f32 %v541, %v3429
    %v3431 = vpop.f32.mrb[0].mxu0
    %3432 = vmatprep.mubr.f32.mxu0 0.0
    %3433 = vmatmul.mubr.f32.gmra.mrb[0].mxu0 %v1373
    %v3434 = vpop.f32.mrb[0].mxu0
    %v3435 = vadd.f32 %v541, %v3434
    %v3436 = vpop.f32.mrb[0].mxu0
    %3437 = vmatprep.mubr.f32.mxu0 0.0
    %3438 = vmatmul.mubr.f32.gmra.mrb[0].mxu0 %v1376
    %v3439 = vpop.f32.mrb[0].mxu0
    %v3440 = vadd.f32 %v541, %v3439
    %v3441 = vpop.f32.mrb[0].mxu0
    %3442 = vmatprep.mubr.f32.mxu0 0.0
    %3443 = vmatmul.mubr.f32.gmra.mrb[0].mxu0 %v1379
    %v3444 = vpop.f32.mrb[0].mxu0
    %v3445 = vadd.f32 %v541, %v3444
    %v3446 = vpop.f32.mrb[0].mxu0
    %3447 = vmatprep.mubr.f32.mxu0 0.0
    %3448 = vmatmul.mubr.f32.gmra.mrb[0].mxu0 %v1382
    %v3449 = vpop.f32.mrb[0].mxu0
    %v3450 = vadd.f32 %v541, %v3449
    %v3451 = vpop.f32.mrb[0].mxu0
    %3452 = vmatprep.mubr.f32.mxu0 0.0
    %3453 = vmatmul.mubr.f32.gmra.mrb[0].mxu0 %v1385
    %v3454 = vpop.f32.mrb[0].mxu0
    %v3455 = vadd.f32 %v541, %v3454
    %v3456 = vpop.f32.mrb[0].mxu0
    %3457 = vmatprep.mubr.f32.mxu0 0.0
    %3458 = vmatmul.mubr.f32.gmra.mrb[0].mxu0 %v1388
    %v3459 = vpop.f32.mrb[0].mxu0
    %v3460 = vadd.f32 %v541, %v3459
    %v3461 = vpop.f32.mrb[0].mxu0
    %3462 = vmatprep.mubr.f32.mxu0 0.0
    %3463 = vmatmul.mubr.f32.gmra.mrb[0].mxu0 %v1391
    %v3464 = vpop.f32.mrb[0].mxu0
    %v3465 = vadd.f32 %v541, %v3464
    %v3466 = vpop.f32.mrb[0].mxu0
    %3467 = vmatprep.mubr.f32.mxu0 0.0
    %3468 = vmatmul.mubr.f32.gmra.mrb[0].mxu0 %v1394
    %v3469 = vpop.f32.mrb[0].mxu0
    %v3470 = vadd.f32 %v541, %v3469
    %v3471 = vpop.f32.mrb[0].mxu0
    %3472 = vmatprep.mubr.f32.mxu0 0.0
    %3473 = vmatmul.mubr.f32.gmra.mrb[0].mxu0 %v1397
    %v3474 = vpop.f32.mrb[0].mxu0
    %v3475 = vadd.f32 %v541, %v3474
    %v3476 = vpop.f32.mrb[0].mxu0
    %3477 = vmatprep.mubr.f32.mxu0 0.0
    %3478 = vmatmul.mubr.f32.gmra.mrb[0].mxu0 %v1400
    %v3479 = vpop.f32.mrb[0].mxu0
    %v3480 = vadd.f32 %v541, %v3479
    %v3481 = vpop.f32.mrb[0].mxu0
    %3482 = vmatprep.mubr.f32.mxu0 0.0
    %3483 = vmatmul.mubr.f32.gmra.mrb[0].mxu0 %v1403
    %v3484 = vpop.f32.mrb[0].mxu0
    %v3485 = vadd.f32 %v541, %v3484
    %v3486 = vpop.f32.mrb[0].mxu0
    %3487 = vmatprep.mubr.f32.mxu0 0.0
    %3488 = vmatmul.mubr.f32.gmra.mrb[0].mxu0 %v1406
    %v3489 = vpop.f32.mrb[0].mxu0
    %v3490 = vadd.f32 %v541, %v3489
    %v3491 = vpop.f32.mrb[0].mxu0
    %3492 = vmatprep.mubr.f32.mxu0 0.0
    %3493 = vmatmul.mubr.f32.gmra.mrb[0].mxu0 %v1409
    %v3494 = vpop.f32.mrb[0].mxu0
    %v3495 = vadd.f32 %v541, %v3494
    %v3496 = vpop.f32.mrb[0].mxu0
    %3497 = vmatprep.mubr.f32.mxu0 0.0
    %3498 = vmatmul.mubr.f32.gmra.mrb[0].mxu0 %v1412
    %v3499 = vpop.f32.mrb[0].mxu0
    %v3500 = vadd.f32 %v541, %v3499
    %v3501 = vpop.f32.mrb[0].mxu0
    %3502 = vmatprep.mubr.f32.mxu0 0.0
    %3503 = vmatmul.mubr.f32.gmra.mrb[0].mxu0 %v1415
    %v3504 = vpop.f32.mrb[0].mxu0
    %v3505 = vadd.f32 %v541, %v3504
    %v3506 = vpop.f32.mrb[0].mxu0
    %3507 = vmatprep.mubr.f32.mxu0 0.0
    %3508 = vmatmul.mubr.f32.gmra.mrb[0].mxu0 %v1418
    %v3509 = vpop.f32.mrb[0].mxu0
    %v3510 = vadd.f32 %v541, %v3509
    %v3511 = vpop.f32.mrb[0].mxu0
    %3512 = vmatprep.mubr.f32.mxu0 0.0
    %3513 = vmatmul.mubr.f32.gmra.mrb[0].mxu0 %v1421
    %v3514 = vpop.f32.mrb[0].mxu0
    %v3515 = vadd.f32 %v541, %v3514
    %v3516 = vpop.f32.mrb[0].mxu0
    %3517 = vmatprep.mubr.f32.mxu0 0.0
    %3518 = vmatmul.mubr.f32.gmra.mrb[0].mxu0 %v1424
    %v3519 = vpop.f32.mrb[0].mxu0
    %v3520 = vadd.f32 %v541, %v3519
    %v3521 = vpop.f32.mrb[0].mxu0
    %3522 = vmatprep.mubr.f32.mxu0 0.0
    %3523 = vmatmul.mubr.f32.gmra.mrb[0].mxu0 %v1427
    %v3524 = vpop.f32.mrb[0].mxu0
    %v3525 = vadd.f32 %v541, %v3524
    %v3526 = vpop.f32.mrb[0].mxu0
    %3527 = vmatprep.mubr.f32.mxu0 0.0
    %3528 = vmatmul.mubr.f32.gmra.mrb[0].mxu0 %v1430
    %v3529 = vpop.f32.mrb[0].mxu0
    %v3530 = vadd.f32 %v541, %v3529
    %v3531 = vpop.f32.mrb[0].mxu0
    %3532 = vmatprep.mubr.f32.mxu0 0.0
    %3533 = vmatmul.mubr.f32.gmra.mrb[0].mxu0 %v1433
    %v3534 = vpop.f32.mrb[0].mxu0
    %v3535 = vadd.f32 %v541, %v3534
    %v3536 = vpop.f32.mrb[0].mxu0
    %3537 = vmatprep.mubr.f32.mxu0 0.0
    %3538 = vmatmul.mubr.f32.gmra.mrb[0].mxu0 %v1436
    %v3539 = vpop.f32.mrb[0].mxu0
    %v3540 = vadd.f32 %v541, %v3539
    %v3541 = vpop.f32.mrb[0].mxu0
    %3542 = vmatprep.mubr.f32.mxu0 0.0
    %3543 = vmatmul.mubr.f32.gmra.mrb[0].mxu0 %v1439
    %v3544 = vpop.f32.mrb[0].mxu0
    %v3545 = vadd.f32 %v541, %v3544
    %v3546 = vpop.f32.mrb[0].mxu0
    %3547 = vmatprep.mubr.f32.mxu0 0.0
    %3548 = vmatmul.mubr.f32.gmra.mrb[0].mxu0 %v1442
    %v3549 = vpop.f32.mrb[0].mxu0
    %v3550 = vadd.f32 %v541, %v3549
    %v3551 = vpop.f32.mrb[0].mxu0
    %3552 = vmatprep.mubr.f32.mxu0 0.0
    %3553 = vmatmul.mubr.f32.gmra.mrb[0].mxu0 %v1445
    %v3554 = vpop.f32.mrb[0].mxu0
    %v3555 = vadd.f32 %v541, %v3554
    %v3556 = vpop.f32.mrb[0].mxu0
    %3557 = vmatprep.mubr.f32.mxu0 0.0
    %3558 = vmatmul.mubr.f32.gmra.mrb[0].mxu0 %v1448
    %v3559 = vpop.f32.mrb[0].mxu0
    %v3560 = vadd.f32 %v541, %v3559
    %v3561 = vpop.f32.mrb[0].mxu0
    %3562 = vmatprep.mubr.f32.mxu0 0.0
    %3563 = vmatmul.mubr.f32.gmra.mrb[0].mxu0 %v1451
    %v3564 = vpop.f32.mrb[0].mxu0
    %v3565 = vadd.f32 %v541, %v3564
    %v3566 = vpop.f32.mrb[0].mxu0
    %3567 = vmatprep.mubr.f32.mxu0 0.0
    %3568 = vmatmul.mubr.f32.gmra.mrb[0].mxu0 %v1454
    %v3569 = vpop.f32.mrb[0].mxu0
    %v3570 = vadd.f32 %v541, %v3569
    %v3571 = vpop.f32.mrb[0].mxu0
    %3572 = vmatprep.mubr.f32.mxu0 0.0
    %3573 = vmatmul.mubr.f32.gmra.mrb[0].mxu0 %v1457
    %v3574 = vpop.f32.mrb[0].mxu0
    %v3575 = vadd.f32 %v541, %v3574
    %v3576 = vpop.f32.mrb[0].mxu0
    %3577 = vmatprep.mubr.f32.mxu0 0.0
    %3578 = vmatmul.mubr.f32.gmra.mrb[0].mxu0 %v1460
    %v3579 = vpop.f32.mrb[0].mxu0
    %v3580 = vadd.f32 %v541, %v3579
    %v3581 = vpop.f32.mrb[0].mxu0
    %3582 = vmatprep.mubr.f32.mxu0 0.0
    %3583 = vmatmul.mubr.f32.gmra.mrb[0].mxu0 %v1463
    %v3584 = vpop.f32.mrb[0].mxu0
    %v3585 = vadd.f32 %v541, %v3584
    %v3586 = vpop.f32.mrb[0].mxu0
    %3587 = vmatprep.mubr.f32.mxu0 0.0
    %3588 = vmatmul.mubr.f32.gmra.mrb[0].mxu0 %v1466
    %v3589 = vpop.f32.mrb[0].mxu0
    %v3590 = vadd.f32 %v541, %v3589
    %v3591 = vpop.f32.mrb[0].mxu0
    %3592 = vmatprep.mubr.f32.mxu0 0.0
    %3593 = vmatmul.mubr.f32.gmra.mrb[0].mxu0 %v1469
    %v3594 = vpop.f32.mrb[0].mxu0
    %v3595 = vadd.f32 %v541, %v3594
    %v3596 = vpop.f32.mrb[0].mxu0
    %3597 = vmatprep.mubr.f32.mxu0 0.0
    %3598 = vmatmul.mubr.f32.gmra.mrb[0].mxu0 %v1472
    %v3599 = vpop.f32.mrb[0].mxu0
    %v3600 = vadd.f32 %v541, %v3599
    %v3601 = vpop.f32.mrb[0].mxu0
    %3602 = vmatprep.mubr.f32.mxu0 0.0
    %3603 = vmatmul.mubr.f32.gmra.mrb[0].mxu0 %v1475
    %v3604 = vpop.f32.mrb[0].mxu0
    %v3605 = vadd.f32 %v541, %v3604
    %v3606 = vpop.f32.mrb[0].mxu0
    %3607 = vmatprep.mubr.f32.mxu0 0.0
    %3608 = vmatmul.mubr.f32.gmra.mrb[0].mxu0 %v1478
    %v3609 = vpop.f32.mrb[0].mxu0
    %v3610 = vadd.f32 %v541, %v3609
    %v3611 = vpop.f32.mrb[0].mxu0
    %3612 = vmatprep.mubr.f32.mxu0 0.0
    %3613 = vmatmul.mubr.f32.gmra.mrb[0].mxu0 %v1481
    %v3614 = vpop.f32.mrb[0].mxu0
    %v3615 = vadd.f32 %v541, %v3614
    %v3616 = vpop.f32.mrb[0].mxu0
    %3617 = vmatprep.mubr.f32.mxu0 0.0
    %3618 = vmatmul.mubr.f32.gmra.mrb[0].mxu0 %v1484
    %v3619 = vpop.f32.mrb[0].mxu0
    %v3620 = vadd.f32 %v541, %v3619
    %v3621 = vpop.f32.mrb[0].mxu0
    %3622 = vmatprep.mubr.f32.mxu0 0.0
    %3623 = vmatmul.mubr.f32.gmra.mrb[0].mxu0 %v1487
    %v3624 = vpop.f32.mrb[0].mxu0
    %v3625 = vadd.f32 %v541, %v3624
    %v3626 = vpop.f32.mrb[0].mxu0
    %3627 = vmatprep.mubr.f32.mxu0 0.0
    %3628 = vmatmul.mubr.f32.gmra.mrb[0].mxu0 %v1490
    %v3629 = vpop.f32.mrb[0].mxu0
    %v3630 = vadd.f32 %v541, %v3629
    %v3631 = vpop.f32.mrb[0].mxu0
    %3632 = vmatprep.mubr.f32.mxu0 0.0
    %3633 = vmatmul.mubr.f32.gmra.mrb[0].mxu0 %v1493
    %v3634 = vpop.f32.mrb[0].mxu0
    %v3635 = vadd.f32 %v541, %v3634
    %v3636 = vpop.f32.mrb[0].mxu0
    %3637 = vmatprep.mubr.f32.mxu0 0.0
    %3638 = vmatmul.mubr.f32.gmra.mrb[0].mxu0 %v1496
    %v3639 = vpop.f32.mrb[0].mxu0
    %v3640 = vadd.f32 %v541, %v3639
    %v3641 = vpop.f32.mrb[0].mxu0
    %3642 = vmatprep.mubr.f32.mxu0 0.0
    %3643 = vmatmul.mubr.f32.gmra.mrb[0].mxu0 %v1499
    %v3644 = vpop.f32.mrb[0].mxu0
    %v3645 = vadd.f32 %v541, %v3644
    %v3646 = vpop.f32.mrb[0].mxu0
    %3647 = vmatprep.mubr.f32.mxu0 0.0
    %3648 = vmatmul.mubr.f32.gmra.mrb[0].mxu0 %v1502
    %v3649 = vpop.f32.mrb[0].mxu0
    %v3650 = vadd.f32 %v541, %v3649
    %v3651 = vpop.f32.mrb[0].mxu0
    %3652 = vmatprep.mubr.f32.mxu0 0.0
    %3653 = vmatmul.mubr.f32.gmra.mrb[0].mxu0 %v1505
    %v3654 = vpop.f32.mrb[0].mxu0
    %v3655 = vadd.f32 %v541, %v3654
    %v3656 = vpop.f32.mrb[0].mxu0
    %3657 = vmatprep.mubr.f32.mxu0 0.0
    %3658 = vmatmul.mubr.f32.gmra.mrb[0].mxu0 %v1508
    %v3659 = vpop.f32.mrb[0].mxu0
    %v3660 = vadd.f32 %v541, %v3659
    %v3661 = vpop.f32.mrb[0].mxu0
    %3662 = vmatprep.mubr.f32.mxu0 0.0
    %3663 = vmatmul.mubr.f32.gmra.mrb[0].mxu0 %v1511
    %v3664 = vpop.f32.mrb[0].mxu0
    %v3665 = vadd.f32 %v541, %v3664
    %v3666 = vpop.f32.mrb[0].mxu0
    %3667 = vmatprep.mubr.f32.mxu0 0.0
    %3668 = vmatmul.mubr.f32.gmra.mrb[0].mxu0 %v1514
    %v3669 = vpop.f32.mrb[0].mxu0
    %v3670 = vadd.f32 %v541, %v3669
    %v3671 = vpop.f32.mrb[0].mxu0
    %3672 = vmatprep.mubr.f32.mxu0 0.0
    %3673 = vmatmul.mubr.f32.gmra.mrb[0].mxu0 %v1517
    %v3674 = vpop.f32.mrb[0].mxu0
    %v3675 = vadd.f32 %v541, %v3674
    %v3676 = vpop.f32.mrb[0].mxu0
    %3677 = vmatprep.mubr.f32.mxu0 0.0
    %3678 = vmatmul.mubr.f32.gmra.mrb[0].mxu0 %v1520
    %v3679 = vpop.f32.mrb[0].mxu0
    %v3680 = vadd.f32 %v541, %v3679
    %v3681 = vpop.f32.mrb[0].mxu0
    %3682 = vmatprep.mubr.f32.mxu0 0.0
    %3683 = vmatmul.mubr.f32.gmra.mrb[0].mxu0 %v1523
    %v3684 = vpop.f32.mrb[0].mxu0
    %v3685 = vadd.f32 %v541, %v3684
    %v3686 = vpop.f32.mrb[0].mxu0
    %3687 = vmatprep.mubr.f32.mxu0 0.0
    %3688 = vmatmul.mubr.f32.gmra.mrb[0].mxu0 %v1526
    %v3689 = vpop.f32.mrb[0].mxu0
    %v3690 = vadd.f32 %v541, %v3689
    %v3691 = vpop.f32.mrb[0].mxu0
    %3692 = vmatprep.mubr.f32.mxu0 0.0
    %3693 = vmatmul.mubr.f32.gmra.mrb[0].mxu0 %v1529
    %v3694 = vpop.f32.mrb[0].mxu0
    %v3695 = vadd.f32 %v541, %v3694
    %v3696 = vpop.f32.mrb[0].mxu0
    %3697 = vmatprep.mubr.f32.mxu0 0.0
    %3698 = vmatmul.mubr.f32.gmra.mrb[0].mxu0 %v1532
    %v3699 = vpop.f32.mrb[0].mxu0
    %v3700 = vadd.f32 %v541, %v3699
    %v3701 = vpop.f32.mrb[0].mxu0
    %3702 = vmatprep.mubr.f32.mxu0 0.0
    %3703 = vmatmul.mubr.f32.gmra.mrb[0].mxu0 %v1535
    %v3704 = vpop.f32.mrb[0].mxu0
    %v3705 = vadd.f32 %v541, %v3704
    %v3706 = vpop.f32.mrb[0].mxu0
    %3707 = vmatprep.mubr.f32.mxu0 0.0
    %3708 = vmatmul.mubr.f32.gmra.mrb[0].mxu0 %v1538
    %v3709 = vpop.f32.mrb[0].mxu0
    %v3710 = vadd.f32 %v541, %v3709
    %v3711 = vpop.f32.mrb[0].mxu0
    %3712 = vmatprep.mubr.f32.mxu0 0.0
    %3713 = vmatmul.mubr.f32.gmra.mrb[0].mxu0 %v1541
    %v3714 = vpop.f32.mrb[0].mxu0
    %v3715 = vadd.f32 %v541, %v3714
    %v3716 = vpop.f32.mrb[0].mxu0
    %3717 = vmatprep.mubr.f32.mxu0 0.0
    %3718 = vmatmul.mubr.f32.gmra.mrb[0].mxu0 %v1544
    %v3719 = vpop.f32.mrb[0].mxu0
    %v3720 = vadd.f32 %v541, %v3719
    %v3721 = vpop.f32.mrb[0].mxu0
    %3722 = vmatprep.mubr.f32.mxu0 0.0
    %3723 = vmatmul.mubr.f32.gmra.mrb[0].mxu0 %v1547
    %v3724 = vpop.f32.mrb[0].mxu0
    %v3725 = vadd.f32 %v541, %v3724
    %v3726 = vpop.f32.mrb[0].mxu0
    %3727 = vmatprep.mubr.f32.mxu0 0.0
    %3728 = vmatmul.mubr.f32.gmra.mrb[0].mxu0 %v1550
    %v3729 = vpop.f32.mrb[0].mxu0
    %v3730 = vadd.f32 %v541, %v3729
    %v3731 = vpop.f32.mrb[0].mxu0
    %3732 = vmatprep.mubr.f32.mxu0 0.0
    %3733 = vmatmul.mubr.f32.gmra.mrb[0].mxu0 %v1553
    %v3734 = vpop.f32.mrb[0].mxu0
    %v3735 = vadd.f32 %v541, %v3734
    %v3736 = vpop.f32.mrb[0].mxu0
    %3737 = vmatprep.mubr.f32.mxu0 0.0
    %3738 = vmatmul.mubr.f32.gmra.mrb[0].mxu0 %v1556
    %v3739 = vpop.f32.mrb[0].mxu0
    %v3740 = vadd.f32 %v541, %v3739
    %v3741 = vpop.f32.mrb[0].mxu0
    %3742 = vmatprep.mubr.f32.mxu0 0.0
    %3743 = vmatmul.mubr.f32.gmra.mrb[0].mxu0 %v1559
    %v3744 = vpop.f32.mrb[0].mxu0
    %v3745 = vadd.f32 %v541, %v3744
    %v3746 = vpop.f32.mrb[0].mxu0
    %3747 = vmatprep.mubr.f32.mxu0 0.0
    %3748 = vmatmul.mubr.f32.gmra.mrb[0].mxu0 %v1562
    %v3749 = vpop.f32.mrb[0].mxu0
    %v3750 = vadd.f32 %v541, %v3749
    %v3751 = vpop.f32.mrb[0].mxu0
    %3752 = vmatprep.mubr.f32.mxu0 0.0
    %3753 = vmatmul.mubr.f32.gmra.mrb[0].mxu0 %v1565
    %v3754 = vpop.f32.mrb[0].mxu0
    %v3755 = vadd.f32 %v541, %v3754
    %v3756 = vpop.f32.mrb[0].mxu0
    %3757 = vmatprep.mubr.f32.mxu0 0.0
    %3758 = vmatmul.mubr.f32.gmra.mrb[0].mxu0 %v1568
    %v3759 = vpop.f32.mrb[0].mxu0
    %v3760 = vadd.f32 %v541, %v3759
    %v3761 = vpop.f32.mrb[0].mxu0
    %3762 = vmatprep.mubr.f32.mxu0 0.0
    %3763 = vmatmul.mubr.f32.gmra.mrb[0].mxu0 %v1571
    %v3764 = vpop.f32.mrb[0].mxu0
    %v3765 = vadd.f32 %v541, %v3764
    %v3766 = vpop.f32.mrb[0].mxu0
    %3767 = vmatprep.mubr.f32.mxu0 0.0
    %3768 = vmatmul.mubr.f32.gmra.mrb[0].mxu0 %v1574
    %v3769 = vpop.f32.mrb[0].mxu0
    %v3770 = vadd.f32 %v541, %v3769
    %v3771 = vpop.f32.mrb[0].mxu0
    %3772 = vmatprep.mubr.f32.mxu0 0.0
    %3773 = vmatmul.mubr.f32.gmra.mrb[0].mxu0 %v1577
    %v3774 = vpop.f32.mrb[0].mxu0
    %v3775 = vadd.f32 %v541, %v3774
    %v3776 = vpop.f32.mrb[0].mxu0
    %3777 = vmatprep.mubr.f32.mxu0 0.0
    %3778 = vmatmul.mubr.f32.gmra.mrb[0].mxu0 %v1580
    %v3779 = vpop.f32.mrb[0].mxu0
    %v3780 = vadd.f32 %v541, %v3779
    %v3781 = vpop.f32.mrb[0].mxu0
    %3782 = vmatprep.mubr.f32.mxu0 0.0
    %3783 = vmatmul.mubr.f32.gmra.mrb[0].mxu0 %v1583
    %v3784 = vpop.f32.mrb[0].mxu0
    %v3785 = vadd.f32 %v541, %v3784
    %v3786 = vpop.f32.mrb[0].mxu0
    %3787 = vmatprep.mubr.f32.mxu0 0.0
    %3788 = vmatmul.mubr.f32.gmra.mrb[0].mxu0 %v1586
    %v3789 = vpop.f32.mrb[0].mxu0
    %v3790 = vadd.f32 %v541, %v3789
    %v3791 = vpop.f32.mrb[0].mxu0
    %3792 = vmatprep.mubr.f32.mxu0 0.0
    %3793 = vmatmul.mubr.f32.gmra.mrb[0].mxu0 %v1589
    %v3794 = vpop.f32.mrb[0].mxu0
    %v3795 = vadd.f32 %v541, %v3794
    %v3796 = vpop.f32.mrb[0].mxu0
    %3797 = vmatprep.mubr.f32.mxu0 0.0
    %3798 = vmatmul.mubr.f32.gmra.mrb[0].mxu0 %v1592
    %v3799 = vpop.f32.mrb[0].mxu0
    %v3800 = vadd.f32 %v541, %v3799
    %v3801 = vpop.f32.mrb[0].mxu0
    %3802 = vmatprep.mubr.f32.mxu0 0.0
    %3803 = vmatmul.mubr.f32.gmra.mrb[0].mxu0 %v1595
    %v3804 = vpop.f32.mrb[0].mxu0
    %v3805 = vadd.f32 %v541, %v3804
    %v3806 = vpop.f32.mrb[0].mxu0
    %3807 = vmatprep.mubr.f32.mxu0 0.0
    %3808 = vmatmul.mubr.f32.gmra.mrb[0].mxu0 %v1598
    %v3809 = vpop.f32.mrb[0].mxu0
    %v3810 = vadd.f32 %v541, %v3809
    %v3811 = vpop.f32.mrb[0].mxu0
    %3812 = vmatprep.mubr.f32.mxu0 0.0
    %3813 = vmatmul.mubr.f32.gmra.mrb[0].mxu0 %v1601
    %v3814 = vpop.f32.mrb[0].mxu0
    %v3815 = vadd.f32 %v541, %v3814
    %v3816 = vpop.f32.mrb[0].mxu0
    %3817 = vmatprep.mubr.f32.mxu0 0.0
    %3818 = vmatmul.mubr.f32.gmra.mrb[0].mxu0 %v1604
    %v3819 = vpop.f32.mrb[0].mxu0
    %v3820 = vadd.f32 %v541, %v3819
    %v3821 = vpop.f32.mrb[0].mxu0
    %3822 = vmatprep.mubr.f32.mxu0 0.0
    %3823 = vmatmul.mubr.f32.gmra.mrb[0].mxu0 %v1607
    %v3824 = vpop.f32.mrb[0].mxu0
    %v3825 = vadd.f32 %v541, %v3824
    %v3826 = vpop.f32.mrb[0].mxu0
    %3827 = vmatprep.mubr.f32.mxu0 0.0
    %3828 = vmatmul.mubr.f32.gmra.mrb[0].mxu0 %v1610
    %v3829 = vpop.f32.mrb[0].mxu0
    %v3830 = vadd.f32 %v541, %v3829
    %v3831 = vpop.f32.mrb[0].mxu0
    %3832 = vmatprep.mubr.f32.mxu0 0.0
    %3833 = vmatmul.mubr.f32.gmra.mrb[0].mxu0 %v1613
    %v3834 = vpop.f32.mrb[0].mxu0
    %v3835 = vadd.f32 %v541, %v3834
    %v3836 = vpop.f32.mrb[0].mxu0
    %3837 = vmatprep.mubr.f32.mxu0 0.0
    %3838 = vmatmul.mubr.f32.gmra.mrb[0].mxu0 %v1616
    %v3839 = vpop.f32.mrb[0].mxu0
    %v3840 = vadd.f32 %v541, %v3839
    %v3841 = vpop.f32.mrb[0].mxu0
    %3842 = vmatprep.mubr.f32.mxu0 0.0
    %3843 = vmatmul.mubr.f32.gmra.mrb[0].mxu0 %v1619
    %v3844 = vpop.f32.mrb[0].mxu0
    %v3845 = vadd.f32 %v541, %v3844
    %v3846 = vpop.f32.mrb[0].mxu0
    %3847 = vmatprep.mubr.f32.mxu0 0.0
    %3848 = vmatmul.mubr.f32.gmra.mrb[0].mxu0 %v1622
    %v3849 = vpop.f32.mrb[0].mxu0
    %v3850 = vadd.f32 %v541, %v3849
    %v3851 = vpop.f32.mrb[0].mxu0
    %3852 = vmatprep.mubr.f32.mxu0 0.0
    %3853 = vmatmul.mubr.f32.gmra.mrb[0].mxu0 %v1625
    %v3854 = vpop.f32.mrb[0].mxu0
    %v3855 = vadd.f32 %v541, %v3854
    %v3856 = vpop.f32.mrb[0].mxu0
    %3857 = vmatprep.mubr.f32.mxu0 0.0
    %3858 = vmatmul.mubr.f32.gmra.mrb[0].mxu0 %v1628
    %v3859 = vpop.f32.mrb[0].mxu0
    %v3860 = vadd.f32 %v541, %v3859
    %v3861 = vpop.f32.mrb[0].mxu0
    %3862 = vmatprep.mubr.f32.mxu0 0.0
    %3863 = vmatmul.mubr.f32.gmra.mrb[0].mxu0 %v1631
    %v3864 = vpop.f32.mrb[0].mxu0
    %v3865 = vadd.f32 %v541, %v3864
    %v3866 = vpop.f32.mrb[0].mxu0
    %3867 = vmatprep.mubr.f32.mxu0 0.0
    %3868 = vmatmul.mubr.f32.gmra.mrb[0].mxu0 %v1634
    %v3869 = vpop.f32.mrb[0].mxu0
    %v3870 = vadd.f32 %v541, %v3869
    %v3871 = vpop.f32.mrb[0].mxu0
    %3872 = vmatprep.mubr.f32.mxu0 0.0
    %3873 = vmatmul.mubr.f32.gmra.mrb[0].mxu0 %v1637
    %v3874 = vpop.f32.mrb[0].mxu0
    %v3875 = vadd.f32 %v541, %v3874
    %v3876 = vpop.f32.mrb[0].mxu0
    %3877 = vmatprep.mubr.f32.mxu0 0.0
    %3878 = vmatmul.mubr.f32.gmra.mrb[0].mxu0 %v1640
    %v3879 = vpop.f32.mrb[0].mxu0
    %v3880 = vadd.f32 %v541, %v3879
    %v3881 = vpop.f32.mrb[0].mxu0
    %3882 = vmatprep.mubr.f32.mxu0 0.0
    %3883 = vmatmul.mubr.f32.gmra.mrb[0].mxu0 %v1643
    %v3884 = vpop.f32.mrb[0].mxu0
    %v3885 = vadd.f32 %v541, %v3884
    %v3886 = vpop.f32.mrb[0].mxu0
    %3887 = vmatprep.mubr.f32.mxu0 0.0
    %3888 = vmatmul.mubr.f32.gmra.mrb[0].mxu0 %v1646
    %v3889 = vpop.f32.mrb[0].mxu0
    %v3890 = vadd.f32 %v541, %v3889
    %v3891 = vpop.f32.mrb[0].mxu0
    %3892 = vmatprep.mubr.f32.mxu0 0.0
    %3893 = vmatmul.mubr.f32.gmra.mrb[0].mxu0 %v1649
    %v3894 = vpop.f32.mrb[0].mxu0
    %v3895 = vadd.f32 %v541, %v3894
    %v3896 = vpop.f32.mrb[0].mxu0
    %3897 = vmatprep.mubr.f32.mxu0 0.0
    %3898 = vmatmul.mubr.f32.gmra.mrb[0].mxu0 %v1652
    %v3899 = vpop.f32.mrb[0].mxu0
    %v3900 = vadd.f32 %v541, %v3899
    %v3901 = vpop.f32.mrb[0].mxu0
    %3902 = vmatprep.mubr.f32.mxu0 0.0
    %3903 = vmatmul.mubr.f32.gmra.mrb[0].mxu0 %v1655
    %v3904 = vpop.f32.mrb[0].mxu0
    %v3905 = vadd.f32 %v541, %v3904
    %v3906 = vpop.f32.mrb[0].mxu0
    %3907 = vmatprep.mubr.f32.mxu0 0.0
    %3908 = vmatmul.mubr.f32.gmra.mrb[0].mxu0 %v1658
    %v3909 = vpop.f32.mrb[0].mxu0
    %v3910 = vadd.f32 %v541, %v3909
    %v3911 = vpop.f32.mrb[0].mxu0
    %3912 = vmatprep.mubr.f32.mxu0 0.0
    %3913 = vmatmul.mubr.f32.gmra.mrb[0].mxu0 %v1661
    %v3914 = vpop.f32.mrb[0].mxu0
    %v3915 = vadd.f32 %v541, %v3914
    %v3916 = vpop.f32.mrb[0].mxu0
    %3917 = vmatprep.mubr.f32.mxu0 0.0
    %3918 = vmatmul.mubr.f32.gmra.mrb[0].mxu0 %v1664
    %v3919 = vpop.f32.mrb[0].mxu0
    %v3920 = vadd.f32 %v541, %v3919
    %v3921 = vpop.f32.mrb[0].mxu0
    %3922 = vmatprep.mubr.f32.mxu0 0.0
    %3923 = vmatmul.mubr.f32.gmra.mrb[0].mxu0 %v1667
    %v3924 = vpop.f32.mrb[0].mxu0
    %v3925 = vadd.f32 %v541, %v3924
    %v3926 = vpop.f32.mrb[0].mxu0
    %3927 = vmatprep.mubr.f32.mxu0 0.0
    %3928 = vmatmul.mubr.f32.gmra.mrb[0].mxu0 %v1670
    %v3929 = vpop.f32.mrb[0].mxu0
    %v3930 = vadd.f32 %v541, %v3929
    %v3931 = vpop.f32.mrb[0].mxu0
    %3932 = vmatprep.mubr.f32.mxu0 0.0
    %3933 = vmatmul.mubr.f32.gmra.mrb[0].mxu0 %v1673
    %v3934 = vpop.f32.mrb[0].mxu0
    %v3935 = vadd.f32 %v541, %v3934
    %v3936 = vpop.f32.mrb[0].mxu0
    %3937 = vmatprep.mubr.f32.mxu0 0.0
    %3938 = vmatmul.mubr.f32.gmra.mrb[0].mxu0 %v1676
    %v3939 = vpop.f32.mrb[0].mxu0
    %v3940 = vadd.f32 %v541, %v3939
    %v3941 = vpop.f32.mrb[0].mxu0
    %3942 = vmatprep.mubr.f32.mxu0 0.0
    %3943 = vmatmul.mubr.f32.gmra.mrb[0].mxu0 %v1679
    %v3944 = vpop.f32.mrb[0].mxu0
    %v3945 = vadd.f32 %v541, %v3944
    %v3946 = vpop.f32.mrb[0].mxu0
    %3947 = vmatprep.mubr.f32.mxu0 0.0
    %3948 = vmatmul.mubr.f32.gmra.mrb[0].mxu0 %v1682
    %v3949 = vpop.f32.mrb[0].mxu0
    %v3950 = vadd.f32 %v541, %v3949
    %v3951 = vpop.f32.mrb[0].mxu0
    %3952 = vmatprep.mubr.f32.mxu0 0.0
    %3953 = vmatmul.mubr.f32.gmra.mrb[0].mxu0 %v1685
    %v3954 = vpop.f32.mrb[0].mxu0
    %v3955 = vadd.f32 %v541, %v3954
    %v3956 = vpop.f32.mrb[0].mxu0
    %3957 = vmatprep.mubr.f32.mxu0 0.0
    %3958 = vmatmul.mubr.f32.gmra.mrb[0].mxu0 %v1688
    %v3959 = vpop.f32.mrb[0].mxu0
    %v3960 = vadd.f32 %v541, %v3959
    %v3961 = vpop.f32.mrb[0].mxu0
    %3962 = vmatprep.mubr.f32.mxu0 0.0
    %3963 = vmatmul.mubr.f32.gmra.mrb[0].mxu0 %v1691
    %v3964 = vpop.f32.mrb[0].mxu0
    %v3965 = vadd.f32 %v541, %v3964
    %v3966 = vpop.f32.mrb[0].mxu0
    %3967 = vmatprep.mubr.f32.mxu0 0.0
    %3968 = vmatmul.mubr.f32.gmra.mrb[0].mxu0 %v1694
    %v3969 = vpop.f32.mrb[0].mxu0
    %v3970 = vadd.f32 %v541, %v3969
    %v3971 = vpop.f32.mrb[0].mxu0
    %3972 = vmatprep.mubr.f32.mxu0 0.0
    %3973 = vmatmul.mubr.f32.gmra.mrb[0].mxu0 %v1697
    %v3974 = vpop.f32.mrb[0].mxu0
    %v3975 = vadd.f32 %v541, %v3974
    %v3976 = vpop.f32.mrb[0].mxu0
    %3977 = vmatprep.mubr.f32.mxu0 0.0
    %3978 = vmatmul.mubr.f32.gmra.mrb[0].mxu0 %v1700
    %v3979 = vpop.f32.mrb[0].mxu0
    %v3980 = vadd.f32 %v541, %v3979
    %v3981 = vpop.f32.mrb[0].mxu0
    %3982 = vmatprep.mubr.f32.mxu0 0.0
    %3983 = vmatmul.mubr.f32.gmra.mrb[0].mxu0 %v1703
    %v3984 = vpop.f32.mrb[0].mxu0
    %v3985 = vadd.f32 %v541, %v3984
    %v3986 = vpop.f32.mrb[0].mxu0
    %3987 = vmatprep.mubr.f32.mxu0 0.0
    %3988 = vmatmul.mubr.f32.gmra.mrb[0].mxu0 %v1706
    %v3989 = vpop.f32.mrb[0].mxu0
    %v3990 = vadd.f32 %v541, %v3989
    %v3991 = vpop.f32.mrb[0].mxu0
    %3992 = vmatprep.mubr.f32.mxu0 0.0
    %3993 = vmatmul.mubr.f32.gmra.mrb[0].mxu0 %v1709
    %v3994 = vpop.f32.mrb[0].mxu0
    %v3995 = vadd.f32 %v541, %v3994
    %v3996 = vpop.f32.mrb[0].mxu0
    %3997 = vmatprep.mubr.f32.mxu0 0.0
    %3998 = vmatmul.mubr.f32.gmra.mrb[0].mxu0 %v1712
    %v3999 = vpop.f32.mrb[0].mxu0
    %v4000 = vadd.f32 %v541, %v3999
    %v4001 = vpop.f32.mrb[0].mxu0
    %4002 = vmatprep.mubr.f32.mxu0 0.0
    %4003 = vmatmul.mubr.f32.gmra.mrb[0].mxu0 %v1715
    %v4004 = vpop.f32.mrb[0].mxu0
    %v4005 = vadd.f32 %v541, %v4004
    %v4006 = vpop.f32.mrb[0].mxu0
    %4007 = vmatprep.mubr.f32.mxu0 0.0
    %4008 = vmatmul.mubr.f32.gmra.mrb[0].mxu0 %v1718
    %v4009 = vpop.f32.mrb[0].mxu0
    %v4010 = vadd.f32 %v541, %v4009
    %v4011 = vpop.f32.mrb[0].mxu0
    %4012 = vmatprep.mubr.f32.mxu0 0.0
    %4013 = vmatmul.mubr.f32.gmra.mrb[0].mxu0 %v1721
    %v4014 = vpop.f32.mrb[0].mxu0
    %v4015 = vadd.f32 %v541, %v4014
    %v4016 = vpop.f32.mrb[0].mxu0
    %4017 = vmatprep.mubr.f32.mxu0 0.0
    %4018 = vmatmul.mubr.f32.gmra.mrb[0].mxu0 %v1724
    %v4019 = vpop.f32.mrb[0].mxu0
    %v4020 = vadd.f32 %v541, %v4019
    %v4021 = vpop.f32.mrb[0].mxu0
    %4022 = vmatprep.mubr.f32.mxu0 0.0
    %4023 = vmatmul.mubr.f32.gmra.mrb[0].mxu0 %v1727
    %v4024 = vpop.f32.mrb[0].mxu0
    %v4025 = vadd.f32 %v541, %v4024
    %v4026 = vpop.f32.mrb[0].mxu0
    %4027 = vmatprep.mubr.f32.mxu0 0.0
    %4028 = vmatmul.mubr.f32.gmra.mrb[0].mxu0 %v1730
    %v4029 = vpop.f32.mrb[0].mxu0
    %v4030 = vadd.f32 %v541, %v4029
    %v4031 = vpop.f32.mrb[0].mxu0
    %4032 = vmatprep.mubr.f32.mxu0 0.0
    %4033 = vmatmul.mubr.f32.gmra.mrb[0].mxu0 %v1733
    %v4034 = vpop.f32.mrb[0].mxu0
    %v4035 = vadd.f32 %v541, %v4034
    %v4036 = vpop.f32.mrb[0].mxu0
    %4037 = vmatprep.mubr.f32.mxu0 0.0
    %4038 = vmatmul.mubr.f32.gmra.mrb[0].mxu0 %v1736
    %v4039 = vpop.f32.mrb[0].mxu0
    %v4040 = vadd.f32 %v541, %v4039
    %v4041 = vpop.f32.mrb[0].mxu0
    %4042 = vmatprep.mubr.f32.mxu0 0.0
    %4043 = vmatmul.mubr.f32.gmra.mrb[0].mxu0 %v1739
    %v4044 = vpop.f32.mrb[0].mxu0
    %v4045 = vadd.f32 %v541, %v4044
    %v4046 = vpop.f32.mrb[0].mxu0
    %4047 = vmatprep.mubr.f32.mxu0 0.0
    %4048 = vmatmul.mubr.f32.gmra.mrb[0].mxu0 %v1742
    %v4049 = vpop.f32.mrb[0].mxu0
    %v4050 = vadd.f32 %v541, %v4049
    %v4051 = vpop.f32.mrb[0].mxu0
    %4052 = vmatprep.mubr.f32.mxu0 0.0
    %4053 = vmatmul.mubr.f32.gmra.mrb[0].mxu0 %v1745
    %v4054 = vpop.f32.mrb[0].mxu0
    %v4055 = vadd.f32 %v541, %v4054
    %v4056 = vpop.f32.mrb[0].mxu0
    %4057 = vmatprep.mubr.f32.mxu0 0.0
    %4058 = vmatmul.mubr.f32.gmra.mrb[0].mxu0 %v1748
    %v4059 = vpop.f32.mrb[0].mxu0
    %v4060 = vadd.f32 %v541, %v4059
    %v4061 = vpop.f32.mrb[0].mxu0
    %4062 = vmatprep.mubr.f32.mxu0 0.0
    %4063 = vmatmul.mubr.f32.gmra.mrb[0].mxu0 %v1751
    %v4064 = vpop.f32.mrb[0].mxu0
    %v4065 = vadd.f32 %v541, %v4064
    %v4066 = vpop.f32.mrb[0].mxu0
    %4067 = vmatprep.mubr.f32.mxu0 0.0
    %4068 = vmatmul.mubr.f32.gmra.mrb[0].mxu0 %v1754
    %v4069 = vpop.f32.mrb[0].mxu0
    %v4070 = vadd.f32 %v541, %v4069
    %v4071 = vpop.f32.mrb[0].mxu0
    %4072 = vmatprep.mubr.f32.mxu0 0.0
    %4073 = vmatmul.mubr.f32.gmra.mrb[0].mxu0 %v1757
    %v4074 = vpop.f32.mrb[0].mxu0
    %v4075 = vadd.f32 %v541, %v4074
    %v4076 = vpop.f32.mrb[0].mxu0
    %4077 = vmatprep.mubr.f32.mxu0 0.0
    %4078 = vmatmul.mubr.f32.gmra.mrb[0].mxu0 %v1760
    %v4079 = vpop.f32.mrb[0].mxu0
    %v4080 = vadd.f32 %v541, %v4079
    %v4081 = vpop.f32.mrb[0].mxu0
    %4082 = vmatprep.mubr.f32.mxu0 0.0
    %4083 = vmatmul.mubr.f32.gmra.mrb[0].mxu0 %v1763
    %v4084 = vpop.f32.mrb[0].mxu0
    %v4085 = vadd.f32 %v541, %v4084
    %v4086 = vpop.f32.mrb[0].mxu0
    %4087 = vmatprep.mubr.f32.mxu0 0.0
    %4088 = vmatmul.mubr.f32.gmra.mrb[0].mxu0 %v1766
    %v4089 = vpop.f32.mrb[0].mxu0
    %v4090 = vadd.f32 %v541, %v4089
    %v4091 = vpop.f32.mrb[0].mxu0
    %4092 = vmatprep.mubr.f32.mxu0 0.0
    %4093 = vmatmul.mubr.f32.gmra.mrb[0].mxu0 %v1769
    %v4094 = vpop.f32.mrb[0].mxu0
    %v4095 = vadd.f32 %v541, %v4094
    %v4096 = vpop.f32.mrb[0].mxu0
    %4097 = vmatprep.mubr.f32.mxu0 0.0
    %4098 = vmatmul.mubr.f32.gmra.mrb[0].mxu0 %v1772
    %v4099 = vpop.f32.mrb[0].mxu0
    %v4100 = vadd.f32 %v541, %v4099
    %v4101 = vpop.f32.mrb[0].mxu0
    %4102 = vmatprep.mubr.f32.mxu0 0.0
    %4103 = vmatmul.mubr.f32.gmra.mrb[0].mxu0 %v1775
    %v4104 = vpop.f32.mrb[0].mxu0
    %v4105 = vadd.f32 %v541, %v4104
    %v4106 = vpop.f32.mrb[0].mxu0
    %4107 = vmatprep.mubr.f32.mxu0 0.0
    %4108 = vmatmul.mubr.f32.gmra.mrb[0].mxu0 %v1778
    %v4109 = vpop.f32.mrb[0].mxu0
    %v4110 = vadd.f32 %v541, %v4109
    %v4111 = vpop.f32.mrb[0].mxu0
    %4112 = vmatprep.mubr.f32.mxu0 0.0
    %4113 = vmatmul.mubr.f32.gmra.mrb[0].mxu0 %v1781
    %v4114 = vpop.f32.mrb[0].mxu0
    %v4115 = vadd.f32 %v541, %v4114
    %v4116 = vpop.f32.mrb[0].mxu0
    %4117 = vmatprep.mubr.f32.mxu0 0.0
    %4118 = vmatmul.mubr.f32.gmra.mrb[0].mxu0 %v1784
    %v4119 = vpop.f32.mrb[0].mxu0
    %v4120 = vadd.f32 %v541, %v4119
    %v4121 = vpop.f32.mrb[0].mxu0
    %4122 = vmatprep.mubr.f32.mxu0 0.0
    %4123 = vmatmul.mubr.f32.gmra.mrb[0].mxu0 %v1787
    %v4124 = vpop.f32.mrb[0].mxu0
    %v4125 = vadd.f32 %v541, %v4124
    %v4126 = vpop.f32.mrb[0].mxu0
    %4127 = vmatprep.mubr.f32.mxu0 0.0
    %4128 = vmatmul.mubr.f32.gmra.mrb[0].mxu0 %v1790
    %v4129 = vpop.f32.mrb[0].mxu0
    %v4130 = vadd.f32 %v541, %v4129
    %v4131 = vpop.f32.mrb[0].mxu0
    %4132 = vmatprep.mubr.f32.mxu0 0.0
    %4133 = vmatmul.mubr.f32.gmra.mrb[0].mxu0 %v1793
    %v4134 = vpop.f32.mrb[0].mxu0
    %v4135 = vadd.f32 %v541, %v4134
    %v4136 = vpop.f32.mrb[0].mxu0
    %4137 = vmatprep.mubr.f32.mxu0 0.0
    %4138 = vmatmul.mubr.f32.gmra.mrb[0].mxu0 %v1796
    %v4139 = vpop.f32.mrb[0].mxu0
    %v4140 = vadd.f32 %v541, %v4139
    %v4141 = vpop.f32.mrb[0].mxu0
    %4142 = vmatprep.mubr.f32.mxu0 0.0
    %4143 = vmatmul.mubr.f32.gmra.mrb[0].mxu0 %v1799
    %v4144 = vpop.f32.mrb[0].mxu0
    %v4145 = vadd.f32 %v541, %v4144
    %v4146 = vpop.f32.mrb[0].mxu0
    %4147 = vmatprep.mubr.f32.mxu0 0.0
    %4148 = vmatmul.mubr.f32.gmra.mrb[0].mxu0 %v1802
    %v4149 = vpop.f32.mrb[0].mxu0
    %v4150 = vadd.f32 %v541, %v4149
    %v4151 = vpop.f32.mrb[0].mxu0
    %4152 = vmatprep.mubr.f32.mxu0 0.0
    %4153 = vmatmul.mubr.f32.gmra.mrb[0].mxu0 %v1805
    %v4154 = vpop.f32.mrb[0].mxu0
    %v4155 = vadd.f32 %v541, %v4154
    %v4156 = vpop.f32.mrb[0].mxu0
    %4157 = vmatprep.mubr.f32.mxu0 0.0
    %4158 = vmatmul.mubr.f32.gmra.mrb[0].mxu0 %v1808
    %v4159 = vpop.f32.mrb[0].mxu0
    %v4160 = vadd.f32 %v541, %v4159
    %v4161 = vpop.f32.mrb[0].mxu0
    %4162 = vmatprep.mubr.f32.mxu0 0.0
    %4163 = vmatmul.mubr.f32.gmra.mrb[0].mxu0 %v1811
    %v4164 = vpop.f32.mrb[0].mxu0
    %v4165 = vadd.f32 %v541, %v4164
    %v4166 = vpop.f32.mrb[0].mxu0
    %4167 = vmatprep.mubr.f32.mxu0 0.0
    %4168 = vmatmul.mubr.f32.gmra.mrb[0].mxu0 %v1814
    %v4169 = vpop.f32.mrb[0].mxu0
    %v4170 = vadd.f32 %v541, %v4169
    %v4171 = vpop.f32.mrb[0].mxu0
    %4172 = vmatprep.mubr.f32.mxu0 0.0
    %4173 = vmatmul.mubr.f32.gmra.mrb[0].mxu0 %v1817
    %v4174 = vpop.f32.mrb[0].mxu0
    %v4175 = vadd.f32 %v541, %v4174
    %v4176 = vpop.f32.mrb[0].mxu0
    %4177 = vmatprep.mubr.f32.mxu0 0.0
    %4178 = vmatmul.mubr.f32.gmra.mrb[0].mxu0 %v1820
    %v4179 = vpop.f32.mrb[0].mxu0
    %v4180 = vadd.f32 %v541, %v4179
    %v4181 = vpop.f32.mrb[0].mxu0
    %4182 = vmatprep.mubr.f32.mxu0 0.0
    %4183 = vmatmul.mubr.f32.gmra.mrb[0].mxu0 %v1823
    %v4184 = vpop.f32.mrb[0].mxu0
    %v4185 = vadd.f32 %v541, %v4184
    %v4186 = vpop.f32.mrb[0].mxu0
    %4187 = vmatprep.mubr.f32.mxu0 0.0
    %4188 = vmatmul.mubr.f32.gmra.mrb[0].mxu0 %v1826
    %v4189 = vpop.f32.mrb[0].mxu0
    %v4190 = vadd.f32 %v541, %v4189
    %v4191 = vpop.f32.mrb[0].mxu0
    %4192 = vmatprep.mubr.f32.mxu0 0.0
    %4193 = vmatmul.mubr.f32.gmra.mrb[0].mxu0 %v1829
    %v4194 = vpop.f32.mrb[0].mxu0
    %v4195 = vadd.f32 %v541, %v4194
    %v4196 = vpop.f32.mrb[0].mxu0
    %4197 = vmatprep.mubr.f32.mxu0 0.0
    %4198 = vmatmul.mubr.f32.gmra.mrb[0].mxu0 %v1832
    %v4199 = vpop.f32.mrb[0].mxu0
    %v4200 = vadd.f32 %v541, %v4199
    %v4201 = vpop.f32.mrb[0].mxu0
    %4202 = vmatprep.mubr.f32.mxu0 0.0
    %4203 = vmatmul.mubr.f32.gmra.mrb[0].mxu0 %v1835
    %v4204 = vpop.f32.mrb[0].mxu0
    %v4205 = vadd.f32 %v541, %v4204
    %v4206 = vpop.f32.mrb[0].mxu0
    %4207 = vmatprep.mubr.f32.mxu0 0.0
    %4208 = vmatmul.mubr.f32.gmra.mrb[0].mxu0 %v1838
    %v4209 = vpop.f32.mrb[0].mxu0
    %v4210 = vadd.f32 %v541, %v4209
    %v4211 = vpop.f32.mrb[0].mxu0
    %4212 = vmatprep.mubr.f32.mxu0 0.0
    %4213 = vmatmul.mubr.f32.gmra.mrb[0].mxu0 %v1841
    %v4214 = vpop.f32.mrb[0].mxu0
    %v4215 = vadd.f32 %v541, %v4214
    %v4216 = vpop.f32.mrb[0].mxu0
    %4217 = vmatprep.mubr.f32.mxu0 0.0
    %4218 = vmatmul.mubr.f32.gmra.mrb[0].mxu0 %v1844
    %v4219 = vpop.f32.mrb[0].mxu0
    %v4220 = vadd.f32 %v541, %v4219
    %v4221 = vpop.f32.mrb[0].mxu0
    %4222 = vmatprep.mubr.f32.mxu0 0.0
    %4223 = vmatmul.mubr.f32.gmra.mrb[0].mxu0 %v1847
    %v4224 = vpop.f32.mrb[0].mxu0
    %v4225 = vadd.f32 %v541, %v4224
    %v4226 = vpop.f32.mrb[0].mxu0
    %4227 = vmatprep.mubr.f32.mxu0 0.0
    %4228 = vmatmul.mubr.f32.gmra.mrb[0].mxu0 %v1850
    %v4229 = vpop.f32.mrb[0].mxu0
    %v4230 = vadd.f32 %v541, %v4229
    %v4231 = vpop.f32.mrb[0].mxu0
    %4232 = vmatprep.mubr.f32.mxu0 0.0
    %4233 = vmatmul.mubr.f32.gmra.mrb[0].mxu0 %v1853
    %v4234 = vpop.f32.mrb[0].mxu0
    %v4235 = vadd.f32 %v541, %v4234
    %v4236 = vpop.f32.mrb[0].mxu0
    %4237 = vmatprep.mubr.f32.mxu0 0.0
    %4238 = vmatmul.mubr.f32.gmra.mrb[0].mxu0 %v1856
    %v4239 = vpop.f32.mrb[0].mxu0
    %v4240 = vadd.f32 %v541, %v4239
    %v4241 = vpop.f32.mrb[0].mxu0
    %4242 = vmatprep.mubr.f32.mxu0 0.0
    %4243 = vmatmul.mubr.f32.gmra.mrb[0].mxu0 %v1859
    %v4244 = vpop.f32.mrb[0].mxu0
    %v4245 = vadd.f32 %v541, %v4244
    %v4246 = vpop.f32.mrb[0].mxu0
    %4247 = vmatprep.mubr.f32.mxu0 0.0
    %4248 = vmatmul.mubr.f32.gmra.mrb[0].mxu0 %v1862
    %v4249 = vpop.f32.mrb[0].mxu0
    %v4250 = vadd.f32 %v541, %v4249
    %v4251 = vpop.f32.mrb[0].mxu0
    %4252 = vmatprep.mubr.f32.mxu0 0.0
    %4253 = vmatmul.mubr.f32.gmra.mrb[0].mxu0 %v1865
    %v4254 = vpop.f32.mrb[0].mxu0
    %v4255 = vadd.f32 %v541, %v4254
    %v4256 = vpop.f32.mrb[0].mxu0
    %4257 = vmatprep.mubr.f32.mxu0 0.0
    %4258 = vmatmul.mubr.f32.gmra.mrb[0].mxu0 %v1868
    %v4259 = vpop.f32.mrb[0].mxu0
    %v4260 = vadd.f32 %v541, %v4259
    %v4261 = vpop.f32.mrb[0].mxu0
    %4262 = vmatprep.mubr.f32.mxu0 0.0
    %4263 = vmatmul.mubr.f32.gmra.mrb[0].mxu0 %v1871
    %v4264 = vpop.f32.mrb[0].mxu0
    %v4265 = vadd.f32 %v541, %v4264
    %v4266 = vpop.f32.mrb[0].mxu0
    %4267 = vmatprep.mubr.f32.mxu0 0.0
    %4268 = vmatmul.mubr.f32.gmra.mrb[0].mxu0 %v1874
    %v4269 = vpop.f32.mrb[0].mxu0
    %v4270 = vadd.f32 %v541, %v4269
    %v4271 = vpop.f32.mrb[0].mxu0
    %4272 = vmatprep.mubr.f32.mxu0 0.0
    %4273 = vmatmul.mubr.f32.gmra.mrb[0].mxu0 %v1877
    %v4274 = vpop.f32.mrb[0].mxu0
    %v4275 = vadd.f32 %v541, %v4274
    %v4276 = vpop.f32.mrb[0].mxu0
    %4277 = vmatprep.mubr.f32.mxu0 0.0
    %4278 = vmatmul.mubr.f32.gmra.mrb[0].mxu0 %v1880
    %v4279 = vpop.f32.mrb[0].mxu0
    %v4280 = vadd.f32 %v541, %v4279
    %v4281 = vpop.f32.mrb[0].mxu0
    %4282 = vmatprep.mubr.f32.mxu0 0.0
    %4283 = vmatmul.mubr.f32.gmra.mrb[0].mxu0 %v1883
    %v4284 = vpop.f32.mrb[0].mxu0
    %v4285 = vadd.f32 %v541, %v4284
    %v4286 = vpop.f32.mrb[0].mxu0
    %4287 = vmatprep.mubr.f32.mxu0 0.0
    %4288 = vmatmul.mubr.f32.gmra.mrb[0].mxu0 %v1886
    %v4289 = vpop.f32.mrb[0].mxu0
    %v4290 = vadd.f32 %v541, %v4289
    %v4291 = vpop.f32.mrb[0].mxu0
    %4292 = vmatprep.mubr.f32.mxu0 0.0
    %4293 = vmatmul.mubr.f32.gmra.mrb[0].mxu0 %v1889
    %v4294 = vpop.f32.mrb[0].mxu0
    %v4295 = vadd.f32 %v541, %v4294
    %v4296 = vpop.f32.mrb[0].mxu0
    %4297 = vmatprep.mubr.f32.mxu0 0.0
    %4298 = vmatmul.mubr.f32.gmra.mrb[0].mxu0 %v1892
    %v4299 = vpop.f32.mrb[0].mxu0
    %v4300 = vadd.f32 %v541, %v4299
    %v4301 = vpop.f32.mrb[0].mxu0
    %4302 = vmatprep.mubr.f32.mxu0 0.0
    %4303 = vmatmul.mubr.f32.gmra.mrb[0].mxu0 %v1895
    %v4304 = vpop.f32.mrb[0].mxu0
    %v4305 = vadd.f32 %v541, %v4304
    %v4306 = vpop.f32.mrb[0].mxu0
    %4307 = vmatprep.mubr.f32.mxu0 0.0
    %4308 = vmatmul.mubr.f32.gmra.mrb[0].mxu0 %v1898
    %v4309 = vpop.f32.mrb[0].mxu0
    %v4310 = vadd.f32 %v541, %v4309
    %v4311 = vpop.f32.mrb[0].mxu0
    %4312 = vmatprep.mubr.f32.mxu0 0.0
    %4313 = vmatmul.mubr.f32.gmra.mrb[0].mxu0 %v1901
    %v4314 = vpop.f32.mrb[0].mxu0
    %v4315 = vadd.f32 %v541, %v4314
    %v4316 = vpop.f32.mrb[0].mxu0
    %4317 = vmatprep.mubr.f32.mxu0 0.0
    %4318 = vmatmul.mubr.f32.gmra.mrb[0].mxu0 %v1904
    %v4319 = vpop.f32.mrb[0].mxu0
    %v4320 = vadd.f32 %v541, %v4319
    %v4321 = vpop.f32.mrb[0].mxu0
    %4322 = vmatprep.mubr.f32.mxu0 0.0
    %4323 = vmatmul.mubr.f32.gmra.mrb[0].mxu0 %v1907
    %v4324 = vpop.f32.mrb[0].mxu0
    %v4325 = vadd.f32 %v541, %v4324
    %v4326 = vpop.f32.mrb[0].mxu0
    %4327 = vmatprep.mubr.f32.mxu0 0.0
    %4328 = vmatmul.mubr.f32.gmra.mrb[0].mxu0 %v1910
    %v4329 = vpop.f32.mrb[0].mxu0
    %v4330 = vadd.f32 %v541, %v4329
    %v4331 = vpop.f32.mrb[0].mxu0
    %4332 = vmatprep.mubr.f32.mxu0 0.0
    %4333 = vmatmul.mubr.f32.gmra.mrb[0].mxu0 %v1913
    %v4334 = vpop.f32.mrb[0].mxu0
    %v4335 = vadd.f32 %v541, %v4334
    %v4336 = vpop.f32.mrb[0].mxu0
    %4337 = vmatprep.mubr.f32.mxu0 0.0
    %4338 = vmatmul.mubr.f32.gmra.mrb[0].mxu0 %v1916
    %v4339 = vpop.f32.mrb[0].mxu0
    %v4340 = vadd.f32 %v541, %v4339
    %v4341 = vpop.f32.mrb[0].mxu0
    %4342 = vmatprep.mubr.f32.mxu0 0.0
    %4343 = vmatmul.mubr.f32.gmra.mrb[0].mxu0 %v1919
    %v4344 = vpop.f32.mrb[0].mxu0
    %v4345 = vadd.f32 %v541, %v4344
    %v4346 = vpop.f32.mrb[0].mxu0
    %4347 = vmatprep.mubr.f32.mxu0 0.0
    %4348 = vmatmul.mubr.f32.gmra.mrb[0].mxu0 %v1922
    %v4349 = vpop.f32.mrb[0].mxu0
    %v4350 = vadd.f32 %v541, %v4349
    %v4351 = vpop.f32.mrb[0].mxu0
    %4352 = vmatprep.mubr.f32.mxu0 0.0
    %4353 = vmatmul.mubr.f32.gmra.mrb[0].mxu0 %v1925
    %v4354 = vpop.f32.mrb[0].mxu0
    %v4355 = vadd.f32 %v541, %v4354
    %v4356 = vpop.f32.mrb[0].mxu0
    %4357 = vmatprep.mubr.f32.mxu0 0.0
    %4358 = vmatmul.mubr.f32.gmra.mrb[0].mxu0 %v1928
    %v4359 = vpop.f32.mrb[0].mxu0
    %v4360 = vadd.f32 %v541, %v4359
    %v4361 = vpop.f32.mrb[0].mxu0
    %4362 = vmatprep.mubr.f32.mxu0 0.0
    %4363 = vmatmul.mubr.f32.gmra.mrb[0].mxu0 %v1931
    %v4364 = vpop.f32.mrb[0].mxu0
    %v4365 = vadd.f32 %v541, %v4364
    %v4366 = vpop.f32.mrb[0].mxu0
    %4367 = vmatprep.mubr.f32.mxu0 0.0
    %4368 = vmatmul.mubr.f32.gmra.mrb[0].mxu0 %v1934
    %v4369 = vpop.f32.mrb[0].mxu0
    %v4370 = vadd.f32 %v541, %v4369
    %v4371 = vpop.f32.mrb[0].mxu0
    %4372 = vmatprep.mubr.f32.mxu0 0.0
    %4373 = vmatmul.mubr.f32.gmra.mrb[0].mxu0 %v1937
    %v4374 = vpop.f32.mrb[0].mxu0
    %v4375 = vadd.f32 %v541, %v4374
    %v4376 = vpop.f32.mrb[0].mxu0
    %4377 = vmatprep.mubr.f32.mxu0 0.0
    %4378 = vmatmul.mubr.f32.gmra.mrb[0].mxu0 %v1940
    %v4379 = vpop.f32.mrb[0].mxu0
    %v4380 = vadd.f32 %v541, %v4379
    %v4381 = vpop.f32.mrb[0].mxu0
    %4382 = vmatprep.mubr.f32.mxu0 0.0
    %4383 = vmatmul.mubr.f32.gmra.mrb[0].mxu0 %v1943
    %v4384 = vpop.f32.mrb[0].mxu0
    %v4385 = vadd.f32 %v541, %v4384
    %v4386 = vpop.f32.mrb[0].mxu0
    %4387 = vmatprep.mubr.f32.mxu0 0.0
    %4388 = vmatmul.mubr.f32.gmra.mrb[0].mxu0 %v1946
    %v4389 = vpop.f32.mrb[0].mxu0
    %v4390 = vadd.f32 %v541, %v4389
    %v4391 = vpop.f32.mrb[0].mxu0
    %4392 = vmatprep.mubr.f32.mxu0 0.0
    %4393 = vmatmul.mubr.f32.gmra.mrb[0].mxu0 %v1949
    %v4394 = vpop.f32.mrb[0].mxu0
    %v4395 = vadd.f32 %v541, %v4394
    %v4396 = vpop.f32.mrb[0].mxu0
    %4397 = vmatprep.mubr.f32.mxu0 0.0
    %4398 = vmatmul.mubr.f32.gmra.mrb[0].mxu0 %v1952
    %v4399 = vpop.f32.mrb[0].mxu0
    %v4400 = vadd.f32 %v541, %v4399
    %v4401 = vpop.f32.mrb[0].mxu0
    %4402 = vmatprep.mubr.f32.mxu0 0.0
    %4403 = vmatmul.mubr.f32.gmra.mrb[0].mxu0 %v1955
    %v4404 = vpop.f32.mrb[0].mxu0
    %v4405 = vadd.f32 %v541, %v4404
    %v4406 = vpop.f32.mrb[0].mxu0
    %4407 = vmatprep.mubr.f32.mxu0 0.0
    %4408 = vmatmul.mubr.f32.gmra.mrb[0].mxu0 %v1958
    %v4409 = vpop.f32.mrb[0].mxu0
    %v4410 = vadd.f32 %v541, %v4409
    %v4411 = vpop.f32.mrb[0].mxu0
    %4412 = vmatprep.mubr.f32.mxu0 0.0
    %4413 = vmatmul.mubr.f32.gmra.mrb[0].mxu0 %v1961
    %v4414 = vpop.f32.mrb[0].mxu0
    %v4415 = vadd.f32 %v541, %v4414
    %v4416 = vpop.f32.mrb[0].mxu0
    %4417 = vmatprep.mubr.f32.mxu0 0.0
    %4418 = vmatmul.mubr.f32.gmra.mrb[0].mxu0 %v1964
    %v4419 = vpop.f32.mrb[0].mxu0
    %v4420 = vadd.f32 %v541, %v4419
    %v4421 = vpop.f32.mrb[0].mxu0
    %4422 = vmatprep.mubr.f32.mxu0 0.0
    %4423 = vmatmul.mubr.f32.gmra.mrb[0].mxu0 %v1967
    %v4424 = vpop.f32.mrb[0].mxu0
    %v4425 = vadd.f32 %v541, %v4424
    %v4426 = vpop.f32.mrb[0].mxu0
    %4427 = vmatprep.mubr.f32.mxu0 0.0
    %4428 = vmatmul.mubr.f32.gmra.mrb[0].mxu0 %v1970
    %v4429 = vpop.f32.mrb[0].mxu0
    %v4430 = vadd.f32 %v541, %v4429
    %v4431 = vpop.f32.mrb[0].mxu0
    %4432 = vmatprep.mubr.f32.mxu0 0.0
    %4433 = vmatmul.mubr.f32.gmra.mrb[0].mxu0 %v1973
    %v4434 = vpop.f32.mrb[0].mxu0
    %v4435 = vadd.f32 %v541, %v4434
    %v4436 = vpop.f32.mrb[0].mxu0
    %4437 = vmatprep.mubr.f32.mxu0 0.0
    %4438 = vmatmul.mubr.f32.gmra.mrb[0].mxu0 %v1976
    %v4439 = vpop.f32.mrb[0].mxu0
    %v4440 = vadd.f32 %v541, %v4439
    %v4441 = vpop.f32.mrb[0].mxu0
    %4442 = vmatprep.mubr.f32.mxu0 0.0
    %4443 = vmatmul.mubr.f32.gmra.mrb[0].mxu0 %v1979
    %v4444 = vpop.f32.mrb[0].mxu0
    %v4445 = vadd.f32 %v541, %v4444
    %v4446 = vpop.f32.mrb[0].mxu0
    %4447 = vmatprep.mubr.f32.mxu0 0.0
    %4448 = vmatmul.mubr.f32.gmra.mrb[0].mxu0 %v1982
    %v4449 = vpop.f32.mrb[0].mxu0
    %v4450 = vadd.f32 %v541, %v4449
    %v4451 = vpop.f32.mrb[0].mxu0
    %4452 = vdwg.mxu0
    %v4453 = vmax.f32 %v2055, 0.0
    %v4454 = vmax.f32 %v2060, 0.0
    %v4455 = vmax.f32 %v2065, 0.0
    %v4456 = vmax.f32 %v2070, 0.0
    %v4457 = vmax.f32 %v2075, 0.0
    %v4458 = vmax.f32 %v2080, 0.0
    %v4459 = vmax.f32 %v2085, 0.0
    %v4460 = vmax.f32 %v2090, 0.0
    %v4461 = vmax.f32 %v2095, 0.0
    %v4462 = vmax.f32 %v2100, 0.0
    %v4463 = vmax.f32 %v2105, 0.0
    %v4464 = vmax.f32 %v2110, 0.0
    %v4465 = vmax.f32 %v2115, 0.0
    %v4466 = vmax.f32 %v2120, 0.0
    %v4467 = vmax.f32 %v2125, 0.0
    %v4468 = vmax.f32 %v2130, 0.0
    %v4469 = vmax.f32 %v2135, 0.0
    %v4470 = vmax.f32 %v2140, 0.0
    %v4471 = vmax.f32 %v2145, 0.0
    %v4472 = vmax.f32 %v2150, 0.0
    %v4473 = vmax.f32 %v2155, 0.0
    %v4474 = vmax.f32 %v2160, 0.0
    %v4475 = vmax.f32 %v2165, 0.0
    %v4476 = vmax.f32 %v2170, 0.0
    %v4477 = vmax.f32 %v2175, 0.0
    %v4478 = vmax.f32 %v2180, 0.0
    %v4479 = vmax.f32 %v2185, 0.0
    %v4480 = vmax.f32 %v2190, 0.0
    %v4481 = vmax.f32 %v2195, 0.0
    %v4482 = vmax.f32 %v2200, 0.0
    %v4483 = vmax.f32 %v2205, 0.0
    %v4484 = vmax.f32 %v2210, 0.0
    %v4485 = vmax.f32 %v2215, 0.0
    %v4486 = vmax.f32 %v2220, 0.0
    %v4487 = vmax.f32 %v2225, 0.0
    %v4488 = vmax.f32 %v2230, 0.0
    %v4489 = vmax.f32 %v2235, 0.0
    %v4490 = vmax.f32 %v2240, 0.0
    %v4491 = vmax.f32 %v2245, 0.0
    %v4492 = vmax.f32 %v2250, 0.0
    %v4493 = vmax.f32 %v2255, 0.0
    %v4494 = vmax.f32 %v2260, 0.0
    %v4495 = vmax.f32 %v2265, 0.0
    %v4496 = vmax.f32 %v2270, 0.0
    %v4497 = vmax.f32 %v2275, 0.0
    %v4498 = vmax.f32 %v2280, 0.0
    %v4499 = vmax.f32 %v2285, 0.0
    %v4500 = vmax.f32 %v2290, 0.0
    %v4501 = vmax.f32 %v2295, 0.0
    %v4502 = vmax.f32 %v2300, 0.0
    %v4503 = vmax.f32 %v2305, 0.0
    %v4504 = vmax.f32 %v2310, 0.0
    %v4505 = vmax.f32 %v2315, 0.0
    %v4506 = vmax.f32 %v2320, 0.0
    %v4507 = vmax.f32 %v2325, 0.0
    %v4508 = vmax.f32 %v2330, 0.0
    %v4509 = vmax.f32 %v2335, 0.0
    %v4510 = vmax.f32 %v2340, 0.0
    %v4511 = vmax.f32 %v2345, 0.0
    %v4512 = vmax.f32 %v2350, 0.0
    %v4513 = vmax.f32 %v2355, 0.0
    %v4514 = vmax.f32 %v2360, 0.0
    %v4515 = vmax.f32 %v2365, 0.0
    %v4516 = vmax.f32 %v2370, 0.0
    %v4517 = vmax.f32 %v2375, 0.0
    %v4518 = vmax.f32 %v2380, 0.0
    %v4519 = vmax.f32 %v2385, 0.0
    %v4520 = vmax.f32 %v2390, 0.0
    %v4521 = vmax.f32 %v2395, 0.0
    %v4522 = vmax.f32 %v2400, 0.0
    %v4523 = vmax.f32 %v2405, 0.0
    %v4524 = vmax.f32 %v2410, 0.0
    %v4525 = vmax.f32 %v2415, 0.0
    %v4526 = vmax.f32 %v2420, 0.0
    %v4527 = vmax.f32 %v2425, 0.0
    %v4528 = vmax.f32 %v2430, 0.0
    %v4529 = vmax.f32 %v2435, 0.0
    %v4530 = vmax.f32 %v2440, 0.0
    %v4531 = vmax.f32 %v2445, 0.0
    %v4532 = vmax.f32 %v2450, 0.0
    %v4533 = vmax.f32 %v2455, 0.0
    %v4534 = vmax.f32 %v2460, 0.0
    %v4535 = vmax.f32 %v2465, 0.0
    %v4536 = vmax.f32 %v2470, 0.0
    %v4537 = vmax.f32 %v2475, 0.0
    %v4538 = vmax.f32 %v2480, 0.0
    %v4539 = vmax.f32 %v2485, 0.0
    %v4540 = vmax.f32 %v2490, 0.0
    %v4541 = vmax.f32 %v2495, 0.0
    %v4542 = vmax.f32 %v2500, 0.0
    %v4543 = vmax.f32 %v2505, 0.0
    %v4544 = vmax.f32 %v2510, 0.0
    %v4545 = vmax.f32 %v2515, 0.0
    %v4546 = vmax.f32 %v2520, 0.0
    %v4547 = vmax.f32 %v2525, 0.0
    %v4548 = vmax.f32 %v2530, 0.0
    %v4549 = vmax.f32 %v2535, 0.0
    %v4550 = vmax.f32 %v2540, 0.0
    %v4551 = vmax.f32 %v2545, 0.0
    %v4552 = vmax.f32 %v2550, 0.0
    %v4553 = vmax.f32 %v2555, 0.0
    %v4554 = vmax.f32 %v2560, 0.0
    %v4555 = vmax.f32 %v2565, 0.0
    %v4556 = vmax.f32 %v2570, 0.0
    %v4557 = vmax.f32 %v2575, 0.0
    %v4558 = vmax.f32 %v2580, 0.0
    %v4559 = vmax.f32 %v2585, 0.0
    %v4560 = vmax.f32 %v2590, 0.0
    %v4561 = vmax.f32 %v2595, 0.0
    %v4562 = vmax.f32 %v2600, 0.0
    %v4563 = vmax.f32 %v2605, 0.0
    %v4564 = vmax.f32 %v2610, 0.0
    %v4565 = vmax.f32 %v2615, 0.0
    %v4566 = vmax.f32 %v2620, 0.0
    %v4567 = vmax.f32 %v2625, 0.0
    %v4568 = vmax.f32 %v2630, 0.0
    %v4569 = vmax.f32 %v2635, 0.0
    %v4570 = vmax.f32 %v2640, 0.0
    %v4571 = vmax.f32 %v2645, 0.0
    %v4572 = vmax.f32 %v2650, 0.0
    %v4573 = vmax.f32 %v2655, 0.0
    %v4574 = vmax.f32 %v2660, 0.0
    %v4575 = vmax.f32 %v2665, 0.0
    %v4576 = vmax.f32 %v2670, 0.0
    %v4577 = vmax.f32 %v2675, 0.0
    %v4578 = vmax.f32 %v2680, 0.0
    %v4579 = vmax.f32 %v2685, 0.0
    %v4580 = vmax.f32 %v2690, 0.0
    %v4581 = vmax.f32 %v2695, 0.0
    %v4582 = vmax.f32 %v2700, 0.0
    %v4583 = vmax.f32 %v2705, 0.0
    %v4584 = vmax.f32 %v2710, 0.0
    %v4585 = vmax.f32 %v2715, 0.0
    %v4586 = vmax.f32 %v2720, 0.0
    %v4587 = vmax.f32 %v2725, 0.0
    %v4588 = vmax.f32 %v2730, 0.0
    %v4589 = vmax.f32 %v2735, 0.0
    %v4590 = vmax.f32 %v2740, 0.0
    %v4591 = vmax.f32 %v2745, 0.0
    %v4592 = vmax.f32 %v2750, 0.0
    %v4593 = vmax.f32 %v2755, 0.0
    %v4594 = vmax.f32 %v2760, 0.0
    %v4595 = vmax.f32 %v2765, 0.0
    %v4596 = vmax.f32 %v2770, 0.0
    %v4597 = vmax.f32 %v2775, 0.0
    %v4598 = vmax.f32 %v2780, 0.0
    %v4599 = vmax.f32 %v2785, 0.0
    %v4600 = vmax.f32 %v2790, 0.0
    %v4601 = vmax.f32 %v2795, 0.0
    %v4602 = vmax.f32 %v2800, 0.0
    %v4603 = vmax.f32 %v2805, 0.0
    %v4604 = vmax.f32 %v2810, 0.0
    %v4605 = vmax.f32 %v2815, 0.0
    %v4606 = vmax.f32 %v2820, 0.0
    %v4607 = vmax.f32 %v2825, 0.0
    %v4608 = vmax.f32 %v2830, 0.0
    %v4609 = vmax.f32 %v2835, 0.0
    %v4610 = vmax.f32 %v2840, 0.0
    %v4611 = vmax.f32 %v2845, 0.0
    %v4612 = vmax.f32 %v2850, 0.0
    %v4613 = vmax.f32 %v2855, 0.0
    %v4614 = vmax.f32 %v2860, 0.0
    %v4615 = vmax.f32 %v2865, 0.0
    %v4616 = vmax.f32 %v2870, 0.0
    %v4617 = vmax.f32 %v2875, 0.0
    %v4618 = vmax.f32 %v2880, 0.0
    %v4619 = vmax.f32 %v2885, 0.0
    %v4620 = vmax.f32 %v2890, 0.0
    %v4621 = vmax.f32 %v2895, 0.0
    %v4622 = vmax.f32 %v2900, 0.0
    %v4623 = vmax.f32 %v2905, 0.0
    %v4624 = vmax.f32 %v2910, 0.0
    %v4625 = vmax.f32 %v2915, 0.0
    %v4626 = vmax.f32 %v2920, 0.0
    %v4627 = vmax.f32 %v2925, 0.0
    %v4628 = vmax.f32 %v2930, 0.0
    %v4629 = vmax.f32 %v2935, 0.0
    %v4630 = vmax.f32 %v2940, 0.0
    %v4631 = vmax.f32 %v2945, 0.0
    %v4632 = vmax.f32 %v2950, 0.0
    %v4633 = vmax.f32 %v2955, 0.0
    %v4634 = vmax.f32 %v2960, 0.0
    %v4635 = vmax.f32 %v2965, 0.0
    %v4636 = vmax.f32 %v2970, 0.0
    %v4637 = vmax.f32 %v2975, 0.0
    %v4638 = vmax.f32 %v2980, 0.0
    %v4639 = vmax.f32 %v2985, 0.0
    %v4640 = vmax.f32 %v2990, 0.0
    %v4641 = vmax.f32 %v2995, 0.0
    %v4642 = vmax.f32 %v3000, 0.0
    %v4643 = vmax.f32 %v3005, 0.0
    %v4644 = vmax.f32 %v3010, 0.0
    %v4645 = vmax.f32 %v3015, 0.0
    %v4646 = vmax.f32 %v3020, 0.0
    %v4647 = vmax.f32 %v3025, 0.0
    %v4648 = vmax.f32 %v3030, 0.0
    %v4649 = vmax.f32 %v3035, 0.0
    %v4650 = vmax.f32 %v3040, 0.0
    %v4651 = vmax.f32 %v3045, 0.0
    %v4652 = vmax.f32 %v3050, 0.0
    %v4653 = vmax.f32 %v3055, 0.0
    %v4654 = vmax.f32 %v3060, 0.0
    %v4655 = vmax.f32 %v3065, 0.0
    %v4656 = vmax.f32 %v3070, 0.0
    %v4657 = vmax.f32 %v3075, 0.0
    %v4658 = vmax.f32 %v3080, 0.0
    %v4659 = vmax.f32 %v3085, 0.0
    %v4660 = vmax.f32 %v3090, 0.0
    %v4661 = vmax.f32 %v3095, 0.0
    %v4662 = vmax.f32 %v3100, 0.0
    %v4663 = vmax.f32 %v3105, 0.0
    %v4664 = vmax.f32 %v3110, 0.0
    %v4665 = vmax.f32 %v3115, 0.0
    %v4666 = vmax.f32 %v3120, 0.0
    %v4667 = vmax.f32 %v3125, 0.0
    %v4668 = vmax.f32 %v3130, 0.0
    %v4669 = vmax.f32 %v3135, 0.0
    %v4670 = vmax.f32 %v3140, 0.0
    %v4671 = vmax.f32 %v3145, 0.0
    %v4672 = vmax.f32 %v3150, 0.0
    %v4673 = vmax.f32 %v3155, 0.0
    %v4674 = vmax.f32 %v3160, 0.0
    %v4675 = vmax.f32 %v3165, 0.0
    %v4676 = vmax.f32 %v3170, 0.0
    %v4677 = vmax.f32 %v3175, 0.0
    %v4678 = vmax.f32 %v3180, 0.0
    %v4679 = vmax.f32 %v3185, 0.0
    %v4680 = vmax.f32 %v3190, 0.0
    %v4681 = vmax.f32 %v3195, 0.0
    %v4682 = vmax.f32 %v3200, 0.0
    %v4683 = vmax.f32 %v3205, 0.0
    %v4684 = vmax.f32 %v3210, 0.0
    %v4685 = vmax.f32 %v3215, 0.0
    %v4686 = vmax.f32 %v3220, 0.0
    %v4687 = vmax.f32 %v3225, 0.0
    %v4688 = vmax.f32 %v3230, 0.0
    %v4689 = vmax.f32 %v3235, 0.0
    %v4690 = vmax.f32 %v3240, 0.0
    %v4691 = vmax.f32 %v3245, 0.0
    %v4692 = vmax.f32 %v3250, 0.0
    %v4693 = vmax.f32 %v3255, 0.0
    %v4694 = vmax.f32 %v3260, 0.0
    %v4695 = vmax.f32 %v3265, 0.0
    %v4696 = vmax.f32 %v3270, 0.0
    %v4697 = vmax.f32 %v3275, 0.0
    %v4698 = vmax.f32 %v3280, 0.0
    %v4699 = vmax.f32 %v3285, 0.0
    %v4700 = vmax.f32 %v3290, 0.0
    %v4701 = vmax.f32 %v3295, 0.0
    %v4702 = vmax.f32 %v3300, 0.0
    %v4703 = vmax.f32 %v3305, 0.0
    %v4704 = vmax.f32 %v3310, 0.0
    %v4705 = vmax.f32 %v3315, 0.0
    %v4706 = vmax.f32 %v3320, 0.0
    %v4707 = vmax.f32 %v3325, 0.0
    %v4708 = vmax.f32 %v3330, 0.0
    %v4709 = vmax.f32 %v3335, 0.0
    %v4710 = vmax.f32 %v3340, 0.0
    %v4711 = vmax.f32 %v3345, 0.0
    %v4712 = vmax.f32 %v3350, 0.0
    %v4713 = vmax.f32 %v3355, 0.0
    %v4714 = vmax.f32 %v3360, 0.0
    %v4715 = vmax.f32 %v3365, 0.0
    %v4716 = vmax.f32 %v3370, 0.0
    %v4717 = vmax.f32 %v3375, 0.0
    %v4718 = vmax.f32 %v3380, 0.0
    %v4719 = vmax.f32 %v3385, 0.0
    %v4720 = vmax.f32 %v3390, 0.0
    %v4721 = vmax.f32 %v3395, 0.0
    %v4722 = vmax.f32 %v3400, 0.0
    %v4723 = vmax.f32 %v3405, 0.0
    %v4724 = vmax.f32 %v3410, 0.0
    %v4725 = vmax.f32 %v3415, 0.0
    %v4726 = vmax.f32 %v3420, 0.0
    %v4727 = vmax.f32 %v3425, 0.0
    %v4728 = vmax.f32 %v3430, 0.0
    %v4729 = vmax.f32 %v3435, 0.0
    %v4730 = vmax.f32 %v3440, 0.0
    %v4731 = vmax.f32 %v3445, 0.0
    %v4732 = vmax.f32 %v3450, 0.0
    %v4733 = vmax.f32 %v3455, 0.0
    %v4734 = vmax.f32 %v3460, 0.0
    %v4735 = vmax.f32 %v3465, 0.0
    %v4736 = vmax.f32 %v3470, 0.0
    %v4737 = vmax.f32 %v3475, 0.0
    %v4738 = vmax.f32 %v3480, 0.0
    %v4739 = vmax.f32 %v3485, 0.0
    %v4740 = vmax.f32 %v3490, 0.0
    %v4741 = vmax.f32 %v3495, 0.0
    %v4742 = vmax.f32 %v3500, 0.0
    %v4743 = vmax.f32 %v3505, 0.0
    %v4744 = vmax.f32 %v3510, 0.0
    %v4745 = vmax.f32 %v3515, 0.0
    %v4746 = vmax.f32 %v3520, 0.0
    %v4747 = vmax.f32 %v3525, 0.0
    %v4748 = vmax.f32 %v3530, 0.0
    %v4749 = vmax.f32 %v3535, 0.0
    %v4750 = vmax.f32 %v3540, 0.0
    %v4751 = vmax.f32 %v3545, 0.0
    %v4752 = vmax.f32 %v3550, 0.0
    %v4753 = vmax.f32 %v3555, 0.0
    %v4754 = vmax.f32 %v3560, 0.0
    %v4755 = vmax.f32 %v3565, 0.0
    %v4756 = vmax.f32 %v3570, 0.0
    %v4757 = vmax.f32 %v3575, 0.0
    %v4758 = vmax.f32 %v3580, 0.0
    %v4759 = vmax.f32 %v3585, 0.0
    %v4760 = vmax.f32 %v3590, 0.0
    %v4761 = vmax.f32 %v3595, 0.0
    %v4762 = vmax.f32 %v3600, 0.0
    %v4763 = vmax.f32 %v3605, 0.0
    %v4764 = vmax.f32 %v3610, 0.0
    %v4765 = vmax.f32 %v3615, 0.0
    %v4766 = vmax.f32 %v3620, 0.0
    %v4767 = vmax.f32 %v3625, 0.0
    %v4768 = vmax.f32 %v3630, 0.0
    %v4769 = vmax.f32 %v3635, 0.0
    %v4770 = vmax.f32 %v3640, 0.0
    %v4771 = vmax.f32 %v3645, 0.0
    %v4772 = vmax.f32 %v3650, 0.0
    %v4773 = vmax.f32 %v3655, 0.0
    %v4774 = vmax.f32 %v3660, 0.0
    %v4775 = vmax.f32 %v3665, 0.0
    %v4776 = vmax.f32 %v3670, 0.0
    %v4777 = vmax.f32 %v3675, 0.0
    %v4778 = vmax.f32 %v3680, 0.0
    %v4779 = vmax.f32 %v3685, 0.0
    %v4780 = vmax.f32 %v3690, 0.0
    %v4781 = vmax.f32 %v3695, 0.0
    %v4782 = vmax.f32 %v3700, 0.0
    %v4783 = vmax.f32 %v3705, 0.0
    %v4784 = vmax.f32 %v3710, 0.0
    %v4785 = vmax.f32 %v3715, 0.0
    %v4786 = vmax.f32 %v3720, 0.0
    %v4787 = vmax.f32 %v3725, 0.0
    %v4788 = vmax.f32 %v3730, 0.0
    %v4789 = vmax.f32 %v3735, 0.0
    %v4790 = vmax.f32 %v3740, 0.0
    %v4791 = vmax.f32 %v3745, 0.0
    %v4792 = vmax.f32 %v3750, 0.0
    %v4793 = vmax.f32 %v3755, 0.0
    %v4794 = vmax.f32 %v3760, 0.0
    %v4795 = vmax.f32 %v3765, 0.0
    %v4796 = vmax.f32 %v3770, 0.0
    %v4797 = vmax.f32 %v3775, 0.0
    %v4798 = vmax.f32 %v3780, 0.0
    %v4799 = vmax.f32 %v3785, 0.0
    %v4800 = vmax.f32 %v3790, 0.0
    %v4801 = vmax.f32 %v3795, 0.0
    %v4802 = vmax.f32 %v3800, 0.0
    %v4803 = vmax.f32 %v3805, 0.0
    %v4804 = vmax.f32 %v3810, 0.0
    %v4805 = vmax.f32 %v3815, 0.0
    %v4806 = vmax.f32 %v3820, 0.0
    %v4807 = vmax.f32 %v3825, 0.0
    %v4808 = vmax.f32 %v3830, 0.0
    %v4809 = vmax.f32 %v3835, 0.0
    %v4810 = vmax.f32 %v3840, 0.0
    %v4811 = vmax.f32 %v3845, 0.0
    %v4812 = vmax.f32 %v3850, 0.0
    %v4813 = vmax.f32 %v3855, 0.0
    %v4814 = vmax.f32 %v3860, 0.0
    %v4815 = vmax.f32 %v3865, 0.0
    %v4816 = vmax.f32 %v3870, 0.0
    %v4817 = vmax.f32 %v3875, 0.0
    %v4818 = vmax.f32 %v3880, 0.0
    %v4819 = vmax.f32 %v3885, 0.0
    %v4820 = vmax.f32 %v3890, 0.0
    %v4821 = vmax.f32 %v3895, 0.0
    %v4822 = vmax.f32 %v3900, 0.0
    %v4823 = vmax.f32 %v3905, 0.0
    %v4824 = vmax.f32 %v3910, 0.0
    %v4825 = vmax.f32 %v3915, 0.0
    %v4826 = vmax.f32 %v3920, 0.0
    %v4827 = vmax.f32 %v3925, 0.0
    %v4828 = vmax.f32 %v3930, 0.0
    %v4829 = vmax.f32 %v3935, 0.0
    %v4830 = vmax.f32 %v3940, 0.0
    %v4831 = vmax.f32 %v3945, 0.0
    %v4832 = vmax.f32 %v3950, 0.0
    %v4833 = vmax.f32 %v3955, 0.0
    %v4834 = vmax.f32 %v3960, 0.0
    %v4835 = vmax.f32 %v3965, 0.0
    %v4836 = vmax.f32 %v3970, 0.0
    %v4837 = vmax.f32 %v3975, 0.0
    %v4838 = vmax.f32 %v3980, 0.0
    %v4839 = vmax.f32 %v3985, 0.0
    %v4840 = vmax.f32 %v3990, 0.0
    %v4841 = vmax.f32 %v3995, 0.0
    %v4842 = vmax.f32 %v4000, 0.0
    %v4843 = vmax.f32 %v4005, 0.0
    %v4844 = vmax.f32 %v4010, 0.0
    %v4845 = vmax.f32 %v4015, 0.0
    %v4846 = vmax.f32 %v4020, 0.0
    %v4847 = vmax.f32 %v4025, 0.0
    %v4848 = vmax.f32 %v4030, 0.0
    %v4849 = vmax.f32 %v4035, 0.0
    %v4850 = vmax.f32 %v4040, 0.0
    %v4851 = vmax.f32 %v4045, 0.0
    %v4852 = vmax.f32 %v4050, 0.0
    %v4853 = vmax.f32 %v4055, 0.0
    %v4854 = vmax.f32 %v4060, 0.0
    %v4855 = vmax.f32 %v4065, 0.0
    %v4856 = vmax.f32 %v4070, 0.0
    %v4857 = vmax.f32 %v4075, 0.0
    %v4858 = vmax.f32 %v4080, 0.0
    %v4859 = vmax.f32 %v4085, 0.0
    %v4860 = vmax.f32 %v4090, 0.0
    %v4861 = vmax.f32 %v4095, 0.0
    %v4862 = vmax.f32 %v4100, 0.0
    %v4863 = vmax.f32 %v4105, 0.0
    %v4864 = vmax.f32 %v4110, 0.0
    %v4865 = vmax.f32 %v4115, 0.0
    %v4866 = vmax.f32 %v4120, 0.0
    %v4867 = vmax.f32 %v4125, 0.0
    %v4868 = vmax.f32 %v4130, 0.0
    %v4869 = vmax.f32 %v4135, 0.0
    %v4870 = vmax.f32 %v4140, 0.0
    %v4871 = vmax.f32 %v4145, 0.0
    %v4872 = vmax.f32 %v4150, 0.0
    %v4873 = vmax.f32 %v4155, 0.0
    %v4874 = vmax.f32 %v4160, 0.0
    %v4875 = vmax.f32 %v4165, 0.0
    %v4876 = vmax.f32 %v4170, 0.0
    %v4877 = vmax.f32 %v4175, 0.0
    %v4878 = vmax.f32 %v4180, 0.0
    %v4879 = vmax.f32 %v4185, 0.0
    %v4880 = vmax.f32 %v4190, 0.0
    %v4881 = vmax.f32 %v4195, 0.0
    %v4882 = vmax.f32 %v4200, 0.0
    %v4883 = vmax.f32 %v4205, 0.0
    %v4884 = vmax.f32 %v4210, 0.0
    %v4885 = vmax.f32 %v4215, 0.0
    %v4886 = vmax.f32 %v4220, 0.0
    %v4887 = vmax.f32 %v4225, 0.0
    %v4888 = vmax.f32 %v4230, 0.0
    %v4889 = vmax.f32 %v4235, 0.0
    %v4890 = vmax.f32 %v4240, 0.0
    %v4891 = vmax.f32 %v4245, 0.0
    %v4892 = vmax.f32 %v4250, 0.0
    %v4893 = vmax.f32 %v4255, 0.0
    %v4894 = vmax.f32 %v4260, 0.0
    %v4895 = vmax.f32 %v4265, 0.0
    %v4896 = vmax.f32 %v4270, 0.0
    %v4897 = vmax.f32 %v4275, 0.0
    %v4898 = vmax.f32 %v4280, 0.0
    %v4899 = vmax.f32 %v4285, 0.0
    %v4900 = vmax.f32 %v4290, 0.0
    %v4901 = vmax.f32 %v4295, 0.0
    %v4902 = vmax.f32 %v4300, 0.0
    %v4903 = vmax.f32 %v4305, 0.0
    %v4904 = vmax.f32 %v4310, 0.0
    %v4905 = vmax.f32 %v4315, 0.0
    %v4906 = vmax.f32 %v4320, 0.0
    %v4907 = vmax.f32 %v4325, 0.0
    %v4908 = vmax.f32 %v4330, 0.0
    %v4909 = vmax.f32 %v4335, 0.0
    %v4910 = vmax.f32 %v4340, 0.0
    %v4911 = vmax.f32 %v4345, 0.0
    %v4912 = vmax.f32 %v4350, 0.0
    %v4913 = vmax.f32 %v4355, 0.0
    %v4914 = vmax.f32 %v4360, 0.0
    %v4915 = vmax.f32 %v4365, 0.0
    %v4916 = vmax.f32 %v4370, 0.0
    %v4917 = vmax.f32 %v4375, 0.0
    %v4918 = vmax.f32 %v4380, 0.0
    %v4919 = vmax.f32 %v4385, 0.0
    %v4920 = vmax.f32 %v4390, 0.0
    %v4921 = vmax.f32 %v4395, 0.0
    %v4922 = vmax.f32 %v4400, 0.0
    %v4923 = vmax.f32 %v4405, 0.0
    %v4924 = vmax.f32 %v4410, 0.0
    %v4925 = vmax.f32 %v4415, 0.0
    %v4926 = vmax.f32 %v4420, 0.0
    %v4927 = vmax.f32 %v4425, 0.0
    %v4928 = vmax.f32 %v4430, 0.0
    %v4929 = vmax.f32 %v4435, 0.0
    %v4930 = vmax.f32 %v4440, 0.0
    %v4931 = vmax.f32 %v4445, 0.0
    %v4932 = vmax.f32 %v4450, 0.0
    %vm4933 = vcmask 261120
    %v4934 = vsel %vm4933, %v4453, -inf
    %v4935 = vsel %vm4933, %v4454, -inf
    %v4936 = vmax.f32 %v4934, %v4935
    %v4937 = vsel %vm4933, %v4455, -inf
    %v4938 = vmax.f32 %v4936, %v4937
    %v4939 = vsel %vm4933, %v4456, -inf
    %v4940 = vmax.f32 %v4938, %v4939
    %v4941 = vrot.slane %v4940, 4
    %v4942 = vmax.f32 %v4940, %v4941
    %v4943 = vrot.slane %v4942, 2
    %v4944 = vmax.f32 %v4942, %v4943
    %v4945 = vrot.slane %v4944, 1
    %v4946 = vmax.f32 %v4944, %v4945
    %v4947 = vsel %vm4933, %v4457, -inf
    %v4948 = vsel %vm4933, %v4458, -inf
    %v4949 = vmax.f32 %v4947, %v4948
    %v4950 = vsel %vm4933, %v4459, -inf
    %v4951 = vmax.f32 %v4949, %v4950
    %v4952 = vsel %vm4933, %v4460, -inf
    %v4953 = vmax.f32 %v4951, %v4952
    %v4954 = vrot.slane %v4953, 4
    %v4955 = vmax.f32 %v4953, %v4954
    %v4956 = vrot.slane %v4955, 2
    %v4957 = vmax.f32 %v4955, %v4956
    %v4958 = vrot.slane %v4957, 1
    %v4959 = vmax.f32 %v4957, %v4958
    %v4960 = vsel %vm4933, %v4461, -inf
    %v4961 = vsel %vm4933, %v4462, -inf
    %v4962 = vmax.f32 %v4960, %v4961
    %v4963 = vsel %vm4933, %v4463, -inf
    %v4964 = vmax.f32 %v4962, %v4963
    %v4965 = vsel %vm4933, %v4464, -inf
    %v4966 = vmax.f32 %v4964, %v4965
    %v4967 = vrot.slane %v4966, 4
    %v4968 = vmax.f32 %v4966, %v4967
    %v4969 = vrot.slane %v4968, 2
    %v4970 = vmax.f32 %v4968, %v4969
    %v4971 = vrot.slane %v4970, 1
    %v4972 = vmax.f32 %v4970, %v4971
    %v4973 = vsel %vm4933, %v4465, -inf
    %v4974 = vsel %vm4933, %v4466, -inf
    %v4975 = vmax.f32 %v4973, %v4974
    %v4976 = vsel %vm4933, %v4467, -inf
    %v4977 = vmax.f32 %v4975, %v4976
    %v4978 = vsel %vm4933, %v4468, -inf
    %v4979 = vmax.f32 %v4977, %v4978
    %v4980 = vrot.slane %v4979, 4
    %v4981 = vmax.f32 %v4979, %v4980
    %v4982 = vrot.slane %v4981, 2
    %v4983 = vmax.f32 %v4981, %v4982
    %v4984 = vrot.slane %v4983, 1
    %v4985 = vmax.f32 %v4983, %v4984
    %v4986 = vsel %vm4933, %v4469, -inf
    %v4987 = vsel %vm4933, %v4470, -inf
    %v4988 = vmax.f32 %v4986, %v4987
    %v4989 = vsel %vm4933, %v4471, -inf
    %v4990 = vmax.f32 %v4988, %v4989
    %v4991 = vsel %vm4933, %v4472, -inf
    %v4992 = vmax.f32 %v4990, %v4991
    %v4993 = vrot.slane %v4992, 4
    %v4994 = vmax.f32 %v4992, %v4993
    %v4995 = vrot.slane %v4994, 2
    %v4996 = vmax.f32 %v4994, %v4995
    %v4997 = vrot.slane %v4996, 1
    %v4998 = vmax.f32 %v4996, %v4997
    %v4999 = vsel %vm4933, %v4473, -inf
    %v5000 = vsel %vm4933, %v4474, -inf
    %v5001 = vmax.f32 %v4999, %v5000
    %v5002 = vsel %vm4933, %v4475, -inf
    %v5003 = vmax.f32 %v5001, %v5002
    %v5004 = vsel %vm4933, %v4476, -inf
    %v5005 = vmax.f32 %v5003, %v5004
    %v5006 = vrot.slane %v5005, 4
    %v5007 = vmax.f32 %v5005, %v5006
    %v5008 = vrot.slane %v5007, 2
    %v5009 = vmax.f32 %v5007, %v5008
    %v5010 = vrot.slane %v5009, 1
    %v5011 = vmax.f32 %v5009, %v5010
    %v5012 = vsel %vm4933, %v4477, -inf
    %v5013 = vsel %vm4933, %v4478, -inf
    %v5014 = vmax.f32 %v5012, %v5013
    %v5015 = vsel %vm4933, %v4479, -inf
    %v5016 = vmax.f32 %v5014, %v5015
    %v5017 = vsel %vm4933, %v4480, -inf
    %v5018 = vmax.f32 %v5016, %v5017
    %v5019 = vrot.slane %v5018, 4
    %v5020 = vmax.f32 %v5018, %v5019
    %v5021 = vrot.slane %v5020, 2
    %v5022 = vmax.f32 %v5020, %v5021
    %v5023 = vrot.slane %v5022, 1
    %v5024 = vmax.f32 %v5022, %v5023
    %v5025 = vsel %vm4933, %v4481, -inf
    %v5026 = vsel %vm4933, %v4482, -inf
    %v5027 = vmax.f32 %v5025, %v5026
    %v5028 = vsel %vm4933, %v4483, -inf
    %v5029 = vmax.f32 %v5027, %v5028
    %v5030 = vsel %vm4933, %v4484, -inf
    %v5031 = vmax.f32 %v5029, %v5030
    %v5032 = vrot.slane %v5031, 4
    %v5033 = vmax.f32 %v5031, %v5032
    %v5034 = vrot.slane %v5033, 2
    %v5035 = vmax.f32 %v5033, %v5034
    %v5036 = vrot.slane %v5035, 1
    %v5037 = vmax.f32 %v5035, %v5036
    %v5038 = vsel %vm4933, %v4485, -inf
    %v5039 = vsel %vm4933, %v4486, -inf
    %v5040 = vmax.f32 %v5038, %v5039
    %v5041 = vsel %vm4933, %v4487, -inf
    %v5042 = vmax.f32 %v5040, %v5041
    %v5043 = vsel %vm4933, %v4488, -inf
    %v5044 = vmax.f32 %v5042, %v5043
    %v5045 = vrot.slane %v5044, 4
    %v5046 = vmax.f32 %v5044, %v5045
    %v5047 = vrot.slane %v5046, 2
    %v5048 = vmax.f32 %v5046, %v5047
    %v5049 = vrot.slane %v5048, 1
    %v5050 = vmax.f32 %v5048, %v5049
    %v5051 = vsel %vm4933, %v4489, -inf
    %v5052 = vsel %vm4933, %v4490, -inf
    %v5053 = vmax.f32 %v5051, %v5052
    %v5054 = vsel %vm4933, %v4491, -inf
    %v5055 = vmax.f32 %v5053, %v5054
    %v5056 = vsel %vm4933, %v4492, -inf
    %v5057 = vmax.f32 %v5055, %v5056
    %v5058 = vrot.slane %v5057, 4
    %v5059 = vmax.f32 %v5057, %v5058
    %v5060 = vrot.slane %v5059, 2
    %v5061 = vmax.f32 %v5059, %v5060
    %v5062 = vrot.slane %v5061, 1
    %v5063 = vmax.f32 %v5061, %v5062
    %v5064 = vsel %vm4933, %v4493, -inf
    %v5065 = vsel %vm4933, %v4494, -inf
    %v5066 = vmax.f32 %v5064, %v5065
    %v5067 = vsel %vm4933, %v4495, -inf
    %v5068 = vmax.f32 %v5066, %v5067
    %v5069 = vsel %vm4933, %v4496, -inf
    %v5070 = vmax.f32 %v5068, %v5069
    %v5071 = vrot.slane %v5070, 4
    %v5072 = vmax.f32 %v5070, %v5071
    %v5073 = vrot.slane %v5072, 2
    %v5074 = vmax.f32 %v5072, %v5073
    %v5075 = vrot.slane %v5074, 1
    %v5076 = vmax.f32 %v5074, %v5075
    %v5077 = vsel %vm4933, %v4497, -inf
    %v5078 = vsel %vm4933, %v4498, -inf
    %v5079 = vmax.f32 %v5077, %v5078
    %v5080 = vsel %vm4933, %v4499, -inf
    %v5081 = vmax.f32 %v5079, %v5080
    %v5082 = vsel %vm4933, %v4500, -inf
    %v5083 = vmax.f32 %v5081, %v5082
    %v5084 = vrot.slane %v5083, 4
    %v5085 = vmax.f32 %v5083, %v5084
    %v5086 = vrot.slane %v5085, 2
    %v5087 = vmax.f32 %v5085, %v5086
    %v5088 = vrot.slane %v5087, 1
    %v5089 = vmax.f32 %v5087, %v5088
    %v5090 = vsel %vm4933, %v4501, -inf
    %v5091 = vsel %vm4933, %v4502, -inf
    %v5092 = vmax.f32 %v5090, %v5091
    %v5093 = vsel %vm4933, %v4503, -inf
    %v5094 = vmax.f32 %v5092, %v5093
    %v5095 = vsel %vm4933, %v4504, -inf
    %v5096 = vmax.f32 %v5094, %v5095
    %v5097 = vrot.slane %v5096, 4
    %v5098 = vmax.f32 %v5096, %v5097
    %v5099 = vrot.slane %v5098, 2
    %v5100 = vmax.f32 %v5098, %v5099
    %v5101 = vrot.slane %v5100, 1
    %v5102 = vmax.f32 %v5100, %v5101
    %v5103 = vsel %vm4933, %v4505, -inf
    %v5104 = vsel %vm4933, %v4506, -inf
    %v5105 = vmax.f32 %v5103, %v5104
    %v5106 = vsel %vm4933, %v4507, -inf
    %v5107 = vmax.f32 %v5105, %v5106
    %v5108 = vsel %vm4933, %v4508, -inf
    %v5109 = vmax.f32 %v5107, %v5108
    %v5110 = vrot.slane %v5109, 4
    %v5111 = vmax.f32 %v5109, %v5110
    %v5112 = vrot.slane %v5111, 2
    %v5113 = vmax.f32 %v5111, %v5112
    %v5114 = vrot.slane %v5113, 1
    %v5115 = vmax.f32 %v5113, %v5114
    %v5116 = vsel %vm4933, %v4509, -inf
    %v5117 = vsel %vm4933, %v4510, -inf
    %v5118 = vmax.f32 %v5116, %v5117
    %v5119 = vsel %vm4933, %v4511, -inf
    %v5120 = vmax.f32 %v5118, %v5119
    %v5121 = vsel %vm4933, %v4512, -inf
    %v5122 = vmax.f32 %v5120, %v5121
    %v5123 = vrot.slane %v5122, 4
    %v5124 = vmax.f32 %v5122, %v5123
    %v5125 = vrot.slane %v5124, 2
    %v5126 = vmax.f32 %v5124, %v5125
    %v5127 = vrot.slane %v5126, 1
    %v5128 = vmax.f32 %v5126, %v5127
    %v5129 = vsel %vm4933, %v4513, -inf
    %v5130 = vsel %vm4933, %v4514, -inf
    %v5131 = vmax.f32 %v5129, %v5130
    %v5132 = vsel %vm4933, %v4515, -inf
    %v5133 = vmax.f32 %v5131, %v5132
    %v5134 = vsel %vm4933, %v4516, -inf
    %v5135 = vmax.f32 %v5133, %v5134
    %v5136 = vrot.slane %v5135, 4
    %v5137 = vmax.f32 %v5135, %v5136
    %v5138 = vrot.slane %v5137, 2
    %v5139 = vmax.f32 %v5137, %v5138
    %v5140 = vrot.slane %v5139, 1
    %v5141 = vmax.f32 %v5139, %v5140
    %v5142 = vsel %vm4933, %v4517, -inf
    %v5143 = vsel %vm4933, %v4518, -inf
    %v5144 = vmax.f32 %v5142, %v5143
    %v5145 = vsel %vm4933, %v4519, -inf
    %v5146 = vmax.f32 %v5144, %v5145
    %v5147 = vsel %vm4933, %v4520, -inf
    %v5148 = vmax.f32 %v5146, %v5147
    %v5149 = vrot.slane %v5148, 4
    %v5150 = vmax.f32 %v5148, %v5149
    %v5151 = vrot.slane %v5150, 2
    %v5152 = vmax.f32 %v5150, %v5151
    %v5153 = vrot.slane %v5152, 1
    %v5154 = vmax.f32 %v5152, %v5153
    %v5155 = vsel %vm4933, %v4521, -inf
    %v5156 = vsel %vm4933, %v4522, -inf
    %v5157 = vmax.f32 %v5155, %v5156
    %v5158 = vsel %vm4933, %v4523, -inf
    %v5159 = vmax.f32 %v5157, %v5158
    %v5160 = vsel %vm4933, %v4524, -inf
    %v5161 = vmax.f32 %v5159, %v5160
    %v5162 = vrot.slane %v5161, 4
    %v5163 = vmax.f32 %v5161, %v5162
    %v5164 = vrot.slane %v5163, 2
    %v5165 = vmax.f32 %v5163, %v5164
    %v5166 = vrot.slane %v5165, 1
    %v5167 = vmax.f32 %v5165, %v5166
    %v5168 = vsel %vm4933, %v4525, -inf
    %v5169 = vsel %vm4933, %v4526, -inf
    %v5170 = vmax.f32 %v5168, %v5169
    %v5171 = vsel %vm4933, %v4527, -inf
    %v5172 = vmax.f32 %v5170, %v5171
    %v5173 = vsel %vm4933, %v4528, -inf
    %v5174 = vmax.f32 %v5172, %v5173
    %v5175 = vrot.slane %v5174, 4
    %v5176 = vmax.f32 %v5174, %v5175
    %v5177 = vrot.slane %v5176, 2
    %v5178 = vmax.f32 %v5176, %v5177
    %v5179 = vrot.slane %v5178, 1
    %v5180 = vmax.f32 %v5178, %v5179
    %v5181 = vsel %vm4933, %v4529, -inf
    %v5182 = vsel %vm4933, %v4530, -inf
    %v5183 = vmax.f32 %v5181, %v5182
    %v5184 = vsel %vm4933, %v4531, -inf
    %v5185 = vmax.f32 %v5183, %v5184
    %v5186 = vsel %vm4933, %v4532, -inf
    %v5187 = vmax.f32 %v5185, %v5186
    %v5188 = vrot.slane %v5187, 4
    %v5189 = vmax.f32 %v5187, %v5188
    %v5190 = vrot.slane %v5189, 2
    %v5191 = vmax.f32 %v5189, %v5190
    %v5192 = vrot.slane %v5191, 1
    %v5193 = vmax.f32 %v5191, %v5192
    %v5194 = vsel %vm4933, %v4533, -inf
    %v5195 = vsel %vm4933, %v4534, -inf
    %v5196 = vmax.f32 %v5194, %v5195
    %v5197 = vsel %vm4933, %v4535, -inf
    %v5198 = vmax.f32 %v5196, %v5197
    %v5199 = vsel %vm4933, %v4536, -inf
    %v5200 = vmax.f32 %v5198, %v5199
    %v5201 = vrot.slane %v5200, 4
    %v5202 = vmax.f32 %v5200, %v5201
    %v5203 = vrot.slane %v5202, 2
    %v5204 = vmax.f32 %v5202, %v5203
    %v5205 = vrot.slane %v5204, 1
    %v5206 = vmax.f32 %v5204, %v5205
    %v5207 = vsel %vm4933, %v4537, -inf
    %v5208 = vsel %vm4933, %v4538, -inf
    %v5209 = vmax.f32 %v5207, %v5208
    %v5210 = vsel %vm4933, %v4539, -inf
    %v5211 = vmax.f32 %v5209, %v5210
    %v5212 = vsel %vm4933, %v4540, -inf
    %v5213 = vmax.f32 %v5211, %v5212
    %v5214 = vrot.slane %v5213, 4
    %v5215 = vmax.f32 %v5213, %v5214
    %v5216 = vrot.slane %v5215, 2
    %v5217 = vmax.f32 %v5215, %v5216
    %v5218 = vrot.slane %v5217, 1
    %v5219 = vmax.f32 %v5217, %v5218
    %v5220 = vsel %vm4933, %v4541, -inf
    %v5221 = vsel %vm4933, %v4542, -inf
    %v5222 = vmax.f32 %v5220, %v5221
    %v5223 = vsel %vm4933, %v4543, -inf
    %v5224 = vmax.f32 %v5222, %v5223
    %v5225 = vsel %vm4933, %v4544, -inf
    %v5226 = vmax.f32 %v5224, %v5225
    %v5227 = vrot.slane %v5226, 4
    %v5228 = vmax.f32 %v5226, %v5227
    %v5229 = vrot.slane %v5228, 2
    %v5230 = vmax.f32 %v5228, %v5229
    %v5231 = vrot.slane %v5230, 1
    %v5232 = vmax.f32 %v5230, %v5231
    %v5233 = vsel %vm4933, %v4545, -inf
    %v5234 = vsel %vm4933, %v4546, -inf
    %v5235 = vmax.f32 %v5233, %v5234
    %v5236 = vsel %vm4933, %v4547, -inf
    %v5237 = vmax.f32 %v5235, %v5236
    %v5238 = vsel %vm4933, %v4548, -inf
    %v5239 = vmax.f32 %v5237, %v5238
    %v5240 = vrot.slane %v5239, 4
    %v5241 = vmax.f32 %v5239, %v5240
    %v5242 = vrot.slane %v5241, 2
    %v5243 = vmax.f32 %v5241, %v5242
    %v5244 = vrot.slane %v5243, 1
    %v5245 = vmax.f32 %v5243, %v5244
    %v5246 = vsel %vm4933, %v4549, -inf
    %v5247 = vsel %vm4933, %v4550, -inf
    %v5248 = vmax.f32 %v5246, %v5247
    %v5249 = vsel %vm4933, %v4551, -inf
    %v5250 = vmax.f32 %v5248, %v5249
    %v5251 = vsel %vm4933, %v4552, -inf
    %v5252 = vmax.f32 %v5250, %v5251
    %v5253 = vrot.slane %v5252, 4
    %v5254 = vmax.f32 %v5252, %v5253
    %v5255 = vrot.slane %v5254, 2
    %v5256 = vmax.f32 %v5254, %v5255
    %v5257 = vrot.slane %v5256, 1
    %v5258 = vmax.f32 %v5256, %v5257
    %v5259 = vsel %vm4933, %v4553, -inf
    %v5260 = vsel %vm4933, %v4554, -inf
    %v5261 = vmax.f32 %v5259, %v5260
    %v5262 = vsel %vm4933, %v4555, -inf
    %v5263 = vmax.f32 %v5261, %v5262
    %v5264 = vsel %vm4933, %v4556, -inf
    %v5265 = vmax.f32 %v5263, %v5264
    %v5266 = vrot.slane %v5265, 4
    %v5267 = vmax.f32 %v5265, %v5266
    %v5268 = vrot.slane %v5267, 2
    %v5269 = vmax.f32 %v5267, %v5268
    %v5270 = vrot.slane %v5269, 1
    %v5271 = vmax.f32 %v5269, %v5270
    %v5272 = vsel %vm4933, %v4557, -inf
    %v5273 = vsel %vm4933, %v4558, -inf
    %v5274 = vmax.f32 %v5272, %v5273
    %v5275 = vsel %vm4933, %v4559, -inf
    %v5276 = vmax.f32 %v5274, %v5275
    %v5277 = vsel %vm4933, %v4560, -inf
    %v5278 = vmax.f32 %v5276, %v5277
    %v5279 = vrot.slane %v5278, 4
    %v5280 = vmax.f32 %v5278, %v5279
    %v5281 = vrot.slane %v5280, 2
    %v5282 = vmax.f32 %v5280, %v5281
    %v5283 = vrot.slane %v5282, 1
    %v5284 = vmax.f32 %v5282, %v5283
    %v5285 = vsel %vm4933, %v4561, -inf
    %v5286 = vsel %vm4933, %v4562, -inf
    %v5287 = vmax.f32 %v5285, %v5286
    %v5288 = vsel %vm4933, %v4563, -inf
    %v5289 = vmax.f32 %v5287, %v5288
    %v5290 = vsel %vm4933, %v4564, -inf
    %v5291 = vmax.f32 %v5289, %v5290
    %v5292 = vrot.slane %v5291, 4
    %v5293 = vmax.f32 %v5291, %v5292
    %v5294 = vrot.slane %v5293, 2
    %v5295 = vmax.f32 %v5293, %v5294
    %v5296 = vrot.slane %v5295, 1
    %v5297 = vmax.f32 %v5295, %v5296
    %v5298 = vsel %vm4933, %v4565, -inf
    %v5299 = vsel %vm4933, %v4566, -inf
    %v5300 = vmax.f32 %v5298, %v5299
    %v5301 = vsel %vm4933, %v4567, -inf
    %v5302 = vmax.f32 %v5300, %v5301
    %v5303 = vsel %vm4933, %v4568, -inf
    %v5304 = vmax.f32 %v5302, %v5303
    %v5305 = vrot.slane %v5304, 4
    %v5306 = vmax.f32 %v5304, %v5305
    %v5307 = vrot.slane %v5306, 2
    %v5308 = vmax.f32 %v5306, %v5307
    %v5309 = vrot.slane %v5308, 1
    %v5310 = vmax.f32 %v5308, %v5309
    %v5311 = vsel %vm4933, %v4569, -inf
    %v5312 = vsel %vm4933, %v4570, -inf
    %v5313 = vmax.f32 %v5311, %v5312
    %v5314 = vsel %vm4933, %v4571, -inf
    %v5315 = vmax.f32 %v5313, %v5314
    %v5316 = vsel %vm4933, %v4572, -inf
    %v5317 = vmax.f32 %v5315, %v5316
    %v5318 = vrot.slane %v5317, 4
    %v5319 = vmax.f32 %v5317, %v5318
    %v5320 = vrot.slane %v5319, 2
    %v5321 = vmax.f32 %v5319, %v5320
    %v5322 = vrot.slane %v5321, 1
    %v5323 = vmax.f32 %v5321, %v5322
    %v5324 = vsel %vm4933, %v4573, -inf
    %v5325 = vsel %vm4933, %v4574, -inf
    %v5326 = vmax.f32 %v5324, %v5325
    %v5327 = vsel %vm4933, %v4575, -inf
    %v5328 = vmax.f32 %v5326, %v5327
    %v5329 = vsel %vm4933, %v4576, -inf
    %v5330 = vmax.f32 %v5328, %v5329
    %v5331 = vrot.slane %v5330, 4
    %v5332 = vmax.f32 %v5330, %v5331
    %v5333 = vrot.slane %v5332, 2
    %v5334 = vmax.f32 %v5332, %v5333
    %v5335 = vrot.slane %v5334, 1
    %v5336 = vmax.f32 %v5334, %v5335
    %v5337 = vsel %vm4933, %v4577, -inf
    %v5338 = vsel %vm4933, %v4578, -inf
    %v5339 = vmax.f32 %v5337, %v5338
    %v5340 = vsel %vm4933, %v4579, -inf
    %v5341 = vmax.f32 %v5339, %v5340
    %v5342 = vsel %vm4933, %v4580, -inf
    %v5343 = vmax.f32 %v5341, %v5342
    %v5344 = vrot.slane %v5343, 4
    %v5345 = vmax.f32 %v5343, %v5344
    %v5346 = vrot.slane %v5345, 2
    %v5347 = vmax.f32 %v5345, %v5346
    %v5348 = vrot.slane %v5347, 1
    %v5349 = vmax.f32 %v5347, %v5348
    %v5350 = vsel %vm4933, %v4581, -inf
    %v5351 = vsel %vm4933, %v4582, -inf
    %v5352 = vmax.f32 %v5350, %v5351
    %v5353 = vsel %vm4933, %v4583, -inf
    %v5354 = vmax.f32 %v5352, %v5353
    %v5355 = vsel %vm4933, %v4584, -inf
    %v5356 = vmax.f32 %v5354, %v5355
    %v5357 = vrot.slane %v5356, 4
    %v5358 = vmax.f32 %v5356, %v5357
    %v5359 = vrot.slane %v5358, 2
    %v5360 = vmax.f32 %v5358, %v5359
    %v5361 = vrot.slane %v5360, 1
    %v5362 = vmax.f32 %v5360, %v5361
    %v5363 = vsel %vm4933, %v4585, -inf
    %v5364 = vsel %vm4933, %v4586, -inf
    %v5365 = vmax.f32 %v5363, %v5364
    %v5366 = vsel %vm4933, %v4587, -inf
    %v5367 = vmax.f32 %v5365, %v5366
    %v5368 = vsel %vm4933, %v4588, -inf
    %v5369 = vmax.f32 %v5367, %v5368
    %v5370 = vrot.slane %v5369, 4
    %v5371 = vmax.f32 %v5369, %v5370
    %v5372 = vrot.slane %v5371, 2
    %v5373 = vmax.f32 %v5371, %v5372
    %v5374 = vrot.slane %v5373, 1
    %v5375 = vmax.f32 %v5373, %v5374
    %v5376 = vsel %vm4933, %v4589, -inf
    %v5377 = vsel %vm4933, %v4590, -inf
    %v5378 = vmax.f32 %v5376, %v5377
    %v5379 = vsel %vm4933, %v4591, -inf
    %v5380 = vmax.f32 %v5378, %v5379
    %v5381 = vsel %vm4933, %v4592, -inf
    %v5382 = vmax.f32 %v5380, %v5381
    %v5383 = vrot.slane %v5382, 4
    %v5384 = vmax.f32 %v5382, %v5383
    %v5385 = vrot.slane %v5384, 2
    %v5386 = vmax.f32 %v5384, %v5385
    %v5387 = vrot.slane %v5386, 1
    %v5388 = vmax.f32 %v5386, %v5387
    %v5389 = vsel %vm4933, %v4593, -inf
    %v5390 = vsel %vm4933, %v4594, -inf
    %v5391 = vmax.f32 %v5389, %v5390
    %v5392 = vsel %vm4933, %v4595, -inf
    %v5393 = vmax.f32 %v5391, %v5392
    %v5394 = vsel %vm4933, %v4596, -inf
    %v5395 = vmax.f32 %v5393, %v5394
    %v5396 = vrot.slane %v5395, 4
    %v5397 = vmax.f32 %v5395, %v5396
    %v5398 = vrot.slane %v5397, 2
    %v5399 = vmax.f32 %v5397, %v5398
    %v5400 = vrot.slane %v5399, 1
    %v5401 = vmax.f32 %v5399, %v5400
    %v5402 = vsel %vm4933, %v4597, -inf
    %v5403 = vsel %vm4933, %v4598, -inf
    %v5404 = vmax.f32 %v5402, %v5403
    %v5405 = vsel %vm4933, %v4599, -inf
    %v5406 = vmax.f32 %v5404, %v5405
    %v5407 = vsel %vm4933, %v4600, -inf
    %v5408 = vmax.f32 %v5406, %v5407
    %v5409 = vrot.slane %v5408, 4
    %v5410 = vmax.f32 %v5408, %v5409
    %v5411 = vrot.slane %v5410, 2
    %v5412 = vmax.f32 %v5410, %v5411
    %v5413 = vrot.slane %v5412, 1
    %v5414 = vmax.f32 %v5412, %v5413
    %v5415 = vsel %vm4933, %v4601, -inf
    %v5416 = vsel %vm4933, %v4602, -inf
    %v5417 = vmax.f32 %v5415, %v5416
    %v5418 = vsel %vm4933, %v4603, -inf
    %v5419 = vmax.f32 %v5417, %v5418
    %v5420 = vsel %vm4933, %v4604, -inf
    %v5421 = vmax.f32 %v5419, %v5420
    %v5422 = vrot.slane %v5421, 4
    %v5423 = vmax.f32 %v5421, %v5422
    %v5424 = vrot.slane %v5423, 2
    %v5425 = vmax.f32 %v5423, %v5424
    %v5426 = vrot.slane %v5425, 1
    %v5427 = vmax.f32 %v5425, %v5426
    %v5428 = vsel %vm4933, %v4605, -inf
    %v5429 = vsel %vm4933, %v4606, -inf
    %v5430 = vmax.f32 %v5428, %v5429
    %v5431 = vsel %vm4933, %v4607, -inf
    %v5432 = vmax.f32 %v5430, %v5431
    %v5433 = vsel %vm4933, %v4608, -inf
    %v5434 = vmax.f32 %v5432, %v5433
    %v5435 = vrot.slane %v5434, 4
    %v5436 = vmax.f32 %v5434, %v5435
    %v5437 = vrot.slane %v5436, 2
    %v5438 = vmax.f32 %v5436, %v5437
    %v5439 = vrot.slane %v5438, 1
    %v5440 = vmax.f32 %v5438, %v5439
    %v5441 = vsel %vm4933, %v4609, -inf
    %v5442 = vsel %vm4933, %v4610, -inf
    %v5443 = vmax.f32 %v5441, %v5442
    %v5444 = vsel %vm4933, %v4611, -inf
    %v5445 = vmax.f32 %v5443, %v5444
    %v5446 = vsel %vm4933, %v4612, -inf
    %v5447 = vmax.f32 %v5445, %v5446
    %v5448 = vrot.slane %v5447, 4
    %v5449 = vmax.f32 %v5447, %v5448
    %v5450 = vrot.slane %v5449, 2
    %v5451 = vmax.f32 %v5449, %v5450
    %v5452 = vrot.slane %v5451, 1
    %v5453 = vmax.f32 %v5451, %v5452
    %v5454 = vsel %vm4933, %v4613, -inf
    %v5455 = vsel %vm4933, %v4614, -inf
    %v5456 = vmax.f32 %v5454, %v5455
    %v5457 = vsel %vm4933, %v4615, -inf
    %v5458 = vmax.f32 %v5456, %v5457
    %v5459 = vsel %vm4933, %v4616, -inf
    %v5460 = vmax.f32 %v5458, %v5459
    %v5461 = vrot.slane %v5460, 4
    %v5462 = vmax.f32 %v5460, %v5461
    %v5463 = vrot.slane %v5462, 2
    %v5464 = vmax.f32 %v5462, %v5463
    %v5465 = vrot.slane %v5464, 1
    %v5466 = vmax.f32 %v5464, %v5465
    %v5467 = vsel %vm4933, %v4617, -inf
    %v5468 = vsel %vm4933, %v4618, -inf
    %v5469 = vmax.f32 %v5467, %v5468
    %v5470 = vsel %vm4933, %v4619, -inf
    %v5471 = vmax.f32 %v5469, %v5470
    %v5472 = vsel %vm4933, %v4620, -inf
    %v5473 = vmax.f32 %v5471, %v5472
    %v5474 = vrot.slane %v5473, 4
    %v5475 = vmax.f32 %v5473, %v5474
    %v5476 = vrot.slane %v5475, 2
    %v5477 = vmax.f32 %v5475, %v5476
    %v5478 = vrot.slane %v5477, 1
    %v5479 = vmax.f32 %v5477, %v5478
    %v5480 = vsel %vm4933, %v4621, -inf
    %v5481 = vsel %vm4933, %v4622, -inf
    %v5482 = vmax.f32 %v5480, %v5481
    %v5483 = vsel %vm4933, %v4623, -inf
    %v5484 = vmax.f32 %v5482, %v5483
    %v5485 = vsel %vm4933, %v4624, -inf
    %v5486 = vmax.f32 %v5484, %v5485
    %v5487 = vrot.slane %v5486, 4
    %v5488 = vmax.f32 %v5486, %v5487
    %v5489 = vrot.slane %v5488, 2
    %v5490 = vmax.f32 %v5488, %v5489
    %v5491 = vrot.slane %v5490, 1
    %v5492 = vmax.f32 %v5490, %v5491
    %v5493 = vsel %vm4933, %v4625, -inf
    %v5494 = vsel %vm4933, %v4626, -inf
    %v5495 = vmax.f32 %v5493, %v5494
    %v5496 = vsel %vm4933, %v4627, -inf
    %v5497 = vmax.f32 %v5495, %v5496
    %v5498 = vsel %vm4933, %v4628, -inf
    %v5499 = vmax.f32 %v5497, %v5498
    %v5500 = vrot.slane %v5499, 4
    %v5501 = vmax.f32 %v5499, %v5500
    %v5502 = vrot.slane %v5501, 2
    %v5503 = vmax.f32 %v5501, %v5502
    %v5504 = vrot.slane %v5503, 1
    %v5505 = vmax.f32 %v5503, %v5504
    %v5506 = vsel %vm4933, %v4629, -inf
    %v5507 = vsel %vm4933, %v4630, -inf
    %v5508 = vmax.f32 %v5506, %v5507
    %v5509 = vsel %vm4933, %v4631, -inf
    %v5510 = vmax.f32 %v5508, %v5509
    %v5511 = vsel %vm4933, %v4632, -inf
    %v5512 = vmax.f32 %v5510, %v5511
    %v5513 = vrot.slane %v5512, 4
    %v5514 = vmax.f32 %v5512, %v5513
    %v5515 = vrot.slane %v5514, 2
    %v5516 = vmax.f32 %v5514, %v5515
    %v5517 = vrot.slane %v5516, 1
    %v5518 = vmax.f32 %v5516, %v5517
    %v5519 = vsel %vm4933, %v4633, -inf
    %v5520 = vsel %vm4933, %v4634, -inf
    %v5521 = vmax.f32 %v5519, %v5520
    %v5522 = vsel %vm4933, %v4635, -inf
    %v5523 = vmax.f32 %v5521, %v5522
    %v5524 = vsel %vm4933, %v4636, -inf
    %v5525 = vmax.f32 %v5523, %v5524
    %v5526 = vrot.slane %v5525, 4
    %v5527 = vmax.f32 %v5525, %v5526
    %v5528 = vrot.slane %v5527, 2
    %v5529 = vmax.f32 %v5527, %v5528
    %v5530 = vrot.slane %v5529, 1
    %v5531 = vmax.f32 %v5529, %v5530
    %v5532 = vsel %vm4933, %v4637, -inf
    %v5533 = vsel %vm4933, %v4638, -inf
    %v5534 = vmax.f32 %v5532, %v5533
    %v5535 = vsel %vm4933, %v4639, -inf
    %v5536 = vmax.f32 %v5534, %v5535
    %v5537 = vsel %vm4933, %v4640, -inf
    %v5538 = vmax.f32 %v5536, %v5537
    %v5539 = vrot.slane %v5538, 4
    %v5540 = vmax.f32 %v5538, %v5539
    %v5541 = vrot.slane %v5540, 2
    %v5542 = vmax.f32 %v5540, %v5541
    %v5543 = vrot.slane %v5542, 1
    %v5544 = vmax.f32 %v5542, %v5543
    %v5545 = vsel %vm4933, %v4641, -inf
    %v5546 = vsel %vm4933, %v4642, -inf
    %v5547 = vmax.f32 %v5545, %v5546
    %v5548 = vsel %vm4933, %v4643, -inf
    %v5549 = vmax.f32 %v5547, %v5548
    %v5550 = vsel %vm4933, %v4644, -inf
    %v5551 = vmax.f32 %v5549, %v5550
    %v5552 = vrot.slane %v5551, 4
    %v5553 = vmax.f32 %v5551, %v5552
    %v5554 = vrot.slane %v5553, 2
    %v5555 = vmax.f32 %v5553, %v5554
    %v5556 = vrot.slane %v5555, 1
    %v5557 = vmax.f32 %v5555, %v5556
    %v5558 = vsel %vm4933, %v4645, -inf
    %v5559 = vsel %vm4933, %v4646, -inf
    %v5560 = vmax.f32 %v5558, %v5559
    %v5561 = vsel %vm4933, %v4647, -inf
    %v5562 = vmax.f32 %v5560, %v5561
    %v5563 = vsel %vm4933, %v4648, -inf
    %v5564 = vmax.f32 %v5562, %v5563
    %v5565 = vrot.slane %v5564, 4
    %v5566 = vmax.f32 %v5564, %v5565
    %v5567 = vrot.slane %v5566, 2
    %v5568 = vmax.f32 %v5566, %v5567
    %v5569 = vrot.slane %v5568, 1
    %v5570 = vmax.f32 %v5568, %v5569
    %v5571 = vsel %vm4933, %v4649, -inf
    %v5572 = vsel %vm4933, %v4650, -inf
    %v5573 = vmax.f32 %v5571, %v5572
    %v5574 = vsel %vm4933, %v4651, -inf
    %v5575 = vmax.f32 %v5573, %v5574
    %v5576 = vsel %vm4933, %v4652, -inf
    %v5577 = vmax.f32 %v5575, %v5576
    %v5578 = vrot.slane %v5577, 4
    %v5579 = vmax.f32 %v5577, %v5578
    %v5580 = vrot.slane %v5579, 2
    %v5581 = vmax.f32 %v5579, %v5580
    %v5582 = vrot.slane %v5581, 1
    %v5583 = vmax.f32 %v5581, %v5582
    %v5584 = vsel %vm4933, %v4653, -inf
    %v5585 = vsel %vm4933, %v4654, -inf
    %v5586 = vmax.f32 %v5584, %v5585
    %v5587 = vsel %vm4933, %v4655, -inf
    %v5588 = vmax.f32 %v5586, %v5587
    %v5589 = vsel %vm4933, %v4656, -inf
    %v5590 = vmax.f32 %v5588, %v5589
    %v5591 = vrot.slane %v5590, 4
    %v5592 = vmax.f32 %v5590, %v5591
    %v5593 = vrot.slane %v5592, 2
    %v5594 = vmax.f32 %v5592, %v5593
    %v5595 = vrot.slane %v5594, 1
    %v5596 = vmax.f32 %v5594, %v5595
    %v5597 = vsel %vm4933, %v4657, -inf
    %v5598 = vsel %vm4933, %v4658, -inf
    %v5599 = vmax.f32 %v5597, %v5598
    %v5600 = vsel %vm4933, %v4659, -inf
    %v5601 = vmax.f32 %v5599, %v5600
    %v5602 = vsel %vm4933, %v4660, -inf
    %v5603 = vmax.f32 %v5601, %v5602
    %v5604 = vrot.slane %v5603, 4
    %v5605 = vmax.f32 %v5603, %v5604
    %v5606 = vrot.slane %v5605, 2
    %v5607 = vmax.f32 %v5605, %v5606
    %v5608 = vrot.slane %v5607, 1
    %v5609 = vmax.f32 %v5607, %v5608
    %v5610 = vsel %vm4933, %v4661, -inf
    %v5611 = vsel %vm4933, %v4662, -inf
    %v5612 = vmax.f32 %v5610, %v5611
    %v5613 = vsel %vm4933, %v4663, -inf
    %v5614 = vmax.f32 %v5612, %v5613
    %v5615 = vsel %vm4933, %v4664, -inf
    %v5616 = vmax.f32 %v5614, %v5615
    %v5617 = vrot.slane %v5616, 4
    %v5618 = vmax.f32 %v5616, %v5617
    %v5619 = vrot.slane %v5618, 2
    %v5620 = vmax.f32 %v5618, %v5619
    %v5621 = vrot.slane %v5620, 1
    %v5622 = vmax.f32 %v5620, %v5621
    %v5623 = vsel %vm4933, %v4665, -inf
    %v5624 = vsel %vm4933, %v4666, -inf
    %v5625 = vmax.f32 %v5623, %v5624
    %v5626 = vsel %vm4933, %v4667, -inf
    %v5627 = vmax.f32 %v5625, %v5626
    %v5628 = vsel %vm4933, %v4668, -inf
    %v5629 = vmax.f32 %v5627, %v5628
    %v5630 = vrot.slane %v5629, 4
    %v5631 = vmax.f32 %v5629, %v5630
    %v5632 = vrot.slane %v5631, 2
    %v5633 = vmax.f32 %v5631, %v5632
    %v5634 = vrot.slane %v5633, 1
    %v5635 = vmax.f32 %v5633, %v5634
    %v5636 = vsel %vm4933, %v4669, -inf
    %v5637 = vsel %vm4933, %v4670, -inf
    %v5638 = vmax.f32 %v5636, %v5637
    %v5639 = vsel %vm4933, %v4671, -inf
    %v5640 = vmax.f32 %v5638, %v5639
    %v5641 = vsel %vm4933, %v4672, -inf
    %v5642 = vmax.f32 %v5640, %v5641
    %v5643 = vrot.slane %v5642, 4
    %v5644 = vmax.f32 %v5642, %v5643
    %v5645 = vrot.slane %v5644, 2
    %v5646 = vmax.f32 %v5644, %v5645
    %v5647 = vrot.slane %v5646, 1
    %v5648 = vmax.f32 %v5646, %v5647
    %v5649 = vsel %vm4933, %v4673, -inf
    %v5650 = vsel %vm4933, %v4674, -inf
    %v5651 = vmax.f32 %v5649, %v5650
    %v5652 = vsel %vm4933, %v4675, -inf
    %v5653 = vmax.f32 %v5651, %v5652
    %v5654 = vsel %vm4933, %v4676, -inf
    %v5655 = vmax.f32 %v5653, %v5654
    %v5656 = vrot.slane %v5655, 4
    %v5657 = vmax.f32 %v5655, %v5656
    %v5658 = vrot.slane %v5657, 2
    %v5659 = vmax.f32 %v5657, %v5658
    %v5660 = vrot.slane %v5659, 1
    %v5661 = vmax.f32 %v5659, %v5660
    %v5662 = vsel %vm4933, %v4677, -inf
    %v5663 = vsel %vm4933, %v4678, -inf
    %v5664 = vmax.f32 %v5662, %v5663
    %v5665 = vsel %vm4933, %v4679, -inf
    %v5666 = vmax.f32 %v5664, %v5665
    %v5667 = vsel %vm4933, %v4680, -inf
    %v5668 = vmax.f32 %v5666, %v5667
    %v5669 = vrot.slane %v5668, 4
    %v5670 = vmax.f32 %v5668, %v5669
    %v5671 = vrot.slane %v5670, 2
    %v5672 = vmax.f32 %v5670, %v5671
    %v5673 = vrot.slane %v5672, 1
    %v5674 = vmax.f32 %v5672, %v5673
    %v5675 = vsel %vm4933, %v4681, -inf
    %v5676 = vsel %vm4933, %v4682, -inf
    %v5677 = vmax.f32 %v5675, %v5676
    %v5678 = vsel %vm4933, %v4683, -inf
    %v5679 = vmax.f32 %v5677, %v5678
    %v5680 = vsel %vm4933, %v4684, -inf
    %v5681 = vmax.f32 %v5679, %v5680
    %v5682 = vrot.slane %v5681, 4
    %v5683 = vmax.f32 %v5681, %v5682
    %v5684 = vrot.slane %v5683, 2
    %v5685 = vmax.f32 %v5683, %v5684
    %v5686 = vrot.slane %v5685, 1
    %v5687 = vmax.f32 %v5685, %v5686
    %v5688 = vsel %vm4933, %v4685, -inf
    %v5689 = vsel %vm4933, %v4686, -inf
    %v5690 = vmax.f32 %v5688, %v5689
    %v5691 = vsel %vm4933, %v4687, -inf
    %v5692 = vmax.f32 %v5690, %v5691
    %v5693 = vsel %vm4933, %v4688, -inf
    %v5694 = vmax.f32 %v5692, %v5693
    %v5695 = vrot.slane %v5694, 4
    %v5696 = vmax.f32 %v5694, %v5695
    %v5697 = vrot.slane %v5696, 2
    %v5698 = vmax.f32 %v5696, %v5697
    %v5699 = vrot.slane %v5698, 1
    %v5700 = vmax.f32 %v5698, %v5699
    %v5701 = vsel %vm4933, %v4689, -inf
    %v5702 = vsel %vm4933, %v4690, -inf
    %v5703 = vmax.f32 %v5701, %v5702
    %v5704 = vsel %vm4933, %v4691, -inf
    %v5705 = vmax.f32 %v5703, %v5704
    %v5706 = vsel %vm4933, %v4692, -inf
    %v5707 = vmax.f32 %v5705, %v5706
    %v5708 = vrot.slane %v5707, 4
    %v5709 = vmax.f32 %v5707, %v5708
    %v5710 = vrot.slane %v5709, 2
    %v5711 = vmax.f32 %v5709, %v5710
    %v5712 = vrot.slane %v5711, 1
    %v5713 = vmax.f32 %v5711, %v5712
    %v5714 = vsel %vm4933, %v4693, -inf
    %v5715 = vsel %vm4933, %v4694, -inf
    %v5716 = vmax.f32 %v5714, %v5715
    %v5717 = vsel %vm4933, %v4695, -inf
    %v5718 = vmax.f32 %v5716, %v5717
    %v5719 = vsel %vm4933, %v4696, -inf
    %v5720 = vmax.f32 %v5718, %v5719
    %v5721 = vrot.slane %v5720, 4
    %v5722 = vmax.f32 %v5720, %v5721
    %v5723 = vrot.slane %v5722, 2
    %v5724 = vmax.f32 %v5722, %v5723
    %v5725 = vrot.slane %v5724, 1
    %v5726 = vmax.f32 %v5724, %v5725
    %v5727 = vsel %vm4933, %v4697, -inf
    %v5728 = vsel %vm4933, %v4698, -inf
    %v5729 = vmax.f32 %v5727, %v5728
    %v5730 = vsel %vm4933, %v4699, -inf
    %v5731 = vmax.f32 %v5729, %v5730
    %v5732 = vsel %vm4933, %v4700, -inf
    %v5733 = vmax.f32 %v5731, %v5732
    %v5734 = vrot.slane %v5733, 4
    %v5735 = vmax.f32 %v5733, %v5734
    %v5736 = vrot.slane %v5735, 2
    %v5737 = vmax.f32 %v5735, %v5736
    %v5738 = vrot.slane %v5737, 1
    %v5739 = vmax.f32 %v5737, %v5738
    %v5740 = vsel %vm4933, %v4701, -inf
    %v5741 = vsel %vm4933, %v4702, -inf
    %v5742 = vmax.f32 %v5740, %v5741
    %v5743 = vsel %vm4933, %v4703, -inf
    %v5744 = vmax.f32 %v5742, %v5743
    %v5745 = vsel %vm4933, %v4704, -inf
    %v5746 = vmax.f32 %v5744, %v5745
    %v5747 = vrot.slane %v5746, 4
    %v5748 = vmax.f32 %v5746, %v5747
    %v5749 = vrot.slane %v5748, 2
    %v5750 = vmax.f32 %v5748, %v5749
    %v5751 = vrot.slane %v5750, 1
    %v5752 = vmax.f32 %v5750, %v5751
    %v5753 = vsel %vm4933, %v4705, -inf
    %v5754 = vsel %vm4933, %v4706, -inf
    %v5755 = vmax.f32 %v5753, %v5754
    %v5756 = vsel %vm4933, %v4707, -inf
    %v5757 = vmax.f32 %v5755, %v5756
    %v5758 = vsel %vm4933, %v4708, -inf
    %v5759 = vmax.f32 %v5757, %v5758
    %v5760 = vrot.slane %v5759, 4
    %v5761 = vmax.f32 %v5759, %v5760
    %v5762 = vrot.slane %v5761, 2
    %v5763 = vmax.f32 %v5761, %v5762
    %v5764 = vrot.slane %v5763, 1
    %v5765 = vmax.f32 %v5763, %v5764
    %v5766 = vsel %vm4933, %v4709, -inf
    %v5767 = vsel %vm4933, %v4710, -inf
    %v5768 = vmax.f32 %v5766, %v5767
    %v5769 = vsel %vm4933, %v4711, -inf
    %v5770 = vmax.f32 %v5768, %v5769
    %v5771 = vsel %vm4933, %v4712, -inf
    %v5772 = vmax.f32 %v5770, %v5771
    %v5773 = vrot.slane %v5772, 4
    %v5774 = vmax.f32 %v5772, %v5773
    %v5775 = vrot.slane %v5774, 2
    %v5776 = vmax.f32 %v5774, %v5775
    %v5777 = vrot.slane %v5776, 1
    %v5778 = vmax.f32 %v5776, %v5777
    %v5779 = vsel %vm4933, %v4713, -inf
    %v5780 = vsel %vm4933, %v4714, -inf
    %v5781 = vmax.f32 %v5779, %v5780
    %v5782 = vsel %vm4933, %v4715, -inf
    %v5783 = vmax.f32 %v5781, %v5782
    %v5784 = vsel %vm4933, %v4716, -inf
    %v5785 = vmax.f32 %v5783, %v5784
    %v5786 = vrot.slane %v5785, 4
    %v5787 = vmax.f32 %v5785, %v5786
    %v5788 = vrot.slane %v5787, 2
    %v5789 = vmax.f32 %v5787, %v5788
    %v5790 = vrot.slane %v5789, 1
    %v5791 = vmax.f32 %v5789, %v5790
    %v5792 = vsel %vm4933, %v4717, -inf
    %v5793 = vsel %vm4933, %v4718, -inf
    %v5794 = vmax.f32 %v5792, %v5793
    %v5795 = vsel %vm4933, %v4719, -inf
    %v5796 = vmax.f32 %v5794, %v5795
    %v5797 = vsel %vm4933, %v4720, -inf
    %v5798 = vmax.f32 %v5796, %v5797
    %v5799 = vrot.slane %v5798, 4
    %v5800 = vmax.f32 %v5798, %v5799
    %v5801 = vrot.slane %v5800, 2
    %v5802 = vmax.f32 %v5800, %v5801
    %v5803 = vrot.slane %v5802, 1
    %v5804 = vmax.f32 %v5802, %v5803
    %v5805 = vsel %vm4933, %v4721, -inf
    %v5806 = vsel %vm4933, %v4722, -inf
    %v5807 = vmax.f32 %v5805, %v5806
    %v5808 = vsel %vm4933, %v4723, -inf
    %v5809 = vmax.f32 %v5807, %v5808
    %v5810 = vsel %vm4933, %v4724, -inf
    %v5811 = vmax.f32 %v5809, %v5810
    %v5812 = vrot.slane %v5811, 4
    %v5813 = vmax.f32 %v5811, %v5812
    %v5814 = vrot.slane %v5813, 2
    %v5815 = vmax.f32 %v5813, %v5814
    %v5816 = vrot.slane %v5815, 1
    %v5817 = vmax.f32 %v5815, %v5816
    %v5818 = vsel %vm4933, %v4725, -inf
    %v5819 = vsel %vm4933, %v4726, -inf
    %v5820 = vmax.f32 %v5818, %v5819
    %v5821 = vsel %vm4933, %v4727, -inf
    %v5822 = vmax.f32 %v5820, %v5821
    %v5823 = vsel %vm4933, %v4728, -inf
    %v5824 = vmax.f32 %v5822, %v5823
    %v5825 = vrot.slane %v5824, 4
    %v5826 = vmax.f32 %v5824, %v5825
    %v5827 = vrot.slane %v5826, 2
    %v5828 = vmax.f32 %v5826, %v5827
    %v5829 = vrot.slane %v5828, 1
    %v5830 = vmax.f32 %v5828, %v5829
    %v5831 = vsel %vm4933, %v4729, -inf
    %v5832 = vsel %vm4933, %v4730, -inf
    %v5833 = vmax.f32 %v5831, %v5832
    %v5834 = vsel %vm4933, %v4731, -inf
    %v5835 = vmax.f32 %v5833, %v5834
    %v5836 = vsel %vm4933, %v4732, -inf
    %v5837 = vmax.f32 %v5835, %v5836
    %v5838 = vrot.slane %v5837, 4
    %v5839 = vmax.f32 %v5837, %v5838
    %v5840 = vrot.slane %v5839, 2
    %v5841 = vmax.f32 %v5839, %v5840
    %v5842 = vrot.slane %v5841, 1
    %v5843 = vmax.f32 %v5841, %v5842
    %v5844 = vsel %vm4933, %v4733, -inf
    %v5845 = vsel %vm4933, %v4734, -inf
    %v5846 = vmax.f32 %v5844, %v5845
    %v5847 = vsel %vm4933, %v4735, -inf
    %v5848 = vmax.f32 %v5846, %v5847
    %v5849 = vsel %vm4933, %v4736, -inf
    %v5850 = vmax.f32 %v5848, %v5849
    %v5851 = vrot.slane %v5850, 4
    %v5852 = vmax.f32 %v5850, %v5851
    %v5853 = vrot.slane %v5852, 2
    %v5854 = vmax.f32 %v5852, %v5853
    %v5855 = vrot.slane %v5854, 1
    %v5856 = vmax.f32 %v5854, %v5855
    %v5857 = vsel %vm4933, %v4737, -inf
    %v5858 = vsel %vm4933, %v4738, -inf
    %v5859 = vmax.f32 %v5857, %v5858
    %v5860 = vsel %vm4933, %v4739, -inf
    %v5861 = vmax.f32 %v5859, %v5860
    %v5862 = vsel %vm4933, %v4740, -inf
    %v5863 = vmax.f32 %v5861, %v5862
    %v5864 = vrot.slane %v5863, 4
    %v5865 = vmax.f32 %v5863, %v5864
    %v5866 = vrot.slane %v5865, 2
    %v5867 = vmax.f32 %v5865, %v5866
    %v5868 = vrot.slane %v5867, 1
    %v5869 = vmax.f32 %v5867, %v5868
    %v5870 = vsel %vm4933, %v4741, -inf
    %v5871 = vsel %vm4933, %v4742, -inf
    %v5872 = vmax.f32 %v5870, %v5871
    %v5873 = vsel %vm4933, %v4743, -inf
    %v5874 = vmax.f32 %v5872, %v5873
    %v5875 = vsel %vm4933, %v4744, -inf
    %v5876 = vmax.f32 %v5874, %v5875
    %v5877 = vrot.slane %v5876, 4
    %v5878 = vmax.f32 %v5876, %v5877
    %v5879 = vrot.slane %v5878, 2
    %v5880 = vmax.f32 %v5878, %v5879
    %v5881 = vrot.slane %v5880, 1
    %v5882 = vmax.f32 %v5880, %v5881
    %v5883 = vsel %vm4933, %v4745, -inf
    %v5884 = vsel %vm4933, %v4746, -inf
    %v5885 = vmax.f32 %v5883, %v5884
    %v5886 = vsel %vm4933, %v4747, -inf
    %v5887 = vmax.f32 %v5885, %v5886
    %v5888 = vsel %vm4933, %v4748, -inf
    %v5889 = vmax.f32 %v5887, %v5888
    %v5890 = vrot.slane %v5889, 4
    %v5891 = vmax.f32 %v5889, %v5890
    %v5892 = vrot.slane %v5891, 2
    %v5893 = vmax.f32 %v5891, %v5892
    %v5894 = vrot.slane %v5893, 1
    %v5895 = vmax.f32 %v5893, %v5894
    %v5896 = vsel %vm4933, %v4749, -inf
    %v5897 = vsel %vm4933, %v4750, -inf
    %v5898 = vmax.f32 %v5896, %v5897
    %v5899 = vsel %vm4933, %v4751, -inf
    %v5900 = vmax.f32 %v5898, %v5899
    %v5901 = vsel %vm4933, %v4752, -inf
    %v5902 = vmax.f32 %v5900, %v5901
    %v5903 = vrot.slane %v5902, 4
    %v5904 = vmax.f32 %v5902, %v5903
    %v5905 = vrot.slane %v5904, 2
    %v5906 = vmax.f32 %v5904, %v5905
    %v5907 = vrot.slane %v5906, 1
    %v5908 = vmax.f32 %v5906, %v5907
    %v5909 = vsel %vm4933, %v4753, -inf
    %v5910 = vsel %vm4933, %v4754, -inf
    %v5911 = vmax.f32 %v5909, %v5910
    %v5912 = vsel %vm4933, %v4755, -inf
    %v5913 = vmax.f32 %v5911, %v5912
    %v5914 = vsel %vm4933, %v4756, -inf
    %v5915 = vmax.f32 %v5913, %v5914
    %v5916 = vrot.slane %v5915, 4
    %v5917 = vmax.f32 %v5915, %v5916
    %v5918 = vrot.slane %v5917, 2
    %v5919 = vmax.f32 %v5917, %v5918
    %v5920 = vrot.slane %v5919, 1
    %v5921 = vmax.f32 %v5919, %v5920
    %v5922 = vsel %vm4933, %v4757, -inf
    %v5923 = vsel %vm4933, %v4758, -inf
    %v5924 = vmax.f32 %v5922, %v5923
    %v5925 = vsel %vm4933, %v4759, -inf
    %v5926 = vmax.f32 %v5924, %v5925
    %v5927 = vsel %vm4933, %v4760, -inf
    %v5928 = vmax.f32 %v5926, %v5927
    %v5929 = vrot.slane %v5928, 4
    %v5930 = vmax.f32 %v5928, %v5929
    %v5931 = vrot.slane %v5930, 2
    %v5932 = vmax.f32 %v5930, %v5931
    %v5933 = vrot.slane %v5932, 1
    %v5934 = vmax.f32 %v5932, %v5933
    %v5935 = vsel %vm4933, %v4761, -inf
    %v5936 = vsel %vm4933, %v4762, -inf
    %v5937 = vmax.f32 %v5935, %v5936
    %v5938 = vsel %vm4933, %v4763, -inf
    %v5939 = vmax.f32 %v5937, %v5938
    %v5940 = vsel %vm4933, %v4764, -inf
    %v5941 = vmax.f32 %v5939, %v5940
    %v5942 = vrot.slane %v5941, 4
    %v5943 = vmax.f32 %v5941, %v5942
    %v5944 = vrot.slane %v5943, 2
    %v5945 = vmax.f32 %v5943, %v5944
    %v5946 = vrot.slane %v5945, 1
    %v5947 = vmax.f32 %v5945, %v5946
    %v5948 = vsel %vm4933, %v4765, -inf
    %v5949 = vsel %vm4933, %v4766, -inf
    %v5950 = vmax.f32 %v5948, %v5949
    %v5951 = vsel %vm4933, %v4767, -inf
    %v5952 = vmax.f32 %v5950, %v5951
    %v5953 = vsel %vm4933, %v4768, -inf
    %v5954 = vmax.f32 %v5952, %v5953
    %v5955 = vrot.slane %v5954, 4
    %v5956 = vmax.f32 %v5954, %v5955
    %v5957 = vrot.slane %v5956, 2
    %v5958 = vmax.f32 %v5956, %v5957
    %v5959 = vrot.slane %v5958, 1
    %v5960 = vmax.f32 %v5958, %v5959
    %v5961 = vsel %vm4933, %v4769, -inf
    %v5962 = vsel %vm4933, %v4770, -inf
    %v5963 = vmax.f32 %v5961, %v5962
    %v5964 = vsel %vm4933, %v4771, -inf
    %v5965 = vmax.f32 %v5963, %v5964
    %v5966 = vsel %vm4933, %v4772, -inf
    %v5967 = vmax.f32 %v5965, %v5966
    %v5968 = vrot.slane %v5967, 4
    %v5969 = vmax.f32 %v5967, %v5968
    %v5970 = vrot.slane %v5969, 2
    %v5971 = vmax.f32 %v5969, %v5970
    %v5972 = vrot.slane %v5971, 1
    %v5973 = vmax.f32 %v5971, %v5972
    %v5974 = vsel %vm4933, %v4773, -inf
    %v5975 = vsel %vm4933, %v4774, -inf
    %v5976 = vmax.f32 %v5974, %v5975
    %v5977 = vsel %vm4933, %v4775, -inf
    %v5978 = vmax.f32 %v5976, %v5977
    %v5979 = vsel %vm4933, %v4776, -inf
    %v5980 = vmax.f32 %v5978, %v5979
    %v5981 = vrot.slane %v5980, 4
    %v5982 = vmax.f32 %v5980, %v5981
    %v5983 = vrot.slane %v5982, 2
    %v5984 = vmax.f32 %v5982, %v5983
    %v5985 = vrot.slane %v5984, 1
    %v5986 = vmax.f32 %v5984, %v5985
    %v5987 = vsel %vm4933, %v4777, -inf
    %v5988 = vsel %vm4933, %v4778, -inf
    %v5989 = vmax.f32 %v5987, %v5988
    %v5990 = vsel %vm4933, %v4779, -inf
    %v5991 = vmax.f32 %v5989, %v5990
    %v5992 = vsel %vm4933, %v4780, -inf
    %v5993 = vmax.f32 %v5991, %v5992
    %v5994 = vrot.slane %v5993, 4
    %v5995 = vmax.f32 %v5993, %v5994
    %v5996 = vrot.slane %v5995, 2
    %v5997 = vmax.f32 %v5995, %v5996
    %v5998 = vrot.slane %v5997, 1
    %v5999 = vmax.f32 %v5997, %v5998
    %v6000 = vsel %vm4933, %v4781, -inf
    %v6001 = vsel %vm4933, %v4782, -inf
    %v6002 = vmax.f32 %v6000, %v6001
    %v6003 = vsel %vm4933, %v4783, -inf
    %v6004 = vmax.f32 %v6002, %v6003
    %v6005 = vsel %vm4933, %v4784, -inf
    %v6006 = vmax.f32 %v6004, %v6005
    %v6007 = vrot.slane %v6006, 4
    %v6008 = vmax.f32 %v6006, %v6007
    %v6009 = vrot.slane %v6008, 2
    %v6010 = vmax.f32 %v6008, %v6009
    %v6011 = vrot.slane %v6010, 1
    %v6012 = vmax.f32 %v6010, %v6011
    %v6013 = vsel %vm4933, %v4785, -inf
    %v6014 = vsel %vm4933, %v4786, -inf
    %v6015 = vmax.f32 %v6013, %v6014
    %v6016 = vsel %vm4933, %v4787, -inf
    %v6017 = vmax.f32 %v6015, %v6016
    %v6018 = vsel %vm4933, %v4788, -inf
    %v6019 = vmax.f32 %v6017, %v6018
    %v6020 = vrot.slane %v6019, 4
    %v6021 = vmax.f32 %v6019, %v6020
    %v6022 = vrot.slane %v6021, 2
    %v6023 = vmax.f32 %v6021, %v6022
    %v6024 = vrot.slane %v6023, 1
    %v6025 = vmax.f32 %v6023, %v6024
    %v6026 = vsel %vm4933, %v4789, -inf
    %v6027 = vsel %vm4933, %v4790, -inf
    %v6028 = vmax.f32 %v6026, %v6027
    %v6029 = vsel %vm4933, %v4791, -inf
    %v6030 = vmax.f32 %v6028, %v6029
    %v6031 = vsel %vm4933, %v4792, -inf
    %v6032 = vmax.f32 %v6030, %v6031
    %v6033 = vrot.slane %v6032, 4
    %v6034 = vmax.f32 %v6032, %v6033
    %v6035 = vrot.slane %v6034, 2
    %v6036 = vmax.f32 %v6034, %v6035
    %v6037 = vrot.slane %v6036, 1
    %v6038 = vmax.f32 %v6036, %v6037
    %v6039 = vsel %vm4933, %v4793, -inf
    %v6040 = vsel %vm4933, %v4794, -inf
    %v6041 = vmax.f32 %v6039, %v6040
    %v6042 = vsel %vm4933, %v4795, -inf
    %v6043 = vmax.f32 %v6041, %v6042
    %v6044 = vsel %vm4933, %v4796, -inf
    %v6045 = vmax.f32 %v6043, %v6044
    %v6046 = vrot.slane %v6045, 4
    %v6047 = vmax.f32 %v6045, %v6046
    %v6048 = vrot.slane %v6047, 2
    %v6049 = vmax.f32 %v6047, %v6048
    %v6050 = vrot.slane %v6049, 1
    %v6051 = vmax.f32 %v6049, %v6050
    %v6052 = vsel %vm4933, %v4797, -inf
    %v6053 = vsel %vm4933, %v4798, -inf
    %v6054 = vmax.f32 %v6052, %v6053
    %v6055 = vsel %vm4933, %v4799, -inf
    %v6056 = vmax.f32 %v6054, %v6055
    %v6057 = vsel %vm4933, %v4800, -inf
    %v6058 = vmax.f32 %v6056, %v6057
    %v6059 = vrot.slane %v6058, 4
    %v6060 = vmax.f32 %v6058, %v6059
    %v6061 = vrot.slane %v6060, 2
    %v6062 = vmax.f32 %v6060, %v6061
    %v6063 = vrot.slane %v6062, 1
    %v6064 = vmax.f32 %v6062, %v6063
    %v6065 = vsel %vm4933, %v4801, -inf
    %v6066 = vsel %vm4933, %v4802, -inf
    %v6067 = vmax.f32 %v6065, %v6066
    %v6068 = vsel %vm4933, %v4803, -inf
    %v6069 = vmax.f32 %v6067, %v6068
    %v6070 = vsel %vm4933, %v4804, -inf
    %v6071 = vmax.f32 %v6069, %v6070
    %v6072 = vrot.slane %v6071, 4
    %v6073 = vmax.f32 %v6071, %v6072
    %v6074 = vrot.slane %v6073, 2
    %v6075 = vmax.f32 %v6073, %v6074
    %v6076 = vrot.slane %v6075, 1
    %v6077 = vmax.f32 %v6075, %v6076
    %v6078 = vsel %vm4933, %v4805, -inf
    %v6079 = vsel %vm4933, %v4806, -inf
    %v6080 = vmax.f32 %v6078, %v6079
    %v6081 = vsel %vm4933, %v4807, -inf
    %v6082 = vmax.f32 %v6080, %v6081
    %v6083 = vsel %vm4933, %v4808, -inf
    %v6084 = vmax.f32 %v6082, %v6083
    %v6085 = vrot.slane %v6084, 4
    %v6086 = vmax.f32 %v6084, %v6085
    %v6087 = vrot.slane %v6086, 2
    %v6088 = vmax.f32 %v6086, %v6087
    %v6089 = vrot.slane %v6088, 1
    %v6090 = vmax.f32 %v6088, %v6089
    %v6091 = vsel %vm4933, %v4809, -inf
    %v6092 = vsel %vm4933, %v4810, -inf
    %v6093 = vmax.f32 %v6091, %v6092
    %v6094 = vsel %vm4933, %v4811, -inf
    %v6095 = vmax.f32 %v6093, %v6094
    %v6096 = vsel %vm4933, %v4812, -inf
    %v6097 = vmax.f32 %v6095, %v6096
    %v6098 = vrot.slane %v6097, 4
    %v6099 = vmax.f32 %v6097, %v6098
    %v6100 = vrot.slane %v6099, 2
    %v6101 = vmax.f32 %v6099, %v6100
    %v6102 = vrot.slane %v6101, 1
    %v6103 = vmax.f32 %v6101, %v6102
    %v6104 = vsel %vm4933, %v4813, -inf
    %v6105 = vsel %vm4933, %v4814, -inf
    %v6106 = vmax.f32 %v6104, %v6105
    %v6107 = vsel %vm4933, %v4815, -inf
    %v6108 = vmax.f32 %v6106, %v6107
    %v6109 = vsel %vm4933, %v4816, -inf
    %v6110 = vmax.f32 %v6108, %v6109
    %v6111 = vrot.slane %v6110, 4
    %v6112 = vmax.f32 %v6110, %v6111
    %v6113 = vrot.slane %v6112, 2
    %v6114 = vmax.f32 %v6112, %v6113
    %v6115 = vrot.slane %v6114, 1
    %v6116 = vmax.f32 %v6114, %v6115
    %v6117 = vsel %vm4933, %v4817, -inf
    %v6118 = vsel %vm4933, %v4818, -inf
    %v6119 = vmax.f32 %v6117, %v6118
    %v6120 = vsel %vm4933, %v4819, -inf
    %v6121 = vmax.f32 %v6119, %v6120
    %v6122 = vsel %vm4933, %v4820, -inf
    %v6123 = vmax.f32 %v6121, %v6122
    %v6124 = vrot.slane %v6123, 4
    %v6125 = vmax.f32 %v6123, %v6124
    %v6126 = vrot.slane %v6125, 2
    %v6127 = vmax.f32 %v6125, %v6126
    %v6128 = vrot.slane %v6127, 1
    %v6129 = vmax.f32 %v6127, %v6128
    %v6130 = vsel %vm4933, %v4821, -inf
    %v6131 = vsel %vm4933, %v4822, -inf
    %v6132 = vmax.f32 %v6130, %v6131
    %v6133 = vsel %vm4933, %v4823, -inf
    %v6134 = vmax.f32 %v6132, %v6133
    %v6135 = vsel %vm4933, %v4824, -inf
    %v6136 = vmax.f32 %v6134, %v6135
    %v6137 = vrot.slane %v6136, 4
    %v6138 = vmax.f32 %v6136, %v6137
    %v6139 = vrot.slane %v6138, 2
    %v6140 = vmax.f32 %v6138, %v6139
    %v6141 = vrot.slane %v6140, 1
    %v6142 = vmax.f32 %v6140, %v6141
    %v6143 = vsel %vm4933, %v4825, -inf
    %v6144 = vsel %vm4933, %v4826, -inf
    %v6145 = vmax.f32 %v6143, %v6144
    %v6146 = vsel %vm4933, %v4827, -inf
    %v6147 = vmax.f32 %v6145, %v6146
    %v6148 = vsel %vm4933, %v4828, -inf
    %v6149 = vmax.f32 %v6147, %v6148
    %v6150 = vrot.slane %v6149, 4
    %v6151 = vmax.f32 %v6149, %v6150
    %v6152 = vrot.slane %v6151, 2
    %v6153 = vmax.f32 %v6151, %v6152
    %v6154 = vrot.slane %v6153, 1
    %v6155 = vmax.f32 %v6153, %v6154
    %v6156 = vsel %vm4933, %v4829, -inf
    %v6157 = vsel %vm4933, %v4830, -inf
    %v6158 = vmax.f32 %v6156, %v6157
    %v6159 = vsel %vm4933, %v4831, -inf
    %v6160 = vmax.f32 %v6158, %v6159
    %v6161 = vsel %vm4933, %v4832, -inf
    %v6162 = vmax.f32 %v6160, %v6161
    %v6163 = vrot.slane %v6162, 4
    %v6164 = vmax.f32 %v6162, %v6163
    %v6165 = vrot.slane %v6164, 2
    %v6166 = vmax.f32 %v6164, %v6165
    %v6167 = vrot.slane %v6166, 1
    %v6168 = vmax.f32 %v6166, %v6167
    %v6169 = vsel %vm4933, %v4833, -inf
    %v6170 = vsel %vm4933, %v4834, -inf
    %v6171 = vmax.f32 %v6169, %v6170
    %v6172 = vsel %vm4933, %v4835, -inf
    %v6173 = vmax.f32 %v6171, %v6172
    %v6174 = vsel %vm4933, %v4836, -inf
    %v6175 = vmax.f32 %v6173, %v6174
    %v6176 = vrot.slane %v6175, 4
    %v6177 = vmax.f32 %v6175, %v6176
    %v6178 = vrot.slane %v6177, 2
    %v6179 = vmax.f32 %v6177, %v6178
    %v6180 = vrot.slane %v6179, 1
    %v6181 = vmax.f32 %v6179, %v6180
    %v6182 = vsel %vm4933, %v4837, -inf
    %v6183 = vsel %vm4933, %v4838, -inf
    %v6184 = vmax.f32 %v6182, %v6183
    %v6185 = vsel %vm4933, %v4839, -inf
    %v6186 = vmax.f32 %v6184, %v6185
    %v6187 = vsel %vm4933, %v4840, -inf
    %v6188 = vmax.f32 %v6186, %v6187
    %v6189 = vrot.slane %v6188, 4
    %v6190 = vmax.f32 %v6188, %v6189
    %v6191 = vrot.slane %v6190, 2
    %v6192 = vmax.f32 %v6190, %v6191
    %v6193 = vrot.slane %v6192, 1
    %v6194 = vmax.f32 %v6192, %v6193
    %v6195 = vsel %vm4933, %v4841, -inf
    %v6196 = vsel %vm4933, %v4842, -inf
    %v6197 = vmax.f32 %v6195, %v6196
    %v6198 = vsel %vm4933, %v4843, -inf
    %v6199 = vmax.f32 %v6197, %v6198
    %v6200 = vsel %vm4933, %v4844, -inf
    %v6201 = vmax.f32 %v6199, %v6200
    %v6202 = vrot.slane %v6201, 4
    %v6203 = vmax.f32 %v6201, %v6202
    %v6204 = vrot.slane %v6203, 2
    %v6205 = vmax.f32 %v6203, %v6204
    %v6206 = vrot.slane %v6205, 1
    %v6207 = vmax.f32 %v6205, %v6206
    %v6208 = vsel %vm4933, %v4845, -inf
    %v6209 = vsel %vm4933, %v4846, -inf
    %v6210 = vmax.f32 %v6208, %v6209
    %v6211 = vsel %vm4933, %v4847, -inf
    %v6212 = vmax.f32 %v6210, %v6211
    %v6213 = vsel %vm4933, %v4848, -inf
    %v6214 = vmax.f32 %v6212, %v6213
    %v6215 = vrot.slane %v6214, 4
    %v6216 = vmax.f32 %v6214, %v6215
    %v6217 = vrot.slane %v6216, 2
    %v6218 = vmax.f32 %v6216, %v6217
    %v6219 = vrot.slane %v6218, 1
    %v6220 = vmax.f32 %v6218, %v6219
    %v6221 = vsel %vm4933, %v4849, -inf
    %v6222 = vsel %vm4933, %v4850, -inf
    %v6223 = vmax.f32 %v6221, %v6222
    %v6224 = vsel %vm4933, %v4851, -inf
    %v6225 = vmax.f32 %v6223, %v6224
    %v6226 = vsel %vm4933, %v4852, -inf
    %v6227 = vmax.f32 %v6225, %v6226
    %v6228 = vrot.slane %v6227, 4
    %v6229 = vmax.f32 %v6227, %v6228
    %v6230 = vrot.slane %v6229, 2
    %v6231 = vmax.f32 %v6229, %v6230
    %v6232 = vrot.slane %v6231, 1
    %v6233 = vmax.f32 %v6231, %v6232
    %v6234 = vsel %vm4933, %v4853, -inf
    %v6235 = vsel %vm4933, %v4854, -inf
    %v6236 = vmax.f32 %v6234, %v6235
    %v6237 = vsel %vm4933, %v4855, -inf
    %v6238 = vmax.f32 %v6236, %v6237
    %v6239 = vsel %vm4933, %v4856, -inf
    %v6240 = vmax.f32 %v6238, %v6239
    %v6241 = vrot.slane %v6240, 4
    %v6242 = vmax.f32 %v6240, %v6241
    %v6243 = vrot.slane %v6242, 2
    %v6244 = vmax.f32 %v6242, %v6243
    %v6245 = vrot.slane %v6244, 1
    %v6246 = vmax.f32 %v6244, %v6245
    %v6247 = vsel %vm4933, %v4857, -inf
    %v6248 = vsel %vm4933, %v4858, -inf
    %v6249 = vmax.f32 %v6247, %v6248
    %v6250 = vsel %vm4933, %v4859, -inf
    %v6251 = vmax.f32 %v6249, %v6250
    %v6252 = vsel %vm4933, %v4860, -inf
    %v6253 = vmax.f32 %v6251, %v6252
    %v6254 = vrot.slane %v6253, 4
    %v6255 = vmax.f32 %v6253, %v6254
    %v6256 = vrot.slane %v6255, 2
    %v6257 = vmax.f32 %v6255, %v6256
    %v6258 = vrot.slane %v6257, 1
    %v6259 = vmax.f32 %v6257, %v6258
    %v6260 = vsel %vm4933, %v4861, -inf
    %v6261 = vsel %vm4933, %v4862, -inf
    %v6262 = vmax.f32 %v6260, %v6261
    %v6263 = vsel %vm4933, %v4863, -inf
    %v6264 = vmax.f32 %v6262, %v6263
    %v6265 = vsel %vm4933, %v4864, -inf
    %v6266 = vmax.f32 %v6264, %v6265
    %v6267 = vrot.slane %v6266, 4
    %v6268 = vmax.f32 %v6266, %v6267
    %v6269 = vrot.slane %v6268, 2
    %v6270 = vmax.f32 %v6268, %v6269
    %v6271 = vrot.slane %v6270, 1
    %v6272 = vmax.f32 %v6270, %v6271
    %v6273 = vsel %vm4933, %v4865, -inf
    %v6274 = vsel %vm4933, %v4866, -inf
    %v6275 = vmax.f32 %v6273, %v6274
    %v6276 = vsel %vm4933, %v4867, -inf
    %v6277 = vmax.f32 %v6275, %v6276
    %v6278 = vsel %vm4933, %v4868, -inf
    %v6279 = vmax.f32 %v6277, %v6278
    %v6280 = vrot.slane %v6279, 4
    %v6281 = vmax.f32 %v6279, %v6280
    %v6282 = vrot.slane %v6281, 2
    %v6283 = vmax.f32 %v6281, %v6282
    %v6284 = vrot.slane %v6283, 1
    %v6285 = vmax.f32 %v6283, %v6284
    %v6286 = vsel %vm4933, %v4869, -inf
    %v6287 = vsel %vm4933, %v4870, -inf
    %v6288 = vmax.f32 %v6286, %v6287
    %v6289 = vsel %vm4933, %v4871, -inf
    %v6290 = vmax.f32 %v6288, %v6289
    %v6291 = vsel %vm4933, %v4872, -inf
    %v6292 = vmax.f32 %v6290, %v6291
    %v6293 = vrot.slane %v6292, 4
    %v6294 = vmax.f32 %v6292, %v6293
    %v6295 = vrot.slane %v6294, 2
    %v6296 = vmax.f32 %v6294, %v6295
    %v6297 = vrot.slane %v6296, 1
    %v6298 = vmax.f32 %v6296, %v6297
    %v6299 = vsel %vm4933, %v4873, -inf
    %v6300 = vsel %vm4933, %v4874, -inf
    %v6301 = vmax.f32 %v6299, %v6300
    %v6302 = vsel %vm4933, %v4875, -inf
    %v6303 = vmax.f32 %v6301, %v6302
    %v6304 = vsel %vm4933, %v4876, -inf
    %v6305 = vmax.f32 %v6303, %v6304
    %v6306 = vrot.slane %v6305, 4
    %v6307 = vmax.f32 %v6305, %v6306
    %v6308 = vrot.slane %v6307, 2
    %v6309 = vmax.f32 %v6307, %v6308
    %v6310 = vrot.slane %v6309, 1
    %v6311 = vmax.f32 %v6309, %v6310
    %v6312 = vsel %vm4933, %v4877, -inf
    %v6313 = vsel %vm4933, %v4878, -inf
    %v6314 = vmax.f32 %v6312, %v6313
    %v6315 = vsel %vm4933, %v4879, -inf
    %v6316 = vmax.f32 %v6314, %v6315
    %v6317 = vsel %vm4933, %v4880, -inf
    %v6318 = vmax.f32 %v6316, %v6317
    %v6319 = vrot.slane %v6318, 4
    %v6320 = vmax.f32 %v6318, %v6319
    %v6321 = vrot.slane %v6320, 2
    %v6322 = vmax.f32 %v6320, %v6321
    %v6323 = vrot.slane %v6322, 1
    %v6324 = vmax.f32 %v6322, %v6323
    %v6325 = vsel %vm4933, %v4881, -inf
    %v6326 = vsel %vm4933, %v4882, -inf
    %v6327 = vmax.f32 %v6325, %v6326
    %v6328 = vsel %vm4933, %v4883, -inf
    %v6329 = vmax.f32 %v6327, %v6328
    %v6330 = vsel %vm4933, %v4884, -inf
    %v6331 = vmax.f32 %v6329, %v6330
    %v6332 = vrot.slane %v6331, 4
    %v6333 = vmax.f32 %v6331, %v6332
    %v6334 = vrot.slane %v6333, 2
    %v6335 = vmax.f32 %v6333, %v6334
    %v6336 = vrot.slane %v6335, 1
    %v6337 = vmax.f32 %v6335, %v6336
    %v6338 = vsel %vm4933, %v4885, -inf
    %v6339 = vsel %vm4933, %v4886, -inf
    %v6340 = vmax.f32 %v6338, %v6339
    %v6341 = vsel %vm4933, %v4887, -inf
    %v6342 = vmax.f32 %v6340, %v6341
    %v6343 = vsel %vm4933, %v4888, -inf
    %v6344 = vmax.f32 %v6342, %v6343
    %v6345 = vrot.slane %v6344, 4
    %v6346 = vmax.f32 %v6344, %v6345
    %v6347 = vrot.slane %v6346, 2
    %v6348 = vmax.f32 %v6346, %v6347
    %v6349 = vrot.slane %v6348, 1
    %v6350 = vmax.f32 %v6348, %v6349
    %v6351 = vsel %vm4933, %v4889, -inf
    %v6352 = vsel %vm4933, %v4890, -inf
    %v6353 = vmax.f32 %v6351, %v6352
    %v6354 = vsel %vm4933, %v4891, -inf
    %v6355 = vmax.f32 %v6353, %v6354
    %v6356 = vsel %vm4933, %v4892, -inf
    %v6357 = vmax.f32 %v6355, %v6356
    %v6358 = vrot.slane %v6357, 4
    %v6359 = vmax.f32 %v6357, %v6358
    %v6360 = vrot.slane %v6359, 2
    %v6361 = vmax.f32 %v6359, %v6360
    %v6362 = vrot.slane %v6361, 1
    %v6363 = vmax.f32 %v6361, %v6362
    %v6364 = vsel %vm4933, %v4893, -inf
    %v6365 = vsel %vm4933, %v4894, -inf
    %v6366 = vmax.f32 %v6364, %v6365
    %v6367 = vsel %vm4933, %v4895, -inf
    %v6368 = vmax.f32 %v6366, %v6367
    %v6369 = vsel %vm4933, %v4896, -inf
    %v6370 = vmax.f32 %v6368, %v6369
    %v6371 = vrot.slane %v6370, 4
    %v6372 = vmax.f32 %v6370, %v6371
    %v6373 = vrot.slane %v6372, 2
    %v6374 = vmax.f32 %v6372, %v6373
    %v6375 = vrot.slane %v6374, 1
    %v6376 = vmax.f32 %v6374, %v6375
    %v6377 = vsel %vm4933, %v4897, -inf
    %v6378 = vsel %vm4933, %v4898, -inf
    %v6379 = vmax.f32 %v6377, %v6378
    %v6380 = vsel %vm4933, %v4899, -inf
    %v6381 = vmax.f32 %v6379, %v6380
    %v6382 = vsel %vm4933, %v4900, -inf
    %v6383 = vmax.f32 %v6381, %v6382
    %v6384 = vrot.slane %v6383, 4
    %v6385 = vmax.f32 %v6383, %v6384
    %v6386 = vrot.slane %v6385, 2
    %v6387 = vmax.f32 %v6385, %v6386
    %v6388 = vrot.slane %v6387, 1
    %v6389 = vmax.f32 %v6387, %v6388
    %v6390 = vsel %vm4933, %v4901, -inf
    %v6391 = vsel %vm4933, %v4902, -inf
    %v6392 = vmax.f32 %v6390, %v6391
    %v6393 = vsel %vm4933, %v4903, -inf
    %v6394 = vmax.f32 %v6392, %v6393
    %v6395 = vsel %vm4933, %v4904, -inf
    %v6396 = vmax.f32 %v6394, %v6395
    %v6397 = vrot.slane %v6396, 4
    %v6398 = vmax.f32 %v6396, %v6397
    %v6399 = vrot.slane %v6398, 2
    %v6400 = vmax.f32 %v6398, %v6399
    %v6401 = vrot.slane %v6400, 1
    %v6402 = vmax.f32 %v6400, %v6401
    %v6403 = vsel %vm4933, %v4905, -inf
    %v6404 = vsel %vm4933, %v4906, -inf
    %v6405 = vmax.f32 %v6403, %v6404
    %v6406 = vsel %vm4933, %v4907, -inf
    %v6407 = vmax.f32 %v6405, %v6406
    %v6408 = vsel %vm4933, %v4908, -inf
    %v6409 = vmax.f32 %v6407, %v6408
    %v6410 = vrot.slane %v6409, 4
    %v6411 = vmax.f32 %v6409, %v6410
    %v6412 = vrot.slane %v6411, 2
    %v6413 = vmax.f32 %v6411, %v6412
    %v6414 = vrot.slane %v6413, 1
    %v6415 = vmax.f32 %v6413, %v6414
    %v6416 = vsel %vm4933, %v4909, -inf
    %v6417 = vsel %vm4933, %v4910, -inf
    %v6418 = vmax.f32 %v6416, %v6417
    %v6419 = vsel %vm4933, %v4911, -inf
    %v6420 = vmax.f32 %v6418, %v6419
    %v6421 = vsel %vm4933, %v4912, -inf
    %v6422 = vmax.f32 %v6420, %v6421
    %v6423 = vrot.slane %v6422, 4
    %v6424 = vmax.f32 %v6422, %v6423
    %v6425 = vrot.slane %v6424, 2
    %v6426 = vmax.f32 %v6424, %v6425
    %v6427 = vrot.slane %v6426, 1
    %v6428 = vmax.f32 %v6426, %v6427
    %v6429 = vsel %vm4933, %v4913, -inf
    %v6430 = vsel %vm4933, %v4914, -inf
    %v6431 = vmax.f32 %v6429, %v6430
    %v6432 = vsel %vm4933, %v4915, -inf
    %v6433 = vmax.f32 %v6431, %v6432
    %v6434 = vsel %vm4933, %v4916, -inf
    %v6435 = vmax.f32 %v6433, %v6434
    %v6436 = vrot.slane %v6435, 4
    %v6437 = vmax.f32 %v6435, %v6436
    %v6438 = vrot.slane %v6437, 2
    %v6439 = vmax.f32 %v6437, %v6438
    %v6440 = vrot.slane %v6439, 1
    %v6441 = vmax.f32 %v6439, %v6440
    %v6442 = vsel %vm4933, %v4917, -inf
    %v6443 = vsel %vm4933, %v4918, -inf
    %v6444 = vmax.f32 %v6442, %v6443
    %v6445 = vsel %vm4933, %v4919, -inf
    %v6446 = vmax.f32 %v6444, %v6445
    %v6447 = vsel %vm4933, %v4920, -inf
    %v6448 = vmax.f32 %v6446, %v6447
    %v6449 = vrot.slane %v6448, 4
    %v6450 = vmax.f32 %v6448, %v6449
    %v6451 = vrot.slane %v6450, 2
    %v6452 = vmax.f32 %v6450, %v6451
    %v6453 = vrot.slane %v6452, 1
    %v6454 = vmax.f32 %v6452, %v6453
    %v6455 = vsel %vm4933, %v4921, -inf
    %v6456 = vsel %vm4933, %v4922, -inf
    %v6457 = vmax.f32 %v6455, %v6456
    %v6458 = vsel %vm4933, %v4923, -inf
    %v6459 = vmax.f32 %v6457, %v6458
    %v6460 = vsel %vm4933, %v4924, -inf
    %v6461 = vmax.f32 %v6459, %v6460
    %v6462 = vrot.slane %v6461, 4
    %v6463 = vmax.f32 %v6461, %v6462
    %v6464 = vrot.slane %v6463, 2
    %v6465 = vmax.f32 %v6463, %v6464
    %v6466 = vrot.slane %v6465, 1
    %v6467 = vmax.f32 %v6465, %v6466
    %v6468 = vsel %vm4933, %v4925, -inf
    %v6469 = vsel %vm4933, %v4926, -inf
    %v6470 = vmax.f32 %v6468, %v6469
    %v6471 = vsel %vm4933, %v4927, -inf
    %v6472 = vmax.f32 %v6470, %v6471
    %v6473 = vsel %vm4933, %v4928, -inf
    %v6474 = vmax.f32 %v6472, %v6473
    %v6475 = vrot.slane %v6474, 4
    %v6476 = vmax.f32 %v6474, %v6475
    %v6477 = vrot.slane %v6476, 2
    %v6478 = vmax.f32 %v6476, %v6477
    %v6479 = vrot.slane %v6478, 1
    %v6480 = vmax.f32 %v6478, %v6479
    %v6481 = vsel %vm4933, %v4929, -inf
    %v6482 = vsel %vm4933, %v4930, -inf
    %v6483 = vmax.f32 %v6481, %v6482
    %v6484 = vsel %vm4933, %v4931, -inf
    %v6485 = vmax.f32 %v6483, %v6484
    %v6486 = vsel %vm4933, %v4932, -inf
    %v6487 = vmax.f32 %v6485, %v6486
    %v6488 = vrot.slane %v6487, 4
    %v6489 = vmax.f32 %v6487, %v6488
    %v6490 = vrot.slane %v6489, 2
    %v6491 = vmax.f32 %v6489, %v6490
    %v6492 = vrot.slane %v6491, 1
    %v6493 = vmax.f32 %v6491, %v6492
    %6614 = vrot.lane.b32.xlu0 %v4946, 32
    %v6615 = vpop.permute.xlu0 %6614
    %6616 = vrot.lane.b32.xlu0 %v4959, 32
    %v6617 = vpop.permute.xlu0 %6616
    %6618 = vrot.lane.b32.xlu0 %v4972, 32
    %v6619 = vpop.permute.xlu0 %6618
    %6620 = vrot.lane.b32.xlu0 %v4985, 32
    %v6621 = vpop.permute.xlu0 %6620
    %6622 = vrot.lane.b32.xlu0 %v4998, 32
    %v6623 = vpop.permute.xlu0 %6622
    %6624 = vrot.lane.b32.xlu0 %v5011, 32
    %v6625 = vpop.permute.xlu0 %6624
    %6626 = vrot.lane.b32.xlu0 %v5024, 32
    %v6627 = vpop.permute.xlu0 %6626
    %6628 = vrot.lane.b32.xlu0 %v5037, 32
    %v6629 = vpop.permute.xlu0 %6628
    %6630 = vrot.lane.b32.xlu0 %v5050, 32
    %v6631 = vpop.permute.xlu0 %6630
    %6632 = vrot.lane.b32.xlu0 %v5063, 32
    %v6633 = vpop.permute.xlu0 %6632
    %6634 = vrot.lane.b32.xlu0 %v5076, 32
    %v6635 = vpop.permute.xlu0 %6634
    %6636 = vrot.lane.b32.xlu0 %v5089, 32
    %v6637 = vpop.permute.xlu0 %6636
    %6638 = vrot.lane.b32.xlu0 %v5102, 32
    %v6639 = vpop.permute.xlu0 %6638
    %6640 = vrot.lane.b32.xlu0 %v5115, 32
    %v6641 = vpop.permute.xlu0 %6640
    %6642 = vrot.lane.b32.xlu0 %v5128, 32
    %v6643 = vpop.permute.xlu0 %6642
    %6644 = vrot.lane.b32.xlu0 %v5141, 32
    %v6645 = vpop.permute.xlu0 %6644
    %6646 = vrot.lane.b32.xlu0 %v5154, 32
    %v6647 = vpop.permute.xlu0 %6646
    %6648 = vrot.lane.b32.xlu0 %v5167, 32
    %v6649 = vpop.permute.xlu0 %6648
    %6650 = vrot.lane.b32.xlu0 %v5180, 32
    %v6651 = vpop.permute.xlu0 %6650
    %6652 = vrot.lane.b32.xlu0 %v5193, 32
    %v6653 = vpop.permute.xlu0 %6652
    %6654 = vrot.lane.b32.xlu0 %v5206, 32
    %v6655 = vpop.permute.xlu0 %6654
    %6656 = vrot.lane.b32.xlu0 %v5219, 32
    %v6657 = vpop.permute.xlu0 %6656
    %6658 = vrot.lane.b32.xlu0 %v5232, 32
    %v6659 = vpop.permute.xlu0 %6658
    %6660 = vrot.lane.b32.xlu0 %v5245, 32
    %v6661 = vpop.permute.xlu0 %6660
    %6662 = vrot.lane.b32.xlu0 %v5258, 32
    %v6663 = vpop.permute.xlu0 %6662
    %6664 = vrot.lane.b32.xlu0 %v5271, 32
    %v6665 = vpop.permute.xlu0 %6664
    %6666 = vrot.lane.b32.xlu0 %v5284, 32
    %v6667 = vpop.permute.xlu0 %6666
    %6668 = vrot.lane.b32.xlu0 %v5297, 32
    %v6669 = vpop.permute.xlu0 %6668
    %6670 = vrot.lane.b32.xlu0 %v5310, 32
    %v6671 = vpop.permute.xlu0 %6670
    %6672 = vrot.lane.b32.xlu0 %v5323, 32
    %v6673 = vpop.permute.xlu0 %6672
    %6674 = vrot.lane.b32.xlu0 %v5336, 32
    %v6675 = vpop.permute.xlu0 %6674
    %6676 = vrot.lane.b32.xlu0 %v5349, 32
    %v6677 = vpop.permute.xlu0 %6676
    %6678 = vrot.lane.b32.xlu0 %v5362, 32
    %v6679 = vpop.permute.xlu0 %6678
    %6680 = vrot.lane.b32.xlu0 %v5375, 32
    %v6681 = vpop.permute.xlu0 %6680
    %6682 = vrot.lane.b32.xlu0 %v5388, 32
    %v6683 = vpop.permute.xlu0 %6682
    %6684 = vrot.lane.b32.xlu0 %v5401, 32
    %v6685 = vpop.permute.xlu0 %6684
    %6686 = vrot.lane.b32.xlu0 %v5414, 32
    %v6687 = vpop.permute.xlu0 %6686
    %6688 = vrot.lane.b32.xlu0 %v5427, 32
    %v6689 = vpop.permute.xlu0 %6688
    %6690 = vrot.lane.b32.xlu0 %v5440, 32
    %v6691 = vpop.permute.xlu0 %6690
    %6692 = vrot.lane.b32.xlu0 %v5453, 32
    %v6693 = vpop.permute.xlu0 %6692
    %6694 = vrot.lane.b32.xlu0 %v5466, 32
    %v6695 = vpop.permute.xlu0 %6694
    %6696 = vrot.lane.b32.xlu0 %v5479, 32
    %v6697 = vpop.permute.xlu0 %6696
    %6698 = vrot.lane.b32.xlu0 %v5492, 32
    %v6699 = vpop.permute.xlu0 %6698
    %6700 = vrot.lane.b32.xlu0 %v5505, 32
    %v6701 = vpop.permute.xlu0 %6700
    %6702 = vrot.lane.b32.xlu0 %v5518, 32
    %v6703 = vpop.permute.xlu0 %6702
    %6704 = vrot.lane.b32.xlu0 %v5531, 32
    %v6705 = vpop.permute.xlu0 %6704
    %6706 = vrot.lane.b32.xlu0 %v5544, 32
    %v6707 = vpop.permute.xlu0 %6706
    %6708 = vrot.lane.b32.xlu0 %v5557, 32
    %v6709 = vpop.permute.xlu0 %6708
    %6710 = vrot.lane.b32.xlu0 %v5570, 32
    %v6711 = vpop.permute.xlu0 %6710
    %6712 = vrot.lane.b32.xlu0 %v5583, 32
    %v6713 = vpop.permute.xlu0 %6712
    %6714 = vrot.lane.b32.xlu0 %v5596, 32
    %v6715 = vpop.permute.xlu0 %6714
    %6716 = vrot.lane.b32.xlu0 %v5609, 32
    %v6717 = vpop.permute.xlu0 %6716
    %6718 = vrot.lane.b32.xlu0 %v5622, 32
    %v6719 = vpop.permute.xlu0 %6718
    %6720 = vrot.lane.b32.xlu0 %v5635, 32
    %v6721 = vpop.permute.xlu0 %6720
    %6722 = vrot.lane.b32.xlu0 %v5648, 32
    %v6723 = vpop.permute.xlu0 %6722
    %6724 = vrot.lane.b32.xlu0 %v5661, 32
    %v6725 = vpop.permute.xlu0 %6724
    %6726 = vrot.lane.b32.xlu0 %v5674, 32
    %v6727 = vpop.permute.xlu0 %6726
    %6728 = vrot.lane.b32.xlu0 %v5687, 32
    %v6729 = vpop.permute.xlu0 %6728
    %6730 = vrot.lane.b32.xlu0 %v5700, 32
    %v6731 = vpop.permute.xlu0 %6730
    %6732 = vrot.lane.b32.xlu0 %v5713, 32
    %v6733 = vpop.permute.xlu0 %6732
    %6734 = vrot.lane.b32.xlu0 %v5726, 32
    %v6735 = vpop.permute.xlu0 %6734
    %6736 = vrot.lane.b32.xlu0 %v5739, 32
    %v6737 = vpop.permute.xlu0 %6736
    %6738 = vrot.lane.b32.xlu0 %v5752, 32
    %v6739 = vpop.permute.xlu0 %6738
    %6740 = vrot.lane.b32.xlu0 %v5765, 32
    %v6741 = vpop.permute.xlu0 %6740
    %6742 = vrot.lane.b32.xlu0 %v5778, 32
    %v6743 = vpop.permute.xlu0 %6742
    %6744 = vrot.lane.b32.xlu0 %v5791, 32
    %v6745 = vpop.permute.xlu0 %6744
    %6746 = vrot.lane.b32.xlu0 %v5804, 32
    %v6747 = vpop.permute.xlu0 %6746
    %6748 = vrot.lane.b32.xlu0 %v5817, 32
    %v6749 = vpop.permute.xlu0 %6748
    %6750 = vrot.lane.b32.xlu0 %v5830, 32
    %v6751 = vpop.permute.xlu0 %6750
    %6752 = vrot.lane.b32.xlu0 %v5843, 32
    %v6753 = vpop.permute.xlu0 %6752
    %6754 = vrot.lane.b32.xlu0 %v5856, 32
    %v6755 = vpop.permute.xlu0 %6754
    %6756 = vrot.lane.b32.xlu0 %v5869, 32
    %v6757 = vpop.permute.xlu0 %6756
    %6758 = vrot.lane.b32.xlu0 %v5882, 32
    %v6759 = vpop.permute.xlu0 %6758
    %6760 = vrot.lane.b32.xlu0 %v5895, 32
    %v6761 = vpop.permute.xlu0 %6760
    %6762 = vrot.lane.b32.xlu0 %v5908, 32
    %v6763 = vpop.permute.xlu0 %6762
    %6764 = vrot.lane.b32.xlu0 %v5921, 32
    %v6765 = vpop.permute.xlu0 %6764
    %6766 = vrot.lane.b32.xlu0 %v5934, 32
    %v6767 = vpop.permute.xlu0 %6766
    %6768 = vrot.lane.b32.xlu0 %v5947, 32
    %v6769 = vpop.permute.xlu0 %6768
    %6770 = vrot.lane.b32.xlu0 %v5960, 32
    %v6771 = vpop.permute.xlu0 %6770
    %6772 = vrot.lane.b32.xlu0 %v5973, 32
    %v6773 = vpop.permute.xlu0 %6772
    %6774 = vrot.lane.b32.xlu0 %v5986, 32
    %v6775 = vpop.permute.xlu0 %6774
    %6776 = vrot.lane.b32.xlu0 %v5999, 32
    %v6777 = vpop.permute.xlu0 %6776
    %6778 = vrot.lane.b32.xlu0 %v6012, 32
    %v6779 = vpop.permute.xlu0 %6778
    %6780 = vrot.lane.b32.xlu0 %v6025, 32
    %v6781 = vpop.permute.xlu0 %6780
    %6782 = vrot.lane.b32.xlu0 %v6038, 32
    %v6783 = vpop.permute.xlu0 %6782
    %6784 = vrot.lane.b32.xlu0 %v6051, 32
    %v6785 = vpop.permute.xlu0 %6784
    %6786 = vrot.lane.b32.xlu0 %v6064, 32
    %v6787 = vpop.permute.xlu0 %6786
    %6788 = vrot.lane.b32.xlu0 %v6077, 32
    %v6789 = vpop.permute.xlu0 %6788
    %6790 = vrot.lane.b32.xlu0 %v6090, 32
    %v6791 = vpop.permute.xlu0 %6790
    %6792 = vrot.lane.b32.xlu0 %v6103, 32
    %v6793 = vpop.permute.xlu0 %6792
    %6794 = vrot.lane.b32.xlu0 %v6116, 32
    %v6795 = vpop.permute.xlu0 %6794
    %6796 = vrot.lane.b32.xlu0 %v6129, 32
    %v6797 = vpop.permute.xlu0 %6796
    %6798 = vrot.lane.b32.xlu0 %v6142, 32
    %v6799 = vpop.permute.xlu0 %6798
    %6800 = vrot.lane.b32.xlu0 %v6155, 32
    %v6801 = vpop.permute.xlu0 %6800
    %6802 = vrot.lane.b32.xlu0 %v6168, 32
    %v6803 = vpop.permute.xlu0 %6802
    %6804 = vrot.lane.b32.xlu0 %v6181, 32
    %v6805 = vpop.permute.xlu0 %6804
    %6806 = vrot.lane.b32.xlu0 %v6194, 32
    %v6807 = vpop.permute.xlu0 %6806
    %6808 = vrot.lane.b32.xlu0 %v6207, 32
    %v6809 = vpop.permute.xlu0 %6808
    %6810 = vrot.lane.b32.xlu0 %v6220, 32
    %v6811 = vpop.permute.xlu0 %6810
    %6812 = vrot.lane.b32.xlu0 %v6233, 32
    %v6813 = vpop.permute.xlu0 %6812
    %6814 = vrot.lane.b32.xlu0 %v6246, 32
    %v6815 = vpop.permute.xlu0 %6814
    %6816 = vrot.lane.b32.xlu0 %v6259, 32
    %v6817 = vpop.permute.xlu0 %6816
    %6818 = vrot.lane.b32.xlu0 %v6272, 32
    %v6819 = vpop.permute.xlu0 %6818
    %6820 = vrot.lane.b32.xlu0 %v6285, 32
    %v6821 = vpop.permute.xlu0 %6820
    %6822 = vrot.lane.b32.xlu0 %v6298, 32
    %v6823 = vpop.permute.xlu0 %6822
    %6824 = vrot.lane.b32.xlu0 %v6311, 32
    %v6825 = vpop.permute.xlu0 %6824
    %6826 = vrot.lane.b32.xlu0 %v6324, 32
    %v6827 = vpop.permute.xlu0 %6826
    %6828 = vrot.lane.b32.xlu0 %v6337, 32
    %v6829 = vpop.permute.xlu0 %6828
    %6830 = vrot.lane.b32.xlu0 %v6350, 32
    %v6831 = vpop.permute.xlu0 %6830
    %6832 = vrot.lane.b32.xlu0 %v6363, 32
    %v6833 = vpop.permute.xlu0 %6832
    %6834 = vrot.lane.b32.xlu0 %v6376, 32
    %v6835 = vpop.permute.xlu0 %6834
    %6836 = vrot.lane.b32.xlu0 %v6389, 32
    %v6837 = vpop.permute.xlu0 %6836
    %6838 = vrot.lane.b32.xlu0 %v6402, 32
    %v6839 = vpop.permute.xlu0 %6838
    %6840 = vrot.lane.b32.xlu0 %v6415, 32
    %v6841 = vpop.permute.xlu0 %6840
    %6842 = vrot.lane.b32.xlu0 %v6428, 32
    %v6843 = vpop.permute.xlu0 %6842
    %6844 = vrot.lane.b32.xlu0 %v6441, 32
    %v6845 = vpop.permute.xlu0 %6844
    %6846 = vrot.lane.b32.xlu0 %v6454, 32
    %v6847 = vpop.permute.xlu0 %6846
    %6848 = vrot.lane.b32.xlu0 %v6467, 32
    %v6849 = vpop.permute.xlu0 %6848
    %6850 = vrot.lane.b32.xlu0 %v6480, 32
    %v6851 = vpop.permute.xlu0 %6850
    %6852 = vrot.lane.b32.xlu0 %v6493, 32
    %v6853 = vpop.permute.xlu0 %6852
    %v6974 = vsel %vm4933, %v4453, %v6615
    %v6975 = vsel %vm4933, %v4454, %v6615
    %v6976 = vsel %vm4933, %v4455, %v6615
    %v6977 = vsel %vm4933, %v4456, %v6615
    %v6978 = vsel %vm4933, %v4457, %v6617
    %v6979 = vsel %vm4933, %v4458, %v6617
    %v6980 = vsel %vm4933, %v4459, %v6617
    %v6981 = vsel %vm4933, %v4460, %v6617
    %v6982 = vsel %vm4933, %v4461, %v6619
    %v6983 = vsel %vm4933, %v4462, %v6619
    %v6984 = vsel %vm4933, %v4463, %v6619
    %v6985 = vsel %vm4933, %v4464, %v6619
    %v6986 = vsel %vm4933, %v4465, %v6621
    %v6987 = vsel %vm4933, %v4466, %v6621
    %v6988 = vsel %vm4933, %v4467, %v6621
    %v6989 = vsel %vm4933, %v4468, %v6621
    %v6990 = vsel %vm4933, %v4469, %v6623
    %v6991 = vsel %vm4933, %v4470, %v6623
    %v6992 = vsel %vm4933, %v4471, %v6623
    %v6993 = vsel %vm4933, %v4472, %v6623
    %v6994 = vsel %vm4933, %v4473, %v6625
    %v6995 = vsel %vm4933, %v4474, %v6625
    %v6996 = vsel %vm4933, %v4475, %v6625
    %v6997 = vsel %vm4933, %v4476, %v6625
    %v6998 = vsel %vm4933, %v4477, %v6627
    %v6999 = vsel %vm4933, %v4478, %v6627
    %v7000 = vsel %vm4933, %v4479, %v6627
    %v7001 = vsel %vm4933, %v4480, %v6627
    %v7002 = vsel %vm4933, %v4481, %v6629
    %v7003 = vsel %vm4933, %v4482, %v6629
    %v7004 = vsel %vm4933, %v4483, %v6629
    %v7005 = vsel %vm4933, %v4484, %v6629
    %v7006 = vsel %vm4933, %v4485, %v6631
    %v7007 = vsel %vm4933, %v4486, %v6631
    %v7008 = vsel %vm4933, %v4487, %v6631
    %v7009 = vsel %vm4933, %v4488, %v6631
    %v7010 = vsel %vm4933, %v4489, %v6633
    %v7011 = vsel %vm4933, %v4490, %v6633
    %v7012 = vsel %vm4933, %v4491, %v6633
    %v7013 = vsel %vm4933, %v4492, %v6633
    %v7014 = vsel %vm4933, %v4493, %v6635
    %v7015 = vsel %vm4933, %v4494, %v6635
    %v7016 = vsel %vm4933, %v4495, %v6635
    %v7017 = vsel %vm4933, %v4496, %v6635
    %v7018 = vsel %vm4933, %v4497, %v6637
    %v7019 = vsel %vm4933, %v4498, %v6637
    %v7020 = vsel %vm4933, %v4499, %v6637
    %v7021 = vsel %vm4933, %v4500, %v6637
    %v7022 = vsel %vm4933, %v4501, %v6639
    %v7023 = vsel %vm4933, %v4502, %v6639
    %v7024 = vsel %vm4933, %v4503, %v6639
    %v7025 = vsel %vm4933, %v4504, %v6639
    %v7026 = vsel %vm4933, %v4505, %v6641
    %v7027 = vsel %vm4933, %v4506, %v6641
    %v7028 = vsel %vm4933, %v4507, %v6641
    %v7029 = vsel %vm4933, %v4508, %v6641
    %v7030 = vsel %vm4933, %v4509, %v6643
    %v7031 = vsel %vm4933, %v4510, %v6643
    %v7032 = vsel %vm4933, %v4511, %v6643
    %v7033 = vsel %vm4933, %v4512, %v6643
    %v7034 = vsel %vm4933, %v4513, %v6645
    %v7035 = vsel %vm4933, %v4514, %v6645
    %v7036 = vsel %vm4933, %v4515, %v6645
    %v7037 = vsel %vm4933, %v4516, %v6645
    %v7038 = vsel %vm4933, %v4517, %v6647
    %v7039 = vsel %vm4933, %v4518, %v6647
    %v7040 = vsel %vm4933, %v4519, %v6647
    %v7041 = vsel %vm4933, %v4520, %v6647
    %v7042 = vsel %vm4933, %v4521, %v6649
    %v7043 = vsel %vm4933, %v4522, %v6649
    %v7044 = vsel %vm4933, %v4523, %v6649
    %v7045 = vsel %vm4933, %v4524, %v6649
    %v7046 = vsel %vm4933, %v4525, %v6651
    %v7047 = vsel %vm4933, %v4526, %v6651
    %v7048 = vsel %vm4933, %v4527, %v6651
    %v7049 = vsel %vm4933, %v4528, %v6651
    %v7050 = vsel %vm4933, %v4529, %v6653
    %v7051 = vsel %vm4933, %v4530, %v6653
    %v7052 = vsel %vm4933, %v4531, %v6653
    %v7053 = vsel %vm4933, %v4532, %v6653
    %v7054 = vsel %vm4933, %v4533, %v6655
    %v7055 = vsel %vm4933, %v4534, %v6655
    %v7056 = vsel %vm4933, %v4535, %v6655
    %v7057 = vsel %vm4933, %v4536, %v6655
    %v7058 = vsel %vm4933, %v4537, %v6657
    %v7059 = vsel %vm4933, %v4538, %v6657
    %v7060 = vsel %vm4933, %v4539, %v6657
    %v7061 = vsel %vm4933, %v4540, %v6657
    %v7062 = vsel %vm4933, %v4541, %v6659
    %v7063 = vsel %vm4933, %v4542, %v6659
    %v7064 = vsel %vm4933, %v4543, %v6659
    %v7065 = vsel %vm4933, %v4544, %v6659
    %v7066 = vsel %vm4933, %v4545, %v6661
    %v7067 = vsel %vm4933, %v4546, %v6661
    %v7068 = vsel %vm4933, %v4547, %v6661
    %v7069 = vsel %vm4933, %v4548, %v6661
    %v7070 = vsel %vm4933, %v4549, %v6663
    %v7071 = vsel %vm4933, %v4550, %v6663
    %v7072 = vsel %vm4933, %v4551, %v6663
    %v7073 = vsel %vm4933, %v4552, %v6663
    %v7074 = vsel %vm4933, %v4553, %v6665
    %v7075 = vsel %vm4933, %v4554, %v6665
    %v7076 = vsel %vm4933, %v4555, %v6665
    %v7077 = vsel %vm4933, %v4556, %v6665
    %v7078 = vsel %vm4933, %v4557, %v6667
    %v7079 = vsel %vm4933, %v4558, %v6667
    %v7080 = vsel %vm4933, %v4559, %v6667
    %v7081 = vsel %vm4933, %v4560, %v6667
    %v7082 = vsel %vm4933, %v4561, %v6669
    %v7083 = vsel %vm4933, %v4562, %v6669
    %v7084 = vsel %vm4933, %v4563, %v6669
    %v7085 = vsel %vm4933, %v4564, %v6669
    %v7086 = vsel %vm4933, %v4565, %v6671
    %v7087 = vsel %vm4933, %v4566, %v6671
    %v7088 = vsel %vm4933, %v4567, %v6671
    %v7089 = vsel %vm4933, %v4568, %v6671
    %v7090 = vsel %vm4933, %v4569, %v6673
    %v7091 = vsel %vm4933, %v4570, %v6673
    %v7092 = vsel %vm4933, %v4571, %v6673
    %v7093 = vsel %vm4933, %v4572, %v6673
    %v7094 = vsel %vm4933, %v4573, %v6675
    %v7095 = vsel %vm4933, %v4574, %v6675
    %v7096 = vsel %vm4933, %v4575, %v6675
    %v7097 = vsel %vm4933, %v4576, %v6675
    %v7098 = vsel %vm4933, %v4577, %v6677
    %v7099 = vsel %vm4933, %v4578, %v6677
    %v7100 = vsel %vm4933, %v4579, %v6677
    %v7101 = vsel %vm4933, %v4580, %v6677
    %v7102 = vsel %vm4933, %v4581, %v6679
    %v7103 = vsel %vm4933, %v4582, %v6679
    %v7104 = vsel %vm4933, %v4583, %v6679
    %v7105 = vsel %vm4933, %v4584, %v6679
    %v7106 = vsel %vm4933, %v4585, %v6681
    %v7107 = vsel %vm4933, %v4586, %v6681
    %v7108 = vsel %vm4933, %v4587, %v6681
    %v7109 = vsel %vm4933, %v4588, %v6681
    %v7110 = vsel %vm4933, %v4589, %v6683
    %v7111 = vsel %vm4933, %v4590, %v6683
    %v7112 = vsel %vm4933, %v4591, %v6683
    %v7113 = vsel %vm4933, %v4592, %v6683
    %v7114 = vsel %vm4933, %v4593, %v6685
    %v7115 = vsel %vm4933, %v4594, %v6685
    %v7116 = vsel %vm4933, %v4595, %v6685
    %v7117 = vsel %vm4933, %v4596, %v6685
    %v7118 = vsel %vm4933, %v4597, %v6687
    %v7119 = vsel %vm4933, %v4598, %v6687
    %v7120 = vsel %vm4933, %v4599, %v6687
    %v7121 = vsel %vm4933, %v4600, %v6687
    %v7122 = vsel %vm4933, %v4601, %v6689
    %v7123 = vsel %vm4933, %v4602, %v6689
    %v7124 = vsel %vm4933, %v4603, %v6689
    %v7125 = vsel %vm4933, %v4604, %v6689
    %v7126 = vsel %vm4933, %v4605, %v6691
    %v7127 = vsel %vm4933, %v4606, %v6691
    %v7128 = vsel %vm4933, %v4607, %v6691
    %v7129 = vsel %vm4933, %v4608, %v6691
    %v7130 = vsel %vm4933, %v4609, %v6693
    %v7131 = vsel %vm4933, %v4610, %v6693
    %v7132 = vsel %vm4933, %v4611, %v6693
    %v7133 = vsel %vm4933, %v4612, %v6693
    %v7134 = vsel %vm4933, %v4613, %v6695
    %v7135 = vsel %vm4933, %v4614, %v6695
    %v7136 = vsel %vm4933, %v4615, %v6695
    %v7137 = vsel %vm4933, %v4616, %v6695
    %v7138 = vsel %vm4933, %v4617, %v6697
    %v7139 = vsel %vm4933, %v4618, %v6697
    %v7140 = vsel %vm4933, %v4619, %v6697
    %v7141 = vsel %vm4933, %v4620, %v6697
    %v7142 = vsel %vm4933, %v4621, %v6699
    %v7143 = vsel %vm4933, %v4622, %v6699
    %v7144 = vsel %vm4933, %v4623, %v6699
    %v7145 = vsel %vm4933, %v4624, %v6699
    %v7146 = vsel %vm4933, %v4625, %v6701
    %v7147 = vsel %vm4933, %v4626, %v6701
    %v7148 = vsel %vm4933, %v4627, %v6701
    %v7149 = vsel %vm4933, %v4628, %v6701
    %v7150 = vsel %vm4933, %v4629, %v6703
    %v7151 = vsel %vm4933, %v4630, %v6703
    %v7152 = vsel %vm4933, %v4631, %v6703
    %v7153 = vsel %vm4933, %v4632, %v6703
    %v7154 = vsel %vm4933, %v4633, %v6705
    %v7155 = vsel %vm4933, %v4634, %v6705
    %v7156 = vsel %vm4933, %v4635, %v6705
    %v7157 = vsel %vm4933, %v4636, %v6705
    %v7158 = vsel %vm4933, %v4637, %v6707
    %v7159 = vsel %vm4933, %v4638, %v6707
    %v7160 = vsel %vm4933, %v4639, %v6707
    %v7161 = vsel %vm4933, %v4640, %v6707
    %v7162 = vsel %vm4933, %v4641, %v6709
    %v7163 = vsel %vm4933, %v4642, %v6709
    %v7164 = vsel %vm4933, %v4643, %v6709
    %v7165 = vsel %vm4933, %v4644, %v6709
    %v7166 = vsel %vm4933, %v4645, %v6711
    %v7167 = vsel %vm4933, %v4646, %v6711
    %v7168 = vsel %vm4933, %v4647, %v6711
    %v7169 = vsel %vm4933, %v4648, %v6711
    %v7170 = vsel %vm4933, %v4649, %v6713
    %v7171 = vsel %vm4933, %v4650, %v6713
    %v7172 = vsel %vm4933, %v4651, %v6713
    %v7173 = vsel %vm4933, %v4652, %v6713
    %v7174 = vsel %vm4933, %v4653, %v6715
    %v7175 = vsel %vm4933, %v4654, %v6715
    %v7176 = vsel %vm4933, %v4655, %v6715
    %v7177 = vsel %vm4933, %v4656, %v6715
    %v7178 = vsel %vm4933, %v4657, %v6717
    %v7179 = vsel %vm4933, %v4658, %v6717
    %v7180 = vsel %vm4933, %v4659, %v6717
    %v7181 = vsel %vm4933, %v4660, %v6717
    %v7182 = vsel %vm4933, %v4661, %v6719
    %v7183 = vsel %vm4933, %v4662, %v6719
    %v7184 = vsel %vm4933, %v4663, %v6719
    %v7185 = vsel %vm4933, %v4664, %v6719
    %v7186 = vsel %vm4933, %v4665, %v6721
    %v7187 = vsel %vm4933, %v4666, %v6721
    %v7188 = vsel %vm4933, %v4667, %v6721
    %v7189 = vsel %vm4933, %v4668, %v6721
    %v7190 = vsel %vm4933, %v4669, %v6723
    %v7191 = vsel %vm4933, %v4670, %v6723
    %v7192 = vsel %vm4933, %v4671, %v6723
    %v7193 = vsel %vm4933, %v4672, %v6723
    %v7194 = vsel %vm4933, %v4673, %v6725
    %v7195 = vsel %vm4933, %v4674, %v6725
    %v7196 = vsel %vm4933, %v4675, %v6725
    %v7197 = vsel %vm4933, %v4676, %v6725
    %v7198 = vsel %vm4933, %v4677, %v6727
    %v7199 = vsel %vm4933, %v4678, %v6727
    %v7200 = vsel %vm4933, %v4679, %v6727
    %v7201 = vsel %vm4933, %v4680, %v6727
    %v7202 = vsel %vm4933, %v4681, %v6729
    %v7203 = vsel %vm4933, %v4682, %v6729
    %v7204 = vsel %vm4933, %v4683, %v6729
    %v7205 = vsel %vm4933, %v4684, %v6729
    %v7206 = vsel %vm4933, %v4685, %v6731
    %v7207 = vsel %vm4933, %v4686, %v6731
    %v7208 = vsel %vm4933, %v4687, %v6731
    %v7209 = vsel %vm4933, %v4688, %v6731
    %v7210 = vsel %vm4933, %v4689, %v6733
    %v7211 = vsel %vm4933, %v4690, %v6733
    %v7212 = vsel %vm4933, %v4691, %v6733
    %v7213 = vsel %vm4933, %v4692, %v6733
    %v7214 = vsel %vm4933, %v4693, %v6735
    %v7215 = vsel %vm4933, %v4694, %v6735
    %v7216 = vsel %vm4933, %v4695, %v6735
    %v7217 = vsel %vm4933, %v4696, %v6735
    %v7218 = vsel %vm4933, %v4697, %v6737
    %v7219 = vsel %vm4933, %v4698, %v6737
    %v7220 = vsel %vm4933, %v4699, %v6737
    %v7221 = vsel %vm4933, %v4700, %v6737
    %v7222 = vsel %vm4933, %v4701, %v6739
    %v7223 = vsel %vm4933, %v4702, %v6739
    %v7224 = vsel %vm4933, %v4703, %v6739
    %v7225 = vsel %vm4933, %v4704, %v6739
    %v7226 = vsel %vm4933, %v4705, %v6741
    %v7227 = vsel %vm4933, %v4706, %v6741
    %v7228 = vsel %vm4933, %v4707, %v6741
    %v7229 = vsel %vm4933, %v4708, %v6741
    %v7230 = vsel %vm4933, %v4709, %v6743
    %v7231 = vsel %vm4933, %v4710, %v6743
    %v7232 = vsel %vm4933, %v4711, %v6743
    %v7233 = vsel %vm4933, %v4712, %v6743
    %v7234 = vsel %vm4933, %v4713, %v6745
    %v7235 = vsel %vm4933, %v4714, %v6745
    %v7236 = vsel %vm4933, %v4715, %v6745
    %v7237 = vsel %vm4933, %v4716, %v6745
    %v7238 = vsel %vm4933, %v4717, %v6747
    %v7239 = vsel %vm4933, %v4718, %v6747
    %v7240 = vsel %vm4933, %v4719, %v6747
    %v7241 = vsel %vm4933, %v4720, %v6747
    %v7242 = vsel %vm4933, %v4721, %v6749
    %v7243 = vsel %vm4933, %v4722, %v6749
    %v7244 = vsel %vm4933, %v4723, %v6749
    %v7245 = vsel %vm4933, %v4724, %v6749
    %v7246 = vsel %vm4933, %v4725, %v6751
    %v7247 = vsel %vm4933, %v4726, %v6751
    %v7248 = vsel %vm4933, %v4727, %v6751
    %v7249 = vsel %vm4933, %v4728, %v6751
    %v7250 = vsel %vm4933, %v4729, %v6753
    %v7251 = vsel %vm4933, %v4730, %v6753
    %v7252 = vsel %vm4933, %v4731, %v6753
    %v7253 = vsel %vm4933, %v4732, %v6753
    %v7254 = vsel %vm4933, %v4733, %v6755
    %v7255 = vsel %vm4933, %v4734, %v6755
    %v7256 = vsel %vm4933, %v4735, %v6755
    %v7257 = vsel %vm4933, %v4736, %v6755
    %v7258 = vsel %vm4933, %v4737, %v6757
    %v7259 = vsel %vm4933, %v4738, %v6757
    %v7260 = vsel %vm4933, %v4739, %v6757
    %v7261 = vsel %vm4933, %v4740, %v6757
    %v7262 = vsel %vm4933, %v4741, %v6759
    %v7263 = vsel %vm4933, %v4742, %v6759
    %v7264 = vsel %vm4933, %v4743, %v6759
    %v7265 = vsel %vm4933, %v4744, %v6759
    %v7266 = vsel %vm4933, %v4745, %v6761
    %v7267 = vsel %vm4933, %v4746, %v6761
    %v7268 = vsel %vm4933, %v4747, %v6761
    %v7269 = vsel %vm4933, %v4748, %v6761
    %v7270 = vsel %vm4933, %v4749, %v6763
    %v7271 = vsel %vm4933, %v4750, %v6763
    %v7272 = vsel %vm4933, %v4751, %v6763
    %v7273 = vsel %vm4933, %v4752, %v6763
    %v7274 = vsel %vm4933, %v4753, %v6765
    %v7275 = vsel %vm4933, %v4754, %v6765
    %v7276 = vsel %vm4933, %v4755, %v6765
    %v7277 = vsel %vm4933, %v4756, %v6765
    %v7278 = vsel %vm4933, %v4757, %v6767
    %v7279 = vsel %vm4933, %v4758, %v6767
    %v7280 = vsel %vm4933, %v4759, %v6767
    %v7281 = vsel %vm4933, %v4760, %v6767
    %v7282 = vsel %vm4933, %v4761, %v6769
    %v7283 = vsel %vm4933, %v4762, %v6769
    %v7284 = vsel %vm4933, %v4763, %v6769
    %v7285 = vsel %vm4933, %v4764, %v6769
    %v7286 = vsel %vm4933, %v4765, %v6771
    %v7287 = vsel %vm4933, %v4766, %v6771
    %v7288 = vsel %vm4933, %v4767, %v6771
    %v7289 = vsel %vm4933, %v4768, %v6771
    %v7290 = vsel %vm4933, %v4769, %v6773
    %v7291 = vsel %vm4933, %v4770, %v6773
    %v7292 = vsel %vm4933, %v4771, %v6773
    %v7293 = vsel %vm4933, %v4772, %v6773
    %v7294 = vsel %vm4933, %v4773, %v6775
    %v7295 = vsel %vm4933, %v4774, %v6775
    %v7296 = vsel %vm4933, %v4775, %v6775
    %v7297 = vsel %vm4933, %v4776, %v6775
    %v7298 = vsel %vm4933, %v4777, %v6777
    %v7299 = vsel %vm4933, %v4778, %v6777
    %v7300 = vsel %vm4933, %v4779, %v6777
    %v7301 = vsel %vm4933, %v4780, %v6777
    %v7302 = vsel %vm4933, %v4781, %v6779
    %v7303 = vsel %vm4933, %v4782, %v6779
    %v7304 = vsel %vm4933, %v4783, %v6779
    %v7305 = vsel %vm4933, %v4784, %v6779
    %v7306 = vsel %vm4933, %v4785, %v6781
    %v7307 = vsel %vm4933, %v4786, %v6781
    %v7308 = vsel %vm4933, %v4787, %v6781
    %v7309 = vsel %vm4933, %v4788, %v6781
    %v7310 = vsel %vm4933, %v4789, %v6783
    %v7311 = vsel %vm4933, %v4790, %v6783
    %v7312 = vsel %vm4933, %v4791, %v6783
    %v7313 = vsel %vm4933, %v4792, %v6783
    %v7314 = vsel %vm4933, %v4793, %v6785
    %v7315 = vsel %vm4933, %v4794, %v6785
    %v7316 = vsel %vm4933, %v4795, %v6785
    %v7317 = vsel %vm4933, %v4796, %v6785
    %v7318 = vsel %vm4933, %v4797, %v6787
    %v7319 = vsel %vm4933, %v4798, %v6787
    %v7320 = vsel %vm4933, %v4799, %v6787
    %v7321 = vsel %vm4933, %v4800, %v6787
    %v7322 = vsel %vm4933, %v4801, %v6789
    %v7323 = vsel %vm4933, %v4802, %v6789
    %v7324 = vsel %vm4933, %v4803, %v6789
    %v7325 = vsel %vm4933, %v4804, %v6789
    %v7326 = vsel %vm4933, %v4805, %v6791
    %v7327 = vsel %vm4933, %v4806, %v6791
    %v7328 = vsel %vm4933, %v4807, %v6791
    %v7329 = vsel %vm4933, %v4808, %v6791
    %v7330 = vsel %vm4933, %v4809, %v6793
    %v7331 = vsel %vm4933, %v4810, %v6793
    %v7332 = vsel %vm4933, %v4811, %v6793
    %v7333 = vsel %vm4933, %v4812, %v6793
    %v7334 = vsel %vm4933, %v4813, %v6795
    %v7335 = vsel %vm4933, %v4814, %v6795
    %v7336 = vsel %vm4933, %v4815, %v6795
    %v7337 = vsel %vm4933, %v4816, %v6795
    %v7338 = vsel %vm4933, %v4817, %v6797
    %v7339 = vsel %vm4933, %v4818, %v6797
    %v7340 = vsel %vm4933, %v4819, %v6797
    %v7341 = vsel %vm4933, %v4820, %v6797
    %v7342 = vsel %vm4933, %v4821, %v6799
    %v7343 = vsel %vm4933, %v4822, %v6799
    %v7344 = vsel %vm4933, %v4823, %v6799
    %v7345 = vsel %vm4933, %v4824, %v6799
    %v7346 = vsel %vm4933, %v4825, %v6801
    %v7347 = vsel %vm4933, %v4826, %v6801
    %v7348 = vsel %vm4933, %v4827, %v6801
    %v7349 = vsel %vm4933, %v4828, %v6801
    %v7350 = vsel %vm4933, %v4829, %v6803
    %v7351 = vsel %vm4933, %v4830, %v6803
    %v7352 = vsel %vm4933, %v4831, %v6803
    %v7353 = vsel %vm4933, %v4832, %v6803
    %v7354 = vsel %vm4933, %v4833, %v6805
    %v7355 = vsel %vm4933, %v4834, %v6805
    %v7356 = vsel %vm4933, %v4835, %v6805
    %v7357 = vsel %vm4933, %v4836, %v6805
    %v7358 = vsel %vm4933, %v4837, %v6807
    %v7359 = vsel %vm4933, %v4838, %v6807
    %v7360 = vsel %vm4933, %v4839, %v6807
    %v7361 = vsel %vm4933, %v4840, %v6807
    %v7362 = vsel %vm4933, %v4841, %v6809
    %v7363 = vsel %vm4933, %v4842, %v6809
    %v7364 = vsel %vm4933, %v4843, %v6809
    %v7365 = vsel %vm4933, %v4844, %v6809
    %v7366 = vsel %vm4933, %v4845, %v6811
    %v7367 = vsel %vm4933, %v4846, %v6811
    %v7368 = vsel %vm4933, %v4847, %v6811
    %v7369 = vsel %vm4933, %v4848, %v6811
    %v7370 = vsel %vm4933, %v4849, %v6813
    %v7371 = vsel %vm4933, %v4850, %v6813
    %v7372 = vsel %vm4933, %v4851, %v6813
    %v7373 = vsel %vm4933, %v4852, %v6813
    %v7374 = vsel %vm4933, %v4853, %v6815
    %v7375 = vsel %vm4933, %v4854, %v6815
    %v7376 = vsel %vm4933, %v4855, %v6815
    %v7377 = vsel %vm4933, %v4856, %v6815
    %v7378 = vsel %vm4933, %v4857, %v6817
    %v7379 = vsel %vm4933, %v4858, %v6817
    %v7380 = vsel %vm4933, %v4859, %v6817
    %v7381 = vsel %vm4933, %v4860, %v6817
    %v7382 = vsel %vm4933, %v4861, %v6819
    %v7383 = vsel %vm4933, %v4862, %v6819
    %v7384 = vsel %vm4933, %v4863, %v6819
    %v7385 = vsel %vm4933, %v4864, %v6819
    %v7386 = vsel %vm4933, %v4865, %v6821
    %v7387 = vsel %vm4933, %v4866, %v6821
    %v7388 = vsel %vm4933, %v4867, %v6821
    %v7389 = vsel %vm4933, %v4868, %v6821
    %v7390 = vsel %vm4933, %v4869, %v6823
    %v7391 = vsel %vm4933, %v4870, %v6823
    %v7392 = vsel %vm4933, %v4871, %v6823
    %v7393 = vsel %vm4933, %v4872, %v6823
    %v7394 = vsel %vm4933, %v4873, %v6825
    %v7395 = vsel %vm4933, %v4874, %v6825
    %v7396 = vsel %vm4933, %v4875, %v6825
    %v7397 = vsel %vm4933, %v4876, %v6825
    %v7398 = vsel %vm4933, %v4877, %v6827
    %v7399 = vsel %vm4933, %v4878, %v6827
    %v7400 = vsel %vm4933, %v4879, %v6827
    %v7401 = vsel %vm4933, %v4880, %v6827
    %v7402 = vsel %vm4933, %v4881, %v6829
    %v7403 = vsel %vm4933, %v4882, %v6829
    %v7404 = vsel %vm4933, %v4883, %v6829
    %v7405 = vsel %vm4933, %v4884, %v6829
    %v7406 = vsel %vm4933, %v4885, %v6831
    %v7407 = vsel %vm4933, %v4886, %v6831
    %v7408 = vsel %vm4933, %v4887, %v6831
    %v7409 = vsel %vm4933, %v4888, %v6831
    %v7410 = vsel %vm4933, %v4889, %v6833
    %v7411 = vsel %vm4933, %v4890, %v6833
    %v7412 = vsel %vm4933, %v4891, %v6833
    %v7413 = vsel %vm4933, %v4892, %v6833
    %v7414 = vsel %vm4933, %v4893, %v6835
    %v7415 = vsel %vm4933, %v4894, %v6835
    %v7416 = vsel %vm4933, %v4895, %v6835
    %v7417 = vsel %vm4933, %v4896, %v6835
    %v7418 = vsel %vm4933, %v4897, %v6837
    %v7419 = vsel %vm4933, %v4898, %v6837
    %v7420 = vsel %vm4933, %v4899, %v6837
    %v7421 = vsel %vm4933, %v4900, %v6837
    %v7422 = vsel %vm4933, %v4901, %v6839
    %v7423 = vsel %vm4933, %v4902, %v6839
    %v7424 = vsel %vm4933, %v4903, %v6839
    %v7425 = vsel %vm4933, %v4904, %v6839
    %v7426 = vsel %vm4933, %v4905, %v6841
    %v7427 = vsel %vm4933, %v4906, %v6841
    %v7428 = vsel %vm4933, %v4907, %v6841
    %v7429 = vsel %vm4933, %v4908, %v6841
    %v7430 = vsel %vm4933, %v4909, %v6843
    %v7431 = vsel %vm4933, %v4910, %v6843
    %v7432 = vsel %vm4933, %v4911, %v6843
    %v7433 = vsel %vm4933, %v4912, %v6843
    %v7434 = vsel %vm4933, %v4913, %v6845
    %v7435 = vsel %vm4933, %v4914, %v6845
    %v7436 = vsel %vm4933, %v4915, %v6845
    %v7437 = vsel %vm4933, %v4916, %v6845
    %v7438 = vsel %vm4933, %v4917, %v6847
    %v7439 = vsel %vm4933, %v4918, %v6847
    %v7440 = vsel %vm4933, %v4919, %v6847
    %v7441 = vsel %vm4933, %v4920, %v6847
    %v7442 = vsel %vm4933, %v4921, %v6849
    %v7443 = vsel %vm4933, %v4922, %v6849
    %v7444 = vsel %vm4933, %v4923, %v6849
    %v7445 = vsel %vm4933, %v4924, %v6849
    %v7446 = vsel %vm4933, %v4925, %v6851
    %v7447 = vsel %vm4933, %v4926, %v6851
    %v7448 = vsel %vm4933, %v4927, %v6851
    %v7449 = vsel %vm4933, %v4928, %v6851
    %v7450 = vsel %vm4933, %v4929, %v6853
    %v7451 = vsel %vm4933, %v4930, %v6853
    %v7452 = vsel %vm4933, %v4931, %v6853
    %v7453 = vsel %vm4933, %v4932, %v6853
    %vm7454 = vcmask 523264
    %7455 = vst.msk [vmem:[#allocation8] sm:$0xff] %vm7454, %v6974
    %7456 = vst.msk [vmem:[#allocation8 + $0x8] sm:$0xff] %vm7454, %v6975
    %7457 = vst.msk [vmem:[#allocation8 + $0x10] sm:$0xff] %vm7454, %v6976
    %7458 = vst.msk [vmem:[#allocation8 + $0x18] sm:$0xff] %vm7454, %v6977
    %7459 = vst.msk [vmem:[#allocation8 + $0x20] sm:$0xff] %vm7454, %v6978
    %7460 = vst.msk [vmem:[#allocation8 + $0x28] sm:$0xff] %vm7454, %v6979
    %7461 = vst.msk [vmem:[#allocation8 + $0x30] sm:$0xff] %vm7454, %v6980
    %7462 = vst.msk [vmem:[#allocation8 + $0x38] sm:$0xff] %vm7454, %v6981
    %7463 = vst.msk [vmem:[#allocation8 + $0x40] sm:$0xff] %vm7454, %v6982
    %7464 = vst.msk [vmem:[#allocation8 + $0x48] sm:$0xff] %vm7454, %v6983
    %7465 = vst.msk [vmem:[#allocation8 + $0x50] sm:$0xff] %vm7454, %v6984
    %7466 = vst.msk [vmem:[#allocation8 + $0x58] sm:$0xff] %vm7454, %v6985
    %7467 = vst.msk [vmem:[#allocation8 + $0x60] sm:$0xff] %vm7454, %v6986
    %7468 = vst.msk [vmem:[#allocation8 + $0x68] sm:$0xff] %vm7454, %v6987
    %7469 = vst.msk [vmem:[#allocation8 + $0x70] sm:$0xff] %vm7454, %v6988
    %7470 = vst.msk [vmem:[#allocation8 + $0x78] sm:$0xff] %vm7454, %v6989
    %7471 = vst.msk [vmem:[#allocation8 + $0x80] sm:$0xff] %vm7454, %v6990
    %7472 = vst.msk [vmem:[#allocation8 + $0x88] sm:$0xff] %vm7454, %v6991
    %7473 = vst.msk [vmem:[#allocation8 + $0x90] sm:$0xff] %vm7454, %v6992
    %7474 = vst.msk [vmem:[#allocation8 + $0x98] sm:$0xff] %vm7454, %v6993
    %7475 = vst.msk [vmem:[#allocation8 + $0xa0] sm:$0xff] %vm7454, %v6994
    %7476 = vst.msk [vmem:[#allocation8 + $0xa8] sm:$0xff] %vm7454, %v6995
    %7477 = vst.msk [vmem:[#allocation8 + $0xb0] sm:$0xff] %vm7454, %v6996
    %7478 = vst.msk [vmem:[#allocation8 + $0xb8] sm:$0xff] %vm7454, %v6997
    %7479 = vst.msk [vmem:[#allocation8 + $0xc0] sm:$0xff] %vm7454, %v6998
    %7480 = vst.msk [vmem:[#allocation8 + $0xc8] sm:$0xff] %vm7454, %v6999
    %7481 = vst.msk [vmem:[#allocation8 + $0xd0] sm:$0xff] %vm7454, %v7000
    %7482 = vst.msk [vmem:[#allocation8 + $0xd8] sm:$0xff] %vm7454, %v7001
    %7483 = vst.msk [vmem:[#allocation8 + $0xe0] sm:$0xff] %vm7454, %v7002
    %7484 = vst.msk [vmem:[#allocation8 + $0xe8] sm:$0xff] %vm7454, %v7003
    %7485 = vst.msk [vmem:[#allocation8 + $0xf0] sm:$0xff] %vm7454, %v7004
    %7486 = vst.msk [vmem:[#allocation8 + $0xf8] sm:$0xff] %vm7454, %v7005
    %7487 = vst.msk [vmem:[#allocation8 + $0x100] sm:$0xff] %vm7454, %v7006
    %7488 = vst.msk [vmem:[#allocation8 + $0x108] sm:$0xff] %vm7454, %v7007
    %7489 = vst.msk [vmem:[#allocation8 + $0x110] sm:$0xff] %vm7454, %v7008
    %7490 = vst.msk [vmem:[#allocation8 + $0x118] sm:$0xff] %vm7454, %v7009
    %7491 = vst.msk [vmem:[#allocation8 + $0x120] sm:$0xff] %vm7454, %v7010
    %7492 = vst.msk [vmem:[#allocation8 + $0x128] sm:$0xff] %vm7454, %v7011
    %7493 = vst.msk [vmem:[#allocation8 + $0x130] sm:$0xff] %vm7454, %v7012
    %7494 = vst.msk [vmem:[#allocation8 + $0x138] sm:$0xff] %vm7454, %v7013
    %7495 = vst.msk [vmem:[#allocation8 + $0x140] sm:$0xff] %vm7454, %v7014
    %7496 = vst.msk [vmem:[#allocation8 + $0x148] sm:$0xff] %vm7454, %v7015
    %7497 = vst.msk [vmem:[#allocation8 + $0x150] sm:$0xff] %vm7454, %v7016
    %7498 = vst.msk [vmem:[#allocation8 + $0x158] sm:$0xff] %vm7454, %v7017
    %7499 = vst.msk [vmem:[#allocation8 + $0x160] sm:$0xff] %vm7454, %v7018
    %7500 = vst.msk [vmem:[#allocation8 + $0x168] sm:$0xff] %vm7454, %v7019
    %7501 = vst.msk [vmem:[#allocation8 + $0x170] sm:$0xff] %vm7454, %v7020
    %7502 = vst.msk [vmem:[#allocation8 + $0x178] sm:$0xff] %vm7454, %v7021
    %7503 = vst.msk [vmem:[#allocation8 + $0x180] sm:$0xff] %vm7454, %v7022
    %7504 = vst.msk [vmem:[#allocation8 + $0x188] sm:$0xff] %vm7454, %v7023
    %7505 = vst.msk [vmem:[#allocation8 + $0x190] sm:$0xff] %vm7454, %v7024
    %7506 = vst.msk [vmem:[#allocation8 + $0x198] sm:$0xff] %vm7454, %v7025
    %7507 = vst.msk [vmem:[#allocation8 + $0x1a0] sm:$0xff] %vm7454, %v7026
    %7508 = vst.msk [vmem:[#allocation8 + $0x1a8] sm:$0xff] %vm7454, %v7027
    %7509 = vst.msk [vmem:[#allocation8 + $0x1b0] sm:$0xff] %vm7454, %v7028
    %7510 = vst.msk [vmem:[#allocation8 + $0x1b8] sm:$0xff] %vm7454, %v7029
    %7511 = vst.msk [vmem:[#allocation8 + $0x1c0] sm:$0xff] %vm7454, %v7030
    %7512 = vst.msk [vmem:[#allocation8 + $0x1c8] sm:$0xff] %vm7454, %v7031
    %7513 = vst.msk [vmem:[#allocation8 + $0x1d0] sm:$0xff] %vm7454, %v7032
    %7514 = vst.msk [vmem:[#allocation8 + $0x1d8] sm:$0xff] %vm7454, %v7033
    %7515 = vst.msk [vmem:[#allocation8 + $0x1e0] sm:$0xff] %vm7454, %v7034
    %7516 = vst.msk [vmem:[#allocation8 + $0x1e8] sm:$0xff] %vm7454, %v7035
    %7517 = vst.msk [vmem:[#allocation8 + $0x1f0] sm:$0xff] %vm7454, %v7036
    %7518 = vst.msk [vmem:[#allocation8 + $0x1f8] sm:$0xff] %vm7454, %v7037
    %7519 = vst.msk [vmem:[#allocation8 + $0x200] sm:$0xff] %vm7454, %v7038
    %7520 = vst.msk [vmem:[#allocation8 + $0x208] sm:$0xff] %vm7454, %v7039
    %7521 = vst.msk [vmem:[#allocation8 + $0x210] sm:$0xff] %vm7454, %v7040
    %7522 = vst.msk [vmem:[#allocation8 + $0x218] sm:$0xff] %vm7454, %v7041
    %7523 = vst.msk [vmem:[#allocation8 + $0x220] sm:$0xff] %vm7454, %v7042
    %7524 = vst.msk [vmem:[#allocation8 + $0x228] sm:$0xff] %vm7454, %v7043
    %7525 = vst.msk [vmem:[#allocation8 + $0x230] sm:$0xff] %vm7454, %v7044
    %7526 = vst.msk [vmem:[#allocation8 + $0x238] sm:$0xff] %vm7454, %v7045
    %7527 = vst.msk [vmem:[#allocation8 + $0x240] sm:$0xff] %vm7454, %v7046
    %7528 = vst.msk [vmem:[#allocation8 + $0x248] sm:$0xff] %vm7454, %v7047
    %7529 = vst.msk [vmem:[#allocation8 + $0x250] sm:$0xff] %vm7454, %v7048
    %7530 = vst.msk [vmem:[#allocation8 + $0x258] sm:$0xff] %vm7454, %v7049
    %7531 = vst.msk [vmem:[#allocation8 + $0x260] sm:$0xff] %vm7454, %v7050
    %7532 = vst.msk [vmem:[#allocation8 + $0x268] sm:$0xff] %vm7454, %v7051
    %7533 = vst.msk [vmem:[#allocation8 + $0x270] sm:$0xff] %vm7454, %v7052
    %7534 = vst.msk [vmem:[#allocation8 + $0x278] sm:$0xff] %vm7454, %v7053
    %7535 = vst.msk [vmem:[#allocation8 + $0x280] sm:$0xff] %vm7454, %v7054
    %7536 = vst.msk [vmem:[#allocation8 + $0x288] sm:$0xff] %vm7454, %v7055
    %7537 = vst.msk [vmem:[#allocation8 + $0x290] sm:$0xff] %vm7454, %v7056
    %7538 = vst.msk [vmem:[#allocation8 + $0x298] sm:$0xff] %vm7454, %v7057
    %7539 = vst.msk [vmem:[#allocation8 + $0x2a0] sm:$0xff] %vm7454, %v7058
    %7540 = vst.msk [vmem:[#allocation8 + $0x2a8] sm:$0xff] %vm7454, %v7059
    %7541 = vst.msk [vmem:[#allocation8 + $0x2b0] sm:$0xff] %vm7454, %v7060
    %7542 = vst.msk [vmem:[#allocation8 + $0x2b8] sm:$0xff] %vm7454, %v7061
    %7543 = vst.msk [vmem:[#allocation8 + $0x2c0] sm:$0xff] %vm7454, %v7062
    %7544 = vst.msk [vmem:[#allocation8 + $0x2c8] sm:$0xff] %vm7454, %v7063
    %7545 = vst.msk [vmem:[#allocation8 + $0x2d0] sm:$0xff] %vm7454, %v7064
    %7546 = vst.msk [vmem:[#allocation8 + $0x2d8] sm:$0xff] %vm7454, %v7065
    %7547 = vst.msk [vmem:[#allocation8 + $0x2e0] sm:$0xff] %vm7454, %v7066
    %7548 = vst.msk [vmem:[#allocation8 + $0x2e8] sm:$0xff] %vm7454, %v7067
    %7549 = vst.msk [vmem:[#allocation8 + $0x2f0] sm:$0xff] %vm7454, %v7068
    %7550 = vst.msk [vmem:[#allocation8 + $0x2f8] sm:$0xff] %vm7454, %v7069
    %7551 = vst.msk [vmem:[#allocation8 + $0x300] sm:$0xff] %vm7454, %v7070
    %7552 = vst.msk [vmem:[#allocation8 + $0x308] sm:$0xff] %vm7454, %v7071
    %7553 = vst.msk [vmem:[#allocation8 + $0x310] sm:$0xff] %vm7454, %v7072
    %7554 = vst.msk [vmem:[#allocation8 + $0x318] sm:$0xff] %vm7454, %v7073
    %7555 = vst.msk [vmem:[#allocation8 + $0x320] sm:$0xff] %vm7454, %v7074
    %7556 = vst.msk [vmem:[#allocation8 + $0x328] sm:$0xff] %vm7454, %v7075
    %7557 = vst.msk [vmem:[#allocation8 + $0x330] sm:$0xff] %vm7454, %v7076
    %7558 = vst.msk [vmem:[#allocation8 + $0x338] sm:$0xff] %vm7454, %v7077
    %7559 = vst.msk [vmem:[#allocation8 + $0x340] sm:$0xff] %vm7454, %v7078
    %7560 = vst.msk [vmem:[#allocation8 + $0x348] sm:$0xff] %vm7454, %v7079
    %7561 = vst.msk [vmem:[#allocation8 + $0x350] sm:$0xff] %vm7454, %v7080
    %7562 = vst.msk [vmem:[#allocation8 + $0x358] sm:$0xff] %vm7454, %v7081
    %7563 = vst.msk [vmem:[#allocation8 + $0x360] sm:$0xff] %vm7454, %v7082
    %7564 = vst.msk [vmem:[#allocation8 + $0x368] sm:$0xff] %vm7454, %v7083
    %7565 = vst.msk [vmem:[#allocation8 + $0x370] sm:$0xff] %vm7454, %v7084
    %7566 = vst.msk [vmem:[#allocation8 + $0x378] sm:$0xff] %vm7454, %v7085
    %7567 = vst.msk [vmem:[#allocation8 + $0x380] sm:$0xff] %vm7454, %v7086
    %7568 = vst.msk [vmem:[#allocation8 + $0x388] sm:$0xff] %vm7454, %v7087
    %7569 = vst.msk [vmem:[#allocation8 + $0x390] sm:$0xff] %vm7454, %v7088
    %7570 = vst.msk [vmem:[#allocation8 + $0x398] sm:$0xff] %vm7454, %v7089
    %7571 = vst.msk [vmem:[#allocation8 + $0x3a0] sm:$0xff] %vm7454, %v7090
    %7572 = vst.msk [vmem:[#allocation8 + $0x3a8] sm:$0xff] %vm7454, %v7091
    %7573 = vst.msk [vmem:[#allocation8 + $0x3b0] sm:$0xff] %vm7454, %v7092
    %7574 = vst.msk [vmem:[#allocation8 + $0x3b8] sm:$0xff] %vm7454, %v7093
    %7575 = vst.msk [vmem:[#allocation8 + $0x3c0] sm:$0xff] %vm7454, %v7094
    %7576 = vst.msk [vmem:[#allocation8 + $0x3c8] sm:$0xff] %vm7454, %v7095
    %7577 = vst.msk [vmem:[#allocation8 + $0x3d0] sm:$0xff] %vm7454, %v7096
    %7578 = vst.msk [vmem:[#allocation8 + $0x3d8] sm:$0xff] %vm7454, %v7097
    %7579 = vst.msk [vmem:[#allocation8 + $0x3e0] sm:$0xff] %vm7454, %v7098
    %7580 = vst.msk [vmem:[#allocation8 + $0x3e8] sm:$0xff] %vm7454, %v7099
    %7581 = vst.msk [vmem:[#allocation8 + $0x3f0] sm:$0xff] %vm7454, %v7100
    %7582 = vst.msk [vmem:[#allocation8 + $0x3f8] sm:$0xff] %vm7454, %v7101
    %7583 = vst.msk [vmem:[#allocation8 + $0x400] sm:$0xff] %vm7454, %v7102
    %7584 = vst.msk [vmem:[#allocation8 + $0x408] sm:$0xff] %vm7454, %v7103
    %7585 = vst.msk [vmem:[#allocation8 + $0x410] sm:$0xff] %vm7454, %v7104
    %7586 = vst.msk [vmem:[#allocation8 + $0x418] sm:$0xff] %vm7454, %v7105
    %7587 = vst.msk [vmem:[#allocation8 + $0x420] sm:$0xff] %vm7454, %v7106
    %7588 = vst.msk [vmem:[#allocation8 + $0x428] sm:$0xff] %vm7454, %v7107
    %7589 = vst.msk [vmem:[#allocation8 + $0x430] sm:$0xff] %vm7454, %v7108
    %7590 = vst.msk [vmem:[#allocation8 + $0x438] sm:$0xff] %vm7454, %v7109
    %7591 = vst.msk [vmem:[#allocation8 + $0x440] sm:$0xff] %vm7454, %v7110
    %7592 = vst.msk [vmem:[#allocation8 + $0x448] sm:$0xff] %vm7454, %v7111
    %7593 = vst.msk [vmem:[#allocation8 + $0x450] sm:$0xff] %vm7454, %v7112
    %7594 = vst.msk [vmem:[#allocation8 + $0x458] sm:$0xff] %vm7454, %v7113
    %7595 = vst.msk [vmem:[#allocation8 + $0x460] sm:$0xff] %vm7454, %v7114
    %7596 = vst.msk [vmem:[#allocation8 + $0x468] sm:$0xff] %vm7454, %v7115
    %7597 = vst.msk [vmem:[#allocation8 + $0x470] sm:$0xff] %vm7454, %v7116
    %7598 = vst.msk [vmem:[#allocation8 + $0x478] sm:$0xff] %vm7454, %v7117
    %7599 = vst.msk [vmem:[#allocation8 + $0x480] sm:$0xff] %vm7454, %v7118
    %7600 = vst.msk [vmem:[#allocation8 + $0x488] sm:$0xff] %vm7454, %v7119
    %7601 = vst.msk [vmem:[#allocation8 + $0x490] sm:$0xff] %vm7454, %v7120
    %7602 = vst.msk [vmem:[#allocation8 + $0x498] sm:$0xff] %vm7454, %v7121
    %7603 = vst.msk [vmem:[#allocation8 + $0x4a0] sm:$0xff] %vm7454, %v7122
    %7604 = vst.msk [vmem:[#allocation8 + $0x4a8] sm:$0xff] %vm7454, %v7123
    %7605 = vst.msk [vmem:[#allocation8 + $0x4b0] sm:$0xff] %vm7454, %v7124
    %7606 = vst.msk [vmem:[#allocation8 + $0x4b8] sm:$0xff] %vm7454, %v7125
    %7607 = vst.msk [vmem:[#allocation8 + $0x4c0] sm:$0xff] %vm7454, %v7126
    %7608 = vst.msk [vmem:[#allocation8 + $0x4c8] sm:$0xff] %vm7454, %v7127
    %7609 = vst.msk [vmem:[#allocation8 + $0x4d0] sm:$0xff] %vm7454, %v7128
    %7610 = vst.msk [vmem:[#allocation8 + $0x4d8] sm:$0xff] %vm7454, %v7129
    %7611 = vst.msk [vmem:[#allocation8 + $0x4e0] sm:$0xff] %vm7454, %v7130
    %7612 = vst.msk [vmem:[#allocation8 + $0x4e8] sm:$0xff] %vm7454, %v7131
    %7613 = vst.msk [vmem:[#allocation8 + $0x4f0] sm:$0xff] %vm7454, %v7132
    %7614 = vst.msk [vmem:[#allocation8 + $0x4f8] sm:$0xff] %vm7454, %v7133
    %7615 = vst.msk [vmem:[#allocation8 + $0x500] sm:$0xff] %vm7454, %v7134
    %7616 = vst.msk [vmem:[#allocation8 + $0x508] sm:$0xff] %vm7454, %v7135
    %7617 = vst.msk [vmem:[#allocation8 + $0x510] sm:$0xff] %vm7454, %v7136
    %7618 = vst.msk [vmem:[#allocation8 + $0x518] sm:$0xff] %vm7454, %v7137
    %7619 = vst.msk [vmem:[#allocation8 + $0x520] sm:$0xff] %vm7454, %v7138
    %7620 = vst.msk [vmem:[#allocation8 + $0x528] sm:$0xff] %vm7454, %v7139
    %7621 = vst.msk [vmem:[#allocation8 + $0x530] sm:$0xff] %vm7454, %v7140
    %7622 = vst.msk [vmem:[#allocation8 + $0x538] sm:$0xff] %vm7454, %v7141
    %7623 = vst.msk [vmem:[#allocation8 + $0x540] sm:$0xff] %vm7454, %v7142
    %7624 = vst.msk [vmem:[#allocation8 + $0x548] sm:$0xff] %vm7454, %v7143
    %7625 = vst.msk [vmem:[#allocation8 + $0x550] sm:$0xff] %vm7454, %v7144
    %7626 = vst.msk [vmem:[#allocation8 + $0x558] sm:$0xff] %vm7454, %v7145
    %7627 = vst.msk [vmem:[#allocation8 + $0x560] sm:$0xff] %vm7454, %v7146
    %7628 = vst.msk [vmem:[#allocation8 + $0x568] sm:$0xff] %vm7454, %v7147
    %7629 = vst.msk [vmem:[#allocation8 + $0x570] sm:$0xff] %vm7454, %v7148
    %7630 = vst.msk [vmem:[#allocation8 + $0x578] sm:$0xff] %vm7454, %v7149
    %7631 = vst.msk [vmem:[#allocation8 + $0x580] sm:$0xff] %vm7454, %v7150
    %7632 = vst.msk [vmem:[#allocation8 + $0x588] sm:$0xff] %vm7454, %v7151
    %7633 = vst.msk [vmem:[#allocation8 + $0x590] sm:$0xff] %vm7454, %v7152
    %7634 = vst.msk [vmem:[#allocation8 + $0x598] sm:$0xff] %vm7454, %v7153
    %7635 = vst.msk [vmem:[#allocation8 + $0x5a0] sm:$0xff] %vm7454, %v7154
    %7636 = vst.msk [vmem:[#allocation8 + $0x5a8] sm:$0xff] %vm7454, %v7155
    %7637 = vst.msk [vmem:[#allocation8 + $0x5b0] sm:$0xff] %vm7454, %v7156
    %7638 = vst.msk [vmem:[#allocation8 + $0x5b8] sm:$0xff] %vm7454, %v7157
    %7639 = vst.msk [vmem:[#allocation8 + $0x5c0] sm:$0xff] %vm7454, %v7158
    %7640 = vst.msk [vmem:[#allocation8 + $0x5c8] sm:$0xff] %vm7454, %v7159
    %7641 = vst.msk [vmem:[#allocation8 + $0x5d0] sm:$0xff] %vm7454, %v7160
    %7642 = vst.msk [vmem:[#allocation8 + $0x5d8] sm:$0xff] %vm7454, %v7161
    %7643 = vst.msk [vmem:[#allocation8 + $0x5e0] sm:$0xff] %vm7454, %v7162
    %7644 = vst.msk [vmem:[#allocation8 + $0x5e8] sm:$0xff] %vm7454, %v7163
    %7645 = vst.msk [vmem:[#allocation8 + $0x5f0] sm:$0xff] %vm7454, %v7164
    %7646 = vst.msk [vmem:[#allocation8 + $0x5f8] sm:$0xff] %vm7454, %v7165
    %7647 = vst.msk [vmem:[#allocation8 + $0x600] sm:$0xff] %vm7454, %v7166
    %7648 = vst.msk [vmem:[#allocation8 + $0x608] sm:$0xff] %vm7454, %v7167
    %7649 = vst.msk [vmem:[#allocation8 + $0x610] sm:$0xff] %vm7454, %v7168
    %7650 = vst.msk [vmem:[#allocation8 + $0x618] sm:$0xff] %vm7454, %v7169
    %7651 = vst.msk [vmem:[#allocation8 + $0x620] sm:$0xff] %vm7454, %v7170
    %7652 = vst.msk [vmem:[#allocation8 + $0x628] sm:$0xff] %vm7454, %v7171
    %7653 = vst.msk [vmem:[#allocation8 + $0x630] sm:$0xff] %vm7454, %v7172
    %7654 = vst.msk [vmem:[#allocation8 + $0x638] sm:$0xff] %vm7454, %v7173
    %7655 = vst.msk [vmem:[#allocation8 + $0x640] sm:$0xff] %vm7454, %v7174
    %7656 = vst.msk [vmem:[#allocation8 + $0x648] sm:$0xff] %vm7454, %v7175
    %7657 = vst.msk [vmem:[#allocation8 + $0x650] sm:$0xff] %vm7454, %v7176
    %7658 = vst.msk [vmem:[#allocation8 + $0x658] sm:$0xff] %vm7454, %v7177
    %7659 = vst.msk [vmem:[#allocation8 + $0x660] sm:$0xff] %vm7454, %v7178
    %7660 = vst.msk [vmem:[#allocation8 + $0x668] sm:$0xff] %vm7454, %v7179
    %7661 = vst.msk [vmem:[#allocation8 + $0x670] sm:$0xff] %vm7454, %v7180
    %7662 = vst.msk [vmem:[#allocation8 + $0x678] sm:$0xff] %vm7454, %v7181
    %7663 = vst.msk [vmem:[#allocation8 + $0x680] sm:$0xff] %vm7454, %v7182
    %7664 = vst.msk [vmem:[#allocation8 + $0x688] sm:$0xff] %vm7454, %v7183
    %7665 = vst.msk [vmem:[#allocation8 + $0x690] sm:$0xff] %vm7454, %v7184
    %7666 = vst.msk [vmem:[#allocation8 + $0x698] sm:$0xff] %vm7454, %v7185
    %7667 = vst.msk [vmem:[#allocation8 + $0x6a0] sm:$0xff] %vm7454, %v7186
    %7668 = vst.msk [vmem:[#allocation8 + $0x6a8] sm:$0xff] %vm7454, %v7187
    %7669 = vst.msk [vmem:[#allocation8 + $0x6b0] sm:$0xff] %vm7454, %v7188
    %7670 = vst.msk [vmem:[#allocation8 + $0x6b8] sm:$0xff] %vm7454, %v7189
    %7671 = vst.msk [vmem:[#allocation8 + $0x6c0] sm:$0xff] %vm7454, %v7190
    %7672 = vst.msk [vmem:[#allocation8 + $0x6c8] sm:$0xff] %vm7454, %v7191
    %7673 = vst.msk [vmem:[#allocation8 + $0x6d0] sm:$0xff] %vm7454, %v7192
    %7674 = vst.msk [vmem:[#allocation8 + $0x6d8] sm:$0xff] %vm7454, %v7193
    %7675 = vst.msk [vmem:[#allocation8 + $0x6e0] sm:$0xff] %vm7454, %v7194
    %7676 = vst.msk [vmem:[#allocation8 + $0x6e8] sm:$0xff] %vm7454, %v7195
    %7677 = vst.msk [vmem:[#allocation8 + $0x6f0] sm:$0xff] %vm7454, %v7196
    %7678 = vst.msk [vmem:[#allocation8 + $0x6f8] sm:$0xff] %vm7454, %v7197
    %7679 = vst.msk [vmem:[#allocation8 + $0x700] sm:$0xff] %vm7454, %v7198
    %7680 = vst.msk [vmem:[#allocation8 + $0x708] sm:$0xff] %vm7454, %v7199
    %7681 = vst.msk [vmem:[#allocation8 + $0x710] sm:$0xff] %vm7454, %v7200
    %7682 = vst.msk [vmem:[#allocation8 + $0x718] sm:$0xff] %vm7454, %v7201
    %7683 = vst.msk [vmem:[#allocation8 + $0x720] sm:$0xff] %vm7454, %v7202
    %7684 = vst.msk [vmem:[#allocation8 + $0x728] sm:$0xff] %vm7454, %v7203
    %7685 = vst.msk [vmem:[#allocation8 + $0x730] sm:$0xff] %vm7454, %v7204
    %7686 = vst.msk [vmem:[#allocation8 + $0x738] sm:$0xff] %vm7454, %v7205
    %7687 = vst.msk [vmem:[#allocation8 + $0x740] sm:$0xff] %vm7454, %v7206
    %7688 = vst.msk [vmem:[#allocation8 + $0x748] sm:$0xff] %vm7454, %v7207
    %7689 = vst.msk [vmem:[#allocation8 + $0x750] sm:$0xff] %vm7454, %v7208
    %7690 = vst.msk [vmem:[#allocation8 + $0x758] sm:$0xff] %vm7454, %v7209
    %7691 = vst.msk [vmem:[#allocation8 + $0x760] sm:$0xff] %vm7454, %v7210
    %7692 = vst.msk [vmem:[#allocation8 + $0x768] sm:$0xff] %vm7454, %v7211
    %7693 = vst.msk [vmem:[#allocation8 + $0x770] sm:$0xff] %vm7454, %v7212
    %7694 = vst.msk [vmem:[#allocation8 + $0x778] sm:$0xff] %vm7454, %v7213
    %7695 = vst.msk [vmem:[#allocation8 + $0x780] sm:$0xff] %vm7454, %v7214
    %7696 = vst.msk [vmem:[#allocation8 + $0x788] sm:$0xff] %vm7454, %v7215
    %7697 = vst.msk [vmem:[#allocation8 + $0x790] sm:$0xff] %vm7454, %v7216
    %7698 = vst.msk [vmem:[#allocation8 + $0x798] sm:$0xff] %vm7454, %v7217
    %7699 = vst.msk [vmem:[#allocation8 + $0x7a0] sm:$0xff] %vm7454, %v7218
    %7700 = vst.msk [vmem:[#allocation8 + $0x7a8] sm:$0xff] %vm7454, %v7219
    %7701 = vst.msk [vmem:[#allocation8 + $0x7b0] sm:$0xff] %vm7454, %v7220
    %7702 = vst.msk [vmem:[#allocation8 + $0x7b8] sm:$0xff] %vm7454, %v7221
    %7703 = vst.msk [vmem:[#allocation8 + $0x7c0] sm:$0xff] %vm7454, %v7222
    %7704 = vst.msk [vmem:[#allocation8 + $0x7c8] sm:$0xff] %vm7454, %v7223
    %7705 = vst.msk [vmem:[#allocation8 + $0x7d0] sm:$0xff] %vm7454, %v7224
    %7706 = vst.msk [vmem:[#allocation8 + $0x7d8] sm:$0xff] %vm7454, %v7225
    %7707 = vst.msk [vmem:[#allocation8 + $0x7e0] sm:$0xff] %vm7454, %v7226
    %7708 = vst.msk [vmem:[#allocation8 + $0x7e8] sm:$0xff] %vm7454, %v7227
    %7709 = vst.msk [vmem:[#allocation8 + $0x7f0] sm:$0xff] %vm7454, %v7228
    %7710 = vst.msk [vmem:[#allocation8 + $0x7f8] sm:$0xff] %vm7454, %v7229
    %7711 = vst.msk [vmem:[#allocation8 + $0x800] sm:$0xff] %vm7454, %v7230
    %7712 = vst.msk [vmem:[#allocation8 + $0x808] sm:$0xff] %vm7454, %v7231
    %7713 = vst.msk [vmem:[#allocation8 + $0x810] sm:$0xff] %vm7454, %v7232
    %7714 = vst.msk [vmem:[#allocation8 + $0x818] sm:$0xff] %vm7454, %v7233
    %7715 = vst.msk [vmem:[#allocation8 + $0x820] sm:$0xff] %vm7454, %v7234
    %7716 = vst.msk [vmem:[#allocation8 + $0x828] sm:$0xff] %vm7454, %v7235
    %7717 = vst.msk [vmem:[#allocation8 + $0x830] sm:$0xff] %vm7454, %v7236
    %7718 = vst.msk [vmem:[#allocation8 + $0x838] sm:$0xff] %vm7454, %v7237
    %7719 = vst.msk [vmem:[#allocation8 + $0x840] sm:$0xff] %vm7454, %v7238
    %7720 = vst.msk [vmem:[#allocation8 + $0x848] sm:$0xff] %vm7454, %v7239
    %7721 = vst.msk [vmem:[#allocation8 + $0x850] sm:$0xff] %vm7454, %v7240
    %7722 = vst.msk [vmem:[#allocation8 + $0x858] sm:$0xff] %vm7454, %v7241
    %7723 = vst.msk [vmem:[#allocation8 + $0x860] sm:$0xff] %vm7454, %v7242
    %7724 = vst.msk [vmem:[#allocation8 + $0x868] sm:$0xff] %vm7454, %v7243
    %7725 = vst.msk [vmem:[#allocation8 + $0x870] sm:$0xff] %vm7454, %v7244
    %7726 = vst.msk [vmem:[#allocation8 + $0x878] sm:$0xff] %vm7454, %v7245
    %7727 = vst.msk [vmem:[#allocation8 + $0x880] sm:$0xff] %vm7454, %v7246
    %7728 = vst.msk [vmem:[#allocation8 + $0x888] sm:$0xff] %vm7454, %v7247
    %7729 = vst.msk [vmem:[#allocation8 + $0x890] sm:$0xff] %vm7454, %v7248
    %7730 = vst.msk [vmem:[#allocation8 + $0x898] sm:$0xff] %vm7454, %v7249
    %7731 = vst.msk [vmem:[#allocation8 + $0x8a0] sm:$0xff] %vm7454, %v7250
    %7732 = vst.msk [vmem:[#allocation8 + $0x8a8] sm:$0xff] %vm7454, %v7251
    %7733 = vst.msk [vmem:[#allocation8 + $0x8b0] sm:$0xff] %vm7454, %v7252
    %7734 = vst.msk [vmem:[#allocation8 + $0x8b8] sm:$0xff] %vm7454, %v7253
    %7735 = vst.msk [vmem:[#allocation8 + $0x8c0] sm:$0xff] %vm7454, %v7254
    %7736 = vst.msk [vmem:[#allocation8 + $0x8c8] sm:$0xff] %vm7454, %v7255
    %7737 = vst.msk [vmem:[#allocation8 + $0x8d0] sm:$0xff] %vm7454, %v7256
    %7738 = vst.msk [vmem:[#allocation8 + $0x8d8] sm:$0xff] %vm7454, %v7257
    %7739 = vst.msk [vmem:[#allocation8 + $0x8e0] sm:$0xff] %vm7454, %v7258
    %7740 = vst.msk [vmem:[#allocation8 + $0x8e8] sm:$0xff] %vm7454, %v7259
    %7741 = vst.msk [vmem:[#allocation8 + $0x8f0] sm:$0xff] %vm7454, %v7260
    %7742 = vst.msk [vmem:[#allocation8 + $0x8f8] sm:$0xff] %vm7454, %v7261
    %7743 = vst.msk [vmem:[#allocation8 + $0x900] sm:$0xff] %vm7454, %v7262
    %7744 = vst.msk [vmem:[#allocation8 + $0x908] sm:$0xff] %vm7454, %v7263
    %7745 = vst.msk [vmem:[#allocation8 + $0x910] sm:$0xff] %vm7454, %v7264
    %7746 = vst.msk [vmem:[#allocation8 + $0x918] sm:$0xff] %vm7454, %v7265
    %7747 = vst.msk [vmem:[#allocation8 + $0x920] sm:$0xff] %vm7454, %v7266
    %7748 = vst.msk [vmem:[#allocation8 + $0x928] sm:$0xff] %vm7454, %v7267
    %7749 = vst.msk [vmem:[#allocation8 + $0x930] sm:$0xff] %vm7454, %v7268
    %7750 = vst.msk [vmem:[#allocation8 + $0x938] sm:$0xff] %vm7454, %v7269
    %7751 = vst.msk [vmem:[#allocation8 + $0x940] sm:$0xff] %vm7454, %v7270
    %7752 = vst.msk [vmem:[#allocation8 + $0x948] sm:$0xff] %vm7454, %v7271
    %7753 = vst.msk [vmem:[#allocation8 + $0x950] sm:$0xff] %vm7454, %v7272
    %7754 = vst.msk [vmem:[#allocation8 + $0x958] sm:$0xff] %vm7454, %v7273
    %7755 = vst.msk [vmem:[#allocation8 + $0x960] sm:$0xff] %vm7454, %v7274
    %7756 = vst.msk [vmem:[#allocation8 + $0x968] sm:$0xff] %vm7454, %v7275
    %7757 = vst.msk [vmem:[#allocation8 + $0x970] sm:$0xff] %vm7454, %v7276
    %7758 = vst.msk [vmem:[#allocation8 + $0x978] sm:$0xff] %vm7454, %v7277
    %7759 = vst.msk [vmem:[#allocation8 + $0x980] sm:$0xff] %vm7454, %v7278
    %7760 = vst.msk [vmem:[#allocation8 + $0x988] sm:$0xff] %vm7454, %v7279
    %7761 = vst.msk [vmem:[#allocation8 + $0x990] sm:$0xff] %vm7454, %v7280
    %7762 = vst.msk [vmem:[#allocation8 + $0x998] sm:$0xff] %vm7454, %v7281
    %7763 = vst.msk [vmem:[#allocation8 + $0x9a0] sm:$0xff] %vm7454, %v7282
    %7764 = vst.msk [vmem:[#allocation8 + $0x9a8] sm:$0xff] %vm7454, %v7283
    %7765 = vst.msk [vmem:[#allocation8 + $0x9b0] sm:$0xff] %vm7454, %v7284
    %7766 = vst.msk [vmem:[#allocation8 + $0x9b8] sm:$0xff] %vm7454, %v7285
    %7767 = vst.msk [vmem:[#allocation8 + $0x9c0] sm:$0xff] %vm7454, %v7286
    %7768 = vst.msk [vmem:[#allocation8 + $0x9c8] sm:$0xff] %vm7454, %v7287
    %7769 = vst.msk [vmem:[#allocation8 + $0x9d0] sm:$0xff] %vm7454, %v7288
    %7770 = vst.msk [vmem:[#allocation8 + $0x9d8] sm:$0xff] %vm7454, %v7289
    %7771 = vst.msk [vmem:[#allocation8 + $0x9e0] sm:$0xff] %vm7454, %v7290
    %7772 = vst.msk [vmem:[#allocation8 + $0x9e8] sm:$0xff] %vm7454, %v7291
    %7773 = vst.msk [vmem:[#allocation8 + $0x9f0] sm:$0xff] %vm7454, %v7292
    %7774 = vst.msk [vmem:[#allocation8 + $0x9f8] sm:$0xff] %vm7454, %v7293
    %7775 = vst.msk [vmem:[#allocation8 + $0xa00] sm:$0xff] %vm7454, %v7294
    %7776 = vst.msk [vmem:[#allocation8 + $0xa08] sm:$0xff] %vm7454, %v7295
    %7777 = vst.msk [vmem:[#allocation8 + $0xa10] sm:$0xff] %vm7454, %v7296
    %7778 = vst.msk [vmem:[#allocation8 + $0xa18] sm:$0xff] %vm7454, %v7297
    %7779 = vst.msk [vmem:[#allocation8 + $0xa20] sm:$0xff] %vm7454, %v7298
    %7780 = vst.msk [vmem:[#allocation8 + $0xa28] sm:$0xff] %vm7454, %v7299
    %7781 = vst.msk [vmem:[#allocation8 + $0xa30] sm:$0xff] %vm7454, %v7300
    %7782 = vst.msk [vmem:[#allocation8 + $0xa38] sm:$0xff] %vm7454, %v7301
    %7783 = vst.msk [vmem:[#allocation8 + $0xa40] sm:$0xff] %vm7454, %v7302
    %7784 = vst.msk [vmem:[#allocation8 + $0xa48] sm:$0xff] %vm7454, %v7303
    %7785 = vst.msk [vmem:[#allocation8 + $0xa50] sm:$0xff] %vm7454, %v7304
    %7786 = vst.msk [vmem:[#allocation8 + $0xa58] sm:$0xff] %vm7454, %v7305
    %7787 = vst.msk [vmem:[#allocation8 + $0xa60] sm:$0xff] %vm7454, %v7306
    %7788 = vst.msk [vmem:[#allocation8 + $0xa68] sm:$0xff] %vm7454, %v7307
    %7789 = vst.msk [vmem:[#allocation8 + $0xa70] sm:$0xff] %vm7454, %v7308
    %7790 = vst.msk [vmem:[#allocation8 + $0xa78] sm:$0xff] %vm7454, %v7309
    %7791 = vst.msk [vmem:[#allocation8 + $0xa80] sm:$0xff] %vm7454, %v7310
    %7792 = vst.msk [vmem:[#allocation8 + $0xa88] sm:$0xff] %vm7454, %v7311
    %7793 = vst.msk [vmem:[#allocation8 + $0xa90] sm:$0xff] %vm7454, %v7312
    %7794 = vst.msk [vmem:[#allocation8 + $0xa98] sm:$0xff] %vm7454, %v7313
    %7795 = vst.msk [vmem:[#allocation8 + $0xaa0] sm:$0xff] %vm7454, %v7314
    %7796 = vst.msk [vmem:[#allocation8 + $0xaa8] sm:$0xff] %vm7454, %v7315
    %7797 = vst.msk [vmem:[#allocation8 + $0xab0] sm:$0xff] %vm7454, %v7316
    %7798 = vst.msk [vmem:[#allocation8 + $0xab8] sm:$0xff] %vm7454, %v7317
    %7799 = vst.msk [vmem:[#allocation8 + $0xac0] sm:$0xff] %vm7454, %v7318
    %7800 = vst.msk [vmem:[#allocation8 + $0xac8] sm:$0xff] %vm7454, %v7319
    %7801 = vst.msk [vmem:[#allocation8 + $0xad0] sm:$0xff] %vm7454, %v7320
    %7802 = vst.msk [vmem:[#allocation8 + $0xad8] sm:$0xff] %vm7454, %v7321
    %7803 = vst.msk [vmem:[#allocation8 + $0xae0] sm:$0xff] %vm7454, %v7322
    %7804 = vst.msk [vmem:[#allocation8 + $0xae8] sm:$0xff] %vm7454, %v7323
    %7805 = vst.msk [vmem:[#allocation8 + $0xaf0] sm:$0xff] %vm7454, %v7324
    %7806 = vst.msk [vmem:[#allocation8 + $0xaf8] sm:$0xff] %vm7454, %v7325
    %7807 = vst.msk [vmem:[#allocation8 + $0xb00] sm:$0xff] %vm7454, %v7326
    %7808 = vst.msk [vmem:[#allocation8 + $0xb08] sm:$0xff] %vm7454, %v7327
    %7809 = vst.msk [vmem:[#allocation8 + $0xb10] sm:$0xff] %vm7454, %v7328
    %7810 = vst.msk [vmem:[#allocation8 + $0xb18] sm:$0xff] %vm7454, %v7329
    %7811 = vst.msk [vmem:[#allocation8 + $0xb20] sm:$0xff] %vm7454, %v7330
    %7812 = vst.msk [vmem:[#allocation8 + $0xb28] sm:$0xff] %vm7454, %v7331
    %7813 = vst.msk [vmem:[#allocation8 + $0xb30] sm:$0xff] %vm7454, %v7332
    %7814 = vst.msk [vmem:[#allocation8 + $0xb38] sm:$0xff] %vm7454, %v7333
    %7815 = vst.msk [vmem:[#allocation8 + $0xb40] sm:$0xff] %vm7454, %v7334
    %7816 = vst.msk [vmem:[#allocation8 + $0xb48] sm:$0xff] %vm7454, %v7335
    %7817 = vst.msk [vmem:[#allocation8 + $0xb50] sm:$0xff] %vm7454, %v7336
    %7818 = vst.msk [vmem:[#allocation8 + $0xb58] sm:$0xff] %vm7454, %v7337
    %7819 = vst.msk [vmem:[#allocation8 + $0xb60] sm:$0xff] %vm7454, %v7338
    %7820 = vst.msk [vmem:[#allocation8 + $0xb68] sm:$0xff] %vm7454, %v7339
    %7821 = vst.msk [vmem:[#allocation8 + $0xb70] sm:$0xff] %vm7454, %v7340
    %7822 = vst.msk [vmem:[#allocation8 + $0xb78] sm:$0xff] %vm7454, %v7341
    %7823 = vst.msk [vmem:[#allocation8 + $0xb80] sm:$0xff] %vm7454, %v7342
    %7824 = vst.msk [vmem:[#allocation8 + $0xb88] sm:$0xff] %vm7454, %v7343
    %7825 = vst.msk [vmem:[#allocation8 + $0xb90] sm:$0xff] %vm7454, %v7344
    %7826 = vst.msk [vmem:[#allocation8 + $0xb98] sm:$0xff] %vm7454, %v7345
    %7827 = vst.msk [vmem:[#allocation8 + $0xba0] sm:$0xff] %vm7454, %v7346
    %7828 = vst.msk [vmem:[#allocation8 + $0xba8] sm:$0xff] %vm7454, %v7347
    %7829 = vst.msk [vmem:[#allocation8 + $0xbb0] sm:$0xff] %vm7454, %v7348
    %7830 = vst.msk [vmem:[#allocation8 + $0xbb8] sm:$0xff] %vm7454, %v7349
    %7831 = vst.msk [vmem:[#allocation8 + $0xbc0] sm:$0xff] %vm7454, %v7350
    %7832 = vst.msk [vmem:[#allocation8 + $0xbc8] sm:$0xff] %vm7454, %v7351
    %7833 = vst.msk [vmem:[#allocation8 + $0xbd0] sm:$0xff] %vm7454, %v7352
    %7834 = vst.msk [vmem:[#allocation8 + $0xbd8] sm:$0xff] %vm7454, %v7353
    %7835 = vst.msk [vmem:[#allocation8 + $0xbe0] sm:$0xff] %vm7454, %v7354
    %7836 = vst.msk [vmem:[#allocation8 + $0xbe8] sm:$0xff] %vm7454, %v7355
    %7837 = vst.msk [vmem:[#allocation8 + $0xbf0] sm:$0xff] %vm7454, %v7356
    %7838 = vst.msk [vmem:[#allocation8 + $0xbf8] sm:$0xff] %vm7454, %v7357
    %7839 = vst.msk [vmem:[#allocation8 + $0xc00] sm:$0xff] %vm7454, %v7358
    %7840 = vst.msk [vmem:[#allocation8 + $0xc08] sm:$0xff] %vm7454, %v7359
    %7841 = vst.msk [vmem:[#allocation8 + $0xc10] sm:$0xff] %vm7454, %v7360
    %7842 = vst.msk [vmem:[#allocation8 + $0xc18] sm:$0xff] %vm7454, %v7361
    %7843 = vst.msk [vmem:[#allocation8 + $0xc20] sm:$0xff] %vm7454, %v7362
    %7844 = vst.msk [vmem:[#allocation8 + $0xc28] sm:$0xff] %vm7454, %v7363
    %7845 = vst.msk [vmem:[#allocation8 + $0xc30] sm:$0xff] %vm7454, %v7364
    %7846 = vst.msk [vmem:[#allocation8 + $0xc38] sm:$0xff] %vm7454, %v7365
    %7847 = vst.msk [vmem:[#allocation8 + $0xc40] sm:$0xff] %vm7454, %v7366
    %7848 = vst.msk [vmem:[#allocation8 + $0xc48] sm:$0xff] %vm7454, %v7367
    %7849 = vst.msk [vmem:[#allocation8 + $0xc50] sm:$0xff] %vm7454, %v7368
    %7850 = vst.msk [vmem:[#allocation8 + $0xc58] sm:$0xff] %vm7454, %v7369
    %7851 = vst.msk [vmem:[#allocation8 + $0xc60] sm:$0xff] %vm7454, %v7370
    %7852 = vst.msk [vmem:[#allocation8 + $0xc68] sm:$0xff] %vm7454, %v7371
    %7853 = vst.msk [vmem:[#allocation8 + $0xc70] sm:$0xff] %vm7454, %v7372
    %7854 = vst.msk [vmem:[#allocation8 + $0xc78] sm:$0xff] %vm7454, %v7373
    %7855 = vst.msk [vmem:[#allocation8 + $0xc80] sm:$0xff] %vm7454, %v7374
    %7856 = vst.msk [vmem:[#allocation8 + $0xc88] sm:$0xff] %vm7454, %v7375
    %7857 = vst.msk [vmem:[#allocation8 + $0xc90] sm:$0xff] %vm7454, %v7376
    %7858 = vst.msk [vmem:[#allocation8 + $0xc98] sm:$0xff] %vm7454, %v7377
    %7859 = vst.msk [vmem:[#allocation8 + $0xca0] sm:$0xff] %vm7454, %v7378
    %7860 = vst.msk [vmem:[#allocation8 + $0xca8] sm:$0xff] %vm7454, %v7379
    %7861 = vst.msk [vmem:[#allocation8 + $0xcb0] sm:$0xff] %vm7454, %v7380
    %7862 = vst.msk [vmem:[#allocation8 + $0xcb8] sm:$0xff] %vm7454, %v7381
    %7863 = vst.msk [vmem:[#allocation8 + $0xcc0] sm:$0xff] %vm7454, %v7382
    %7864 = vst.msk [vmem:[#allocation8 + $0xcc8] sm:$0xff] %vm7454, %v7383
    %7865 = vst.msk [vmem:[#allocation8 + $0xcd0] sm:$0xff] %vm7454, %v7384
    %7866 = vst.msk [vmem:[#allocation8 + $0xcd8] sm:$0xff] %vm7454, %v7385
    %7867 = vst.msk [vmem:[#allocation8 + $0xce0] sm:$0xff] %vm7454, %v7386
    %7868 = vst.msk [vmem:[#allocation8 + $0xce8] sm:$0xff] %vm7454, %v7387
    %7869 = vst.msk [vmem:[#allocation8 + $0xcf0] sm:$0xff] %vm7454, %v7388
    %7870 = vst.msk [vmem:[#allocation8 + $0xcf8] sm:$0xff] %vm7454, %v7389
    %7871 = vst.msk [vmem:[#allocation8 + $0xd00] sm:$0xff] %vm7454, %v7390
    %7872 = vst.msk [vmem:[#allocation8 + $0xd08] sm:$0xff] %vm7454, %v7391
    %7873 = vst.msk [vmem:[#allocation8 + $0xd10] sm:$0xff] %vm7454, %v7392
    %7874 = vst.msk [vmem:[#allocation8 + $0xd18] sm:$0xff] %vm7454, %v7393
    %7875 = vst.msk [vmem:[#allocation8 + $0xd20] sm:$0xff] %vm7454, %v7394
    %7876 = vst.msk [vmem:[#allocation8 + $0xd28] sm:$0xff] %vm7454, %v7395
    %7877 = vst.msk [vmem:[#allocation8 + $0xd30] sm:$0xff] %vm7454, %v7396
    %7878 = vst.msk [vmem:[#allocation8 + $0xd38] sm:$0xff] %vm7454, %v7397
    %7879 = vst.msk [vmem:[#allocation8 + $0xd40] sm:$0xff] %vm7454, %v7398
    %7880 = vst.msk [vmem:[#allocation8 + $0xd48] sm:$0xff] %vm7454, %v7399
    %7881 = vst.msk [vmem:[#allocation8 + $0xd50] sm:$0xff] %vm7454, %v7400
    %7882 = vst.msk [vmem:[#allocation8 + $0xd58] sm:$0xff] %vm7454, %v7401
    %7883 = vst.msk [vmem:[#allocation8 + $0xd60] sm:$0xff] %vm7454, %v7402
    %7884 = vst.msk [vmem:[#allocation8 + $0xd68] sm:$0xff] %vm7454, %v7403
    %7885 = vst.msk [vmem:[#allocation8 + $0xd70] sm:$0xff] %vm7454, %v7404
    %7886 = vst.msk [vmem:[#allocation8 + $0xd78] sm:$0xff] %vm7454, %v7405
    %7887 = vst.msk [vmem:[#allocation8 + $0xd80] sm:$0xff] %vm7454, %v7406
    %7888 = vst.msk [vmem:[#allocation8 + $0xd88] sm:$0xff] %vm7454, %v7407
    %7889 = vst.msk [vmem:[#allocation8 + $0xd90] sm:$0xff] %vm7454, %v7408
    %7890 = vst.msk [vmem:[#allocation8 + $0xd98] sm:$0xff] %vm7454, %v7409
    %7891 = vst.msk [vmem:[#allocation8 + $0xda0] sm:$0xff] %vm7454, %v7410
    %7892 = vst.msk [vmem:[#allocation8 + $0xda8] sm:$0xff] %vm7454, %v7411
    %7893 = vst.msk [vmem:[#allocation8 + $0xdb0] sm:$0xff] %vm7454, %v7412
    %7894 = vst.msk [vmem:[#allocation8 + $0xdb8] sm:$0xff] %vm7454, %v7413
    %7895 = vst.msk [vmem:[#allocation8 + $0xdc0] sm:$0xff] %vm7454, %v7414
    %7896 = vst.msk [vmem:[#allocation8 + $0xdc8] sm:$0xff] %vm7454, %v7415
    %7897 = vst.msk [vmem:[#allocation8 + $0xdd0] sm:$0xff] %vm7454, %v7416
    %7898 = vst.msk [vmem:[#allocation8 + $0xdd8] sm:$0xff] %vm7454, %v7417
    %7899 = vst.msk [vmem:[#allocation8 + $0xde0] sm:$0xff] %vm7454, %v7418
    %7900 = vst.msk [vmem:[#allocation8 + $0xde8] sm:$0xff] %vm7454, %v7419
    %7901 = vst.msk [vmem:[#allocation8 + $0xdf0] sm:$0xff] %vm7454, %v7420
    %7902 = vst.msk [vmem:[#allocation8 + $0xdf8] sm:$0xff] %vm7454, %v7421
    %7903 = vst.msk [vmem:[#allocation8 + $0xe00] sm:$0xff] %vm7454, %v7422
    %7904 = vst.msk [vmem:[#allocation8 + $0xe08] sm:$0xff] %vm7454, %v7423
    %7905 = vst.msk [vmem:[#allocation8 + $0xe10] sm:$0xff] %vm7454, %v7424
    %7906 = vst.msk [vmem:[#allocation8 + $0xe18] sm:$0xff] %vm7454, %v7425
    %7907 = vst.msk [vmem:[#allocation8 + $0xe20] sm:$0xff] %vm7454, %v7426
    %7908 = vst.msk [vmem:[#allocation8 + $0xe28] sm:$0xff] %vm7454, %v7427
    %7909 = vst.msk [vmem:[#allocation8 + $0xe30] sm:$0xff] %vm7454, %v7428
    %7910 = vst.msk [vmem:[#allocation8 + $0xe38] sm:$0xff] %vm7454, %v7429
    %7911 = vst.msk [vmem:[#allocation8 + $0xe40] sm:$0xff] %vm7454, %v7430
    %7912 = vst.msk [vmem:[#allocation8 + $0xe48] sm:$0xff] %vm7454, %v7431
    %7913 = vst.msk [vmem:[#allocation8 + $0xe50] sm:$0xff] %vm7454, %v7432
    %7914 = vst.msk [vmem:[#allocation8 + $0xe58] sm:$0xff] %vm7454, %v7433
    %7915 = vst.msk [vmem:[#allocation8 + $0xe60] sm:$0xff] %vm7454, %v7434
    %7916 = vst.msk [vmem:[#allocation8 + $0xe68] sm:$0xff] %vm7454, %v7435
    %7917 = vst.msk [vmem:[#allocation8 + $0xe70] sm:$0xff] %vm7454, %v7436
    %7918 = vst.msk [vmem:[#allocation8 + $0xe78] sm:$0xff] %vm7454, %v7437
    %7919 = vst.msk [vmem:[#allocation8 + $0xe80] sm:$0xff] %vm7454, %v7438
    %7920 = vst.msk [vmem:[#allocation8 + $0xe88] sm:$0xff] %vm7454, %v7439
    %7921 = vst.msk [vmem:[#allocation8 + $0xe90] sm:$0xff] %vm7454, %v7440
    %7922 = vst.msk [vmem:[#allocation8 + $0xe98] sm:$0xff] %vm7454, %v7441
    %7923 = vst.msk [vmem:[#allocation8 + $0xea0] sm:$0xff] %vm7454, %v7442
    %7924 = vst.msk [vmem:[#allocation8 + $0xea8] sm:$0xff] %vm7454, %v7443
    %7925 = vst.msk [vmem:[#allocation8 + $0xeb0] sm:$0xff] %vm7454, %v7444
    %7926 = vst.msk [vmem:[#allocation8 + $0xeb8] sm:$0xff] %vm7454, %v7445
    %7927 = vst.msk [vmem:[#allocation8 + $0xec0] sm:$0xff] %vm7454, %v7446
    %7928 = vst.msk [vmem:[#allocation8 + $0xec8] sm:$0xff] %vm7454, %v7447
    %7929 = vst.msk [vmem:[#allocation8 + $0xed0] sm:$0xff] %vm7454, %v7448
    %7930 = vst.msk [vmem:[#allocation8 + $0xed8] sm:$0xff] %vm7454, %v7449
    %7931 = vst.msk [vmem:[#allocation8 + $0xee0] sm:$0xff] %vm7454, %v7450
    %7932 = vst.msk [vmem:[#allocation8 + $0xee8] sm:$0xff] %vm7454, %v7451
    %7933 = vst.msk [vmem:[#allocation8 + $0xef0] sm:$0xff] %vm7454, %v7452
    %7934 = vst.msk [vmem:[#allocation8 + $0xef8] sm:$0xff] %vm7454, %v7453
    // Predicated region
    $region26: #{tpu_custom_call.1} parent=1 // pred_check
      _
    $region27: #{tpu_custom_call.1} parent=1 // pred_check_branch
      %7936 = sbr.rel (0) target = $region29
    $region28: #{tpu_custom_call.1} parent=1 // pred_region
      %s7938 = ssub.s32 61440, 61440
      %7939 = vsyncadd [#allocation4], %s7938
      %s7940 = sshll.u32 [#allocation8], 4
      %s7941 = int_to_ptr.vmem [resolvable:$true] %s7940
      %7946 = dma.vmem_to_hbm [thread:$0]  %s7941, 61440, %s3, [#allocation4], 128, 128, 8
    $region29: #{tpu_custom_call.1} parent=1 // pred_fallthru
      _
    // Predicated region
    $region30: #{tpu_custom_call.1} parent=1 // pred_check
      _
    $region31: #{tpu_custom_call.1} parent=1 // pred_check_branch
      %7948 = sbr.rel (0) target = $region33
    $region32: #{tpu_custom_call.1} parent=1 // pred_region
      %7949 = dma.done [#allocation4], 61440
    $region33: #{tpu_custom_call.1} parent=1 // pred_fallthru
      _
    %7950 = vsyncpa [#allocation3], 1
    %7951 = vsyncpa [#allocation6], 1
    %7952 = vsyncpa [#allocation4], 1

</llo_original>
